<compile_context>
chip_gen: v7x
topology: tpu7x:2x2x1
jax: 0.10.0
libtpu: 0.0.40
codegen_flags: <defaults>
</compile_context>

<pallas_src>
import functools
import math

import jax
import jax.numpy as jnp
from jax.experimental import pallas as pl
from jax.experimental.pallas import tpu as pltpu

_NEG_INF = -1e30


def _round_up(x, m):
    return ((x + m - 1) // m) * m


# ----------------------------------------------------------------------------
# Generation-aware tuning (perf review: v5e/v6e want much bigger row tiles and a
# ~100 MiB scoped VMEM limit; v7x keeps moderate tiles under its 64 MiB VMEM).
# ----------------------------------------------------------------------------
def _vmem_capacity_bytes():
    try:
        info = pltpu.get_tpu_info()
        return int(getattr(info, "vmem_capacity_bytes", 64 * 1024 * 1024))
    except Exception:
        return 64 * 1024 * 1024          # conservative default (v7x-sized)


_VMEM_CAP = _vmem_capacity_bytes()
if _VMEM_CAP >= 100 * 1024 * 1024:       # v5e / v6e: 128 MiB physical VMEM
    _VMEM_LIMIT_BYTES = 100 * 1024 * 1024
    _MLP3_TILE_ROWS = 256                # 4x fewer grid steps, bigger DMAs
    _GLOBAL_TILE_PTS = 256
else:                                     # v7x: 64 MiB physical VMEM per TC
    _VMEM_LIMIT_BYTES = 48 * 1024 * 1024
    _MLP3_TILE_ROWS = 128
    _GLOBAL_TILE_PTS = 128


# ----------------------------------------------------------------------------
# Pallas kernels
# ----------------------------------------------------------------------------
def _mlp3_max_kernel(featx_ref, featr_ref, cnt_ref,
                     w1x_ref, w1r_ref, b1_ref, w2_ref, b2_ref, w3_ref, b3_ref,
                     out_ref, *, tm, k):
    """One row-tile of (center, neighbor) edges, pre-flattened to lane-dense 2D.
      featx: (TM*K, CX) bf16  -- x_j part, contraction kept MXU-aligned (8/128/256)
      featr: (TM*K, 8)  bf16  -- rel = pos_j - pos_i part (3 real channels, padded)
      cnt:   (TM, 1) int32    -- #valid neighbors per center (prefix of the K slots)
      out:   (TM, C3) f32     -- masked max over K of MLP(edge features)."""
    h = jnp.dot(featx_ref[...], w1x_ref[...], preferred_element_type=jnp.float32)
    h = h + jnp.dot(featr_ref[...], w1r_ref[...], preferred_element_type=jnp.float32)
    h = jnp.maximum(h + b1_ref[...], 0.0).astype(jnp.bfloat16)
    h = jnp.dot(h, w2_ref[...], preferred_element_type=jnp.float32) + b2_ref[...]
    h = jnp.maximum(h, 0.0).astype(jnp.bfloat16)
    h = jnp.dot(h, w3_ref[...], preferred_element_type=jnp.float32) + b3_ref[...]  # plain last
    c3 = h.shape[-1]
    # (TM*K, C3) -> (TM, K, C3) is layout-preserving: C3 is a 128-multiple, K a
    # multiple of 8 (unlike reshaping the lane-sparse input channels).
    h = h.reshape(tm, k, c3)
    # Additive neighbor mask from per-center counts: no (M,K) f32 mask DMA and no
    # compare+select over the largest f32 intermediate.
    kidx = jax.lax.broadcasted_iota(jnp.int32, (tm, k), 1)
    bias = jnp.where(kidx < cnt_ref[...], 0.0, _NEG_INF)               # (TM, K)
    out_ref[...] = jnp.max(h + bias[:, :, None], axis=1)


def _global_head_kernel(featx_ref, featr_ref,
                        w1x_ref, w1r_ref, b1_ref, w2_ref, b2_ref, w3_ref, b3_ref,
                        hw1_ref, hb1_ref, hw2_ref, hb2_ref, hw3_ref, hb3_ref,
                        out_ref, acc_ref, *, tb, tk, n_valid):
    """GlobalSAModule MLP([259,256,512,1024]) on [x, pos] with the per-batch global
    max pool computed as a RUNNING accumulator over point-axis chunks (grid axis 1),
    fused with the classifier MLP([1024,512,256,1], norm=None, eval dropout = id)
    + sigmoid which runs once on the final chunk.  This caps the live (rows, 1024)
    f32 intermediate so the kernel fits v7x's 64 MiB VMEM at realistic point counts."""
    kstep = pl.program_id(1)

    @pl.when(kstep == 0)
    def _init():
        acc_ref[...] = jnp.full(acc_ref.shape, _NEG_INF, jnp.float32)

    cx = featx_ref.shape[-1]
    cr = featr_ref.shape[-1]
    fx = featx_ref[...].reshape(tb * tk, cx)       # lane-dense -> layout preserving
    fr = featr_ref[...].reshape(tb * tk, cr)
    h = jnp.dot(fx, w1x_ref[...], preferred_element_type=jnp.float32)
    h = h + jnp.dot(fr, w1r_ref[...], preferred_element_type=jnp.float32)
    h = jnp.maximum(h + b1_ref[...], 0.0).astype(jnp.bfloat16)
    h = jnp.dot(h, w2_ref[...], preferred_element_type=jnp.float32) + b2_ref[...]
    h = jnp.maximum(h, 0.0).astype(jnp.bfloat16)
    h = jnp.dot(h, w3_ref[...], preferred_element_type=jnp.float32) + b3_ref[...]
    c3 = h.shape[-1]
    h = h.reshape(tb, tk, c3)

    # Point-axis padding mask (batches are dense: exactly n_valid real points each).
    pidx = kstep * tk + jax.lax.broadcasted_iota(jnp.int32, (tb, tk), 1)
    bias = jnp.where(pidx < n_valid, 0.0, _NEG_INF)
    acc_ref[...] = jnp.maximum(acc_ref[...], jnp.max(h + bias[:, :, None], axis=1))

    @pl.when(kstep == pl.num_programs(1) - 1)
    def _head():
        g = acc_ref[...].astype(jnp.bfloat16)       # (TB, 1024) pooled features
        z = jnp.dot(g, hw1_ref[...], preferred_element_type=jnp.float32) + hb1_ref[...]
        z = jnp.maximum(z, 0.0).astype(jnp.bfloat16)
        z = jnp.dot(z, hw2_ref[...], preferred_element_type=jnp.float32) + hb2_ref[...]
        z = jnp.maximum(z, 0.0).astype(jnp.bfloat16)
        z = jnp.dot(z, hw3_ref[...], preferred_element_type=jnp.float32) + hb3_ref[...]
        out_ref[...] = jax.nn.sigmoid(z)            # (TB, 128) lane-dense, col 0 = logit


# ----------------------------------------------------------------------------
# Pallas wrappers (grid / BlockSpec / pipelining decisions)
# ----------------------------------------------------------------------------
def mlp3_max(featx, featr, cnt, w, *, tile_rows=None):
    """featx: (M, K, CX) bf16, featr: (M, K, CR) bf16, cnt: (M,) int32 -> (M, C3) f32.
    Row-tiled grid (auto double-buffered DMA); features are flattened wrapper-side to
    lane-dense 2D blocks so no in-kernel relayout of the lane-sparse channel dim."""
    if tile_rows is None:
        tile_rows = _MLP3_TILE_ROWS
    M0, K, CX = featx.shape
    CR = featr.shape[-1]
    C1 = w['w1x'].shape[1]
    C2 = w['w2'].shape[1]
    C3 = w['w3'].shape[1]

    TM = min(tile_rows, _round_up(M0, 8))
    Mp = _round_up(M0, TM)
    if Mp != M0:
        featx = jnp.pad(featx, ((0, Mp - M0), (0, 0), (0, 0)))
        featr = jnp.pad(featr, ((0, Mp - M0), (0, 0), (0, 0)))
        cnt = jnp.pad(cnt, ((0, Mp - M0),))

    featx2 = featx.reshape(Mp * K, CX)             # pre-flattened (perf review #5)
    featr2 = featr.reshape(Mp * K, CR)
    cnt2 = cnt.reshape(Mp, 1).astype(jnp.int32)

    flops = 2 * Mp * K * ((CX + CR) * C1 + C1 * C2 + C2 * C3)
    w_bytes = 2 * ((CX + CR) * C1 + C1 * C2 + C2 * C3) + 4 * (C1 + C2 + C3)
    bytes_accessed = (featx2.size + featr2.size) * 2 + cnt2.size * 4 + Mp * C3 * 4 + w_bytes

    kernel = functools.partial(_mlp3_max_kernel, tm=TM, k=K)
    out = pl.pallas_call(
        kernel,
        out_shape=jax.ShapeDtypeStruct((Mp, C3), jnp.float32),
        grid=(Mp // TM,),
        in_specs=[
            pl.BlockSpec((TM * K, CX), lambda i: (i, 0)),   # pipelined per-tile
            pl.BlockSpec((TM * K, CR), lambda i: (i, 0)),
            pl.BlockSpec((TM, 1), lambda i: (i, 0)),
            # Grid-invariant weights: the pipeline skips re-DMA across steps.
            # TODO(synk): single-buffer these (pipeline_mode=pl.Buffered(1)) to reclaim
            # VMEM on v7x once buffer_count=1 is supported by the installed jax.
            pl.BlockSpec((CX, C1), lambda i: (0, 0)),
            pl.BlockSpec((CR, C1), lambda i: (0, 0)),
            pl.BlockSpec((1, C1), lambda i: (0, 0)),
            pl.BlockSpec((C1, C2), lambda i: (0, 0)),
            pl.BlockSpec((1, C2), lambda i: (0, 0)),
            pl.BlockSpec((C2, C3), lambda i: (0, 0)),
            pl.BlockSpec((1, C3), lambda i: (0, 0)),
        ],
        out_specs=pl.BlockSpec((TM, C3), lambda i: (i, 0)),
        compiler_params=pltpu.CompilerParams(
            dimension_semantics=("parallel",),              # megacore sharding
            vmem_limit_bytes=_VMEM_LIMIT_BYTES),
        cost_estimate=pl.CostEstimate(flops=int(flops), transcendentals=0,
                                      bytes_accessed=int(bytes_accessed)),
    )(featx2, featr2, cnt2,
      w['w1x'], w['w1r'], w['b1'], w['w2'], w['b2'], w['w3'], w['b3'])
    return out[:M0]


def global_sa_with_head(x, pos, w_sa3, w_head, *, tile_batch=8, tile_pts=None):
    """GlobalSAModule (MLP on [x, pos] + per-batch global max pool) fused with the
    classifier head + sigmoid.  x: (B, M, 256), pos: (B, M, 3) -> (B, 1)."""
    if tile_pts is None:
        tile_pts = _GLOBAL_TILE_PTS
    B, M, F = x.shape
    CX = w_sa3['w1x'].shape[0]
    CR = w_sa3['w1r'].shape[0]
    C1 = w_sa3['w2'].shape[0]
    C2 = w_sa3['w3'].shape[0]
    C3 = w_sa3['w3'].shape[1]
    H1 = w_head['w2'].shape[0]
    H2 = w_head['w3'].shape[0]
    H3 = w_head['w3'].shape[1]                     # 128 (lane-dense, col 0 real)

    featx = x
    if CX > F:
        featx = jnp.pad(featx, ((0, 0), (0, 0), (0, CX - F)))
    featr = jnp.pad(pos, ((0, 0), (0, 0), (0, CR - 3)))

    TK = min(tile_pts, _round_up(M, 8))            # point-axis chunk (reduction axis)
    Kp = _round_up(M, TK)
    TB = min(tile_batch, _round_up(B, 8))
    Bp = _round_up(B, TB)
    featx = jnp.pad(featx, ((0, Bp - B), (0, Kp - M), (0, 0))).astype(jnp.bfloat16)
    featr = jnp.pad(featr, ((0, Bp - B), (0, Kp - M), (0, 0))).astype(jnp.bfloat16)

    flops = (2 * Bp * Kp * ((CX + CR) * C1 + C1 * C2 + C2 * C3)
             + 2 * Bp * (C3 * H1 + H1 * H2 + H2 * H3))
    w_bytes = (2 * ((CX + CR) * C1 + C1 * C2 + C2 * C3 + C3 * H1 + H1 * H2 + H2 * H3)
               + 4 * (C1 + C2 + C3 + H1 + H2 + H3))
    bytes_accessed = (featx.size + featr.size) * 2 + Bp * H3 * 4 + w_bytes

    kernel = functools.partial(_global_head_kernel, tb=TB, tk=TK, n_valid=M)
    out = pl.pallas_call(
        kernel,
        out_shape=jax.ShapeDtypeStruct((Bp, H3), jnp.float32),
        grid=(Bp // TB, Kp // TK),
        in_specs=[
            pl.BlockSpec((TB, TK, CX), lambda b, k: (b, k, 0)),
            pl.BlockSpec((TB, TK, CR), lambda b, k: (b, k, 0)),
            pl.BlockSpec((CX, C1), lambda b, k: (0, 0)),
            pl.BlockSpec((CR, C1), lambda b, k: (0, 0)),
            pl.BlockSpec((1, C1), lambda b, k: (0, 0)),
            pl.BlockSpec((C1, C2), lambda b, k: (0, 0)),
            pl.BlockSpec((1, C2), lambda b, k: (0, 0)),
            pl.BlockSpec((C2, C3), lambda b, k: (0, 0)),
            pl.BlockSpec((1, C3), lambda b, k: (0, 0)),
            pl.BlockSpec((C3, H1), lambda b, k: (0, 0)),
            pl.BlockSpec((1, H1), lambda b, k: (0, 0)),
            pl.BlockSpec((H1, H2), lambda b, k: (0, 0)),
            pl.BlockSpec((1, H2), lambda b, k: (0, 0)),
            pl.BlockSpec((H2, H3), lambda b, k: (0, 0)),
            pl.BlockSpec((1, H3), lambda b, k: (0, 0)),
        ],
        out_specs=pl.BlockSpec((TB, H3), lambda b, k: (b, 0)),   # revisited across k
        scratch_shapes=[pltpu.VMEM((TB, C3), jnp.float32)],      # running max pool
        compiler_params=pltpu.CompilerParams(
            dimension_semantics=("parallel", "arbitrary"),
            vmem_limit_bytes=_VMEM_LIMIT_BYTES),
        cost_estimate=pl.CostEstimate(flops=int(flops), transcendentals=int(Bp * H3),
                                      bytes_accessed=int(bytes_accessed)),
    )(featx, featr,
      w_sa3['w1x'], w_sa3['w1r'], w_sa3['b1'], w_sa3['w2'], w_sa3['b2'],
      w_sa3['w3'], w_sa3['b3'],
      w_head['w1'], w_head['b1'], w_head['w2'], w_head['b2'], w_head['w3'], w_head['b3'])
    return out[:B, :1]


# ----------------------------------------------------------------------------
# Plain-JAX glue: FPS + radius ball query (data dependent, no clean Pallas form)
# ----------------------------------------------------------------------------
def _fps_single(pos, num_samples):
    """Farthest point sampling on one batch element.  pos: (N, 3).
    # TODO(synk): torch_cluster fps uses random_start=True; we pin start=0 for determinism.
    # TODO(synk): move FPS into a Pallas kernel (pos/min_d resident in VMEM) for large N.
    """
    N = pos.shape[0]

    def body(i, carry):
        idx, min_d = carry
        last = pos[idx[i - 1]]
        d = jnp.sum((pos - last) ** 2, axis=-1)
        min_d = jnp.minimum(min_d, d)
        nxt = jnp.argmax(min_d).astype(jnp.int32)
        idx = idx.at[i].set(nxt)
        return idx, min_d

    idx0 = jnp.zeros((num_samples,), jnp.int32)
    min_d0 = jnp.full((N,), 1e30, jnp.float32)
    idx, _ = jax.lax.fori_loop(1, num_samples, body, (idx0, min_d0))
    return idx


def _radius_single(pos, centers, r, K):
    """For each center pick up to K neighbors within radius r (by index order,
    approximating torch_cluster ordering). pos: (N,3), centers: (M,3).
    Returns neighbor indices (M, K) and per-center valid counts (M,).
    # TODO(synk): tile this ball query in Pallas to avoid the (M, N) f32 distance
    # tensor and the full top_k for large clouds."""
    N = pos.shape[0]
    d2 = jnp.sum((centers[:, None, :] - pos[None, :, :]) ** 2, axis=-1)   # (M, N)
    within = d2 <= r * r
    score = jnp.where(within, -jnp.arange(N, dtype=jnp.float32), -jnp.inf)
    top_v, top_i = jax.lax.top_k(score, K)                                # smallest indices first
    cnt = jnp.sum(jnp.isfinite(top_v), axis=-1).astype(jnp.int32)         # prefix of K slots
    return top_i, cnt


def sa_module(x, pos, *, ratio, r, max_neighbors, weights):
    """Set-abstraction module: FPS -> radius -> PointNetConv(MLP, aggr=max)."""
    B, N, F = x.shape
    M = int(math.ceil(ratio * N))
    K = min(max_neighbors, N)
    CX = weights['w1x'].shape[0]
    CR = weights['w1r'].shape[0]

    idx = jax.vmap(lambda p: _fps_single(p, M))(pos)                      # (B, M)
    centers = jnp.take_along_axis(pos, idx[..., None], axis=1)            # (B, M, 3)
    nbr, cnt = jax.vmap(lambda p, c: _radius_single(p, c, r, K))(pos, centers)

    Kp = _round_up(K, 8)                                  # sublane-friendly neighbor axis
    if Kp != K:
        nbr = jnp.pad(nbr, ((0, 0), (0, 0), (0, Kp - K)))

    # TODO(synk): move this gather into the Pallas kernel (per-batch point features
    # kept resident in VMEM + scalar-prefetched nbr table) so the K-inflated edge
    # tensor never round-trips through HBM — the remaining top-line DMA cost.
    x_j = jax.vmap(lambda xb, nb: xb[nb])(x, nbr)                         # (B, M, Kp, F)
    pos_j = jax.vmap(lambda pb, nb: pb[nb])(pos, nbr)                     # (B, M, Kp, 3)
    rel = pos_j - centers[:, :, None, :]

    # Split edge features so the big layer-1 contraction stays exactly 128/256 deep
    # (MXU-aligned); the 3-wide rel part goes through its own tiny 8-deep dot.
    featx = x_j
    if CX > F:
        featx = jnp.pad(featx, ((0, 0), (0, 0), (0, 0), (0, CX - F)))
    featr = jnp.pad(rel, ((0, 0), (0, 0), (0, 0), (0, CR - 3)))
    featx = featx.astype(jnp.bfloat16)                    # halve HBM traffic into the kernel
    featr = featr.astype(jnp.bfloat16)

    out = mlp3_max(featx.reshape(B * M, Kp, CX),
                   featr.reshape(B * M, Kp, CR),
                   cnt.reshape(B * M),
                   weights)                                               # (B*M, Cout)
    return out.reshape(B, M, -1), centers


# ----------------------------------------------------------------------------
# Parameter init (deterministic, synthetic). Eval-mode BatchNorm (running_mean=0,
# running_var=1, gamma=1, beta=0) is folded into the Linear weights; layer-1 is
# split into x / rel parts, channels zero-padded to lane/sublane-friendly widths
# and matmul weights cast to bf16 (biases stay f32).
# ----------------------------------------------------------------------------
def _init_mlp(key, dims, fold_bn):
    eps = 1e-5
    bn_scale = 1.0 / math.sqrt(1.0 + eps)
    w = {}
    for i in range(3):
        key, k_w, k_b = jax.random.split(key, 3)
        fan_in = dims[i]
        wi = jax.random.normal(k_w, (dims[i], dims[i + 1]), jnp.float32) / math.sqrt(fan_in)
        bi = 0.01 * jax.random.normal(k_b, (1, dims[i + 1]), jnp.float32)
        if fold_bn and i < 2:  # plain_last=True: last layer has no norm/act
            wi = wi * bn_scale
            bi = bi * bn_scale
        w[f'w{i + 1}'] = wi
        w[f'b{i + 1}'] = bi
    return w, key


def _split_pad_cast_sa(w, *, n_x, x_pad, r_pad=8, h1_pad=None, h2_pad=None):
    """Split layer 1 into an MXU-aligned x-part and an 8-deep rel-part, zero-pad
    hidden channels to lane-dense widths, and cast matmul weights to bf16 (biases
    stay f32).  Zero padding is exact: padded input channels hit zero weight rows,
    padded hidden units get zero weight+bias (ReLU(0)=0) and feed zero rows of the
    next layer."""
    w1, b1, w2, b2, w3, b3 = w['w1'], w['b1'], w['w2'], w['b2'], w['w3'], w['b3']
    c0, c1 = w1.shape
    c2 = w2.shape[1]
    assert c0 == n_x + 3
    c1p = h1_pad or c1
    c2p = h2_pad or c2
    w1x = jnp.zeros((x_pad, c1p), jnp.float32).at[:n_x, :c1].set(w1[:n_x])
    w1r = jnp.zeros((r_pad, c1p), jnp.float32).at[:3, :c1].set(w1[n_x:])
    b1p = jnp.zeros((1, c1p), jnp.float32).at[:, :c1].set(b1)
    w2p = jnp.zeros((c1p, c2p), jnp.float32).at[:c1, :c2].set(w2)
    b2p = jnp.zeros((1, c2p), jnp.float32).at[:, :c2].set(b2)
    w3p = jnp.zeros((c2p, w3.shape[1]), jnp.float32).at[:c2, :].set(w3)
    return {'w1x': w1x.astype(jnp.bfloat16), 'w1r': w1r.astype(jnp.bfloat16),
            'b1': b1p,
            'w2': w2p.astype(jnp.bfloat16), 'b2': b2p,
            'w3': w3p.astype(jnp.bfloat16), 'b3': b3}


def _pad_cast_head(w, *, out_pad=128):
    """Classifier head: pad the 1-wide logit column to a lane-dense 128 (col 0 real)."""
    w1, b1, w2, b2, w3, b3 = w['w1'], w['b1'], w['w2'], w['b2'], w['w3'], w['b3']
    c2, c3 = w3.shape
    w3p = jnp.zeros((c2, out_pad), jnp.float32).at[:, :c3].set(w3)
    b3p = jnp.zeros((1, out_pad), jnp.float32).at[:, :c3].set(b3)
    return {'w1': w1.astype(jnp.bfloat16), 'b1': b1,
            'w2': w2.astype(jnp.bfloat16), 'b2': b2,
            'w3': w3p.astype(jnp.bfloat16), 'b3': b3p}


def init_params(key):
    raw_sa1, key = _init_mlp(key, [6, 64, 64, 128], fold_bn=True)
    raw_sa2, key = _init_mlp(key, [128 + 3, 128, 128, 256], fold_bn=True)
    raw_sa3, key = _init_mlp(key, [256 + 3, 256, 512, 1024], fold_bn=True)
    raw_head, key = _init_mlp(key, [1024, 512, 256, 1], fold_bn=False)
    return {
        # sa1: x-part is the 3-channel source tag (pad->8); 64-wide hiddens -> 128 lanes
        'sa1': _split_pad_cast_sa(raw_sa1, n_x=3, x_pad=8, h1_pad=128, h2_pad=128),
        # sa2 / sa3: x-part contraction kept exactly 128 / 256 deep (MXU aligned),
        # rel part padded 3 -> 8 and handled by its own tiny dot.
        'sa2': _split_pad_cast_sa(raw_sa2, n_x=128, x_pad=128),
        'sa3': _split_pad_cast_sa(raw_sa3, n_x=256, x_pad=256),
        'head': _pad_cast_head(raw_head, out_pad=128),
    }


# ----------------------------------------------------------------------------
# Full forward
# ----------------------------------------------------------------------------
def pointnet2_cls_forward(scene, pc, params):
    assert scene.ndim == 3
    # one-hot source tags, exactly as in the PyTorch module
    scene_oh = jnp.zeros_like(scene).at[..., 0].set(1.0)
    pc_oh = jnp.zeros_like(pc).at[..., 1].set(1.0)
    scene_f = jnp.concatenate([scene, scene_oh], axis=-1)                 # (B, Ns, 6)
    pc_f = jnp.concatenate([pc, pc_oh], axis=-1)                          # (B, Np, 6)
    pts = jnp.concatenate([scene_f, pc_f], axis=1)                        # (B, N, 6)

    pos = pts[..., :3].astype(jnp.float32)
    x = pts[..., 3:].astype(jnp.float32)

    x1, pos1 = sa_module(x, pos, ratio=0.5, r=0.2, max_neighbors=64,
                         weights=params['sa1'])
    x2, pos2 = sa_module(x1, pos1, ratio=0.25, r=0.4, max_neighbors=64,
                         weights=params['sa2'])
    # GlobalSAModule + classifier head + sigmoid, fused into one Pallas call.
    return global_sa_with_head(x2, pos2, params['sa3'], params['head'])   # (B, 1)


# ----------------------------------------------------------------------------
if __name__ == "__main__":
    key = jax.random.PRNGKey(0)
    k_scene, k_pc, k_params = jax.random.split(key, 3)

    B, N_scene, N_pc = 2, 24, 8
    scene = jax.random.uniform(k_scene, (B, N_scene, 3), jnp.float32)
    pc = jax.random.uniform(k_pc, (B, N_pc, 3), jnp.float32)

    params = init_params(k_params)

    fwd = jax.jit(pointnet2_cls_forward)
    out = fwd(scene, pc, params)
    out = jax.block_until_ready(out)

    assert out.shape == (B, 1)
    assert bool(jnp.all(jnp.isfinite(out)))
    assert bool(jnp.all((out >= 0.0) & (out <= 1.0)))
    print("KERNEL_OK")
</pallas_src>

<mosaic_0001>
module attributes {stable_mosaic.version = 11 : i64} {
  func.func @_mlp3_max_kernel(%arg0: i32, %arg1: memref<1024x8xbf16, #tpu.memory_space<vmem>>, %arg2: memref<1024x8xbf16, #tpu.memory_space<vmem>>, %arg3: memref<32x1xi32, #tpu.memory_space<vmem>>, %arg4: memref<8x128xbf16, #tpu.memory_space<vmem>>, %arg5: memref<8x128xbf16, #tpu.memory_space<vmem>>, %arg6: memref<1x128xf32, #tpu.memory_space<vmem>>, %arg7: memref<128x128xbf16, #tpu.memory_space<vmem>>, %arg8: memref<1x128xf32, #tpu.memory_space<vmem>>, %arg9: memref<128x128xbf16, #tpu.memory_space<vmem>>, %arg10: memref<1x128xf32, #tpu.memory_space<vmem>>, %arg11: memref<32x128xf32, #tpu.memory_space<vmem>>) attributes {dimension_semantics = [#tpu.dimension_semantics<parallel>], iteration_bounds = array<i64: 1>, scalar_prefetch = 0 : i64, scratch_operands = 0 : i64, tpu.core_type = #tpu.core_type<tc>, window_params = [{transform_indices = @transform_0, window_bounds = array<i64: 1024, 8>}, {transform_indices = @transform_1, window_bounds = array<i64: 1024, 8>}, {transform_indices = @transform_2, window_bounds = array<i64: 32, 1>}, {pipeline_mode = #tpu.pipeline_mode<synchronous>, transform_indices = @transform_3, window_bounds = array<i64: 8, 128>}, {pipeline_mode = #tpu.pipeline_mode<synchronous>, transform_indices = @transform_4, window_bounds = array<i64: 8, 128>}, {pipeline_mode = #tpu.pipeline_mode<synchronous>, transform_indices = @transform_5, window_bounds = array<i64: 1, 128>}, {pipeline_mode = #tpu.pipeline_mode<synchronous>, transform_indices = @transform_6, window_bounds = array<i64: 128, 128>}, {pipeline_mode = #tpu.pipeline_mode<synchronous>, transform_indices = @transform_7, window_bounds = array<i64: 1, 128>}, {pipeline_mode = #tpu.pipeline_mode<synchronous>, transform_indices = @transform_8, window_bounds = array<i64: 128, 128>}, {pipeline_mode = #tpu.pipeline_mode<synchronous>, transform_indices = @transform_9, window_bounds = array<i64: 1, 128>}, {transform_indices = @transform_10, window_bounds = array<i64: 32, 128>}]} {
    %c0 = arith.constant 0 : index
    %c0_0 = arith.constant 0 : index
    %0 = vector.load %arg1[%c0, %c0_0] : memref<1024x8xbf16, #tpu.memory_space<vmem>>, vector<1024x8xbf16>
    %c0_1 = arith.constant 0 : index
    %c0_2 = arith.constant 0 : index
    %1 = vector.load %arg4[%c0_1, %c0_2] : memref<8x128xbf16, #tpu.memory_space<vmem>>, vector<8x128xbf16>
    %cst = arith.constant dense<0.000000e+00> : vector<1024x128xf32>
    %2 = tpu.matmul %0, %1, %cst {dimension_numbers = #tpu.dot_dimension_numbers<[1], [0], [0], [1], [0, 0, 1, 1], [], []>} : vector<1024x8xbf16>, vector<8x128xbf16>, vector<1024x128xf32> -> vector<1024x128xf32>
    %c0_3 = arith.constant 0 : index
    %c0_4 = arith.constant 0 : index
    %3 = vector.load %arg2[%c0_3, %c0_4] : memref<1024x8xbf16, #tpu.memory_space<vmem>>, vector<1024x8xbf16>
    %c0_5 = arith.constant 0 : index
    %c0_6 = arith.constant 0 : index
    %4 = vector.load %arg5[%c0_5, %c0_6] : memref<8x128xbf16, #tpu.memory_space<vmem>>, vector<8x128xbf16>
    %cst_7 = arith.constant dense<0.000000e+00> : vector<1024x128xf32>
    %5 = tpu.matmul %3, %4, %cst_7 {dimension_numbers = #tpu.dot_dimension_numbers<[1], [0], [0], [1], [0, 0, 1, 1], [], []>} : vector<1024x8xbf16>, vector<8x128xbf16>, vector<1024x128xf32> -> vector<1024x128xf32>
    %6 = arith.addf %2, %5 : vector<1024x128xf32>
    %c0_8 = arith.constant 0 : index
    %c0_9 = arith.constant 0 : index
    %7 = vector.load %arg6[%c0_8, %c0_9] : memref<1x128xf32, #tpu.memory_space<vmem>>, vector<1x128xf32>
    %8 = vector.broadcast %7 : vector<1x128xf32> to vector<1024x128xf32>
    %9 = arith.addf %6, %8 : vector<1024x128xf32>
    %cst_10 = arith.constant 0.000000e+00 : f32
    %10 = vector.broadcast %cst_10 : f32 to vector<1024x128xf32>
    %11 = arith.maximumf %9, %10 : vector<1024x128xf32>
    %12 = arith.truncf %11 : vector<1024x128xf32> to vector<1024x128xbf16>
    %c0_11 = arith.constant 0 : index
    %c0_12 = arith.constant 0 : index
    %13 = vector.load %arg7[%c0_11, %c0_12] : memref<128x128xbf16, #tpu.memory_space<vmem>>, vector<128x128xbf16>
    %cst_13 = arith.constant dense<0.000000e+00> : vector<1024x128xf32>
    %14 = tpu.matmul %12, %13, %cst_13 {dimension_numbers = #tpu.dot_dimension_numbers<[1], [0], [0], [1], [0, 0, 1, 1], [], []>} : vector<1024x128xbf16>, vector<128x128xbf16>, vector<1024x128xf32> -> vector<1024x128xf32>
    %c0_14 = arith.constant 0 : index
    %c0_15 = arith.constant 0 : index
    %15 = vector.load %arg8[%c0_14, %c0_15] : memref<1x128xf32, #tpu.memory_space<vmem>>, vector<1x128xf32>
    %16 = vector.broadcast %15 : vector<1x128xf32> to vector<1024x128xf32>
    %17 = arith.addf %14, %16 : vector<1024x128xf32>
    %cst_16 = arith.constant 0.000000e+00 : f32
    %18 = vector.broadcast %cst_16 : f32 to vector<1024x128xf32>
    %19 = arith.maximumf %17, %18 : vector<1024x128xf32>
    %20 = arith.truncf %19 : vector<1024x128xf32> to vector<1024x128xbf16>
    %c0_17 = arith.constant 0 : index
    %c0_18 = arith.constant 0 : index
    %21 = vector.load %arg9[%c0_17, %c0_18] : memref<128x128xbf16, #tpu.memory_space<vmem>>, vector<128x128xbf16>
    %cst_19 = arith.constant dense<0.000000e+00> : vector<1024x128xf32>
    %22 = tpu.matmul %20, %21, %cst_19 {dimension_numbers = #tpu.dot_dimension_numbers<[1], [0], [0], [1], [0, 0, 1, 1], [], []>} : vector<1024x128xbf16>, vector<128x128xbf16>, vector<1024x128xf32> -> vector<1024x128xf32>
    %c0_20 = arith.constant 0 : index
    %c0_21 = arith.constant 0 : index
    %23 = vector.load %arg10[%c0_20, %c0_21] : memref<1x128xf32, #tpu.memory_space<vmem>>, vector<1x128xf32>
    %24 = vector.broadcast %23 : vector<1x128xf32> to vector<1024x128xf32>
    %25 = arith.addf %22, %24 : vector<1024x128xf32>
    %26 = vector.shape_cast %25 : vector<1024x128xf32> to vector<32x32x128xf32>
    %27 = tpu.iota {dimensions = array<i32: 1>} : vector<32x32xi32>
    %c0_22 = arith.constant 0 : index
    %c0_23 = arith.constant 0 : index
    %28 = vector.load %arg3[%c0_22, %c0_23] : memref<32x1xi32, #tpu.memory_space<vmem>>, vector<32x1xi32>
    %29 = vector.broadcast %28 : vector<32x1xi32> to vector<32x32xi32>
    %30 = arith.cmpi slt, %27, %29 : vector<32x32xi32>
    %cst_24 = arith.constant 0.000000e+00 : f32
    %cst_25 = arith.constant -1.000000e+30 : f32
    %31 = vector.broadcast %cst_24 : f32 to vector<32x32xf32>
    %32 = vector.broadcast %cst_25 : f32 to vector<32x32xf32>
    %33 = arith.select %30, %31, %32 : vector<32x32xi1>, vector<32x32xf32>
    %34 = vector.shape_cast %33 : vector<32x32xf32> to vector<32x32x1xf32>
    %35 = vector.broadcast %34 : vector<32x32x1xf32> to vector<32x32x128xf32>
    %36 = arith.addf %26, %35 : vector<32x32x128xf32>
    %cst_26 = arith.constant dense<0xFF800000> : vector<32x128xf32>
    %37 = vector.multi_reduction <maximumf>, %36, %cst_26 [1] : vector<32x32x128xf32> to vector<32x128xf32>
    %c0_27 = arith.constant 0 : index
    %c0_28 = arith.constant 0 : index
    %38 = vector.load %arg11[%c0_27, %c0_28] : memref<32x128xf32, #tpu.memory_space<vmem>>, vector<32x128xf32>
    tpu.vector_store %arg11[%c0_27, %c0_28], %37 {strides = array<i32>} : memref<32x128xf32, #tpu.memory_space<vmem>>, vector<32x128xf32>,
    return
  }
  func.func @transform_0(%arg0: i32) -> (i32, i32) {
    %c0_i32 = arith.constant 0 : i32
    %c0_i32_0 = arith.constant 0 : i32
    return %arg0, %c0_i32 : i32, i32
  }
  func.func @transform_1(%arg0: i32) -> (i32, i32) {
    %c0_i32 = arith.constant 0 : i32
    %c0_i32_0 = arith.constant 0 : i32
    return %arg0, %c0_i32 : i32, i32
  }
  func.func @transform_2(%arg0: i32) -> (i32, i32) {
    %c0_i32 = arith.constant 0 : i32
    %c0_i32_0 = arith.constant 0 : i32
    return %arg0, %c0_i32 : i32, i32
  }
  func.func @transform_3(%arg0: i32) -> (i32, i32) {
    %c0_i32 = arith.constant 0 : i32
    %c0_i32_0 = arith.constant 0 : i32
    %c0_i32_1 = arith.constant 0 : i32
    return %c0_i32, %c0_i32_0 : i32, i32
  }
  func.func @transform_4(%arg0: i32) -> (i32, i32) {
    %c0_i32 = arith.constant 0 : i32
    %c0_i32_0 = arith.constant 0 : i32
    %c0_i32_1 = arith.constant 0 : i32
    return %c0_i32, %c0_i32_0 : i32, i32
  }
  func.func @transform_5(%arg0: i32) -> (i32, i32) {
    %c0_i32 = arith.constant 0 : i32
    %c0_i32_0 = arith.constant 0 : i32
    %c0_i32_1 = arith.constant 0 : i32
    return %c0_i32, %c0_i32_0 : i32, i32
  }
  func.func @transform_6(%arg0: i32) -> (i32, i32) {
    %c0_i32 = arith.constant 0 : i32
    %c0_i32_0 = arith.constant 0 : i32
    %c0_i32_1 = arith.constant 0 : i32
    return %c0_i32, %c0_i32_0 : i32, i32
  }
  func.func @transform_7(%arg0: i32) -> (i32, i32) {
    %c0_i32 = arith.constant 0 : i32
    %c0_i32_0 = arith.constant 0 : i32
    %c0_i32_1 = arith.constant 0 : i32
    return %c0_i32, %c0_i32_0 : i32, i32
  }
  func.func @transform_8(%arg0: i32) -> (i32, i32) {
    %c0_i32 = arith.constant 0 : i32
    %c0_i32_0 = arith.constant 0 : i32
    %c0_i32_1 = arith.constant 0 : i32
    return %c0_i32, %c0_i32_0 : i32, i32
  }
  func.func @transform_9(%arg0: i32) -> (i32, i32) {
    %c0_i32 = arith.constant 0 : i32
    %c0_i32_0 = arith.constant 0 : i32
    %c0_i32_1 = arith.constant 0 : i32
    return %c0_i32, %c0_i32_0 : i32, i32
  }
  func.func @transform_10(%arg0: i32) -> (i32, i32) {
    %c0_i32 = arith.constant 0 : i32
    %c0_i32_0 = arith.constant 0 : i32
    return %arg0, %c0_i32 : i32, i32
  }
}

module attributes {stable_mosaic.version = 11 : i64} {
  func.func @_global_head_kernel(%arg0: i32, %arg1: i32, %arg2: memref<8x8x256xbf16, #tpu.memory_space<vmem>>, %arg3: memref<8x8x8xbf16, #tpu.memory_space<vmem>>, %arg4: memref<256x256xbf16, #tpu.memory_space<vmem>>, %arg5: memref<8x256xbf16, #tpu.memory_space<vmem>>, %arg6: memref<1x256xf32, #tpu.memory_space<vmem>>, %arg7: memref<256x512xbf16, #tpu.memory_space<vmem>>, %arg8: memref<1x512xf32, #tpu.memory_space<vmem>>, %arg9: memref<512x1024xbf16, #tpu.memory_space<vmem>>, %arg10: memref<1x1024xf32, #tpu.memory_space<vmem>>, %arg11: memref<1024x512xbf16, #tpu.memory_space<vmem>>, %arg12: memref<1x512xf32, #tpu.memory_space<vmem>>, %arg13: memref<512x256xbf16, #tpu.memory_space<vmem>>, %arg14: memref<1x256xf32, #tpu.memory_space<vmem>>, %arg15: memref<256x128xbf16, #tpu.memory_space<vmem>>, %arg16: memref<1x128xf32, #tpu.memory_space<vmem>>, %arg17: memref<8x128xf32, #tpu.memory_space<vmem>>, %arg18: memref<8x1024xf32, #tpu.memory_space<vmem>>) attributes {dimension_semantics = [#tpu.dimension_semantics<parallel>, #tpu.dimension_semantics<arbitrary>], iteration_bounds = array<i64: 1, 1>, scalar_prefetch = 0 : i64, scratch_operands = 1 : i64, tpu.core_type = #tpu.core_type<tc>, window_params = [{transform_indices = @transform_0, window_bounds = array<i64: 8, 8, 256>}, {transform_indices = @transform_1, window_bounds = array<i64: 8, 8, 8>}, {pipeline_mode = #tpu.pipeline_mode<synchronous>, transform_indices = @transform_2, window_bounds = array<i64: 256, 256>}, {pipeline_mode = #tpu.pipeline_mode<synchronous>, transform_indices = @transform_3, window_bounds = array<i64: 8, 256>}, {pipeline_mode = #tpu.pipeline_mode<synchronous>, transform_indices = @transform_4, window_bounds = array<i64: 1, 256>}, {pipeline_mode = #tpu.pipeline_mode<synchronous>, transform_indices = @transform_5, window_bounds = array<i64: 256, 512>}, {pipeline_mode = #tpu.pipeline_mode<synchronous>, transform_indices = @transform_6, window_bounds = array<i64: 1, 512>}, {pipeline_mode = #tpu.pipeline_mode<synchronous>, transform_indices = @transform_7, window_bounds = array<i64: 512, 1024>}, {pipeline_mode = #tpu.pipeline_mode<synchronous>, transform_indices = @transform_8, window_bounds = array<i64: 1, 1024>}, {pipeline_mode = #tpu.pipeline_mode<synchronous>, transform_indices = @transform_9, window_bounds = array<i64: 1024, 512>}, {pipeline_mode = #tpu.pipeline_mode<synchronous>, transform_indices = @transform_10, window_bounds = array<i64: 1, 512>}, {pipeline_mode = #tpu.pipeline_mode<synchronous>, transform_indices = @transform_11, window_bounds = array<i64: 512, 256>}, {pipeline_mode = #tpu.pipeline_mode<synchronous>, transform_indices = @transform_12, window_bounds = array<i64: 1, 256>}, {pipeline_mode = #tpu.pipeline_mode<synchronous>, transform_indices = @transform_13, window_bounds = array<i64: 256, 128>}, {pipeline_mode = #tpu.pipeline_mode<synchronous>, transform_indices = @transform_14, window_bounds = array<i64: 1, 128>}, {transform_indices = @transform_15, window_bounds = array<i64: 8, 128>}]} {
    %c0_i32 = arith.constant 0 : i32
    %0 = arith.cmpi eq, %arg1, %c0_i32 : i32
    %1 = arith.extui %0 : i1 to i32
    %c0_i32_0 = arith.constant 0 : i32
    %2 = arith.cmpi ne, %1, %c0_i32_0 : i32
    scf.if %2 {
      %cst_34 = arith.constant -1.000000e+30 : f32
      %51 = vector.broadcast %cst_34 : f32 to vector<8x1024xf32>
      %c0_35 = arith.constant 0 : index
      %c0_36 = arith.constant 0 : index
      %52 = vector.load %arg18[%c0_35, %c0_36] : memref<8x1024xf32, #tpu.memory_space<vmem>>, vector<8x1024xf32>
      tpu.vector_store %arg18[%c0_35, %c0_36], %51 {strides = array<i32>} : memref<8x1024xf32, #tpu.memory_space<vmem>>, vector<8x1024xf32>,
    } else {
    }
    %c0 = arith.constant 0 : index
    %c0_1 = arith.constant 0 : index
    %c0_2 = arith.constant 0 : index
    %3 = vector.load %arg2[%c0, %c0_1, %c0_2] : memref<8x8x256xbf16, #tpu.memory_space<vmem>>, vector<8x8x256xbf16>
    %4 = vector.shape_cast %3 : vector<8x8x256xbf16> to vector<64x256xbf16>
    %c0_3 = arith.constant 0 : index
    %c0_4 = arith.constant 0 : index
    %c0_5 = arith.constant 0 : index
    %5 = vector.load %arg3[%c0_3, %c0_4, %c0_5] : memref<8x8x8xbf16, #tpu.memory_space<vmem>>, vector<8x8x8xbf16>
    %6 = vector.shape_cast %5 : vector<8x8x8xbf16> to vector<64x8xbf16>
    %c0_6 = arith.constant 0 : index
    %c0_7 = arith.constant 0 : index
    %7 = vector.load %arg4[%c0_6, %c0_7] : memref<256x256xbf16, #tpu.memory_space<vmem>>, vector<256x256xbf16>
    %cst = arith.constant dense<0.000000e+00> : vector<64x256xf32>
    %8 = tpu.matmul %4, %7, %cst {dimension_numbers = #tpu.dot_dimension_numbers<[1], [0], [0], [1], [0, 0, 1, 1], [], []>} : vector<64x256xbf16>, vector<256x256xbf16>, vector<64x256xf32> -> vector<64x256xf32>
    %c0_8 = arith.constant 0 : index
    %c0_9 = arith.constant 0 : index
    %9 = vector.load %arg5[%c0_8, %c0_9] : memref<8x256xbf16, #tpu.memory_space<vmem>>, vector<8x256xbf16>
    %cst_10 = arith.constant dense<0.000000e+00> : vector<64x256xf32>
    %10 = tpu.matmul %6, %9, %cst_10 {dimension_numbers = #tpu.dot_dimension_numbers<[1], [0], [0], [1], [0, 0, 1, 1], [], []>} : vector<64x8xbf16>, vector<8x256xbf16>, vector<64x256xf32> -> vector<64x256xf32>
    %11 = arith.addf %8, %10 : vector<64x256xf32>
    %c0_11 = arith.constant 0 : index
    %c0_12 = arith.constant 0 : index
    %12 = vector.load %arg6[%c0_11, %c0_12] : memref<1x256xf32, #tpu.memory_space<vmem>>, vector<1x256xf32>
    %13 = vector.broadcast %12 : vector<1x256xf32> to vector<64x256xf32>
    %14 = arith.addf %11, %13 : vector<64x256xf32>
    %cst_13 = arith.constant 0.000000e+00 : f32
    %15 = vector.broadcast %cst_13 : f32 to vector<64x256xf32>
    %16 = arith.maximumf %14, %15 : vector<64x256xf32>
    %17 = arith.truncf %16 : vector<64x256xf32> to vector<64x256xbf16>
    %c0_14 = arith.constant 0 : index
    %c0_15 = arith.constant 0 : index
    %18 = vector.load %arg7[%c0_14, %c0_15] : memref<256x512xbf16, #tpu.memory_space<vmem>>, vector<256x512xbf16>
    %cst_16 = arith.constant dense<0.000000e+00> : vector<64x512xf32>
    %19 = tpu.matmul %17, %18, %cst_16 {dimension_numbers = #tpu.dot_dimension_numbers<[1], [0], [0], [1], [0, 0, 1, 1], [], []>} : vector<64x256xbf16>, vector<256x512xbf16>, vector<64x512xf32> -> vector<64x512xf32>
    %c0_17 = arith.constant 0 : index
    %c0_18 = arith.constant 0 : index
    %20 = vector.load %arg8[%c0_17, %c0_18] : memref<1x512xf32, #tpu.memory_space<vmem>>, vector<1x512xf32>
    %21 = vector.broadcast %20 : vector<1x512xf32> to vector<64x512xf32>
    %22 = arith.addf %19, %21 : vector<64x512xf32>
    %cst_19 = arith.constant 0.000000e+00 : f32
    %23 = vector.broadcast %cst_19 : f32 to vector<64x512xf32>
    %24 = arith.maximumf %22, %23 : vector<64x512xf32>
    %25 = arith.truncf %24 : vector<64x512xf32> to vector<64x512xbf16>
    %c0_20 = arith.constant 0 : index
    %c0_21 = arith.constant 0 : index
    %26 = vector.load %arg9[%c0_20, %c0_21] : memref<512x1024xbf16, #tpu.memory_space<vmem>>, vector<512x1024xbf16>
    %cst_22 = arith.constant dense<0.000000e+00> : vector<64x1024xf32>
    %27 = tpu.matmul %25, %26, %cst_22 {dimension_numbers = #tpu.dot_dimension_numbers<[1], [0], [0], [1], [0, 0, 1, 1], [], []>} : vector<64x512xbf16>, vector<512x1024xbf16>, vector<64x1024xf32> -> vector<64x1024xf32>
    %c0_23 = arith.constant 0 : index
    %c0_24 = arith.constant 0 : index
    %28 = vector.load %arg10[%c0_23, %c0_24] : memref<1x1024xf32, #tpu.memory_space<vmem>>, vector<1x1024xf32>
    %29 = vector.broadcast %28 : vector<1x1024xf32> to vector<64x1024xf32>
    %30 = arith.addf %27, %29 : vector<64x1024xf32>
    %31 = vector.shape_cast %30 : vector<64x1024xf32> to vector<8x8x1024xf32>
    %c8_i32 = arith.constant 8 : i32
    %32 = arith.muli %arg1, %c8_i32 : i32
    %33 = tpu.iota {dimensions = array<i32: 1>} : vector<8x8xi32>
    %34 = vector.broadcast %32 : i32 to vector<8x8xi32>
    %35 = arith.addi %34, %33 : vector<8x8xi32>
    %c4_i32 = arith.constant 4 : i32
    %36 = vector.broadcast %c4_i32 : i32 to vector<8x8xi32>
    %37 = arith.cmpi slt, %35, %36 : vector<8x8xi32>
    %cst_25 = arith.constant 0.000000e+00 : f32
    %cst_26 = arith.constant -1.000000e+30 : f32
    %38 = vector.broadcast %cst_25 : f32 to vector<8x8xf32>
    %39 = vector.broadcast %cst_26 : f32 to vector<8x8xf32>
    %40 = arith.select %37, %38, %39 : vector<8x8xi1>, vector<8x8xf32>
    %c0_27 = arith.constant 0 : index
    %c0_28 = arith.constant 0 : index
    %41 = vector.load %arg18[%c0_27, %c0_28] : memref<8x1024xf32, #tpu.memory_space<vmem>>, vector<8x1024xf32>
    %42 = vector.shape_cast %40 : vector<8x8xf32> to vector<8x8x1xf32>
    %43 = vector.broadcast %42 : vector<8x8x1xf32> to vector<8x8x1024xf32>
    %44 = arith.addf %31, %43 : vector<8x8x1024xf32>
    %cst_29 = arith.constant dense<0xFF800000> : vector<8x1024xf32>
    %45 = vector.multi_reduction <maximumf>, %44, %cst_29 [1] : vector<8x8x1024xf32> to vector<8x1024xf32>
    %46 = arith.maximumf %41, %45 : vector<8x1024xf32>
    %c0_30 = arith.constant 0 : index
    %c0_31 = arith.constant 0 : index
    %47 = vector.load %arg18[%c0_30, %c0_31] : memref<8x1024xf32, #tpu.memory_space<vmem>>, vector<8x1024xf32>
    tpu.vector_store %arg18[%c0_30, %c0_31], %46 {strides = array<i32>} : memref<8x1024xf32, #tpu.memory_space<vmem>>, vector<8x1024xf32>,
    %c0_i32_32 = arith.constant 0 : i32
    %48 = arith.cmpi eq, %arg1, %c0_i32_32 : i32
    %49 = arith.extui %48 : i1 to i32
    %c0_i32_33 = arith.constant 0 : i32
    %50 = arith.cmpi ne, %49, %c0_i32_33 : i32
    scf.if %50 {
      %c0_34 = arith.constant 0 : index
      %c0_35 = arith.constant 0 : index
      %51 = vector.load %arg18[%c0_34, %c0_35] : memref<8x1024xf32, #tpu.memory_space<vmem>>, vector<8x1024xf32>
      %52 = arith.truncf %51 : vector<8x1024xf32> to vector<8x1024xbf16>
      %c0_36 = arith.constant 0 : index
      %c0_37 = arith.constant 0 : index
      %53 = vector.load %arg11[%c0_36, %c0_37] : memref<1024x512xbf16, #tpu.memory_space<vmem>>, vector<1024x512xbf16>
      %cst_38 = arith.constant dense<0.000000e+00> : vector<8x512xf32>
      %54 = tpu.matmul %52, %53, %cst_38 {dimension_numbers = #tpu.dot_dimension_numbers<[1], [0], [0], [1], [0, 0, 1, 1], [], []>} : vector<8x1024xbf16>, vector<1024x512xbf16>, vector<8x512xf32> -> vector<8x512xf32>
      %c0_39 = arith.constant 0 : index
      %c0_40 = arith.constant 0 : index
      %55 = vector.load %arg12[%c0_39, %c0_40] : memref<1x512xf32, #tpu.memory_space<vmem>>, vector<1x512xf32>
      %56 = vector.broadcast %55 : vector<1x512xf32> to vector<8x512xf32>
      %57 = arith.addf %54, %56 : vector<8x512xf32>
      %cst_41 = arith.constant 0.000000e+00 : f32
      %58 = vector.broadcast %cst_41 : f32 to vector<8x512xf32>
      %59 = arith.maximumf %57, %58 : vector<8x512xf32>
      %60 = arith.truncf %59 : vector<8x512xf32> to vector<8x512xbf16>
      %c0_42 = arith.constant 0 : index
      %c0_43 = arith.constant 0 : index
      %61 = vector.load %arg13[%c0_42, %c0_43] : memref<512x256xbf16, #tpu.memory_space<vmem>>, vector<512x256xbf16>
      %cst_44 = arith.constant dense<0.000000e+00> : vector<8x256xf32>
      %62 = tpu.matmul %60, %61, %cst_44 {dimension_numbers = #tpu.dot_dimension_numbers<[1], [0], [0], [1], [0, 0, 1, 1], [], []>} : vector<8x512xbf16>, vector<512x256xbf16>, vector<8x256xf32> -> vector<8x256xf32>
      %c0_45 = arith.constant 0 : index
      %c0_46 = arith.constant 0 : index
      %63 = vector.load %arg14[%c0_45, %c0_46] : memref<1x256xf32, #tpu.memory_space<vmem>>, vector<1x256xf32>
      %64 = vector.broadcast %63 : vector<1x256xf32> to vector<8x256xf32>
      %65 = arith.addf %62, %64 : vector<8x256xf32>
      %cst_47 = arith.constant 0.000000e+00 : f32
      %66 = vector.broadcast %cst_47 : f32 to vector<8x256xf32>
      %67 = arith.maximumf %65, %66 : vector<8x256xf32>
      %68 = arith.truncf %67 : vector<8x256xf32> to vector<8x256xbf16>
      %c0_48 = arith.constant 0 : index
      %c0_49 = arith.constant 0 : index
      %69 = vector.load %arg15[%c0_48, %c0_49] : memref<256x128xbf16, #tpu.memory_space<vmem>>, vector<256x128xbf16>
      %cst_50 = arith.constant dense<0.000000e+00> : vector<8x128xf32>
      %70 = tpu.matmul %68, %69, %cst_50 {dimension_numbers = #tpu.dot_dimension_numbers<[1], [0], [0], [1], [0, 0, 1, 1], [], []>} : vector<8x256xbf16>, vector<256x128xbf16>, vector<8x128xf32> -> vector<8x128xf32>
      %c0_51 = arith.constant 0 : index
      %c0_52 = arith.constant 0 : index
      %71 = vector.load %arg16[%c0_51, %c0_52] : memref<1x128xf32, #tpu.memory_space<vmem>>, vector<1x128xf32>
      %72 = vector.broadcast %71 : vector<1x128xf32> to vector<8x128xf32>
      %73 = arith.addf %70, %72 : vector<8x128xf32>
      %74 = arith.negf %73 : vector<8x128xf32>
      %75 = math.exp %74 : vector<8x128xf32>
      %cst_53 = arith.constant 1.000000e+00 : f32
      %76 = vector.broadcast %cst_53 : f32 to vector<8x128xf32>
      %77 = arith.addf %76, %75 : vector<8x128xf32>
      %78 = arith.divf %76, %77 : vector<8x128xf32>
      %c0_54 = arith.constant 0 : index
      %c0_55 = arith.constant 0 : index
      %79 = vector.load %arg17[%c0_54, %c0_55] : memref<8x128xf32, #tpu.memory_space<vmem>>, vector<8x128xf32>
      tpu.vector_store %arg17[%c0_54, %c0_55], %78 {strides = array<i32>} : memref<8x128xf32, #tpu.memory_space<vmem>>, vector<8x128xf32>,
    } else {
    }
    return
  }
  func.func @transform_0(%arg0: i32, %arg1: i32) -> (i32, i32, i32) {
    %c0_i32 = arith.constant 0 : i32
    %c0_i32_0 = arith.constant 0 : i32
    return %arg0, %arg1, %c0_i32 : i32, i32, i32
  }
  func.func @transform_1(%arg0: i32, %arg1: i32) -> (i32, i32, i32) {
    %c0_i32 = arith.constant 0 : i32
    %c0_i32_0 = arith.constant 0 : i32
    return %arg0, %arg1, %c0_i32 : i32, i32, i32
  }
  func.func @transform_2(%arg0: i32, %arg1: i32) -> (i32, i32) {
    %c0_i32 = arith.constant 0 : i32
    %c0_i32_0 = arith.constant 0 : i32
    %c0_i32_1 = arith.constant 0 : i32
    return %c0_i32, %c0_i32_0 : i32, i32
  }
  func.func @transform_3(%arg0: i32, %arg1: i32) -> (i32, i32) {
    %c0_i32 = arith.constant 0 : i32
    %c0_i32_0 = arith.constant 0 : i32
    %c0_i32_1 = arith.constant 0 : i32
    return %c0_i32, %c0_i32_0 : i32, i32
  }
  func.func @transform_4(%arg0: i32, %arg1: i32) -> (i32, i32) {
    %c0_i32 = arith.constant 0 : i32
    %c0_i32_0 = arith.constant 0 : i32
    %c0_i32_1 = arith.constant 0 : i32
    return %c0_i32, %c0_i32_0 : i32, i32
  }
  func.func @transform_5(%arg0: i32, %arg1: i32) -> (i32, i32) {
    %c0_i32 = arith.constant 0 : i32
    %c0_i32_0 = arith.constant 0 : i32
    %c0_i32_1 = arith.constant 0 : i32
    return %c0_i32, %c0_i32_0 : i32, i32
  }
  func.func @transform_6(%arg0: i32, %arg1: i32) -> (i32, i32) {
    %c0_i32 = arith.constant 0 : i32
    %c0_i32_0 = arith.constant 0 : i32
    %c0_i32_1 = arith.constant 0 : i32
    return %c0_i32, %c0_i32_0 : i32, i32
  }
  func.func @transform_7(%arg0: i32, %arg1: i32) -> (i32, i32) {
    %c0_i32 = arith.constant 0 : i32
    %c0_i32_0 = arith.constant 0 : i32
    %c0_i32_1 = arith.constant 0 : i32
    return %c0_i32, %c0_i32_0 : i32, i32
  }
  func.func @transform_8(%arg0: i32, %arg1: i32) -> (i32, i32) {
    %c0_i32 = arith.constant 0 : i32
    %c0_i32_0 = arith.constant 0 : i32
    %c0_i32_1 = arith.constant 0 : i32
    return %c0_i32, %c0_i32_0 : i32, i32
  }
  func.func @transform_9(%arg0: i32, %arg1: i32) -> (i32, i32) {
    %c0_i32 = arith.constant 0 : i32
    %c0_i32_0 = arith.constant 0 : i32
    %c0_i32_1 = arith.constant 0 : i32
    return %c0_i32, %c0_i32_0 : i32, i32
  }
  func.func @transform_10(%arg0: i32, %arg1: i32) -> (i32, i32) {
    %c0_i32 = arith.constant 0 : i32
    %c0_i32_0 = arith.constant 0 : i32
    %c0_i32_1 = arith.constant 0 : i32
    return %c0_i32, %c0_i32_0 : i32, i32
  }
  func.func @transform_11(%arg0: i32, %arg1: i32) -> (i32, i32) {
    %c0_i32 = arith.constant 0 : i32
    %c0_i32_0 = arith.constant 0 : i32
    %c0_i32_1 = arith.constant 0 : i32
    return %c0_i32, %c0_i32_0 : i32, i32
  }
  func.func @transform_12(%arg0: i32, %arg1: i32) -> (i32, i32) {
    %c0_i32 = arith.constant 0 : i32
    %c0_i32_0 = arith.constant 0 : i32
    %c0_i32_1 = arith.constant 0 : i32
    return %c0_i32, %c0_i32_0 : i32, i32
  }
  func.func @transform_13(%arg0: i32, %arg1: i32) -> (i32, i32) {
    %c0_i32 = arith.constant 0 : i32
    %c0_i32_0 = arith.constant 0 : i32
    %c0_i32_1 = arith.constant 0 : i32
    return %c0_i32, %c0_i32_0 : i32, i32
  }
  func.func @transform_14(%arg0: i32, %arg1: i32) -> (i32, i32) {
    %c0_i32 = arith.constant 0 : i32
    %c0_i32_0 = arith.constant 0 : i32
    %c0_i32_1 = arith.constant 0 : i32
    return %c0_i32, %c0_i32_0 : i32, i32
  }
  func.func @transform_15(%arg0: i32, %arg1: i32) -> (i32, i32) {
    %c0_i32 = arith.constant 0 : i32
    %c0_i32_0 = arith.constant 0 : i32
    return %arg0, %c0_i32 : i32, i32
  }
}

module attributes {stable_mosaic.version = 11 : i64} {
  func.func @_mlp3_max_kernel(%arg0: i32, %arg1: memref<128x128xbf16, #tpu.memory_space<vmem>>, %arg2: memref<128x8xbf16, #tpu.memory_space<vmem>>, %arg3: memref<8x1xi32, #tpu.memory_space<vmem>>, %arg4: memref<128x128xbf16, #tpu.memory_space<vmem>>, %arg5: memref<8x128xbf16, #tpu.memory_space<vmem>>, %arg6: memref<1x128xf32, #tpu.memory_space<vmem>>, %arg7: memref<128x128xbf16, #tpu.memory_space<vmem>>, %arg8: memref<1x128xf32, #tpu.memory_space<vmem>>, %arg9: memref<128x256xbf16, #tpu.memory_space<vmem>>, %arg10: memref<1x256xf32, #tpu.memory_space<vmem>>, %arg11: memref<8x256xf32, #tpu.memory_space<vmem>>) attributes {dimension_semantics = [#tpu.dimension_semantics<parallel>], iteration_bounds = array<i64: 1>, scalar_prefetch = 0 : i64, scratch_operands = 0 : i64, tpu.core_type = #tpu.core_type<tc>, window_params = [{transform_indices = @transform_0, window_bounds = array<i64: 128, 128>}, {transform_indices = @transform_1, window_bounds = array<i64: 128, 8>}, {transform_indices = @transform_2, window_bounds = array<i64: 8, 1>}, {pipeline_mode = #tpu.pipeline_mode<synchronous>, transform_indices = @transform_3, window_bounds = array<i64: 128, 128>}, {pipeline_mode = #tpu.pipeline_mode<synchronous>, transform_indices = @transform_4, window_bounds = array<i64: 8, 128>}, {pipeline_mode = #tpu.pipeline_mode<synchronous>, transform_indices = @transform_5, window_bounds = array<i64: 1, 128>}, {pipeline_mode = #tpu.pipeline_mode<synchronous>, transform_indices = @transform_6, window_bounds = array<i64: 128, 128>}, {pipeline_mode = #tpu.pipeline_mode<synchronous>, transform_indices = @transform_7, window_bounds = array<i64: 1, 128>}, {pipeline_mode = #tpu.pipeline_mode<synchronous>, transform_indices = @transform_8, window_bounds = array<i64: 128, 256>}, {pipeline_mode = #tpu.pipeline_mode<synchronous>, transform_indices = @transform_9, window_bounds = array<i64: 1, 256>}, {transform_indices = @transform_10, window_bounds = array<i64: 8, 256>}]} {
    %c0 = arith.constant 0 : index
    %c0_0 = arith.constant 0 : index
    %0 = vector.load %arg1[%c0, %c0_0] : memref<128x128xbf16, #tpu.memory_space<vmem>>, vector<128x128xbf16>
    %c0_1 = arith.constant 0 : index
    %c0_2 = arith.constant 0 : index
    %1 = vector.load %arg4[%c0_1, %c0_2] : memref<128x128xbf16, #tpu.memory_space<vmem>>, vector<128x128xbf16>
    %cst = arith.constant dense<0.000000e+00> : vector<128x128xf32>
    %2 = tpu.matmul %0, %1, %cst {dimension_numbers = #tpu.dot_dimension_numbers<[1], [0], [0], [1], [0, 0, 1, 1], [], []>} : vector<128x128xbf16>, vector<128x128xbf16>, vector<128x128xf32> -> vector<128x128xf32>
    %c0_3 = arith.constant 0 : index
    %c0_4 = arith.constant 0 : index
    %3 = vector.load %arg2[%c0_3, %c0_4] : memref<128x8xbf16, #tpu.memory_space<vmem>>, vector<128x8xbf16>
    %c0_5 = arith.constant 0 : index
    %c0_6 = arith.constant 0 : index
    %4 = vector.load %arg5[%c0_5, %c0_6] : memref<8x128xbf16, #tpu.memory_space<vmem>>, vector<8x128xbf16>
    %cst_7 = arith.constant dense<0.000000e+00> : vector<128x128xf32>
    %5 = tpu.matmul %3, %4, %cst_7 {dimension_numbers = #tpu.dot_dimension_numbers<[1], [0], [0], [1], [0, 0, 1, 1], [], []>} : vector<128x8xbf16>, vector<8x128xbf16>, vector<128x128xf32> -> vector<128x128xf32>
    %6 = arith.addf %2, %5 : vector<128x128xf32>
    %c0_8 = arith.constant 0 : index
    %c0_9 = arith.constant 0 : index
    %7 = vector.load %arg6[%c0_8, %c0_9] : memref<1x128xf32, #tpu.memory_space<vmem>>, vector<1x128xf32>
    %8 = vector.broadcast %7 : vector<1x128xf32> to vector<128x128xf32>
    %9 = arith.addf %6, %8 : vector<128x128xf32>
    %cst_10 = arith.constant 0.000000e+00 : f32
    %10 = vector.broadcast %cst_10 : f32 to vector<128x128xf32>
    %11 = arith.maximumf %9, %10 : vector<128x128xf32>
    %12 = arith.truncf %11 : vector<128x128xf32> to vector<128x128xbf16>
    %c0_11 = arith.constant 0 : index
    %c0_12 = arith.constant 0 : index
    %13 = vector.load %arg7[%c0_11, %c0_12] : memref<128x128xbf16, #tpu.memory_space<vmem>>, vector<128x128xbf16>
    %cst_13 = arith.constant dense<0.000000e+00> : vector<128x128xf32>
    %14 = tpu.matmul %12, %13, %cst_13 {dimension_numbers = #tpu.dot_dimension_numbers<[1], [0], [0], [1], [0, 0, 1, 1], [], []>} : vector<128x128xbf16>, vector<128x128xbf16>, vector<128x128xf32> -> vector<128x128xf32>
    %c0_14 = arith.constant 0 : index
    %c0_15 = arith.constant 0 : index
    %15 = vector.load %arg8[%c0_14, %c0_15] : memref<1x128xf32, #tpu.memory_space<vmem>>, vector<1x128xf32>
    %16 = vector.broadcast %15 : vector<1x128xf32> to vector<128x128xf32>
    %17 = arith.addf %14, %16 : vector<128x128xf32>
    %cst_16 = arith.constant 0.000000e+00 : f32
    %18 = vector.broadcast %cst_16 : f32 to vector<128x128xf32>
    %19 = arith.maximumf %17, %18 : vector<128x128xf32>
    %20 = arith.truncf %19 : vector<128x128xf32> to vector<128x128xbf16>
    %c0_17 = arith.constant 0 : index
    %c0_18 = arith.constant 0 : index
    %21 = vector.load %arg9[%c0_17, %c0_18] : memref<128x256xbf16, #tpu.memory_space<vmem>>, vector<128x256xbf16>
    %cst_19 = arith.constant dense<0.000000e+00> : vector<128x256xf32>
    %22 = tpu.matmul %20, %21, %cst_19 {dimension_numbers = #tpu.dot_dimension_numbers<[1], [0], [0], [1], [0, 0, 1, 1], [], []>} : vector<128x128xbf16>, vector<128x256xbf16>, vector<128x256xf32> -> vector<128x256xf32>
    %c0_20 = arith.constant 0 : index
    %c0_21 = arith.constant 0 : index
    %23 = vector.load %arg10[%c0_20, %c0_21] : memref<1x256xf32, #tpu.memory_space<vmem>>, vector<1x256xf32>
    %24 = vector.broadcast %23 : vector<1x256xf32> to vector<128x256xf32>
    %25 = arith.addf %22, %24 : vector<128x256xf32>
    %26 = vector.shape_cast %25 : vector<128x256xf32> to vector<8x16x256xf32>
    %27 = tpu.iota {dimensions = array<i32: 1>} : vector<8x16xi32>
    %c0_22 = arith.constant 0 : index
    %c0_23 = arith.constant 0 : index
    %28 = vector.load %arg3[%c0_22, %c0_23] : memref<8x1xi32, #tpu.memory_space<vmem>>, vector<8x1xi32>
    %29 = vector.broadcast %28 : vector<8x1xi32> to vector<8x16xi32>
    %30 = arith.cmpi slt, %27, %29 : vector<8x16xi32>
    %cst_24 = arith.constant 0.000000e+00 : f32
    %cst_25 = arith.constant -1.000000e+30 : f32
    %31 = vector.broadcast %cst_24 : f32 to vector<8x16xf32>
    %32 = vector.broadcast %cst_25 : f32 to vector<8x16xf32>
    %33 = arith.select %30, %31, %32 : vector<8x16xi1>, vector<8x16xf32>
    %34 = vector.shape_cast %33 : vector<8x16xf32> to vector<8x16x1xf32>
    %35 = vector.broadcast %34 : vector<8x16x1xf32> to vector<8x16x256xf32>
    %36 = arith.addf %26, %35 : vector<8x16x256xf32>
    %cst_26 = arith.constant dense<0xFF800000> : vector<8x256xf32>
    %37 = vector.multi_reduction <maximumf>, %36, %cst_26 [1] : vector<8x16x256xf32> to vector<8x256xf32>
    %c0_27 = arith.constant 0 : index
    %c0_28 = arith.constant 0 : index
    %38 = vector.load %arg11[%c0_27, %c0_28] : memref<8x256xf32, #tpu.memory_space<vmem>>, vector<8x256xf32>
    tpu.vector_store %arg11[%c0_27, %c0_28], %37 {strides = array<i32>} : memref<8x256xf32, #tpu.memory_space<vmem>>, vector<8x256xf32>,
    return
  }
  func.func @transform_0(%arg0: i32) -> (i32, i32) {
    %c0_i32 = arith.constant 0 : i32
    %c0_i32_0 = arith.constant 0 : i32
    return %arg0, %c0_i32 : i32, i32
  }
  func.func @transform_1(%arg0: i32) -> (i32, i32) {
    %c0_i32 = arith.constant 0 : i32
    %c0_i32_0 = arith.constant 0 : i32
    return %arg0, %c0_i32 : i32, i32
  }
  func.func @transform_2(%arg0: i32) -> (i32, i32) {
    %c0_i32 = arith.constant 0 : i32
    %c0_i32_0 = arith.constant 0 : i32
    return %arg0, %c0_i32 : i32, i32
  }
  func.func @transform_3(%arg0: i32) -> (i32, i32) {
    %c0_i32 = arith.constant 0 : i32
    %c0_i32_0 = arith.constant 0 : i32
    %c0_i32_1 = arith.constant 0 : i32
    return %c0_i32, %c0_i32_0 : i32, i32
  }
  func.func @transform_4(%arg0: i32) -> (i32, i32) {
    %c0_i32 = arith.constant 0 : i32
    %c0_i32_0 = arith.constant 0 : i32
    %c0_i32_1 = arith.constant 0 : i32
    return %c0_i32, %c0_i32_0 : i32, i32
  }
  func.func @transform_5(%arg0: i32) -> (i32, i32) {
    %c0_i32 = arith.constant 0 : i32
    %c0_i32_0 = arith.constant 0 : i32
    %c0_i32_1 = arith.constant 0 : i32
    return %c0_i32, %c0_i32_0 : i32, i32
  }
  func.func @transform_6(%arg0: i32) -> (i32, i32) {
    %c0_i32 = arith.constant 0 : i32
    %c0_i32_0 = arith.constant 0 : i32
    %c0_i32_1 = arith.constant 0 : i32
    return %c0_i32, %c0_i32_0 : i32, i32
  }
  func.func @transform_7(%arg0: i32) -> (i32, i32) {
    %c0_i32 = arith.constant 0 : i32
    %c0_i32_0 = arith.constant 0 : i32
    %c0_i32_1 = arith.constant 0 : i32
    return %c0_i32, %c0_i32_0 : i32, i32
  }
  func.func @transform_8(%arg0: i32) -> (i32, i32) {
    %c0_i32 = arith.constant 0 : i32
    %c0_i32_0 = arith.constant 0 : i32
    %c0_i32_1 = arith.constant 0 : i32
    return %c0_i32, %c0_i32_0 : i32, i32
  }
  func.func @transform_9(%arg0: i32) -> (i32, i32) {
    %c0_i32 = arith.constant 0 : i32
    %c0_i32_0 = arith.constant 0 : i32
    %c0_i32_1 = arith.constant 0 : i32
    return %c0_i32, %c0_i32_0 : i32, i32
  }
  func.func @transform_10(%arg0: i32) -> (i32, i32) {
    %c0_i32 = arith.constant 0 : i32
    %c0_i32_0 = arith.constant 0 : i32
    return %arg0, %c0_i32 : i32, i32
  }
}

</mosaic_0001>

<llo_original>
// kernel: custom-call.16
$region0: #{custom-call.16}
  %s0 = inlined_call_operand.vmem [shape: f32[2,32], index: 0, kind: output, shape index: {}]

// kernel: custom-call.17
$region0: #{custom-call.17}
  %s0 = inlined_call_operand.vmem [shape: f32[2,16], index: 0, kind: output, shape index: {}]

// kernel: pointnet2_cls_forward.3
$region0: #{pointnet2_cls_forward.3}
  #allocation0 [shape = 'u32[]', space=smem, size = 0x4, offset = 0x4, fixed_abs, tag = 'smem constant byte address 0x4 - core index']
  #allocation1 [shape = 'u32[144,128]{1,0:T(1,128)}', space=vmem, size = 0x12000, scoped, tag = 'internal scratch']
  %s0 = inlined_call_operand.vmem [shape: bf16[1024,8], index: 0, kind: input, shape index: {}]
  %s1 = inlined_call_operand.vmem [shape: bf16[1024,8], index: 1, kind: input, shape index: {}]
  %s2 = inlined_call_operand.vmem [shape: s32[32,1], index: 2, kind: input, shape index: {}]
  %s3 = inlined_call_operand.vmem [shape: bf16[8,128], index: 3, kind: input, shape index: {}]
  %s4 = inlined_call_operand.vmem [shape: bf16[8,128], index: 4, kind: input, shape index: {}]
  %s5 = inlined_call_operand.vmem [shape: f32[1,128], index: 5, kind: input, shape index: {}]
  %s6 = inlined_call_operand.vmem [shape: bf16[128,128], index: 6, kind: input, shape index: {}]
  %s7 = inlined_call_operand.vmem [shape: f32[1,128], index: 7, kind: input, shape index: {}]
  %s8 = inlined_call_operand.vmem [shape: bf16[128,128], index: 8, kind: input, shape index: {}]
  %s9 = inlined_call_operand.vmem [shape: f32[1,128], index: 9, kind: input, shape index: {}]
  %s10 = inlined_call_operand.vmem [shape: f32[32,128], index: 10, kind: output, shape index: {}]
  %s11 = sld [smem:[#allocation0]]
  $region50: #{pointnet2_cls_forward.3} parent=0
    _
  %s13 = ssub.s32 1, %s11
  %s14 = scalar_select 0, %s13, %s11
  // Predicated region
  $region2: #{pointnet2_cls_forward.3} parent=0 // pred_check
    _
  $region3: #{pointnet2_cls_forward.3} parent=0 // pred_check_branch
    %16 = sbr.rel (0) target = $region5
  $region4: #{pointnet2_cls_forward.3} parent=0 // pred_region
    _
  $region5: #{pointnet2_cls_forward.3} parent=0 // pred_fallthru
    _
  // Predicated region
  $region6: #{pointnet2_cls_forward.3} parent=0 // pred_check
    _
  $region7: #{pointnet2_cls_forward.3} parent=0 // pred_check_branch
    %18 = sbr.rel (0) target = $region9
  $region8: #{pointnet2_cls_forward.3} parent=0 // pred_region
    _
  $region9: #{pointnet2_cls_forward.3} parent=0 // pred_fallthru
    _
  // Predicated region
  $region10: #{pointnet2_cls_forward.3} parent=0 // pred_check
    _
  $region11: #{pointnet2_cls_forward.3} parent=0 // pred_check_branch
    %20 = sbr.rel (0) target = $region13
  $region12: #{pointnet2_cls_forward.3} parent=0 // pred_region
    _
  $region13: #{pointnet2_cls_forward.3} parent=0 // pred_fallthru
    _
  // Predicated region
  $region14: #{pointnet2_cls_forward.3} parent=0 // pred_check
    _
  $region15: #{pointnet2_cls_forward.3} parent=0 // pred_check_branch
    %22 = sbr.rel (0) target = $region17
  $region16: #{pointnet2_cls_forward.3} parent=0 // pred_region
    _
  $region17: #{pointnet2_cls_forward.3} parent=0 // pred_fallthru
    _
  // Predicated region
  $region18: #{pointnet2_cls_forward.3} parent=0 // pred_check
    _
  $region19: #{pointnet2_cls_forward.3} parent=0 // pred_check_branch
    %24 = sbr.rel (0) target = $region21
  $region20: #{pointnet2_cls_forward.3} parent=0 // pred_region
    _
  $region21: #{pointnet2_cls_forward.3} parent=0 // pred_fallthru
    _
  // Predicated region
  $region22: #{pointnet2_cls_forward.3} parent=0 // pred_check
    _
  $region23: #{pointnet2_cls_forward.3} parent=0 // pred_check_branch
    %26 = sbr.rel (0) target = $region25
  $region24: #{pointnet2_cls_forward.3} parent=0 // pred_region
    _
  $region25: #{pointnet2_cls_forward.3} parent=0 // pred_fallthru
    _
  // Predicated region
  $region26: #{pointnet2_cls_forward.3} parent=0 // pred_check
    _
  $region27: #{pointnet2_cls_forward.3} parent=0 // pred_check_branch
    %28 = sbr.rel (0) target = $region29
  $region28: #{pointnet2_cls_forward.3} parent=0 // pred_region
    _
  $region29: #{pointnet2_cls_forward.3} parent=0 // pred_fallthru
    _
  // Predicated region
  $region30: #{pointnet2_cls_forward.3} parent=0 // pred_check
    _
  $region31: #{pointnet2_cls_forward.3} parent=0 // pred_check_branch
    %30 = sbr.rel (0) target = $region33
  $region32: #{pointnet2_cls_forward.3} parent=0 // pred_region
    _
  $region33: #{pointnet2_cls_forward.3} parent=0 // pred_fallthru
    _
  // Predicated region
  $region34: #{pointnet2_cls_forward.3} parent=0 // pred_check
    _
  $region35: #{pointnet2_cls_forward.3} parent=0 // pred_check_branch
    %32 = sbr.rel (0) target = $region37
  $region36: #{pointnet2_cls_forward.3} parent=0 // pred_region
    _
  $region37: #{pointnet2_cls_forward.3} parent=0 // pred_fallthru
    _
  // Predicated region
  $region38: #{pointnet2_cls_forward.3} parent=0 // pred_check
    _
  $region39: #{pointnet2_cls_forward.3} parent=0 // pred_check_branch
    %34 = sbr.rel (0) target = $region41
  $region40: #{pointnet2_cls_forward.3} parent=0 // pred_region
    _
  $region41: #{pointnet2_cls_forward.3} parent=0 // pred_fallthru
    _
  %v36 = vld [vmem:[%s0] sm:$0xf]
  %v37 = vld [vmem:[%s0 + $0x4] sm:$0xf]
  %v38 = vld [vmem:[%s0 + $0x8] sm:$0xf]
  %v39 = vld [vmem:[%s0 + $0xc] sm:$0xf]
  %v40 = vld [vmem:[%s0 + $0x10] sm:$0xf]
  %v41 = vld [vmem:[%s0 + $0x14] sm:$0xf]
  %v42 = vld [vmem:[%s0 + $0x18] sm:$0xf]
  %v43 = vld [vmem:[%s0 + $0x1c] sm:$0xf]
  %v44 = vld [vmem:[%s0 + $0x20] sm:$0xf]
  %v45 = vld [vmem:[%s0 + $0x24] sm:$0xf]
  %v46 = vld [vmem:[%s0 + $0x28] sm:$0xf]
  %v47 = vld [vmem:[%s0 + $0x2c] sm:$0xf]
  %v48 = vld [vmem:[%s0 + $0x30] sm:$0xf]
  %v49 = vld [vmem:[%s0 + $0x34] sm:$0xf]
  %v50 = vld [vmem:[%s0 + $0x38] sm:$0xf]
  %v51 = vld [vmem:[%s0 + $0x3c] sm:$0xf]
  %v52 = vld [vmem:[%s0 + $0x40] sm:$0xf]
  %v53 = vld [vmem:[%s0 + $0x44] sm:$0xf]
  %v54 = vld [vmem:[%s0 + $0x48] sm:$0xf]
  %v55 = vld [vmem:[%s0 + $0x4c] sm:$0xf]
  %v56 = vld [vmem:[%s0 + $0x50] sm:$0xf]
  %v57 = vld [vmem:[%s0 + $0x54] sm:$0xf]
  %v58 = vld [vmem:[%s0 + $0x58] sm:$0xf]
  %v59 = vld [vmem:[%s0 + $0x5c] sm:$0xf]
  %v60 = vld [vmem:[%s0 + $0x60] sm:$0xf]
  %v61 = vld [vmem:[%s0 + $0x64] sm:$0xf]
  %v62 = vld [vmem:[%s0 + $0x68] sm:$0xf]
  %v63 = vld [vmem:[%s0 + $0x6c] sm:$0xf]
  %v64 = vld [vmem:[%s0 + $0x70] sm:$0xf]
  %v65 = vld [vmem:[%s0 + $0x74] sm:$0xf]
  %v66 = vld [vmem:[%s0 + $0x78] sm:$0xf]
  %v67 = vld [vmem:[%s0 + $0x7c] sm:$0xf]
  %v68 = vld [vmem:[%s0 + $0x80] sm:$0xf]
  %v69 = vld [vmem:[%s0 + $0x84] sm:$0xf]
  %v70 = vld [vmem:[%s0 + $0x88] sm:$0xf]
  %v71 = vld [vmem:[%s0 + $0x8c] sm:$0xf]
  %v72 = vld [vmem:[%s0 + $0x90] sm:$0xf]
  %v73 = vld [vmem:[%s0 + $0x94] sm:$0xf]
  %v74 = vld [vmem:[%s0 + $0x98] sm:$0xf]
  %v75 = vld [vmem:[%s0 + $0x9c] sm:$0xf]
  %v76 = vld [vmem:[%s0 + $0xa0] sm:$0xf]
  %v77 = vld [vmem:[%s0 + $0xa4] sm:$0xf]
  %v78 = vld [vmem:[%s0 + $0xa8] sm:$0xf]
  %v79 = vld [vmem:[%s0 + $0xac] sm:$0xf]
  %v80 = vld [vmem:[%s0 + $0xb0] sm:$0xf]
  %v81 = vld [vmem:[%s0 + $0xb4] sm:$0xf]
  %v82 = vld [vmem:[%s0 + $0xb8] sm:$0xf]
  %v83 = vld [vmem:[%s0 + $0xbc] sm:$0xf]
  %v84 = vld [vmem:[%s0 + $0xc0] sm:$0xf]
  %v85 = vld [vmem:[%s0 + $0xc4] sm:$0xf]
  %v86 = vld [vmem:[%s0 + $0xc8] sm:$0xf]
  %v87 = vld [vmem:[%s0 + $0xcc] sm:$0xf]
  %v88 = vld [vmem:[%s0 + $0xd0] sm:$0xf]
  %v89 = vld [vmem:[%s0 + $0xd4] sm:$0xf]
  %v90 = vld [vmem:[%s0 + $0xd8] sm:$0xf]
  %v91 = vld [vmem:[%s0 + $0xdc] sm:$0xf]
  %v92 = vld [vmem:[%s0 + $0xe0] sm:$0xf]
  %v93 = vld [vmem:[%s0 + $0xe4] sm:$0xf]
  %v94 = vld [vmem:[%s0 + $0xe8] sm:$0xf]
  %v95 = vld [vmem:[%s0 + $0xec] sm:$0xf]
  %v96 = vld [vmem:[%s0 + $0xf0] sm:$0xf]
  %v97 = vld [vmem:[%s0 + $0xf4] sm:$0xf]
  %v98 = vld [vmem:[%s0 + $0xf8] sm:$0xf]
  %v99 = vld [vmem:[%s0 + $0xfc] sm:$0xf]
  %v100 = vld [vmem:[%s0 + $0x100] sm:$0xf]
  %v101 = vld [vmem:[%s0 + $0x104] sm:$0xf]
  %v102 = vld [vmem:[%s0 + $0x108] sm:$0xf]
  %v103 = vld [vmem:[%s0 + $0x10c] sm:$0xf]
  %v104 = vld [vmem:[%s0 + $0x110] sm:$0xf]
  %v105 = vld [vmem:[%s0 + $0x114] sm:$0xf]
  %v106 = vld [vmem:[%s0 + $0x118] sm:$0xf]
  %v107 = vld [vmem:[%s0 + $0x11c] sm:$0xf]
  %v108 = vld [vmem:[%s0 + $0x120] sm:$0xf]
  %v109 = vld [vmem:[%s0 + $0x124] sm:$0xf]
  %v110 = vld [vmem:[%s0 + $0x128] sm:$0xf]
  %v111 = vld [vmem:[%s0 + $0x12c] sm:$0xf]
  %v112 = vld [vmem:[%s0 + $0x130] sm:$0xf]
  %v113 = vld [vmem:[%s0 + $0x134] sm:$0xf]
  %v114 = vld [vmem:[%s0 + $0x138] sm:$0xf]
  %v115 = vld [vmem:[%s0 + $0x13c] sm:$0xf]
  %v116 = vld [vmem:[%s0 + $0x140] sm:$0xf]
  %v117 = vld [vmem:[%s0 + $0x144] sm:$0xf]
  %v118 = vld [vmem:[%s0 + $0x148] sm:$0xf]
  %v119 = vld [vmem:[%s0 + $0x14c] sm:$0xf]
  %v120 = vld [vmem:[%s0 + $0x150] sm:$0xf]
  %v121 = vld [vmem:[%s0 + $0x154] sm:$0xf]
  %v122 = vld [vmem:[%s0 + $0x158] sm:$0xf]
  %v123 = vld [vmem:[%s0 + $0x15c] sm:$0xf]
  %v124 = vld [vmem:[%s0 + $0x160] sm:$0xf]
  %v125 = vld [vmem:[%s0 + $0x164] sm:$0xf]
  %v126 = vld [vmem:[%s0 + $0x168] sm:$0xf]
  %v127 = vld [vmem:[%s0 + $0x16c] sm:$0xf]
  %v128 = vld [vmem:[%s0 + $0x170] sm:$0xf]
  %v129 = vld [vmem:[%s0 + $0x174] sm:$0xf]
  %v130 = vld [vmem:[%s0 + $0x178] sm:$0xf]
  %v131 = vld [vmem:[%s0 + $0x17c] sm:$0xf]
  %v132 = vld [vmem:[%s0 + $0x180] sm:$0xf]
  %v133 = vld [vmem:[%s0 + $0x184] sm:$0xf]
  %v134 = vld [vmem:[%s0 + $0x188] sm:$0xf]
  %v135 = vld [vmem:[%s0 + $0x18c] sm:$0xf]
  %v136 = vld [vmem:[%s0 + $0x190] sm:$0xf]
  %v137 = vld [vmem:[%s0 + $0x194] sm:$0xf]
  %v138 = vld [vmem:[%s0 + $0x198] sm:$0xf]
  %v139 = vld [vmem:[%s0 + $0x19c] sm:$0xf]
  %v140 = vld [vmem:[%s0 + $0x1a0] sm:$0xf]
  %v141 = vld [vmem:[%s0 + $0x1a4] sm:$0xf]
  %v142 = vld [vmem:[%s0 + $0x1a8] sm:$0xf]
  %v143 = vld [vmem:[%s0 + $0x1ac] sm:$0xf]
  %v144 = vld [vmem:[%s0 + $0x1b0] sm:$0xf]
  %v145 = vld [vmem:[%s0 + $0x1b4] sm:$0xf]
  %v146 = vld [vmem:[%s0 + $0x1b8] sm:$0xf]
  %v147 = vld [vmem:[%s0 + $0x1bc] sm:$0xf]
  %v148 = vld [vmem:[%s0 + $0x1c0] sm:$0xf]
  %v149 = vld [vmem:[%s0 + $0x1c4] sm:$0xf]
  %v150 = vld [vmem:[%s0 + $0x1c8] sm:$0xf]
  %v151 = vld [vmem:[%s0 + $0x1cc] sm:$0xf]
  %v152 = vld [vmem:[%s0 + $0x1d0] sm:$0xf]
  %v153 = vld [vmem:[%s0 + $0x1d4] sm:$0xf]
  %v154 = vld [vmem:[%s0 + $0x1d8] sm:$0xf]
  %v155 = vld [vmem:[%s0 + $0x1dc] sm:$0xf]
  %v156 = vld [vmem:[%s0 + $0x1e0] sm:$0xf]
  %v157 = vld [vmem:[%s0 + $0x1e4] sm:$0xf]
  %v158 = vld [vmem:[%s0 + $0x1e8] sm:$0xf]
  %v159 = vld [vmem:[%s0 + $0x1ec] sm:$0xf]
  %v160 = vld [vmem:[%s0 + $0x1f0] sm:$0xf]
  %v161 = vld [vmem:[%s0 + $0x1f4] sm:$0xf]
  %v162 = vld [vmem:[%s0 + $0x1f8] sm:$0xf]
  %v163 = vld [vmem:[%s0 + $0x1fc] sm:$0xf]
  %v164 = vld [vmem:[%s3] sm:$0xf]
  %v165 = vld [vmem:[%s1] sm:$0xf]
  %v166 = vld [vmem:[%s1 + $0x4] sm:$0xf]
  %v167 = vld [vmem:[%s1 + $0x8] sm:$0xf]
  %v168 = vld [vmem:[%s1 + $0xc] sm:$0xf]
  %v169 = vld [vmem:[%s1 + $0x10] sm:$0xf]
  %v170 = vld [vmem:[%s1 + $0x14] sm:$0xf]
  %v171 = vld [vmem:[%s1 + $0x18] sm:$0xf]
  %v172 = vld [vmem:[%s1 + $0x1c] sm:$0xf]
  %v173 = vld [vmem:[%s1 + $0x20] sm:$0xf]
  %v174 = vld [vmem:[%s1 + $0x24] sm:$0xf]
  %v175 = vld [vmem:[%s1 + $0x28] sm:$0xf]
  %v176 = vld [vmem:[%s1 + $0x2c] sm:$0xf]
  %v177 = vld [vmem:[%s1 + $0x30] sm:$0xf]
  %v178 = vld [vmem:[%s1 + $0x34] sm:$0xf]
  %v179 = vld [vmem:[%s1 + $0x38] sm:$0xf]
  %v180 = vld [vmem:[%s1 + $0x3c] sm:$0xf]
  %v181 = vld [vmem:[%s1 + $0x40] sm:$0xf]
  %v182 = vld [vmem:[%s1 + $0x44] sm:$0xf]
  %v183 = vld [vmem:[%s1 + $0x48] sm:$0xf]
  %v184 = vld [vmem:[%s1 + $0x4c] sm:$0xf]
  %v185 = vld [vmem:[%s1 + $0x50] sm:$0xf]
  %v186 = vld [vmem:[%s1 + $0x54] sm:$0xf]
  %v187 = vld [vmem:[%s1 + $0x58] sm:$0xf]
  %v188 = vld [vmem:[%s1 + $0x5c] sm:$0xf]
  %v189 = vld [vmem:[%s1 + $0x60] sm:$0xf]
  %v190 = vld [vmem:[%s1 + $0x64] sm:$0xf]
  %v191 = vld [vmem:[%s1 + $0x68] sm:$0xf]
  %v192 = vld [vmem:[%s1 + $0x6c] sm:$0xf]
  %v193 = vld [vmem:[%s1 + $0x70] sm:$0xf]
  %v194 = vld [vmem:[%s1 + $0x74] sm:$0xf]
  %v195 = vld [vmem:[%s1 + $0x78] sm:$0xf]
  %v196 = vld [vmem:[%s1 + $0x7c] sm:$0xf]
  %v197 = vld [vmem:[%s1 + $0x80] sm:$0xf]
  %v198 = vld [vmem:[%s1 + $0x84] sm:$0xf]
  %v199 = vld [vmem:[%s1 + $0x88] sm:$0xf]
  %v200 = vld [vmem:[%s1 + $0x8c] sm:$0xf]
  %v201 = vld [vmem:[%s1 + $0x90] sm:$0xf]
  %v202 = vld [vmem:[%s1 + $0x94] sm:$0xf]
  %v203 = vld [vmem:[%s1 + $0x98] sm:$0xf]
  %v204 = vld [vmem:[%s1 + $0x9c] sm:$0xf]
  %v205 = vld [vmem:[%s1 + $0xa0] sm:$0xf]
  %v206 = vld [vmem:[%s1 + $0xa4] sm:$0xf]
  %v207 = vld [vmem:[%s1 + $0xa8] sm:$0xf]
  %v208 = vld [vmem:[%s1 + $0xac] sm:$0xf]
  %v209 = vld [vmem:[%s1 + $0xb0] sm:$0xf]
  %v210 = vld [vmem:[%s1 + $0xb4] sm:$0xf]
  %v211 = vld [vmem:[%s1 + $0xb8] sm:$0xf]
  %v212 = vld [vmem:[%s1 + $0xbc] sm:$0xf]
  %v213 = vld [vmem:[%s1 + $0xc0] sm:$0xf]
  %v214 = vld [vmem:[%s1 + $0xc4] sm:$0xf]
  %v215 = vld [vmem:[%s1 + $0xc8] sm:$0xf]
  %v216 = vld [vmem:[%s1 + $0xcc] sm:$0xf]
  %v217 = vld [vmem:[%s1 + $0xd0] sm:$0xf]
  %v218 = vld [vmem:[%s1 + $0xd4] sm:$0xf]
  %v219 = vld [vmem:[%s1 + $0xd8] sm:$0xf]
  %v220 = vld [vmem:[%s1 + $0xdc] sm:$0xf]
  %v221 = vld [vmem:[%s1 + $0xe0] sm:$0xf]
  %v222 = vld [vmem:[%s1 + $0xe4] sm:$0xf]
  %v223 = vld [vmem:[%s1 + $0xe8] sm:$0xf]
  %v224 = vld [vmem:[%s1 + $0xec] sm:$0xf]
  %v225 = vld [vmem:[%s1 + $0xf0] sm:$0xf]
  %v226 = vld [vmem:[%s1 + $0xf4] sm:$0xf]
  %v227 = vld [vmem:[%s1 + $0xf8] sm:$0xf]
  %v228 = vld [vmem:[%s1 + $0xfc] sm:$0xf]
  %v229 = vld [vmem:[%s1 + $0x100] sm:$0xf]
  %v230 = vld [vmem:[%s1 + $0x104] sm:$0xf]
  %v231 = vld [vmem:[%s1 + $0x108] sm:$0xf]
  %v232 = vld [vmem:[%s1 + $0x10c] sm:$0xf]
  %v233 = vld [vmem:[%s1 + $0x110] sm:$0xf]
  %v234 = vld [vmem:[%s1 + $0x114] sm:$0xf]
  %v235 = vld [vmem:[%s1 + $0x118] sm:$0xf]
  %v236 = vld [vmem:[%s1 + $0x11c] sm:$0xf]
  %v237 = vld [vmem:[%s1 + $0x120] sm:$0xf]
  %v238 = vld [vmem:[%s1 + $0x124] sm:$0xf]
  %v239 = vld [vmem:[%s1 + $0x128] sm:$0xf]
  %v240 = vld [vmem:[%s1 + $0x12c] sm:$0xf]
  %v241 = vld [vmem:[%s1 + $0x130] sm:$0xf]
  %v242 = vld [vmem:[%s1 + $0x134] sm:$0xf]
  %v243 = vld [vmem:[%s1 + $0x138] sm:$0xf]
  %v244 = vld [vmem:[%s1 + $0x13c] sm:$0xf]
  %v245 = vld [vmem:[%s1 + $0x140] sm:$0xf]
  %v246 = vld [vmem:[%s1 + $0x144] sm:$0xf]
  %v247 = vld [vmem:[%s1 + $0x148] sm:$0xf]
  %v248 = vld [vmem:[%s1 + $0x14c] sm:$0xf]
  %v249 = vld [vmem:[%s1 + $0x150] sm:$0xf]
  %v250 = vld [vmem:[%s1 + $0x154] sm:$0xf]
  %v251 = vld [vmem:[%s1 + $0x158] sm:$0xf]
  %v252 = vld [vmem:[%s1 + $0x15c] sm:$0xf]
  %v253 = vld [vmem:[%s1 + $0x160] sm:$0xf]
  %v254 = vld [vmem:[%s1 + $0x164] sm:$0xf]
  %v255 = vld [vmem:[%s1 + $0x168] sm:$0xf]
  %v256 = vld [vmem:[%s1 + $0x16c] sm:$0xf]
  %v257 = vld [vmem:[%s1 + $0x170] sm:$0xf]
  %v258 = vld [vmem:[%s1 + $0x174] sm:$0xf]
  %v259 = vld [vmem:[%s1 + $0x178] sm:$0xf]
  %v260 = vld [vmem:[%s1 + $0x17c] sm:$0xf]
  %v261 = vld [vmem:[%s1 + $0x180] sm:$0xf]
  %v262 = vld [vmem:[%s1 + $0x184] sm:$0xf]
  %v263 = vld [vmem:[%s1 + $0x188] sm:$0xf]
  %v264 = vld [vmem:[%s1 + $0x18c] sm:$0xf]
  %v265 = vld [vmem:[%s1 + $0x190] sm:$0xf]
  %v266 = vld [vmem:[%s1 + $0x194] sm:$0xf]
  %v267 = vld [vmem:[%s1 + $0x198] sm:$0xf]
  %v268 = vld [vmem:[%s1 + $0x19c] sm:$0xf]
  %v269 = vld [vmem:[%s1 + $0x1a0] sm:$0xf]
  %v270 = vld [vmem:[%s1 + $0x1a4] sm:$0xf]
  %v271 = vld [vmem:[%s1 + $0x1a8] sm:$0xf]
  %v272 = vld [vmem:[%s1 + $0x1ac] sm:$0xf]
  %v273 = vld [vmem:[%s1 + $0x1b0] sm:$0xf]
  %v274 = vld [vmem:[%s1 + $0x1b4] sm:$0xf]
  %v275 = vld [vmem:[%s1 + $0x1b8] sm:$0xf]
  %v276 = vld [vmem:[%s1 + $0x1bc] sm:$0xf]
  %v277 = vld [vmem:[%s1 + $0x1c0] sm:$0xf]
  %v278 = vld [vmem:[%s1 + $0x1c4] sm:$0xf]
  %v279 = vld [vmem:[%s1 + $0x1c8] sm:$0xf]
  %v280 = vld [vmem:[%s1 + $0x1cc] sm:$0xf]
  %v281 = vld [vmem:[%s1 + $0x1d0] sm:$0xf]
  %v282 = vld [vmem:[%s1 + $0x1d4] sm:$0xf]
  %v283 = vld [vmem:[%s1 + $0x1d8] sm:$0xf]
  %v284 = vld [vmem:[%s1 + $0x1dc] sm:$0xf]
  %v285 = vld [vmem:[%s1 + $0x1e0] sm:$0xf]
  %v286 = vld [vmem:[%s1 + $0x1e4] sm:$0xf]
  %v287 = vld [vmem:[%s1 + $0x1e8] sm:$0xf]
  %v288 = vld [vmem:[%s1 + $0x1ec] sm:$0xf]
  %v289 = vld [vmem:[%s1 + $0x1f0] sm:$0xf]
  %v290 = vld [vmem:[%s1 + $0x1f4] sm:$0xf]
  %v291 = vld [vmem:[%s1 + $0x1f8] sm:$0xf]
  %v292 = vld [vmem:[%s1 + $0x1fc] sm:$0xf]
  %v293 = vld [vmem:[%s4] sm:$0xf]
  %v422 = vunpack.c.l.b16 %v165
  %v423 = vunpack.c.l.b16 %v166
  %v424 = vunpack.c.l.b16 %v167
  %v425 = vunpack.c.l.b16 %v168
  %v426 = vunpack.c.l.b16 %v169
  %v427 = vunpack.c.l.b16 %v170
  %v428 = vunpack.c.l.b16 %v171
  %v429 = vunpack.c.l.b16 %v172
  %v430 = vunpack.c.l.b16 %v173
  %v431 = vunpack.c.l.b16 %v174
  %v432 = vunpack.c.l.b16 %v175
  %v433 = vunpack.c.l.b16 %v176
  %v434 = vunpack.c.l.b16 %v177
  %v435 = vunpack.c.l.b16 %v178
  %v436 = vunpack.c.l.b16 %v179
  %v437 = vunpack.c.l.b16 %v180
  %v438 = vunpack.c.l.b16 %v181
  %v439 = vunpack.c.l.b16 %v182
  %v440 = vunpack.c.l.b16 %v183
  %v441 = vunpack.c.l.b16 %v184
  %v442 = vunpack.c.l.b16 %v185
  %v443 = vunpack.c.l.b16 %v186
  %v444 = vunpack.c.l.b16 %v187
  %v445 = vunpack.c.l.b16 %v188
  %v446 = vunpack.c.l.b16 %v189
  %v447 = vunpack.c.l.b16 %v190
  %v448 = vunpack.c.l.b16 %v191
  %v449 = vunpack.c.l.b16 %v192
  %v450 = vunpack.c.l.b16 %v193
  %v451 = vunpack.c.l.b16 %v194
  %v452 = vunpack.c.l.b16 %v195
  %v453 = vunpack.c.l.b16 %v196
  %v454 = vunpack.c.l.b16 %v197
  %v455 = vunpack.c.l.b16 %v198
  %v456 = vunpack.c.l.b16 %v199
  %v457 = vunpack.c.l.b16 %v200
  %v458 = vunpack.c.l.b16 %v201
  %v459 = vunpack.c.l.b16 %v202
  %v460 = vunpack.c.l.b16 %v203
  %v461 = vunpack.c.l.b16 %v204
  %v462 = vunpack.c.l.b16 %v205
  %v463 = vunpack.c.l.b16 %v206
  %v464 = vunpack.c.l.b16 %v207
  %v465 = vunpack.c.l.b16 %v208
  %v466 = vunpack.c.l.b16 %v209
  %v467 = vunpack.c.l.b16 %v210
  %v468 = vunpack.c.l.b16 %v211
  %v469 = vunpack.c.l.b16 %v212
  %v470 = vunpack.c.l.b16 %v213
  %v471 = vunpack.c.l.b16 %v214
  %v472 = vunpack.c.l.b16 %v215
  %v473 = vunpack.c.l.b16 %v216
  %v474 = vunpack.c.l.b16 %v217
  %v475 = vunpack.c.l.b16 %v218
  %v476 = vunpack.c.l.b16 %v219
  %v477 = vunpack.c.l.b16 %v220
  %v478 = vunpack.c.l.b16 %v221
  %v479 = vunpack.c.l.b16 %v222
  %v480 = vunpack.c.l.b16 %v223
  %v481 = vunpack.c.l.b16 %v224
  %v482 = vunpack.c.l.b16 %v225
  %v483 = vunpack.c.l.b16 %v226
  %v484 = vunpack.c.l.b16 %v227
  %v485 = vunpack.c.l.b16 %v228
  %v486 = vunpack.c.l.b16 %v229
  %v487 = vunpack.c.l.b16 %v230
  %v488 = vunpack.c.l.b16 %v231
  %v489 = vunpack.c.l.b16 %v232
  %v490 = vunpack.c.l.b16 %v233
  %v491 = vunpack.c.l.b16 %v234
  %v492 = vunpack.c.l.b16 %v235
  %v493 = vunpack.c.l.b16 %v236
  %v494 = vunpack.c.l.b16 %v237
  %v495 = vunpack.c.l.b16 %v238
  %v496 = vunpack.c.l.b16 %v239
  %v497 = vunpack.c.l.b16 %v240
  %v498 = vunpack.c.l.b16 %v241
  %v499 = vunpack.c.l.b16 %v242
  %v500 = vunpack.c.l.b16 %v243
  %v501 = vunpack.c.l.b16 %v244
  %v502 = vunpack.c.l.b16 %v245
  %v503 = vunpack.c.l.b16 %v246
  %v504 = vunpack.c.l.b16 %v247
  %v505 = vunpack.c.l.b16 %v248
  %v506 = vunpack.c.l.b16 %v249
  %v507 = vunpack.c.l.b16 %v250
  %v508 = vunpack.c.l.b16 %v251
  %v509 = vunpack.c.l.b16 %v252
  %v510 = vunpack.c.l.b16 %v253
  %v511 = vunpack.c.l.b16 %v254
  %v512 = vunpack.c.l.b16 %v255
  %v513 = vunpack.c.l.b16 %v256
  %v514 = vunpack.c.l.b16 %v257
  %v515 = vunpack.c.l.b16 %v258
  %v516 = vunpack.c.l.b16 %v259
  %v517 = vunpack.c.l.b16 %v260
  %v518 = vunpack.c.l.b16 %v261
  %v519 = vunpack.c.l.b16 %v262
  %v520 = vunpack.c.l.b16 %v263
  %v521 = vunpack.c.l.b16 %v264
  %v522 = vunpack.c.l.b16 %v265
  %v523 = vunpack.c.l.b16 %v266
  %v524 = vunpack.c.l.b16 %v267
  %v525 = vunpack.c.l.b16 %v268
  %v526 = vunpack.c.l.b16 %v269
  %v527 = vunpack.c.l.b16 %v270
  %v528 = vunpack.c.l.b16 %v271
  %v529 = vunpack.c.l.b16 %v272
  %v530 = vunpack.c.l.b16 %v273
  %v531 = vunpack.c.l.b16 %v274
  %v532 = vunpack.c.l.b16 %v275
  %v533 = vunpack.c.l.b16 %v276
  %v534 = vunpack.c.l.b16 %v277
  %v535 = vunpack.c.l.b16 %v278
  %v536 = vunpack.c.l.b16 %v279
  %v537 = vunpack.c.l.b16 %v280
  %v538 = vunpack.c.l.b16 %v281
  %v539 = vunpack.c.l.b16 %v282
  %v540 = vunpack.c.l.b16 %v283
  %v541 = vunpack.c.l.b16 %v284
  %v542 = vunpack.c.l.b16 %v285
  %v543 = vunpack.c.l.b16 %v286
  %v544 = vunpack.c.l.b16 %v287
  %v545 = vunpack.c.l.b16 %v288
  %v546 = vunpack.c.l.b16 %v289
  %v547 = vunpack.c.l.b16 %v290
  %v548 = vunpack.c.l.b16 %v291
  %v549 = vunpack.c.l.b16 %v292
  %v550 = vpack.c.b16 %v423, %v422
  %v551 = vpack.c.b16 %v425, %v424
  %v552 = vpack.c.b16 %v427, %v426
  %v553 = vpack.c.b16 %v429, %v428
  %v554 = vpack.c.b16 %v431, %v430
  %v555 = vpack.c.b16 %v433, %v432
  %v556 = vpack.c.b16 %v435, %v434
  %v557 = vpack.c.b16 %v437, %v436
  %v558 = vpack.c.b16 %v439, %v438
  %v559 = vpack.c.b16 %v441, %v440
  %v560 = vpack.c.b16 %v443, %v442
  %v561 = vpack.c.b16 %v445, %v444
  %v562 = vpack.c.b16 %v447, %v446
  %v563 = vpack.c.b16 %v449, %v448
  %v564 = vpack.c.b16 %v451, %v450
  %v565 = vpack.c.b16 %v453, %v452
  %v566 = vpack.c.b16 %v455, %v454
  %v567 = vpack.c.b16 %v457, %v456
  %v568 = vpack.c.b16 %v459, %v458
  %v569 = vpack.c.b16 %v461, %v460
  %v570 = vpack.c.b16 %v463, %v462
  %v571 = vpack.c.b16 %v465, %v464
  %v572 = vpack.c.b16 %v467, %v466
  %v573 = vpack.c.b16 %v469, %v468
  %v574 = vpack.c.b16 %v471, %v470
  %v575 = vpack.c.b16 %v473, %v472
  %v576 = vpack.c.b16 %v475, %v474
  %v577 = vpack.c.b16 %v477, %v476
  %v578 = vpack.c.b16 %v479, %v478
  %v579 = vpack.c.b16 %v481, %v480
  %v580 = vpack.c.b16 %v483, %v482
  %v581 = vpack.c.b16 %v485, %v484
  %v582 = vpack.c.b16 %v487, %v486
  %v583 = vpack.c.b16 %v489, %v488
  %v584 = vpack.c.b16 %v491, %v490
  %v585 = vpack.c.b16 %v493, %v492
  %v586 = vpack.c.b16 %v495, %v494
  %v587 = vpack.c.b16 %v497, %v496
  %v588 = vpack.c.b16 %v499, %v498
  %v589 = vpack.c.b16 %v501, %v500
  %v590 = vpack.c.b16 %v503, %v502
  %v591 = vpack.c.b16 %v505, %v504
  %v592 = vpack.c.b16 %v507, %v506
  %v593 = vpack.c.b16 %v509, %v508
  %v594 = vpack.c.b16 %v511, %v510
  %v595 = vpack.c.b16 %v513, %v512
  %v596 = vpack.c.b16 %v515, %v514
  %v597 = vpack.c.b16 %v517, %v516
  %v598 = vpack.c.b16 %v519, %v518
  %v599 = vpack.c.b16 %v521, %v520
  %v600 = vpack.c.b16 %v523, %v522
  %v601 = vpack.c.b16 %v525, %v524
  %v602 = vpack.c.b16 %v527, %v526
  %v603 = vpack.c.b16 %v529, %v528
  %v604 = vpack.c.b16 %v531, %v530
  %v605 = vpack.c.b16 %v533, %v532
  %v606 = vpack.c.b16 %v535, %v534
  %v607 = vpack.c.b16 %v537, %v536
  %v608 = vpack.c.b16 %v539, %v538
  %v609 = vpack.c.b16 %v541, %v540
  %v610 = vpack.c.b16 %v543, %v542
  %v611 = vpack.c.b16 %v545, %v544
  %v612 = vpack.c.b16 %v547, %v546
  %v613 = vpack.c.b16 %v549, %v548
  %vm614 = vcmask 64512
  %v616 = vsel %vm614, %v550, 0
  %v619 = vsel %vm614, %v551, 0
  %v622 = vsel %vm614, %v552, 0
  %v625 = vsel %vm614, %v553, 0
  %v628 = vsel %vm614, %v554, 0
  %v631 = vsel %vm614, %v555, 0
  %v634 = vsel %vm614, %v556, 0
  %v637 = vsel %vm614, %v557, 0
  %v640 = vsel %vm614, %v558, 0
  %v643 = vsel %vm614, %v559, 0
  %v646 = vsel %vm614, %v560, 0
  %v649 = vsel %vm614, %v561, 0
  %v652 = vsel %vm614, %v562, 0
  %v655 = vsel %vm614, %v563, 0
  %v658 = vsel %vm614, %v564, 0
  %v661 = vsel %vm614, %v565, 0
  %v664 = vsel %vm614, %v566, 0
  %v667 = vsel %vm614, %v567, 0
  %v670 = vsel %vm614, %v568, 0
  %v673 = vsel %vm614, %v569, 0
  %v676 = vsel %vm614, %v570, 0
  %v679 = vsel %vm614, %v571, 0
  %v682 = vsel %vm614, %v572, 0
  %v685 = vsel %vm614, %v573, 0
  %v688 = vsel %vm614, %v574, 0
  %v691 = vsel %vm614, %v575, 0
  %v694 = vsel %vm614, %v576, 0
  %v697 = vsel %vm614, %v577, 0
  %v700 = vsel %vm614, %v578, 0
  %v703 = vsel %vm614, %v579, 0
  %v706 = vsel %vm614, %v580, 0
  %v709 = vsel %vm614, %v581, 0
  %v712 = vsel %vm614, %v582, 0
  %v715 = vsel %vm614, %v583, 0
  %v718 = vsel %vm614, %v584, 0
  %v721 = vsel %vm614, %v585, 0
  %v724 = vsel %vm614, %v586, 0
  %v727 = vsel %vm614, %v587, 0
  %v730 = vsel %vm614, %v588, 0
  %v733 = vsel %vm614, %v589, 0
  %v736 = vsel %vm614, %v590, 0
  %v739 = vsel %vm614, %v591, 0
  %v742 = vsel %vm614, %v592, 0
  %v745 = vsel %vm614, %v593, 0
  %v748 = vsel %vm614, %v594, 0
  %v751 = vsel %vm614, %v595, 0
  %v754 = vsel %vm614, %v596, 0
  %v757 = vsel %vm614, %v597, 0
  %v760 = vsel %vm614, %v598, 0
  %v763 = vsel %vm614, %v599, 0
  %v766 = vsel %vm614, %v600, 0
  %v769 = vsel %vm614, %v601, 0
  %v772 = vsel %vm614, %v602, 0
  %v775 = vsel %vm614, %v603, 0
  %v778 = vsel %vm614, %v604, 0
  %v781 = vsel %vm614, %v605, 0
  %v784 = vsel %vm614, %v606, 0
  %v787 = vsel %vm614, %v607, 0
  %v790 = vsel %vm614, %v608, 0
  %v793 = vsel %vm614, %v609, 0
  %v796 = vsel %vm614, %v610, 0
  %v799 = vsel %vm614, %v611, 0
  %v802 = vsel %vm614, %v612, 0
  %v805 = vsel %vm614, %v613, 0
  %vm807 = vcmask 1043456
  %v809 = vsel %vm807, %v293, 0
  %811 = vmatprep.subr.bf16.mxu0 0
  %812 = vmatpush1.bf16.msra.mxu0 %v809
  %813 = vmatprep.subr.bf16.mxu0 0
  %814 = vmatpush1.bf16.msra.mxu0 0
  %815 = vmatprep.subr.bf16.mxu0 0
  %816 = vmatpush1.bf16.msra.mxu0 0
  %817 = vmatprep.subr.bf16.mxu0 0
  %818 = vmatpush1.bf16.msra.mxu0 0
  %819 = vmatprep.subr.bf16.mxu0 0
  %820 = vmatpush1.bf16.msra.mxu0 0
  %821 = vmatprep.subr.bf16.mxu0 0
  %822 = vmatpush1.bf16.msra.mxu0 0
  %823 = vmatprep.subr.bf16.mxu0 0
  %824 = vmatpush1.bf16.msra.mxu0 0
  %825 = vmatprep.subr.bf16.mxu0 0
  %826 = vmatpush1.bf16.msra.mxu0 0
  %827 = vmatprep.subr.bf16.mxu0 0
  %828 = vmatpush1.bf16.msra.mxu0 0
  %829 = vmatprep.subr.bf16.mxu0 0
  %830 = vmatpush1.bf16.msra.mxu0 0
  %831 = vmatprep.subr.bf16.mxu0 0
  %832 = vmatpush1.bf16.msra.mxu0 0
  %833 = vmatprep.subr.bf16.mxu0 0
  %834 = vmatpush1.bf16.msra.mxu0 0
  %835 = vmatprep.subr.bf16.mxu0 0
  %836 = vmatpush1.bf16.msra.mxu0 0
  %837 = vmatprep.subr.bf16.mxu0 0
  %838 = vmatpush1.bf16.msra.mxu0 0
  %839 = vmatprep.subr.bf16.mxu0 0
  %840 = vmatpush1.bf16.msra.mxu0 0
  %841 = vmatprep.subr.bf16.mxu0 0
  %842 = vmatpush1.bf16.msra.mxu0 0
  %843 = vmatprep.mubr.bf16.mxu0 0
  %844 = vmatmul.mubr.bf16.gmra.mrb[0].mxu0 %v616
  %v845 = vpop.f32.mrb[0].mxu0
  %v846 = vadd.f32 0.0, %v845
  %v847 = vpop.f32.mrb[0].mxu0
  %v848 = vpop.f32.mrb[0].mxu0
  %v849 = vadd.f32 0.0, %v848
  %v850 = vpop.f32.mrb[0].mxu0
  %851 = vmatprep.mubr.bf16.mxu0 0
  %852 = vmatmul.mubr.bf16.gmra.mrb[0].mxu0 %v619
  %v853 = vpop.f32.mrb[0].mxu0
  %v854 = vadd.f32 0.0, %v853
  %v855 = vpop.f32.mrb[0].mxu0
  %v856 = vpop.f32.mrb[0].mxu0
  %v857 = vadd.f32 0.0, %v856
  %v858 = vpop.f32.mrb[0].mxu0
  %859 = vmatprep.mubr.bf16.mxu0 0
  %860 = vmatmul.mubr.bf16.gmra.mrb[0].mxu0 %v622
  %v861 = vpop.f32.mrb[0].mxu0
  %v862 = vadd.f32 0.0, %v861
  %v863 = vpop.f32.mrb[0].mxu0
  %v864 = vpop.f32.mrb[0].mxu0
  %v865 = vadd.f32 0.0, %v864
  %v866 = vpop.f32.mrb[0].mxu0
  %867 = vmatprep.mubr.bf16.mxu0 0
  %868 = vmatmul.mubr.bf16.gmra.mrb[0].mxu0 %v625
  %v869 = vpop.f32.mrb[0].mxu0
  %v870 = vadd.f32 0.0, %v869
  %v871 = vpop.f32.mrb[0].mxu0
  %v872 = vpop.f32.mrb[0].mxu0
  %v873 = vadd.f32 0.0, %v872
  %v874 = vpop.f32.mrb[0].mxu0
  %875 = vmatprep.mubr.bf16.mxu0 0
  %876 = vmatmul.mubr.bf16.gmra.mrb[0].mxu0 %v628
  %v877 = vpop.f32.mrb[0].mxu0
  %v878 = vadd.f32 0.0, %v877
  %v879 = vpop.f32.mrb[0].mxu0
  %v880 = vpop.f32.mrb[0].mxu0
  %v881 = vadd.f32 0.0, %v880
  %v882 = vpop.f32.mrb[0].mxu0
  %883 = vmatprep.mubr.bf16.mxu0 0
  %884 = vmatmul.mubr.bf16.gmra.mrb[0].mxu0 %v631
  %v885 = vpop.f32.mrb[0].mxu0
  %v886 = vadd.f32 0.0, %v885
  %v887 = vpop.f32.mrb[0].mxu0
  %v888 = vpop.f32.mrb[0].mxu0
  %v889 = vadd.f32 0.0, %v888
  %v890 = vpop.f32.mrb[0].mxu0
  %891 = vmatprep.mubr.bf16.mxu0 0
  %892 = vmatmul.mubr.bf16.gmra.mrb[0].mxu0 %v634
  %v893 = vpop.f32.mrb[0].mxu0
  %v894 = vadd.f32 0.0, %v893
  %v895 = vpop.f32.mrb[0].mxu0
  %v896 = vpop.f32.mrb[0].mxu0
  %v897 = vadd.f32 0.0, %v896
  %v898 = vpop.f32.mrb[0].mxu0
  %899 = vmatprep.mubr.bf16.mxu0 0
  %900 = vmatmul.mubr.bf16.gmra.mrb[0].mxu0 %v637
  %v901 = vpop.f32.mrb[0].mxu0
  %v902 = vadd.f32 0.0, %v901
  %v903 = vpop.f32.mrb[0].mxu0
  %v904 = vpop.f32.mrb[0].mxu0
  %v905 = vadd.f32 0.0, %v904
  %v906 = vpop.f32.mrb[0].mxu0
  %907 = vmatprep.mubr.bf16.mxu0 0
  %908 = vmatmul.mubr.bf16.gmra.mrb[0].mxu0 %v640
  %v909 = vpop.f32.mrb[0].mxu0
  %v910 = vadd.f32 0.0, %v909
  %v911 = vpop.f32.mrb[0].mxu0
  %v912 = vpop.f32.mrb[0].mxu0
  %v913 = vadd.f32 0.0, %v912
  %v914 = vpop.f32.mrb[0].mxu0
  %915 = vmatprep.mubr.bf16.mxu0 0
  %916 = vmatmul.mubr.bf16.gmra.mrb[0].mxu0 %v643
  %v917 = vpop.f32.mrb[0].mxu0
  %v918 = vadd.f32 0.0, %v917
  %v919 = vpop.f32.mrb[0].mxu0
  %v920 = vpop.f32.mrb[0].mxu0
  %v921 = vadd.f32 0.0, %v920
  %v922 = vpop.f32.mrb[0].mxu0
  %923 = vmatprep.mubr.bf16.mxu0 0
  %924 = vmatmul.mubr.bf16.gmra.mrb[0].mxu0 %v646
  %v925 = vpop.f32.mrb[0].mxu0
  %v926 = vadd.f32 0.0, %v925
  %v927 = vpop.f32.mrb[0].mxu0
  %v928 = vpop.f32.mrb[0].mxu0
  %v929 = vadd.f32 0.0, %v928
  %v930 = vpop.f32.mrb[0].mxu0
  %931 = vmatprep.mubr.bf16.mxu0 0
  %932 = vmatmul.mubr.bf16.gmra.mrb[0].mxu0 %v649
  %v933 = vpop.f32.mrb[0].mxu0
  %v934 = vadd.f32 0.0, %v933
  %v935 = vpop.f32.mrb[0].mxu0
  %v936 = vpop.f32.mrb[0].mxu0
  %v937 = vadd.f32 0.0, %v936
  %v938 = vpop.f32.mrb[0].mxu0
  %939 = vmatprep.mubr.bf16.mxu0 0
  %940 = vmatmul.mubr.bf16.gmra.mrb[0].mxu0 %v652
  %v941 = vpop.f32.mrb[0].mxu0
  %v942 = vadd.f32 0.0, %v941
  %v943 = vpop.f32.mrb[0].mxu0
  %v944 = vpop.f32.mrb[0].mxu0
  %v945 = vadd.f32 0.0, %v944
  %v946 = vpop.f32.mrb[0].mxu0
  %947 = vmatprep.mubr.bf16.mxu0 0
  %948 = vmatmul.mubr.bf16.gmra.mrb[0].mxu0 %v655
  %v949 = vpop.f32.mrb[0].mxu0
  %v950 = vadd.f32 0.0, %v949
  %v951 = vpop.f32.mrb[0].mxu0
  %v952 = vpop.f32.mrb[0].mxu0
  %v953 = vadd.f32 0.0, %v952
  %v954 = vpop.f32.mrb[0].mxu0
  %955 = vmatprep.mubr.bf16.mxu0 0
  %956 = vmatmul.mubr.bf16.gmra.mrb[0].mxu0 %v658
  %v957 = vpop.f32.mrb[0].mxu0
  %v958 = vadd.f32 0.0, %v957
  %v959 = vpop.f32.mrb[0].mxu0
  %v960 = vpop.f32.mrb[0].mxu0
  %v961 = vadd.f32 0.0, %v960
  %v962 = vpop.f32.mrb[0].mxu0
  %963 = vmatprep.mubr.bf16.mxu0 0
  %964 = vmatmul.mubr.bf16.gmra.mrb[0].mxu0 %v661
  %v965 = vpop.f32.mrb[0].mxu0
  %v966 = vadd.f32 0.0, %v965
  %v967 = vpop.f32.mrb[0].mxu0
  %v968 = vpop.f32.mrb[0].mxu0
  %v969 = vadd.f32 0.0, %v968
  %v970 = vpop.f32.mrb[0].mxu0
  %971 = vmatprep.mubr.bf16.mxu0 0
  %972 = vmatmul.mubr.bf16.gmra.mrb[0].mxu0 %v664
  %v973 = vpop.f32.mrb[0].mxu0
  %v974 = vadd.f32 0.0, %v973
  %v975 = vpop.f32.mrb[0].mxu0
  %v976 = vpop.f32.mrb[0].mxu0
  %v977 = vadd.f32 0.0, %v976
  %v978 = vpop.f32.mrb[0].mxu0
  %979 = vmatprep.mubr.bf16.mxu0 0
  %980 = vmatmul.mubr.bf16.gmra.mrb[0].mxu0 %v667
  %v981 = vpop.f32.mrb[0].mxu0
  %v982 = vadd.f32 0.0, %v981
  %v983 = vpop.f32.mrb[0].mxu0
  %v984 = vpop.f32.mrb[0].mxu0
  %v985 = vadd.f32 0.0, %v984
  %v986 = vpop.f32.mrb[0].mxu0
  %987 = vmatprep.mubr.bf16.mxu0 0
  %988 = vmatmul.mubr.bf16.gmra.mrb[0].mxu0 %v670
  %v989 = vpop.f32.mrb[0].mxu0
  %v990 = vadd.f32 0.0, %v989
  %v991 = vpop.f32.mrb[0].mxu0
  %v992 = vpop.f32.mrb[0].mxu0
  %v993 = vadd.f32 0.0, %v992
  %v994 = vpop.f32.mrb[0].mxu0
  %995 = vmatprep.mubr.bf16.mxu0 0
  %996 = vmatmul.mubr.bf16.gmra.mrb[0].mxu0 %v673
  %v997 = vpop.f32.mrb[0].mxu0
  %v998 = vadd.f32 0.0, %v997
  %v999 = vpop.f32.mrb[0].mxu0
  %v1000 = vpop.f32.mrb[0].mxu0
  %v1001 = vadd.f32 0.0, %v1000
  %v1002 = vpop.f32.mrb[0].mxu0
  %1003 = vmatprep.mubr.bf16.mxu0 0
  %1004 = vmatmul.mubr.bf16.gmra.mrb[0].mxu0 %v676
  %v1005 = vpop.f32.mrb[0].mxu0
  %v1006 = vadd.f32 0.0, %v1005
  %v1007 = vpop.f32.mrb[0].mxu0
  %v1008 = vpop.f32.mrb[0].mxu0
  %v1009 = vadd.f32 0.0, %v1008
  %v1010 = vpop.f32.mrb[0].mxu0
  %1011 = vmatprep.mubr.bf16.mxu0 0
  %1012 = vmatmul.mubr.bf16.gmra.mrb[0].mxu0 %v679
  %v1013 = vpop.f32.mrb[0].mxu0
  %v1014 = vadd.f32 0.0, %v1013
  %v1015 = vpop.f32.mrb[0].mxu0
  %v1016 = vpop.f32.mrb[0].mxu0
  %v1017 = vadd.f32 0.0, %v1016
  %v1018 = vpop.f32.mrb[0].mxu0
  %1019 = vmatprep.mubr.bf16.mxu0 0
  %1020 = vmatmul.mubr.bf16.gmra.mrb[0].mxu0 %v682
  %v1021 = vpop.f32.mrb[0].mxu0
  %v1022 = vadd.f32 0.0, %v1021
  %v1023 = vpop.f32.mrb[0].mxu0
  %v1024 = vpop.f32.mrb[0].mxu0
  %v1025 = vadd.f32 0.0, %v1024
  %v1026 = vpop.f32.mrb[0].mxu0
  %1027 = vmatprep.mubr.bf16.mxu0 0
  %1028 = vmatmul.mubr.bf16.gmra.mrb[0].mxu0 %v685
  %v1029 = vpop.f32.mrb[0].mxu0
  %v1030 = vadd.f32 0.0, %v1029
  %v1031 = vpop.f32.mrb[0].mxu0
  %v1032 = vpop.f32.mrb[0].mxu0
  %v1033 = vadd.f32 0.0, %v1032
  %v1034 = vpop.f32.mrb[0].mxu0
  %1035 = vmatprep.mubr.bf16.mxu0 0
  %1036 = vmatmul.mubr.bf16.gmra.mrb[0].mxu0 %v688
  %v1037 = vpop.f32.mrb[0].mxu0
  %v1038 = vadd.f32 0.0, %v1037
  %v1039 = vpop.f32.mrb[0].mxu0
  %v1040 = vpop.f32.mrb[0].mxu0
  %v1041 = vadd.f32 0.0, %v1040
  %v1042 = vpop.f32.mrb[0].mxu0
  %1043 = vmatprep.mubr.bf16.mxu0 0
  %1044 = vmatmul.mubr.bf16.gmra.mrb[0].mxu0 %v691
  %v1045 = vpop.f32.mrb[0].mxu0
  %v1046 = vadd.f32 0.0, %v1045
  %v1047 = vpop.f32.mrb[0].mxu0
  %v1048 = vpop.f32.mrb[0].mxu0
  %v1049 = vadd.f32 0.0, %v1048
  %v1050 = vpop.f32.mrb[0].mxu0
  %1051 = vmatprep.mubr.bf16.mxu0 0
  %1052 = vmatmul.mubr.bf16.gmra.mrb[0].mxu0 %v694
  %v1053 = vpop.f32.mrb[0].mxu0
  %v1054 = vadd.f32 0.0, %v1053
  %v1055 = vpop.f32.mrb[0].mxu0
  %v1056 = vpop.f32.mrb[0].mxu0
  %v1057 = vadd.f32 0.0, %v1056
  %v1058 = vpop.f32.mrb[0].mxu0
  %1059 = vmatprep.mubr.bf16.mxu0 0
  %1060 = vmatmul.mubr.bf16.gmra.mrb[0].mxu0 %v697
  %v1061 = vpop.f32.mrb[0].mxu0
  %v1062 = vadd.f32 0.0, %v1061
  %v1063 = vpop.f32.mrb[0].mxu0
  %v1064 = vpop.f32.mrb[0].mxu0
  %v1065 = vadd.f32 0.0, %v1064
  %v1066 = vpop.f32.mrb[0].mxu0
  %1067 = vmatprep.mubr.bf16.mxu0 0
  %1068 = vmatmul.mubr.bf16.gmra.mrb[0].mxu0 %v700
  %v1069 = vpop.f32.mrb[0].mxu0
  %v1070 = vadd.f32 0.0, %v1069
  %v1071 = vpop.f32.mrb[0].mxu0
  %v1072 = vpop.f32.mrb[0].mxu0
  %v1073 = vadd.f32 0.0, %v1072
  %v1074 = vpop.f32.mrb[0].mxu0
  %1075 = vmatprep.mubr.bf16.mxu0 0
  %1076 = vmatmul.mubr.bf16.gmra.mrb[0].mxu0 %v703
  %v1077 = vpop.f32.mrb[0].mxu0
  %v1078 = vadd.f32 0.0, %v1077
  %v1079 = vpop.f32.mrb[0].mxu0
  %v1080 = vpop.f32.mrb[0].mxu0
  %v1081 = vadd.f32 0.0, %v1080
  %v1082 = vpop.f32.mrb[0].mxu0
  %1083 = vmatprep.mubr.bf16.mxu0 0
  %1084 = vmatmul.mubr.bf16.gmra.mrb[0].mxu0 %v706
  %v1085 = vpop.f32.mrb[0].mxu0
  %v1086 = vadd.f32 0.0, %v1085
  %v1087 = vpop.f32.mrb[0].mxu0
  %v1088 = vpop.f32.mrb[0].mxu0
  %v1089 = vadd.f32 0.0, %v1088
  %v1090 = vpop.f32.mrb[0].mxu0
  %1091 = vmatprep.mubr.bf16.mxu0 0
  %1092 = vmatmul.mubr.bf16.gmra.mrb[0].mxu0 %v709
  %v1093 = vpop.f32.mrb[0].mxu0
  %v1094 = vadd.f32 0.0, %v1093
  %v1095 = vpop.f32.mrb[0].mxu0
  %v1096 = vpop.f32.mrb[0].mxu0
  %v1097 = vadd.f32 0.0, %v1096
  %v1098 = vpop.f32.mrb[0].mxu0
  %1099 = vmatprep.mubr.bf16.mxu0 0
  %1100 = vmatmul.mubr.bf16.gmra.mrb[0].mxu0 %v712
  %v1101 = vpop.f32.mrb[0].mxu0
  %v1102 = vadd.f32 0.0, %v1101
  %v1103 = vpop.f32.mrb[0].mxu0
  %v1104 = vpop.f32.mrb[0].mxu0
  %v1105 = vadd.f32 0.0, %v1104
  %v1106 = vpop.f32.mrb[0].mxu0
  %1107 = vmatprep.mubr.bf16.mxu0 0
  %1108 = vmatmul.mubr.bf16.gmra.mrb[0].mxu0 %v715
  %v1109 = vpop.f32.mrb[0].mxu0
  %v1110 = vadd.f32 0.0, %v1109
  %v1111 = vpop.f32.mrb[0].mxu0
  %v1112 = vpop.f32.mrb[0].mxu0
  %v1113 = vadd.f32 0.0, %v1112
  %v1114 = vpop.f32.mrb[0].mxu0
  %1115 = vmatprep.mubr.bf16.mxu0 0
  %1116 = vmatmul.mubr.bf16.gmra.mrb[0].mxu0 %v718
  %v1117 = vpop.f32.mrb[0].mxu0
  %v1118 = vadd.f32 0.0, %v1117
  %v1119 = vpop.f32.mrb[0].mxu0
  %v1120 = vpop.f32.mrb[0].mxu0
  %v1121 = vadd.f32 0.0, %v1120
  %v1122 = vpop.f32.mrb[0].mxu0
  %1123 = vmatprep.mubr.bf16.mxu0 0
  %1124 = vmatmul.mubr.bf16.gmra.mrb[0].mxu0 %v721
  %v1125 = vpop.f32.mrb[0].mxu0
  %v1126 = vadd.f32 0.0, %v1125
  %v1127 = vpop.f32.mrb[0].mxu0
  %v1128 = vpop.f32.mrb[0].mxu0
  %v1129 = vadd.f32 0.0, %v1128
  %v1130 = vpop.f32.mrb[0].mxu0
  %1131 = vmatprep.mubr.bf16.mxu0 0
  %1132 = vmatmul.mubr.bf16.gmra.mrb[0].mxu0 %v724
  %v1133 = vpop.f32.mrb[0].mxu0
  %v1134 = vadd.f32 0.0, %v1133
  %v1135 = vpop.f32.mrb[0].mxu0
  %v1136 = vpop.f32.mrb[0].mxu0
  %v1137 = vadd.f32 0.0, %v1136
  %v1138 = vpop.f32.mrb[0].mxu0
  %1139 = vmatprep.mubr.bf16.mxu0 0
  %1140 = vmatmul.mubr.bf16.gmra.mrb[0].mxu0 %v727
  %v1141 = vpop.f32.mrb[0].mxu0
  %v1142 = vadd.f32 0.0, %v1141
  %v1143 = vpop.f32.mrb[0].mxu0
  %v1144 = vpop.f32.mrb[0].mxu0
  %v1145 = vadd.f32 0.0, %v1144
  %v1146 = vpop.f32.mrb[0].mxu0
  %1147 = vmatprep.mubr.bf16.mxu0 0
  %1148 = vmatmul.mubr.bf16.gmra.mrb[0].mxu0 %v730
  %v1149 = vpop.f32.mrb[0].mxu0
  %v1150 = vadd.f32 0.0, %v1149
  %v1151 = vpop.f32.mrb[0].mxu0
  %v1152 = vpop.f32.mrb[0].mxu0
  %v1153 = vadd.f32 0.0, %v1152
  %v1154 = vpop.f32.mrb[0].mxu0
  %1155 = vmatprep.mubr.bf16.mxu0 0
  %1156 = vmatmul.mubr.bf16.gmra.mrb[0].mxu0 %v733
  %v1157 = vpop.f32.mrb[0].mxu0
  %v1158 = vadd.f32 0.0, %v1157
  %v1159 = vpop.f32.mrb[0].mxu0
  %v1160 = vpop.f32.mrb[0].mxu0
  %v1161 = vadd.f32 0.0, %v1160
  %v1162 = vpop.f32.mrb[0].mxu0
  %1163 = vmatprep.mubr.bf16.mxu0 0
  %1164 = vmatmul.mubr.bf16.gmra.mrb[0].mxu0 %v736
  %v1165 = vpop.f32.mrb[0].mxu0
  %v1166 = vadd.f32 0.0, %v1165
  %v1167 = vpop.f32.mrb[0].mxu0
  %v1168 = vpop.f32.mrb[0].mxu0
  %v1169 = vadd.f32 0.0, %v1168
  %v1170 = vpop.f32.mrb[0].mxu0
  %1171 = vmatprep.mubr.bf16.mxu0 0
  %1172 = vmatmul.mubr.bf16.gmra.mrb[0].mxu0 %v739
  %v1173 = vpop.f32.mrb[0].mxu0
  %v1174 = vadd.f32 0.0, %v1173
  %v1175 = vpop.f32.mrb[0].mxu0
  %v1176 = vpop.f32.mrb[0].mxu0
  %v1177 = vadd.f32 0.0, %v1176
  %v1178 = vpop.f32.mrb[0].mxu0
  %1179 = vmatprep.mubr.bf16.mxu0 0
  %1180 = vmatmul.mubr.bf16.gmra.mrb[0].mxu0 %v742
  %v1181 = vpop.f32.mrb[0].mxu0
  %v1182 = vadd.f32 0.0, %v1181
  %v1183 = vpop.f32.mrb[0].mxu0
  %v1184 = vpop.f32.mrb[0].mxu0
  %v1185 = vadd.f32 0.0, %v1184
  %v1186 = vpop.f32.mrb[0].mxu0
  %1187 = vmatprep.mubr.bf16.mxu0 0
  %1188 = vmatmul.mubr.bf16.gmra.mrb[0].mxu0 %v745
  %v1189 = vpop.f32.mrb[0].mxu0
  %v1190 = vadd.f32 0.0, %v1189
  %v1191 = vpop.f32.mrb[0].mxu0
  %v1192 = vpop.f32.mrb[0].mxu0
  %v1193 = vadd.f32 0.0, %v1192
  %v1194 = vpop.f32.mrb[0].mxu0
  %1195 = vmatprep.mubr.bf16.mxu0 0
  %1196 = vmatmul.mubr.bf16.gmra.mrb[0].mxu0 %v748
  %v1197 = vpop.f32.mrb[0].mxu0
  %v1198 = vadd.f32 0.0, %v1197
  %v1199 = vpop.f32.mrb[0].mxu0
  %v1200 = vpop.f32.mrb[0].mxu0
  %v1201 = vadd.f32 0.0, %v1200
  %v1202 = vpop.f32.mrb[0].mxu0
  %1203 = vmatprep.mubr.bf16.mxu0 0
  %1204 = vmatmul.mubr.bf16.gmra.mrb[0].mxu0 %v751
  %v1205 = vpop.f32.mrb[0].mxu0
  %v1206 = vadd.f32 0.0, %v1205
  %v1207 = vpop.f32.mrb[0].mxu0
  %v1208 = vpop.f32.mrb[0].mxu0
  %v1209 = vadd.f32 0.0, %v1208
  %v1210 = vpop.f32.mrb[0].mxu0
  %1211 = vmatprep.mubr.bf16.mxu0 0
  %1212 = vmatmul.mubr.bf16.gmra.mrb[0].mxu0 %v754
  %v1213 = vpop.f32.mrb[0].mxu0
  %v1214 = vadd.f32 0.0, %v1213
  %v1215 = vpop.f32.mrb[0].mxu0
  %v1216 = vpop.f32.mrb[0].mxu0
  %v1217 = vadd.f32 0.0, %v1216
  %v1218 = vpop.f32.mrb[0].mxu0
  %1219 = vmatprep.mubr.bf16.mxu0 0
  %1220 = vmatmul.mubr.bf16.gmra.mrb[0].mxu0 %v757
  %v1221 = vpop.f32.mrb[0].mxu0
  %v1222 = vadd.f32 0.0, %v1221
  %v1223 = vpop.f32.mrb[0].mxu0
  %v1224 = vpop.f32.mrb[0].mxu0
  %v1225 = vadd.f32 0.0, %v1224
  %v1226 = vpop.f32.mrb[0].mxu0
  %1227 = vmatprep.mubr.bf16.mxu0 0
  %1228 = vmatmul.mubr.bf16.gmra.mrb[0].mxu0 %v760
  %v1229 = vpop.f32.mrb[0].mxu0
  %v1230 = vadd.f32 0.0, %v1229
  %v1231 = vpop.f32.mrb[0].mxu0
  %v1232 = vpop.f32.mrb[0].mxu0
  %v1233 = vadd.f32 0.0, %v1232
  %v1234 = vpop.f32.mrb[0].mxu0
  %1235 = vmatprep.mubr.bf16.mxu0 0
  %1236 = vmatmul.mubr.bf16.gmra.mrb[0].mxu0 %v763
  %v1237 = vpop.f32.mrb[0].mxu0
  %v1238 = vadd.f32 0.0, %v1237
  %v1239 = vpop.f32.mrb[0].mxu0
  %v1240 = vpop.f32.mrb[0].mxu0
  %v1241 = vadd.f32 0.0, %v1240
  %v1242 = vpop.f32.mrb[0].mxu0
  %1243 = vmatprep.mubr.bf16.mxu0 0
  %1244 = vmatmul.mubr.bf16.gmra.mrb[0].mxu0 %v766
  %v1245 = vpop.f32.mrb[0].mxu0
  %v1246 = vadd.f32 0.0, %v1245
  %v1247 = vpop.f32.mrb[0].mxu0
  %v1248 = vpop.f32.mrb[0].mxu0
  %v1249 = vadd.f32 0.0, %v1248
  %v1250 = vpop.f32.mrb[0].mxu0
  %1251 = vmatprep.mubr.bf16.mxu0 0
  %1252 = vmatmul.mubr.bf16.gmra.mrb[0].mxu0 %v769
  %v1253 = vpop.f32.mrb[0].mxu0
  %v1254 = vadd.f32 0.0, %v1253
  %v1255 = vpop.f32.mrb[0].mxu0
  %v1256 = vpop.f32.mrb[0].mxu0
  %v1257 = vadd.f32 0.0, %v1256
  %v1258 = vpop.f32.mrb[0].mxu0
  %1259 = vmatprep.mubr.bf16.mxu0 0
  %1260 = vmatmul.mubr.bf16.gmra.mrb[0].mxu0 %v772
  %v1261 = vpop.f32.mrb[0].mxu0
  %v1262 = vadd.f32 0.0, %v1261
  %v1263 = vpop.f32.mrb[0].mxu0
  %v1264 = vpop.f32.mrb[0].mxu0
  %v1265 = vadd.f32 0.0, %v1264
  %v1266 = vpop.f32.mrb[0].mxu0
  %1267 = vmatprep.mubr.bf16.mxu0 0
  %1268 = vmatmul.mubr.bf16.gmra.mrb[0].mxu0 %v775
  %v1269 = vpop.f32.mrb[0].mxu0
  %v1270 = vadd.f32 0.0, %v1269
  %v1271 = vpop.f32.mrb[0].mxu0
  %v1272 = vpop.f32.mrb[0].mxu0
  %v1273 = vadd.f32 0.0, %v1272
  %v1274 = vpop.f32.mrb[0].mxu0
  %1275 = vmatprep.mubr.bf16.mxu0 0
  %1276 = vmatmul.mubr.bf16.gmra.mrb[0].mxu0 %v778
  %v1277 = vpop.f32.mrb[0].mxu0
  %v1278 = vadd.f32 0.0, %v1277
  %v1279 = vpop.f32.mrb[0].mxu0
  %v1280 = vpop.f32.mrb[0].mxu0
  %v1281 = vadd.f32 0.0, %v1280
  %v1282 = vpop.f32.mrb[0].mxu0
  %1283 = vmatprep.mubr.bf16.mxu0 0
  %1284 = vmatmul.mubr.bf16.gmra.mrb[0].mxu0 %v781
  %v1285 = vpop.f32.mrb[0].mxu0
  %v1286 = vadd.f32 0.0, %v1285
  %v1287 = vpop.f32.mrb[0].mxu0
  %v1288 = vpop.f32.mrb[0].mxu0
  %v1289 = vadd.f32 0.0, %v1288
  %v1290 = vpop.f32.mrb[0].mxu0
  %1291 = vmatprep.mubr.bf16.mxu0 0
  %1292 = vmatmul.mubr.bf16.gmra.mrb[0].mxu0 %v784
  %v1293 = vpop.f32.mrb[0].mxu0
  %v1294 = vadd.f32 0.0, %v1293
  %v1295 = vpop.f32.mrb[0].mxu0
  %v1296 = vpop.f32.mrb[0].mxu0
  %v1297 = vadd.f32 0.0, %v1296
  %v1298 = vpop.f32.mrb[0].mxu0
  %1299 = vmatprep.mubr.bf16.mxu0 0
  %1300 = vmatmul.mubr.bf16.gmra.mrb[0].mxu0 %v787
  %v1301 = vpop.f32.mrb[0].mxu0
  %v1302 = vadd.f32 0.0, %v1301
  %v1303 = vpop.f32.mrb[0].mxu0
  %v1304 = vpop.f32.mrb[0].mxu0
  %v1305 = vadd.f32 0.0, %v1304
  %v1306 = vpop.f32.mrb[0].mxu0
  %1307 = vmatprep.mubr.bf16.mxu0 0
  %1308 = vmatmul.mubr.bf16.gmra.mrb[0].mxu0 %v790
  %v1309 = vpop.f32.mrb[0].mxu0
  %v1310 = vadd.f32 0.0, %v1309
  %v1311 = vpop.f32.mrb[0].mxu0
  %v1312 = vpop.f32.mrb[0].mxu0
  %v1313 = vadd.f32 0.0, %v1312
  %v1314 = vpop.f32.mrb[0].mxu0
  %1315 = vmatprep.mubr.bf16.mxu0 0
  %1316 = vmatmul.mubr.bf16.gmra.mrb[0].mxu0 %v793
  %v1317 = vpop.f32.mrb[0].mxu0
  %v1318 = vadd.f32 0.0, %v1317
  %v1319 = vpop.f32.mrb[0].mxu0
  %v1320 = vpop.f32.mrb[0].mxu0
  %v1321 = vadd.f32 0.0, %v1320
  %v1322 = vpop.f32.mrb[0].mxu0
  %1323 = vmatprep.mubr.bf16.mxu0 0
  %1324 = vmatmul.mubr.bf16.gmra.mrb[0].mxu0 %v796
  %v1325 = vpop.f32.mrb[0].mxu0
  %v1326 = vadd.f32 0.0, %v1325
  %v1327 = vpop.f32.mrb[0].mxu0
  %v1328 = vpop.f32.mrb[0].mxu0
  %v1329 = vadd.f32 0.0, %v1328
  %v1330 = vpop.f32.mrb[0].mxu0
  %1331 = vmatprep.mubr.bf16.mxu0 0
  %1332 = vmatmul.mubr.bf16.gmra.mrb[0].mxu0 %v799
  %v1333 = vpop.f32.mrb[0].mxu0
  %v1334 = vadd.f32 0.0, %v1333
  %v1335 = vpop.f32.mrb[0].mxu0
  %v1336 = vpop.f32.mrb[0].mxu0
  %v1337 = vadd.f32 0.0, %v1336
  %v1338 = vpop.f32.mrb[0].mxu0
  %1339 = vmatprep.mubr.bf16.mxu0 0
  %1340 = vmatmul.mubr.bf16.gmra.mrb[0].mxu0 %v802
  %v1341 = vpop.f32.mrb[0].mxu0
  %v1342 = vadd.f32 0.0, %v1341
  %v1343 = vpop.f32.mrb[0].mxu0
  %v1344 = vpop.f32.mrb[0].mxu0
  %v1345 = vadd.f32 0.0, %v1344
  %v1346 = vpop.f32.mrb[0].mxu0
  %1347 = vmatprep.mubr.bf16.mxu0 0
  %1348 = vmatmul.mubr.bf16.gmra.mrb[0].mxu0 %v805
  %v1349 = vpop.f32.mrb[0].mxu0
  %v1350 = vadd.f32 0.0, %v1349
  %v1351 = vpop.f32.mrb[0].mxu0
  %v1352 = vpop.f32.mrb[0].mxu0
  %v1353 = vadd.f32 0.0, %v1352
  %v1354 = vpop.f32.mrb[0].mxu0
  %1355 = vdwg.mxu0
  %v1484 = vunpack.c.l.b16 %v36
  %v1485 = vunpack.c.l.b16 %v37
  %v1486 = vunpack.c.l.b16 %v38
  %v1487 = vunpack.c.l.b16 %v39
  %v1488 = vunpack.c.l.b16 %v40
  %v1489 = vunpack.c.l.b16 %v41
  %v1490 = vunpack.c.l.b16 %v42
  %v1491 = vunpack.c.l.b16 %v43
  %v1492 = vunpack.c.l.b16 %v44
  %v1493 = vunpack.c.l.b16 %v45
  %v1494 = vunpack.c.l.b16 %v46
  %v1495 = vunpack.c.l.b16 %v47
  %v1496 = vunpack.c.l.b16 %v48
  %v1497 = vunpack.c.l.b16 %v49
  %v1498 = vunpack.c.l.b16 %v50
  %v1499 = vunpack.c.l.b16 %v51
  %v1500 = vunpack.c.l.b16 %v52
  %v1501 = vunpack.c.l.b16 %v53
  %v1502 = vunpack.c.l.b16 %v54
  %v1503 = vunpack.c.l.b16 %v55
  %v1504 = vunpack.c.l.b16 %v56
  %v1505 = vunpack.c.l.b16 %v57
  %v1506 = vunpack.c.l.b16 %v58
  %v1507 = vunpack.c.l.b16 %v59
  %v1508 = vunpack.c.l.b16 %v60
  %v1509 = vunpack.c.l.b16 %v61
  %v1510 = vunpack.c.l.b16 %v62
  %v1511 = vunpack.c.l.b16 %v63
  %v1512 = vunpack.c.l.b16 %v64
  %v1513 = vunpack.c.l.b16 %v65
  %v1514 = vunpack.c.l.b16 %v66
  %v1515 = vunpack.c.l.b16 %v67
  %v1516 = vunpack.c.l.b16 %v68
  %v1517 = vunpack.c.l.b16 %v69
  %v1518 = vunpack.c.l.b16 %v70
  %v1519 = vunpack.c.l.b16 %v71
  %v1520 = vunpack.c.l.b16 %v72
  %v1521 = vunpack.c.l.b16 %v73
  %v1522 = vunpack.c.l.b16 %v74
  %v1523 = vunpack.c.l.b16 %v75
  %v1524 = vunpack.c.l.b16 %v76
  %v1525 = vunpack.c.l.b16 %v77
  %v1526 = vunpack.c.l.b16 %v78
  %v1527 = vunpack.c.l.b16 %v79
  %v1528 = vunpack.c.l.b16 %v80
  %v1529 = vunpack.c.l.b16 %v81
  %v1530 = vunpack.c.l.b16 %v82
  %v1531 = vunpack.c.l.b16 %v83
  %v1532 = vunpack.c.l.b16 %v84
  %v1533 = vunpack.c.l.b16 %v85
  %v1534 = vunpack.c.l.b16 %v86
  %v1535 = vunpack.c.l.b16 %v87
  %v1536 = vunpack.c.l.b16 %v88
  %v1537 = vunpack.c.l.b16 %v89
  %v1538 = vunpack.c.l.b16 %v90
  %v1539 = vunpack.c.l.b16 %v91
  %v1540 = vunpack.c.l.b16 %v92
  %v1541 = vunpack.c.l.b16 %v93
  %v1542 = vunpack.c.l.b16 %v94
  %v1543 = vunpack.c.l.b16 %v95
  %v1544 = vunpack.c.l.b16 %v96
  %v1545 = vunpack.c.l.b16 %v97
  %v1546 = vunpack.c.l.b16 %v98
  %v1547 = vunpack.c.l.b16 %v99
  %v1548 = vunpack.c.l.b16 %v100
  %v1549 = vunpack.c.l.b16 %v101
  %v1550 = vunpack.c.l.b16 %v102
  %v1551 = vunpack.c.l.b16 %v103
  %v1552 = vunpack.c.l.b16 %v104
  %v1553 = vunpack.c.l.b16 %v105
  %v1554 = vunpack.c.l.b16 %v106
  %v1555 = vunpack.c.l.b16 %v107
  %v1556 = vunpack.c.l.b16 %v108
  %v1557 = vunpack.c.l.b16 %v109
  %v1558 = vunpack.c.l.b16 %v110
  %v1559 = vunpack.c.l.b16 %v111
  %v1560 = vunpack.c.l.b16 %v112
  %v1561 = vunpack.c.l.b16 %v113
  %v1562 = vunpack.c.l.b16 %v114
  %v1563 = vunpack.c.l.b16 %v115
  %v1564 = vunpack.c.l.b16 %v116
  %v1565 = vunpack.c.l.b16 %v117
  %v1566 = vunpack.c.l.b16 %v118
  %v1567 = vunpack.c.l.b16 %v119
  %v1568 = vunpack.c.l.b16 %v120
  %v1569 = vunpack.c.l.b16 %v121
  %v1570 = vunpack.c.l.b16 %v122
  %v1571 = vunpack.c.l.b16 %v123
  %v1572 = vunpack.c.l.b16 %v124
  %v1573 = vunpack.c.l.b16 %v125
  %v1574 = vunpack.c.l.b16 %v126
  %v1575 = vunpack.c.l.b16 %v127
  %v1576 = vunpack.c.l.b16 %v128
  %v1577 = vunpack.c.l.b16 %v129
  %v1578 = vunpack.c.l.b16 %v130
  %v1579 = vunpack.c.l.b16 %v131
  %v1580 = vunpack.c.l.b16 %v132
  %v1581 = vunpack.c.l.b16 %v133
  %v1582 = vunpack.c.l.b16 %v134
  %v1583 = vunpack.c.l.b16 %v135
  %v1584 = vunpack.c.l.b16 %v136
  %v1585 = vunpack.c.l.b16 %v137
  %v1586 = vunpack.c.l.b16 %v138
  %v1587 = vunpack.c.l.b16 %v139
  %v1588 = vunpack.c.l.b16 %v140
  %v1589 = vunpack.c.l.b16 %v141
  %v1590 = vunpack.c.l.b16 %v142
  %v1591 = vunpack.c.l.b16 %v143
  %v1592 = vunpack.c.l.b16 %v144
  %v1593 = vunpack.c.l.b16 %v145
  %v1594 = vunpack.c.l.b16 %v146
  %v1595 = vunpack.c.l.b16 %v147
  %v1596 = vunpack.c.l.b16 %v148
  %v1597 = vunpack.c.l.b16 %v149
  %v1598 = vunpack.c.l.b16 %v150
  %v1599 = vunpack.c.l.b16 %v151
  %v1600 = vunpack.c.l.b16 %v152
  %v1601 = vunpack.c.l.b16 %v153
  %v1602 = vunpack.c.l.b16 %v154
  %v1603 = vunpack.c.l.b16 %v155
  %v1604 = vunpack.c.l.b16 %v156
  %v1605 = vunpack.c.l.b16 %v157
  %v1606 = vunpack.c.l.b16 %v158
  %v1607 = vunpack.c.l.b16 %v159
  %v1608 = vunpack.c.l.b16 %v160
  %v1609 = vunpack.c.l.b16 %v161
  %v1610 = vunpack.c.l.b16 %v162
  %v1611 = vunpack.c.l.b16 %v163
  %v1612 = vpack.c.b16 %v1485, %v1484
  %v1613 = vpack.c.b16 %v1487, %v1486
  %v1614 = vpack.c.b16 %v1489, %v1488
  %v1615 = vpack.c.b16 %v1491, %v1490
  %v1616 = vpack.c.b16 %v1493, %v1492
  %v1617 = vpack.c.b16 %v1495, %v1494
  %v1618 = vpack.c.b16 %v1497, %v1496
  %v1619 = vpack.c.b16 %v1499, %v1498
  %v1620 = vpack.c.b16 %v1501, %v1500
  %v1621 = vpack.c.b16 %v1503, %v1502
  %v1622 = vpack.c.b16 %v1505, %v1504
  %v1623 = vpack.c.b16 %v1507, %v1506
  %v1624 = vpack.c.b16 %v1509, %v1508
  %v1625 = vpack.c.b16 %v1511, %v1510
  %v1626 = vpack.c.b16 %v1513, %v1512
  %v1627 = vpack.c.b16 %v1515, %v1514
  %v1628 = vpack.c.b16 %v1517, %v1516
  %v1629 = vpack.c.b16 %v1519, %v1518
  %v1630 = vpack.c.b16 %v1521, %v1520
  %v1631 = vpack.c.b16 %v1523, %v1522
  %v1632 = vpack.c.b16 %v1525, %v1524
  %v1633 = vpack.c.b16 %v1527, %v1526
  %v1634 = vpack.c.b16 %v1529, %v1528
  %v1635 = vpack.c.b16 %v1531, %v1530
  %v1636 = vpack.c.b16 %v1533, %v1532
  %v1637 = vpack.c.b16 %v1535, %v1534
  %v1638 = vpack.c.b16 %v1537, %v1536
  %v1639 = vpack.c.b16 %v1539, %v1538
  %v1640 = vpack.c.b16 %v1541, %v1540
  %v1641 = vpack.c.b16 %v1543, %v1542
  %v1642 = vpack.c.b16 %v1545, %v1544
  %v1643 = vpack.c.b16 %v1547, %v1546
  %v1644 = vpack.c.b16 %v1549, %v1548
  %v1645 = vpack.c.b16 %v1551, %v1550
  %v1646 = vpack.c.b16 %v1553, %v1552
  %v1647 = vpack.c.b16 %v1555, %v1554
  %v1648 = vpack.c.b16 %v1557, %v1556
  %v1649 = vpack.c.b16 %v1559, %v1558
  %v1650 = vpack.c.b16 %v1561, %v1560
  %v1651 = vpack.c.b16 %v1563, %v1562
  %v1652 = vpack.c.b16 %v1565, %v1564
  %v1653 = vpack.c.b16 %v1567, %v1566
  %v1654 = vpack.c.b16 %v1569, %v1568
  %v1655 = vpack.c.b16 %v1571, %v1570
  %v1656 = vpack.c.b16 %v1573, %v1572
  %v1657 = vpack.c.b16 %v1575, %v1574
  %v1658 = vpack.c.b16 %v1577, %v1576
  %v1659 = vpack.c.b16 %v1579, %v1578
  %v1660 = vpack.c.b16 %v1581, %v1580
  %v1661 = vpack.c.b16 %v1583, %v1582
  %v1662 = vpack.c.b16 %v1585, %v1584
  %v1663 = vpack.c.b16 %v1587, %v1586
  %v1664 = vpack.c.b16 %v1589, %v1588
  %v1665 = vpack.c.b16 %v1591, %v1590
  %v1666 = vpack.c.b16 %v1593, %v1592
  %v1667 = vpack.c.b16 %v1595, %v1594
  %v1668 = vpack.c.b16 %v1597, %v1596
  %v1669 = vpack.c.b16 %v1599, %v1598
  %v1670 = vpack.c.b16 %v1601, %v1600
  %v1671 = vpack.c.b16 %v1603, %v1602
  %v1672 = vpack.c.b16 %v1605, %v1604
  %v1673 = vpack.c.b16 %v1607, %v1606
  %v1674 = vpack.c.b16 %v1609, %v1608
  %v1675 = vpack.c.b16 %v1611, %v1610
  %v1677 = vsel %vm614, %v1612, 0
  %v1680 = vsel %vm614, %v1613, 0
  %v1683 = vsel %vm614, %v1614, 0
  %v1686 = vsel %vm614, %v1615, 0
  %v1689 = vsel %vm614, %v1616, 0
  %v1692 = vsel %vm614, %v1617, 0
  %v1695 = vsel %vm614, %v1618, 0
  %v1698 = vsel %vm614, %v1619, 0
  %v1701 = vsel %vm614, %v1620, 0
  %v1704 = vsel %vm614, %v1621, 0
  %v1707 = vsel %vm614, %v1622, 0
  %v1710 = vsel %vm614, %v1623, 0
  %v1713 = vsel %vm614, %v1624, 0
  %v1716 = vsel %vm614, %v1625, 0
  %v1719 = vsel %vm614, %v1626, 0
  %v1722 = vsel %vm614, %v1627, 0
  %v1725 = vsel %vm614, %v1628, 0
  %v1728 = vsel %vm614, %v1629, 0
  %v1731 = vsel %vm614, %v1630, 0
  %v1734 = vsel %vm614, %v1631, 0
  %v1737 = vsel %vm614, %v1632, 0
  %v1740 = vsel %vm614, %v1633, 0
  %v1743 = vsel %vm614, %v1634, 0
  %v1746 = vsel %vm614, %v1635, 0
  %v1749 = vsel %vm614, %v1636, 0
  %v1752 = vsel %vm614, %v1637, 0
  %v1755 = vsel %vm614, %v1638, 0
  %v1758 = vsel %vm614, %v1639, 0
  %v1761 = vsel %vm614, %v1640, 0
  %v1764 = vsel %vm614, %v1641, 0
  %v1767 = vsel %vm614, %v1642, 0
  %v1770 = vsel %vm614, %v1643, 0
  %v1773 = vsel %vm614, %v1644, 0
  %v1776 = vsel %vm614, %v1645, 0
  %v1779 = vsel %vm614, %v1646, 0
  %v1782 = vsel %vm614, %v1647, 0
  %v1785 = vsel %vm614, %v1648, 0
  %v1788 = vsel %vm614, %v1649, 0
  %v1791 = vsel %vm614, %v1650, 0
  %v1794 = vsel %vm614, %v1651, 0
  %v1797 = vsel %vm614, %v1652, 0
  %v1800 = vsel %vm614, %v1653, 0
  %v1803 = vsel %vm614, %v1654, 0
  %v1806 = vsel %vm614, %v1655, 0
  %v1809 = vsel %vm614, %v1656, 0
  %v1812 = vsel %vm614, %v1657, 0
  %v1815 = vsel %vm614, %v1658, 0
  %v1818 = vsel %vm614, %v1659, 0
  %v1821 = vsel %vm614, %v1660, 0
  %v1824 = vsel %vm614, %v1661, 0
  %v1827 = vsel %vm614, %v1662, 0
  %v1830 = vsel %vm614, %v1663, 0
  %v1833 = vsel %vm614, %v1664, 0
  %v1836 = vsel %vm614, %v1665, 0
  %v1839 = vsel %vm614, %v1666, 0
  %v1842 = vsel %vm614, %v1667, 0
  %v1845 = vsel %vm614, %v1668, 0
  %v1848 = vsel %vm614, %v1669, 0
  %v1851 = vsel %vm614, %v1670, 0
  %v1854 = vsel %vm614, %v1671, 0
  %v1857 = vsel %vm614, %v1672, 0
  %v1860 = vsel %vm614, %v1673, 0
  %v1863 = vsel %vm614, %v1674, 0
  %v1866 = vsel %vm614, %v1675, 0
  %v1869 = vsel %vm807, %v164, 0
  %1871 = vmatprep.subr.bf16.mxu0 0
  %1872 = vmatpush1.bf16.msra.mxu0 %v1869
  %1873 = vmatprep.subr.bf16.mxu0 0
  %1874 = vmatpush1.bf16.msra.mxu0 0
  %1875 = vmatprep.subr.bf16.mxu0 0
  %1876 = vmatpush1.bf16.msra.mxu0 0
  %1877 = vmatprep.subr.bf16.mxu0 0
  %1878 = vmatpush1.bf16.msra.mxu0 0
  %1879 = vmatprep.subr.bf16.mxu0 0
  %1880 = vmatpush1.bf16.msra.mxu0 0
  %1881 = vmatprep.subr.bf16.mxu0 0
  %1882 = vmatpush1.bf16.msra.mxu0 0
  %1883 = vmatprep.subr.bf16.mxu0 0
  %1884 = vmatpush1.bf16.msra.mxu0 0
  %1885 = vmatprep.subr.bf16.mxu0 0
  %1886 = vmatpush1.bf16.msra.mxu0 0
  %1887 = vmatprep.subr.bf16.mxu0 0
  %1888 = vmatpush1.bf16.msra.mxu0 0
  %1889 = vmatprep.subr.bf16.mxu0 0
  %1890 = vmatpush1.bf16.msra.mxu0 0
  %1891 = vmatprep.subr.bf16.mxu0 0
  %1892 = vmatpush1.bf16.msra.mxu0 0
  %1893 = vmatprep.subr.bf16.mxu0 0
  %1894 = vmatpush1.bf16.msra.mxu0 0
  %1895 = vmatprep.subr.bf16.mxu0 0
  %1896 = vmatpush1.bf16.msra.mxu0 0
  %1897 = vmatprep.subr.bf16.mxu0 0
  %1898 = vmatpush1.bf16.msra.mxu0 0
  %1899 = vmatprep.subr.bf16.mxu0 0
  %1900 = vmatpush1.bf16.msra.mxu0 0
  %1901 = vmatprep.subr.bf16.mxu0 0
  %1902 = vmatpush1.bf16.msra.mxu0 0
  %1903 = vmatprep.mubr.bf16.mxu0 0
  %1904 = vmatmul.mubr.bf16.gmra.mrb[0].mxu0 %v1677
  %v1905 = vpop.f32.mrb[0].mxu0
  %v1906 = vadd.f32 %v846, %v1905
  %v1907 = vpop.f32.mrb[0].mxu0
  %v1908 = vpop.f32.mrb[0].mxu0
  %v1909 = vadd.f32 %v849, %v1908
  %v1910 = vpop.f32.mrb[0].mxu0
  %1911 = vmatprep.mubr.bf16.mxu0 0
  %1912 = vmatmul.mubr.bf16.gmra.mrb[0].mxu0 %v1680
  %v1913 = vpop.f32.mrb[0].mxu0
  %v1914 = vadd.f32 %v854, %v1913
  %v1915 = vpop.f32.mrb[0].mxu0
  %v1916 = vpop.f32.mrb[0].mxu0
  %v1917 = vadd.f32 %v857, %v1916
  %v1918 = vpop.f32.mrb[0].mxu0
  %1919 = vmatprep.mubr.bf16.mxu0 0
  %1920 = vmatmul.mubr.bf16.gmra.mrb[0].mxu0 %v1683
  %v1921 = vpop.f32.mrb[0].mxu0
  %v1922 = vadd.f32 %v862, %v1921
  %v1923 = vpop.f32.mrb[0].mxu0
  %v1924 = vpop.f32.mrb[0].mxu0
  %v1925 = vadd.f32 %v865, %v1924
  %v1926 = vpop.f32.mrb[0].mxu0
  %1927 = vmatprep.mubr.bf16.mxu0 0
  %1928 = vmatmul.mubr.bf16.gmra.mrb[0].mxu0 %v1686
  %v1929 = vpop.f32.mrb[0].mxu0
  %v1930 = vadd.f32 %v870, %v1929
  %v1931 = vpop.f32.mrb[0].mxu0
  %v1932 = vpop.f32.mrb[0].mxu0
  %v1933 = vadd.f32 %v873, %v1932
  %v1934 = vpop.f32.mrb[0].mxu0
  %1935 = vmatprep.mubr.bf16.mxu0 0
  %1936 = vmatmul.mubr.bf16.gmra.mrb[0].mxu0 %v1689
  %v1937 = vpop.f32.mrb[0].mxu0
  %v1938 = vadd.f32 %v878, %v1937
  %v1939 = vpop.f32.mrb[0].mxu0
  %v1940 = vpop.f32.mrb[0].mxu0
  %v1941 = vadd.f32 %v881, %v1940
  %v1942 = vpop.f32.mrb[0].mxu0
  %1943 = vmatprep.mubr.bf16.mxu0 0
  %1944 = vmatmul.mubr.bf16.gmra.mrb[0].mxu0 %v1692
  %v1945 = vpop.f32.mrb[0].mxu0
  %v1946 = vadd.f32 %v886, %v1945
  %v1947 = vpop.f32.mrb[0].mxu0
  %v1948 = vpop.f32.mrb[0].mxu0
  %v1949 = vadd.f32 %v889, %v1948
  %v1950 = vpop.f32.mrb[0].mxu0
  %1951 = vmatprep.mubr.bf16.mxu0 0
  %1952 = vmatmul.mubr.bf16.gmra.mrb[0].mxu0 %v1695
  %v1953 = vpop.f32.mrb[0].mxu0
  %v1954 = vadd.f32 %v894, %v1953
  %v1955 = vpop.f32.mrb[0].mxu0
  %v1956 = vpop.f32.mrb[0].mxu0
  %v1957 = vadd.f32 %v897, %v1956
  %v1958 = vpop.f32.mrb[0].mxu0
  %1959 = vmatprep.mubr.bf16.mxu0 0
  %1960 = vmatmul.mubr.bf16.gmra.mrb[0].mxu0 %v1698
  %v1961 = vpop.f32.mrb[0].mxu0
  %v1962 = vadd.f32 %v902, %v1961
  %v1963 = vpop.f32.mrb[0].mxu0
  %v1964 = vpop.f32.mrb[0].mxu0
  %v1965 = vadd.f32 %v905, %v1964
  %v1966 = vpop.f32.mrb[0].mxu0
  %1967 = vmatprep.mubr.bf16.mxu0 0
  %1968 = vmatmul.mubr.bf16.gmra.mrb[0].mxu0 %v1701
  %v1969 = vpop.f32.mrb[0].mxu0
  %v1970 = vadd.f32 %v910, %v1969
  %v1971 = vpop.f32.mrb[0].mxu0
  %v1972 = vpop.f32.mrb[0].mxu0
  %v1973 = vadd.f32 %v913, %v1972
  %v1974 = vpop.f32.mrb[0].mxu0
  %1975 = vmatprep.mubr.bf16.mxu0 0
  %1976 = vmatmul.mubr.bf16.gmra.mrb[0].mxu0 %v1704
  %v1977 = vpop.f32.mrb[0].mxu0
  %v1978 = vadd.f32 %v918, %v1977
  %v1979 = vpop.f32.mrb[0].mxu0
  %v1980 = vpop.f32.mrb[0].mxu0
  %v1981 = vadd.f32 %v921, %v1980
  %v1982 = vpop.f32.mrb[0].mxu0
  %1983 = vmatprep.mubr.bf16.mxu0 0
  %1984 = vmatmul.mubr.bf16.gmra.mrb[0].mxu0 %v1707
  %v1985 = vpop.f32.mrb[0].mxu0
  %v1986 = vadd.f32 %v926, %v1985
  %v1987 = vpop.f32.mrb[0].mxu0
  %v1988 = vpop.f32.mrb[0].mxu0
  %v1989 = vadd.f32 %v929, %v1988
  %v1990 = vpop.f32.mrb[0].mxu0
  %1991 = vmatprep.mubr.bf16.mxu0 0
  %1992 = vmatmul.mubr.bf16.gmra.mrb[0].mxu0 %v1710
  %v1993 = vpop.f32.mrb[0].mxu0
  %v1994 = vadd.f32 %v934, %v1993
  %v1995 = vpop.f32.mrb[0].mxu0
  %v1996 = vpop.f32.mrb[0].mxu0
  %v1997 = vadd.f32 %v937, %v1996
  %v1998 = vpop.f32.mrb[0].mxu0
  %1999 = vmatprep.mubr.bf16.mxu0 0
  %2000 = vmatmul.mubr.bf16.gmra.mrb[0].mxu0 %v1713
  %v2001 = vpop.f32.mrb[0].mxu0
  %v2002 = vadd.f32 %v942, %v2001
  %v2003 = vpop.f32.mrb[0].mxu0
  %v2004 = vpop.f32.mrb[0].mxu0
  %v2005 = vadd.f32 %v945, %v2004
  %v2006 = vpop.f32.mrb[0].mxu0
  %2007 = vmatprep.mubr.bf16.mxu0 0
  %2008 = vmatmul.mubr.bf16.gmra.mrb[0].mxu0 %v1716
  %v2009 = vpop.f32.mrb[0].mxu0
  %v2010 = vadd.f32 %v950, %v2009
  %v2011 = vpop.f32.mrb[0].mxu0
  %v2012 = vpop.f32.mrb[0].mxu0
  %v2013 = vadd.f32 %v953, %v2012
  %v2014 = vpop.f32.mrb[0].mxu0
  %2015 = vmatprep.mubr.bf16.mxu0 0
  %2016 = vmatmul.mubr.bf16.gmra.mrb[0].mxu0 %v1719
  %v2017 = vpop.f32.mrb[0].mxu0
  %v2018 = vadd.f32 %v958, %v2017
  %v2019 = vpop.f32.mrb[0].mxu0
  %v2020 = vpop.f32.mrb[0].mxu0
  %v2021 = vadd.f32 %v961, %v2020
  %v2022 = vpop.f32.mrb[0].mxu0
  %2023 = vmatprep.mubr.bf16.mxu0 0
  %2024 = vmatmul.mubr.bf16.gmra.mrb[0].mxu0 %v1722
  %v2025 = vpop.f32.mrb[0].mxu0
  %v2026 = vadd.f32 %v966, %v2025
  %v2027 = vpop.f32.mrb[0].mxu0
  %v2028 = vpop.f32.mrb[0].mxu0
  %v2029 = vadd.f32 %v969, %v2028
  %v2030 = vpop.f32.mrb[0].mxu0
  %2031 = vmatprep.mubr.bf16.mxu0 0
  %2032 = vmatmul.mubr.bf16.gmra.mrb[0].mxu0 %v1725
  %v2033 = vpop.f32.mrb[0].mxu0
  %v2034 = vadd.f32 %v974, %v2033
  %v2035 = vpop.f32.mrb[0].mxu0
  %v2036 = vpop.f32.mrb[0].mxu0
  %v2037 = vadd.f32 %v977, %v2036
  %v2038 = vpop.f32.mrb[0].mxu0
  %2039 = vmatprep.mubr.bf16.mxu0 0
  %2040 = vmatmul.mubr.bf16.gmra.mrb[0].mxu0 %v1728
  %v2041 = vpop.f32.mrb[0].mxu0
  %v2042 = vadd.f32 %v982, %v2041
  %v2043 = vpop.f32.mrb[0].mxu0
  %v2044 = vpop.f32.mrb[0].mxu0
  %v2045 = vadd.f32 %v985, %v2044
  %v2046 = vpop.f32.mrb[0].mxu0
  %2047 = vmatprep.mubr.bf16.mxu0 0
  %2048 = vmatmul.mubr.bf16.gmra.mrb[0].mxu0 %v1731
  %v2049 = vpop.f32.mrb[0].mxu0
  %v2050 = vadd.f32 %v990, %v2049
  %v2051 = vpop.f32.mrb[0].mxu0
  %v2052 = vpop.f32.mrb[0].mxu0
  %v2053 = vadd.f32 %v993, %v2052
  %v2054 = vpop.f32.mrb[0].mxu0
  %2055 = vmatprep.mubr.bf16.mxu0 0
  %2056 = vmatmul.mubr.bf16.gmra.mrb[0].mxu0 %v1734
  %v2057 = vpop.f32.mrb[0].mxu0
  %v2058 = vadd.f32 %v998, %v2057
  %v2059 = vpop.f32.mrb[0].mxu0
  %v2060 = vpop.f32.mrb[0].mxu0
  %v2061 = vadd.f32 %v1001, %v2060
  %v2062 = vpop.f32.mrb[0].mxu0
  %2063 = vmatprep.mubr.bf16.mxu0 0
  %2064 = vmatmul.mubr.bf16.gmra.mrb[0].mxu0 %v1737
  %v2065 = vpop.f32.mrb[0].mxu0
  %v2066 = vadd.f32 %v1006, %v2065
  %v2067 = vpop.f32.mrb[0].mxu0
  %v2068 = vpop.f32.mrb[0].mxu0
  %v2069 = vadd.f32 %v1009, %v2068
  %v2070 = vpop.f32.mrb[0].mxu0
  %2071 = vmatprep.mubr.bf16.mxu0 0
  %2072 = vmatmul.mubr.bf16.gmra.mrb[0].mxu0 %v1740
  %v2073 = vpop.f32.mrb[0].mxu0
  %v2074 = vadd.f32 %v1014, %v2073
  %v2075 = vpop.f32.mrb[0].mxu0
  %v2076 = vpop.f32.mrb[0].mxu0
  %v2077 = vadd.f32 %v1017, %v2076
  %v2078 = vpop.f32.mrb[0].mxu0
  %2079 = vmatprep.mubr.bf16.mxu0 0
  %2080 = vmatmul.mubr.bf16.gmra.mrb[0].mxu0 %v1743
  %v2081 = vpop.f32.mrb[0].mxu0
  %v2082 = vadd.f32 %v1022, %v2081
  %v2083 = vpop.f32.mrb[0].mxu0
  %v2084 = vpop.f32.mrb[0].mxu0
  %v2085 = vadd.f32 %v1025, %v2084
  %v2086 = vpop.f32.mrb[0].mxu0
  %2087 = vmatprep.mubr.bf16.mxu0 0
  %2088 = vmatmul.mubr.bf16.gmra.mrb[0].mxu0 %v1746
  %v2089 = vpop.f32.mrb[0].mxu0
  %v2090 = vadd.f32 %v1030, %v2089
  %v2091 = vpop.f32.mrb[0].mxu0
  %v2092 = vpop.f32.mrb[0].mxu0
  %v2093 = vadd.f32 %v1033, %v2092
  %v2094 = vpop.f32.mrb[0].mxu0
  %2095 = vmatprep.mubr.bf16.mxu0 0
  %2096 = vmatmul.mubr.bf16.gmra.mrb[0].mxu0 %v1749
  %v2097 = vpop.f32.mrb[0].mxu0
  %v2098 = vadd.f32 %v1038, %v2097
  %v2099 = vpop.f32.mrb[0].mxu0
  %v2100 = vpop.f32.mrb[0].mxu0
  %v2101 = vadd.f32 %v1041, %v2100
  %v2102 = vpop.f32.mrb[0].mxu0
  %2103 = vmatprep.mubr.bf16.mxu0 0
  %2104 = vmatmul.mubr.bf16.gmra.mrb[0].mxu0 %v1752
  %v2105 = vpop.f32.mrb[0].mxu0
  %v2106 = vadd.f32 %v1046, %v2105
  %v2107 = vpop.f32.mrb[0].mxu0
  %v2108 = vpop.f32.mrb[0].mxu0
  %v2109 = vadd.f32 %v1049, %v2108
  %v2110 = vpop.f32.mrb[0].mxu0
  %2111 = vmatprep.mubr.bf16.mxu0 0
  %2112 = vmatmul.mubr.bf16.gmra.mrb[0].mxu0 %v1755
  %v2113 = vpop.f32.mrb[0].mxu0
  %v2114 = vadd.f32 %v1054, %v2113
  %v2115 = vpop.f32.mrb[0].mxu0
  %v2116 = vpop.f32.mrb[0].mxu0
  %v2117 = vadd.f32 %v1057, %v2116
  %v2118 = vpop.f32.mrb[0].mxu0
  %2119 = vmatprep.mubr.bf16.mxu0 0
  %2120 = vmatmul.mubr.bf16.gmra.mrb[0].mxu0 %v1758
  %v2121 = vpop.f32.mrb[0].mxu0
  %v2122 = vadd.f32 %v1062, %v2121
  %v2123 = vpop.f32.mrb[0].mxu0
  %v2124 = vpop.f32.mrb[0].mxu0
  %v2125 = vadd.f32 %v1065, %v2124
  %v2126 = vpop.f32.mrb[0].mxu0
  %2127 = vmatprep.mubr.bf16.mxu0 0
  %2128 = vmatmul.mubr.bf16.gmra.mrb[0].mxu0 %v1761
  %v2129 = vpop.f32.mrb[0].mxu0
  %v2130 = vadd.f32 %v1070, %v2129
  %v2131 = vpop.f32.mrb[0].mxu0
  %v2132 = vpop.f32.mrb[0].mxu0
  %v2133 = vadd.f32 %v1073, %v2132
  %v2134 = vpop.f32.mrb[0].mxu0
  %2135 = vmatprep.mubr.bf16.mxu0 0
  %2136 = vmatmul.mubr.bf16.gmra.mrb[0].mxu0 %v1764
  %v2137 = vpop.f32.mrb[0].mxu0
  %v2138 = vadd.f32 %v1078, %v2137
  %v2139 = vpop.f32.mrb[0].mxu0
  %v2140 = vpop.f32.mrb[0].mxu0
  %v2141 = vadd.f32 %v1081, %v2140
  %v2142 = vpop.f32.mrb[0].mxu0
  %2143 = vmatprep.mubr.bf16.mxu0 0
  %2144 = vmatmul.mubr.bf16.gmra.mrb[0].mxu0 %v1767
  %v2145 = vpop.f32.mrb[0].mxu0
  %v2146 = vadd.f32 %v1086, %v2145
  %v2147 = vpop.f32.mrb[0].mxu0
  %v2148 = vpop.f32.mrb[0].mxu0
  %v2149 = vadd.f32 %v1089, %v2148
  %v2150 = vpop.f32.mrb[0].mxu0
  %2151 = vmatprep.mubr.bf16.mxu0 0
  %2152 = vmatmul.mubr.bf16.gmra.mrb[0].mxu0 %v1770
  %v2153 = vpop.f32.mrb[0].mxu0
  %v2154 = vadd.f32 %v1094, %v2153
  %v2155 = vpop.f32.mrb[0].mxu0
  %v2156 = vpop.f32.mrb[0].mxu0
  %v2157 = vadd.f32 %v1097, %v2156
  %v2158 = vpop.f32.mrb[0].mxu0
  %2159 = vmatprep.mubr.bf16.mxu0 0
  %2160 = vmatmul.mubr.bf16.gmra.mrb[0].mxu0 %v1773
  %v2161 = vpop.f32.mrb[0].mxu0
  %v2162 = vadd.f32 %v1102, %v2161
  %v2163 = vpop.f32.mrb[0].mxu0
  %v2164 = vpop.f32.mrb[0].mxu0
  %v2165 = vadd.f32 %v1105, %v2164
  %v2166 = vpop.f32.mrb[0].mxu0
  %2167 = vmatprep.mubr.bf16.mxu0 0
  %2168 = vmatmul.mubr.bf16.gmra.mrb[0].mxu0 %v1776
  %v2169 = vpop.f32.mrb[0].mxu0
  %v2170 = vadd.f32 %v1110, %v2169
  %v2171 = vpop.f32.mrb[0].mxu0
  %v2172 = vpop.f32.mrb[0].mxu0
  %v2173 = vadd.f32 %v1113, %v2172
  %v2174 = vpop.f32.mrb[0].mxu0
  %2175 = vmatprep.mubr.bf16.mxu0 0
  %2176 = vmatmul.mubr.bf16.gmra.mrb[0].mxu0 %v1779
  %v2177 = vpop.f32.mrb[0].mxu0
  %v2178 = vadd.f32 %v1118, %v2177
  %v2179 = vpop.f32.mrb[0].mxu0
  %v2180 = vpop.f32.mrb[0].mxu0
  %v2181 = vadd.f32 %v1121, %v2180
  %v2182 = vpop.f32.mrb[0].mxu0
  %2183 = vmatprep.mubr.bf16.mxu0 0
  %2184 = vmatmul.mubr.bf16.gmra.mrb[0].mxu0 %v1782
  %v2185 = vpop.f32.mrb[0].mxu0
  %v2186 = vadd.f32 %v1126, %v2185
  %v2187 = vpop.f32.mrb[0].mxu0
  %v2188 = vpop.f32.mrb[0].mxu0
  %v2189 = vadd.f32 %v1129, %v2188
  %v2190 = vpop.f32.mrb[0].mxu0
  %2191 = vmatprep.mubr.bf16.mxu0 0
  %2192 = vmatmul.mubr.bf16.gmra.mrb[0].mxu0 %v1785
  %v2193 = vpop.f32.mrb[0].mxu0
  %v2194 = vadd.f32 %v1134, %v2193
  %v2195 = vpop.f32.mrb[0].mxu0
  %v2196 = vpop.f32.mrb[0].mxu0
  %v2197 = vadd.f32 %v1137, %v2196
  %v2198 = vpop.f32.mrb[0].mxu0
  %2199 = vmatprep.mubr.bf16.mxu0 0
  %2200 = vmatmul.mubr.bf16.gmra.mrb[0].mxu0 %v1788
  %v2201 = vpop.f32.mrb[0].mxu0
  %v2202 = vadd.f32 %v1142, %v2201
  %v2203 = vpop.f32.mrb[0].mxu0
  %v2204 = vpop.f32.mrb[0].mxu0
  %v2205 = vadd.f32 %v1145, %v2204
  %v2206 = vpop.f32.mrb[0].mxu0
  %2207 = vmatprep.mubr.bf16.mxu0 0
  %2208 = vmatmul.mubr.bf16.gmra.mrb[0].mxu0 %v1791
  %v2209 = vpop.f32.mrb[0].mxu0
  %v2210 = vadd.f32 %v1150, %v2209
  %v2211 = vpop.f32.mrb[0].mxu0
  %v2212 = vpop.f32.mrb[0].mxu0
  %v2213 = vadd.f32 %v1153, %v2212
  %v2214 = vpop.f32.mrb[0].mxu0
  %2215 = vmatprep.mubr.bf16.mxu0 0
  %2216 = vmatmul.mubr.bf16.gmra.mrb[0].mxu0 %v1794
  %v2217 = vpop.f32.mrb[0].mxu0
  %v2218 = vadd.f32 %v1158, %v2217
  %v2219 = vpop.f32.mrb[0].mxu0
  %v2220 = vpop.f32.mrb[0].mxu0
  %v2221 = vadd.f32 %v1161, %v2220
  %v2222 = vpop.f32.mrb[0].mxu0
  %2223 = vmatprep.mubr.bf16.mxu0 0
  %2224 = vmatmul.mubr.bf16.gmra.mrb[0].mxu0 %v1797
  %v2225 = vpop.f32.mrb[0].mxu0
  %v2226 = vadd.f32 %v1166, %v2225
  %v2227 = vpop.f32.mrb[0].mxu0
  %v2228 = vpop.f32.mrb[0].mxu0
  %v2229 = vadd.f32 %v1169, %v2228
  %v2230 = vpop.f32.mrb[0].mxu0
  %2231 = vmatprep.mubr.bf16.mxu0 0
  %2232 = vmatmul.mubr.bf16.gmra.mrb[0].mxu0 %v1800
  %v2233 = vpop.f32.mrb[0].mxu0
  %v2234 = vadd.f32 %v1174, %v2233
  %v2235 = vpop.f32.mrb[0].mxu0
  %v2236 = vpop.f32.mrb[0].mxu0
  %v2237 = vadd.f32 %v1177, %v2236
  %v2238 = vpop.f32.mrb[0].mxu0
  %2239 = vmatprep.mubr.bf16.mxu0 0
  %2240 = vmatmul.mubr.bf16.gmra.mrb[0].mxu0 %v1803
  %v2241 = vpop.f32.mrb[0].mxu0
  %v2242 = vadd.f32 %v1182, %v2241
  %v2243 = vpop.f32.mrb[0].mxu0
  %v2244 = vpop.f32.mrb[0].mxu0
  %v2245 = vadd.f32 %v1185, %v2244
  %v2246 = vpop.f32.mrb[0].mxu0
  %2247 = vmatprep.mubr.bf16.mxu0 0
  %2248 = vmatmul.mubr.bf16.gmra.mrb[0].mxu0 %v1806
  %v2249 = vpop.f32.mrb[0].mxu0
  %v2250 = vadd.f32 %v1190, %v2249
  %v2251 = vpop.f32.mrb[0].mxu0
  %v2252 = vpop.f32.mrb[0].mxu0
  %v2253 = vadd.f32 %v1193, %v2252
  %v2254 = vpop.f32.mrb[0].mxu0
  %2255 = vmatprep.mubr.bf16.mxu0 0
  %2256 = vmatmul.mubr.bf16.gmra.mrb[0].mxu0 %v1809
  %v2257 = vpop.f32.mrb[0].mxu0
  %v2258 = vadd.f32 %v1198, %v2257
  %v2259 = vpop.f32.mrb[0].mxu0
  %v2260 = vpop.f32.mrb[0].mxu0
  %v2261 = vadd.f32 %v1201, %v2260
  %v2262 = vpop.f32.mrb[0].mxu0
  %2263 = vmatprep.mubr.bf16.mxu0 0
  %2264 = vmatmul.mubr.bf16.gmra.mrb[0].mxu0 %v1812
  %v2265 = vpop.f32.mrb[0].mxu0
  %v2266 = vadd.f32 %v1206, %v2265
  %v2267 = vpop.f32.mrb[0].mxu0
  %v2268 = vpop.f32.mrb[0].mxu0
  %v2269 = vadd.f32 %v1209, %v2268
  %v2270 = vpop.f32.mrb[0].mxu0
  %2271 = vmatprep.mubr.bf16.mxu0 0
  %2272 = vmatmul.mubr.bf16.gmra.mrb[0].mxu0 %v1815
  %v2273 = vpop.f32.mrb[0].mxu0
  %v2274 = vadd.f32 %v1214, %v2273
  %v2275 = vpop.f32.mrb[0].mxu0
  %v2276 = vpop.f32.mrb[0].mxu0
  %v2277 = vadd.f32 %v1217, %v2276
  %v2278 = vpop.f32.mrb[0].mxu0
  %2279 = vmatprep.mubr.bf16.mxu0 0
  %2280 = vmatmul.mubr.bf16.gmra.mrb[0].mxu0 %v1818
  %v2281 = vpop.f32.mrb[0].mxu0
  %v2282 = vadd.f32 %v1222, %v2281
  %v2283 = vpop.f32.mrb[0].mxu0
  %v2284 = vpop.f32.mrb[0].mxu0
  %v2285 = vadd.f32 %v1225, %v2284
  %v2286 = vpop.f32.mrb[0].mxu0
  %2287 = vmatprep.mubr.bf16.mxu0 0
  %2288 = vmatmul.mubr.bf16.gmra.mrb[0].mxu0 %v1821
  %v2289 = vpop.f32.mrb[0].mxu0
  %v2290 = vadd.f32 %v1230, %v2289
  %v2291 = vpop.f32.mrb[0].mxu0
  %v2292 = vpop.f32.mrb[0].mxu0
  %v2293 = vadd.f32 %v1233, %v2292
  %v2294 = vpop.f32.mrb[0].mxu0
  %2295 = vmatprep.mubr.bf16.mxu0 0
  %2296 = vmatmul.mubr.bf16.gmra.mrb[0].mxu0 %v1824
  %v2297 = vpop.f32.mrb[0].mxu0
  %v2298 = vadd.f32 %v1238, %v2297
  %v2299 = vpop.f32.mrb[0].mxu0
  %v2300 = vpop.f32.mrb[0].mxu0
  %v2301 = vadd.f32 %v1241, %v2300
  %v2302 = vpop.f32.mrb[0].mxu0
  %2303 = vmatprep.mubr.bf16.mxu0 0
  %2304 = vmatmul.mubr.bf16.gmra.mrb[0].mxu0 %v1827
  %v2305 = vpop.f32.mrb[0].mxu0
  %v2306 = vadd.f32 %v1246, %v2305
  %v2307 = vpop.f32.mrb[0].mxu0
  %v2308 = vpop.f32.mrb[0].mxu0
  %v2309 = vadd.f32 %v1249, %v2308
  %v2310 = vpop.f32.mrb[0].mxu0
  %2311 = vmatprep.mubr.bf16.mxu0 0
  %2312 = vmatmul.mubr.bf16.gmra.mrb[0].mxu0 %v1830
  %v2313 = vpop.f32.mrb[0].mxu0
  %v2314 = vadd.f32 %v1254, %v2313
  %v2315 = vpop.f32.mrb[0].mxu0
  %v2316 = vpop.f32.mrb[0].mxu0
  %v2317 = vadd.f32 %v1257, %v2316
  %v2318 = vpop.f32.mrb[0].mxu0
  %2319 = vmatprep.mubr.bf16.mxu0 0
  %2320 = vmatmul.mubr.bf16.gmra.mrb[0].mxu0 %v1833
  %v2321 = vpop.f32.mrb[0].mxu0
  %v2322 = vadd.f32 %v1262, %v2321
  %v2323 = vpop.f32.mrb[0].mxu0
  %v2324 = vpop.f32.mrb[0].mxu0
  %v2325 = vadd.f32 %v1265, %v2324
  %v2326 = vpop.f32.mrb[0].mxu0
  %2327 = vmatprep.mubr.bf16.mxu0 0
  %2328 = vmatmul.mubr.bf16.gmra.mrb[0].mxu0 %v1836
  %v2329 = vpop.f32.mrb[0].mxu0
  %v2330 = vadd.f32 %v1270, %v2329
  %v2331 = vpop.f32.mrb[0].mxu0
  %v2332 = vpop.f32.mrb[0].mxu0
  %v2333 = vadd.f32 %v1273, %v2332
  %v2334 = vpop.f32.mrb[0].mxu0
  %2335 = vmatprep.mubr.bf16.mxu0 0
  %2336 = vmatmul.mubr.bf16.gmra.mrb[0].mxu0 %v1839
  %v2337 = vpop.f32.mrb[0].mxu0
  %v2338 = vadd.f32 %v1278, %v2337
  %v2339 = vpop.f32.mrb[0].mxu0
  %v2340 = vpop.f32.mrb[0].mxu0
  %v2341 = vadd.f32 %v1281, %v2340
  %v2342 = vpop.f32.mrb[0].mxu0
  %2343 = vmatprep.mubr.bf16.mxu0 0
  %2344 = vmatmul.mubr.bf16.gmra.mrb[0].mxu0 %v1842
  %v2345 = vpop.f32.mrb[0].mxu0
  %v2346 = vadd.f32 %v1286, %v2345
  %v2347 = vpop.f32.mrb[0].mxu0
  %v2348 = vpop.f32.mrb[0].mxu0
  %v2349 = vadd.f32 %v1289, %v2348
  %v2350 = vpop.f32.mrb[0].mxu0
  %2351 = vmatprep.mubr.bf16.mxu0 0
  %2352 = vmatmul.mubr.bf16.gmra.mrb[0].mxu0 %v1845
  %v2353 = vpop.f32.mrb[0].mxu0
  %v2354 = vadd.f32 %v1294, %v2353
  %v2355 = vpop.f32.mrb[0].mxu0
  %v2356 = vpop.f32.mrb[0].mxu0
  %v2357 = vadd.f32 %v1297, %v2356
  %v2358 = vpop.f32.mrb[0].mxu0
  %2359 = vmatprep.mubr.bf16.mxu0 0
  %2360 = vmatmul.mubr.bf16.gmra.mrb[0].mxu0 %v1848
  %v2361 = vpop.f32.mrb[0].mxu0
  %v2362 = vadd.f32 %v1302, %v2361
  %v2363 = vpop.f32.mrb[0].mxu0
  %v2364 = vpop.f32.mrb[0].mxu0
  %v2365 = vadd.f32 %v1305, %v2364
  %v2366 = vpop.f32.mrb[0].mxu0
  %2367 = vmatprep.mubr.bf16.mxu0 0
  %2368 = vmatmul.mubr.bf16.gmra.mrb[0].mxu0 %v1851
  %v2369 = vpop.f32.mrb[0].mxu0
  %v2370 = vadd.f32 %v1310, %v2369
  %v2371 = vpop.f32.mrb[0].mxu0
  %v2372 = vpop.f32.mrb[0].mxu0
  %v2373 = vadd.f32 %v1313, %v2372
  %v2374 = vpop.f32.mrb[0].mxu0
  %2375 = vmatprep.mubr.bf16.mxu0 0
  %2376 = vmatmul.mubr.bf16.gmra.mrb[0].mxu0 %v1854
  %v2377 = vpop.f32.mrb[0].mxu0
  %v2378 = vadd.f32 %v1318, %v2377
  %v2379 = vpop.f32.mrb[0].mxu0
  %v2380 = vpop.f32.mrb[0].mxu0
  %v2381 = vadd.f32 %v1321, %v2380
  %v2382 = vpop.f32.mrb[0].mxu0
  %2383 = vmatprep.mubr.bf16.mxu0 0
  %2384 = vmatmul.mubr.bf16.gmra.mrb[0].mxu0 %v1857
  %v2385 = vpop.f32.mrb[0].mxu0
  %v2386 = vadd.f32 %v1326, %v2385
  %v2387 = vpop.f32.mrb[0].mxu0
  %v2388 = vpop.f32.mrb[0].mxu0
  %v2389 = vadd.f32 %v1329, %v2388
  %v2390 = vpop.f32.mrb[0].mxu0
  %2391 = vmatprep.mubr.bf16.mxu0 0
  %2392 = vmatmul.mubr.bf16.gmra.mrb[0].mxu0 %v1860
  %v2393 = vpop.f32.mrb[0].mxu0
  %v2394 = vadd.f32 %v1334, %v2393
  %v2395 = vpop.f32.mrb[0].mxu0
  %v2396 = vpop.f32.mrb[0].mxu0
  %v2397 = vadd.f32 %v1337, %v2396
  %v2398 = vpop.f32.mrb[0].mxu0
  %2399 = vmatprep.mubr.bf16.mxu0 0
  %2400 = vmatmul.mubr.bf16.gmra.mrb[0].mxu0 %v1863
  %v2401 = vpop.f32.mrb[0].mxu0
  %v2402 = vadd.f32 %v1342, %v2401
  %v2403 = vpop.f32.mrb[0].mxu0
  %v2404 = vpop.f32.mrb[0].mxu0
  %v2405 = vadd.f32 %v1345, %v2404
  %v2406 = vpop.f32.mrb[0].mxu0
  %2407 = vmatprep.mubr.bf16.mxu0 0
  %2408 = vmatmul.mubr.bf16.gmra.mrb[0].mxu0 %v1866
  %v2409 = vpop.f32.mrb[0].mxu0
  %v2410 = vadd.f32 %v1350, %v2409
  %v2411 = vpop.f32.mrb[0].mxu0
  %v2412 = vpop.f32.mrb[0].mxu0
  %v2413 = vadd.f32 %v1353, %v2412
  %v2414 = vpop.f32.mrb[0].mxu0
  %2415 = vdwg.mxu0
  %v2416 = vld [vmem:[%s5] sm:$0x1]
  %v2418 = vlaneseq
  %v2419 = vshrl.u32 %v2418, 7
  %v2420 = vsub.s32 0, %v2419
  %v2421 = vrot.slane %v2416, %v2420
  %v2423 = vadd.f32 %v1906, %v2421
  %v2424 = vadd.f32 %v1909, %v2421
  %v2425 = vadd.f32 %v1914, %v2421
  %v2426 = vadd.f32 %v1917, %v2421
  %v2427 = vadd.f32 %v1922, %v2421
  %v2428 = vadd.f32 %v1925, %v2421
  %v2429 = vadd.f32 %v1930, %v2421
  %v2430 = vadd.f32 %v1933, %v2421
  %v2431 = vadd.f32 %v1938, %v2421
  %v2432 = vadd.f32 %v1941, %v2421
  %v2433 = vadd.f32 %v1946, %v2421
  %v2434 = vadd.f32 %v1949, %v2421
  %v2435 = vadd.f32 %v1954, %v2421
  %v2436 = vadd.f32 %v1957, %v2421
  %v2437 = vadd.f32 %v1962, %v2421
  %v2438 = vadd.f32 %v1965, %v2421
  %v2439 = vadd.f32 %v1970, %v2421
  %v2440 = vadd.f32 %v1973, %v2421
  %v2441 = vadd.f32 %v1978, %v2421
  %v2442 = vadd.f32 %v1981, %v2421
  %v2443 = vadd.f32 %v1986, %v2421
  %v2444 = vadd.f32 %v1989, %v2421
  %v2445 = vadd.f32 %v1994, %v2421
  %v2446 = vadd.f32 %v1997, %v2421
  %v2447 = vadd.f32 %v2002, %v2421
  %v2448 = vadd.f32 %v2005, %v2421
  %v2449 = vadd.f32 %v2010, %v2421
  %v2450 = vadd.f32 %v2013, %v2421
  %v2451 = vadd.f32 %v2018, %v2421
  %v2452 = vadd.f32 %v2021, %v2421
  %v2453 = vadd.f32 %v2026, %v2421
  %v2454 = vadd.f32 %v2029, %v2421
  %v2455 = vadd.f32 %v2034, %v2421
  %v2456 = vadd.f32 %v2037, %v2421
  %v2457 = vadd.f32 %v2042, %v2421
  %v2458 = vadd.f32 %v2045, %v2421
  %v2459 = vadd.f32 %v2050, %v2421
  %v2460 = vadd.f32 %v2053, %v2421
  %v2461 = vadd.f32 %v2058, %v2421
  %v2462 = vadd.f32 %v2061, %v2421
  %v2463 = vadd.f32 %v2066, %v2421
  %v2464 = vadd.f32 %v2069, %v2421
  %v2465 = vadd.f32 %v2074, %v2421
  %v2466 = vadd.f32 %v2077, %v2421
  %v2467 = vadd.f32 %v2082, %v2421
  %v2468 = vadd.f32 %v2085, %v2421
  %v2469 = vadd.f32 %v2090, %v2421
  %v2470 = vadd.f32 %v2093, %v2421
  %v2471 = vadd.f32 %v2098, %v2421
  %v2472 = vadd.f32 %v2101, %v2421
  %v2473 = vadd.f32 %v2106, %v2421
  %v2474 = vadd.f32 %v2109, %v2421
  %v2475 = vadd.f32 %v2114, %v2421
  %v2476 = vadd.f32 %v2117, %v2421
  %v2477 = vadd.f32 %v2122, %v2421
  %v2478 = vadd.f32 %v2125, %v2421
  %v2479 = vadd.f32 %v2130, %v2421
  %v2480 = vadd.f32 %v2133, %v2421
  %v2481 = vadd.f32 %v2138, %v2421
  %v2482 = vadd.f32 %v2141, %v2421
  %v2483 = vadd.f32 %v2146, %v2421
  %v2484 = vadd.f32 %v2149, %v2421
  %v2485 = vadd.f32 %v2154, %v2421
  %v2486 = vadd.f32 %v2157, %v2421
  %v2487 = vadd.f32 %v2162, %v2421
  %v2488 = vadd.f32 %v2165, %v2421
  %v2489 = vadd.f32 %v2170, %v2421
  %v2490 = vadd.f32 %v2173, %v2421
  %v2491 = vadd.f32 %v2178, %v2421
  %v2492 = vadd.f32 %v2181, %v2421
  %v2493 = vadd.f32 %v2186, %v2421
  %v2494 = vadd.f32 %v2189, %v2421
  %v2495 = vadd.f32 %v2194, %v2421
  %v2496 = vadd.f32 %v2197, %v2421
  %v2497 = vadd.f32 %v2202, %v2421
  %v2498 = vadd.f32 %v2205, %v2421
  %v2499 = vadd.f32 %v2210, %v2421
  %v2500 = vadd.f32 %v2213, %v2421
  %v2501 = vadd.f32 %v2218, %v2421
  %v2502 = vadd.f32 %v2221, %v2421
  %v2503 = vadd.f32 %v2226, %v2421
  %v2504 = vadd.f32 %v2229, %v2421
  %v2505 = vadd.f32 %v2234, %v2421
  %v2506 = vadd.f32 %v2237, %v2421
  %v2507 = vadd.f32 %v2242, %v2421
  %v2508 = vadd.f32 %v2245, %v2421
  %v2509 = vadd.f32 %v2250, %v2421
  %v2510 = vadd.f32 %v2253, %v2421
  %v2511 = vadd.f32 %v2258, %v2421
  %v2512 = vadd.f32 %v2261, %v2421
  %v2513 = vadd.f32 %v2266, %v2421
  %v2514 = vadd.f32 %v2269, %v2421
  %v2515 = vadd.f32 %v2274, %v2421
  %v2516 = vadd.f32 %v2277, %v2421
  %v2517 = vadd.f32 %v2282, %v2421
  %v2518 = vadd.f32 %v2285, %v2421
  %v2519 = vadd.f32 %v2290, %v2421
  %v2520 = vadd.f32 %v2293, %v2421
  %v2521 = vadd.f32 %v2298, %v2421
  %v2522 = vadd.f32 %v2301, %v2421
  %v2523 = vadd.f32 %v2306, %v2421
  %v2524 = vadd.f32 %v2309, %v2421
  %v2525 = vadd.f32 %v2314, %v2421
  %v2526 = vadd.f32 %v2317, %v2421
  %v2527 = vadd.f32 %v2322, %v2421
  %v2528 = vadd.f32 %v2325, %v2421
  %v2529 = vadd.f32 %v2330, %v2421
  %v2530 = vadd.f32 %v2333, %v2421
  %v2531 = vadd.f32 %v2338, %v2421
  %v2532 = vadd.f32 %v2341, %v2421
  %v2533 = vadd.f32 %v2346, %v2421
  %v2534 = vadd.f32 %v2349, %v2421
  %v2535 = vadd.f32 %v2354, %v2421
  %v2536 = vadd.f32 %v2357, %v2421
  %v2537 = vadd.f32 %v2362, %v2421
  %v2538 = vadd.f32 %v2365, %v2421
  %v2539 = vadd.f32 %v2370, %v2421
  %v2540 = vadd.f32 %v2373, %v2421
  %v2541 = vadd.f32 %v2378, %v2421
  %v2542 = vadd.f32 %v2381, %v2421
  %v2543 = vadd.f32 %v2386, %v2421
  %v2544 = vadd.f32 %v2389, %v2421
  %v2545 = vadd.f32 %v2394, %v2421
  %v2546 = vadd.f32 %v2397, %v2421
  %v2547 = vadd.f32 %v2402, %v2421
  %v2548 = vadd.f32 %v2405, %v2421
  %v2549 = vadd.f32 %v2410, %v2421
  %v2550 = vadd.f32 %v2413, %v2421
  %v2551 = vmax.f32 %v2423, 0.0
  %v2552 = vmax.f32 %v2424, 0.0
  %v2553 = vmax.f32 %v2425, 0.0
  %v2554 = vmax.f32 %v2426, 0.0
  %v2555 = vmax.f32 %v2427, 0.0
  %v2556 = vmax.f32 %v2428, 0.0
  %v2557 = vmax.f32 %v2429, 0.0
  %v2558 = vmax.f32 %v2430, 0.0
  %v2559 = vmax.f32 %v2431, 0.0
  %v2560 = vmax.f32 %v2432, 0.0
  %v2561 = vmax.f32 %v2433, 0.0
  %v2562 = vmax.f32 %v2434, 0.0
  %v2563 = vmax.f32 %v2435, 0.0
  %v2564 = vmax.f32 %v2436, 0.0
  %v2565 = vmax.f32 %v2437, 0.0
  %v2566 = vmax.f32 %v2438, 0.0
  %v2567 = vmax.f32 %v2439, 0.0
  %v2568 = vmax.f32 %v2440, 0.0
  %v2569 = vmax.f32 %v2441, 0.0
  %v2570 = vmax.f32 %v2442, 0.0
  %v2571 = vmax.f32 %v2443, 0.0
  %v2572 = vmax.f32 %v2444, 0.0
  %v2573 = vmax.f32 %v2445, 0.0
  %v2574 = vmax.f32 %v2446, 0.0
  %v2575 = vmax.f32 %v2447, 0.0
  %v2576 = vmax.f32 %v2448, 0.0
  %v2577 = vmax.f32 %v2449, 0.0
  %v2578 = vmax.f32 %v2450, 0.0
  %v2579 = vmax.f32 %v2451, 0.0
  %v2580 = vmax.f32 %v2452, 0.0
  %v2581 = vmax.f32 %v2453, 0.0
  %v2582 = vmax.f32 %v2454, 0.0
  %v2583 = vmax.f32 %v2455, 0.0
  %v2584 = vmax.f32 %v2456, 0.0
  %v2585 = vmax.f32 %v2457, 0.0
  %v2586 = vmax.f32 %v2458, 0.0
  %v2587 = vmax.f32 %v2459, 0.0
  %v2588 = vmax.f32 %v2460, 0.0
  %v2589 = vmax.f32 %v2461, 0.0
  %v2590 = vmax.f32 %v2462, 0.0
  %v2591 = vmax.f32 %v2463, 0.0
  %v2592 = vmax.f32 %v2464, 0.0
  %v2593 = vmax.f32 %v2465, 0.0
  %v2594 = vmax.f32 %v2466, 0.0
  %v2595 = vmax.f32 %v2467, 0.0
  %v2596 = vmax.f32 %v2468, 0.0
  %v2597 = vmax.f32 %v2469, 0.0
  %v2598 = vmax.f32 %v2470, 0.0
  %v2599 = vmax.f32 %v2471, 0.0
  %v2600 = vmax.f32 %v2472, 0.0
  %v2601 = vmax.f32 %v2473, 0.0
  %v2602 = vmax.f32 %v2474, 0.0
  %v2603 = vmax.f32 %v2475, 0.0
  %v2604 = vmax.f32 %v2476, 0.0
  %v2605 = vmax.f32 %v2477, 0.0
  %v2606 = vmax.f32 %v2478, 0.0
  %v2607 = vmax.f32 %v2479, 0.0
  %v2608 = vmax.f32 %v2480, 0.0
  %v2609 = vmax.f32 %v2481, 0.0
  %v2610 = vmax.f32 %v2482, 0.0
  %v2611 = vmax.f32 %v2483, 0.0
  %v2612 = vmax.f32 %v2484, 0.0
  %v2613 = vmax.f32 %v2485, 0.0
  %v2614 = vmax.f32 %v2486, 0.0
  %v2615 = vmax.f32 %v2487, 0.0
  %v2616 = vmax.f32 %v2488, 0.0
  %v2617 = vmax.f32 %v2489, 0.0
  %v2618 = vmax.f32 %v2490, 0.0
  %v2619 = vmax.f32 %v2491, 0.0
  %v2620 = vmax.f32 %v2492, 0.0
  %v2621 = vmax.f32 %v2493, 0.0
  %v2622 = vmax.f32 %v2494, 0.0
  %v2623 = vmax.f32 %v2495, 0.0
  %v2624 = vmax.f32 %v2496, 0.0
  %v2625 = vmax.f32 %v2497, 0.0
  %v2626 = vmax.f32 %v2498, 0.0
  %v2627 = vmax.f32 %v2499, 0.0
  %v2628 = vmax.f32 %v2500, 0.0
  %v2629 = vmax.f32 %v2501, 0.0
  %v2630 = vmax.f32 %v2502, 0.0
  %v2631 = vmax.f32 %v2503, 0.0
  %v2632 = vmax.f32 %v2504, 0.0
  %v2633 = vmax.f32 %v2505, 0.0
  %v2634 = vmax.f32 %v2506, 0.0
  %v2635 = vmax.f32 %v2507, 0.0
  %v2636 = vmax.f32 %v2508, 0.0
  %v2637 = vmax.f32 %v2509, 0.0
  %v2638 = vmax.f32 %v2510, 0.0
  %v2639 = vmax.f32 %v2511, 0.0
  %v2640 = vmax.f32 %v2512, 0.0
  %v2641 = vmax.f32 %v2513, 0.0
  %v2642 = vmax.f32 %v2514, 0.0
  %v2643 = vmax.f32 %v2515, 0.0
  %v2644 = vmax.f32 %v2516, 0.0
  %v2645 = vmax.f32 %v2517, 0.0
  %v2646 = vmax.f32 %v2518, 0.0
  %v2647 = vmax.f32 %v2519, 0.0
  %v2648 = vmax.f32 %v2520, 0.0
  %v2649 = vmax.f32 %v2521, 0.0
  %v2650 = vmax.f32 %v2522, 0.0
  %v2651 = vmax.f32 %v2523, 0.0
  %v2652 = vmax.f32 %v2524, 0.0
  %v2653 = vmax.f32 %v2525, 0.0
  %v2654 = vmax.f32 %v2526, 0.0
  %v2655 = vmax.f32 %v2527, 0.0
  %v2656 = vmax.f32 %v2528, 0.0
  %v2657 = vmax.f32 %v2529, 0.0
  %v2658 = vmax.f32 %v2530, 0.0
  %v2659 = vmax.f32 %v2531, 0.0
  %v2660 = vmax.f32 %v2532, 0.0
  %v2661 = vmax.f32 %v2533, 0.0
  %v2662 = vmax.f32 %v2534, 0.0
  %v2663 = vmax.f32 %v2535, 0.0
  %v2664 = vmax.f32 %v2536, 0.0
  %v2665 = vmax.f32 %v2537, 0.0
  %v2666 = vmax.f32 %v2538, 0.0
  %v2667 = vmax.f32 %v2539, 0.0
  %v2668 = vmax.f32 %v2540, 0.0
  %v2669 = vmax.f32 %v2541, 0.0
  %v2670 = vmax.f32 %v2542, 0.0
  %v2671 = vmax.f32 %v2543, 0.0
  %v2672 = vmax.f32 %v2544, 0.0
  %v2673 = vmax.f32 %v2545, 0.0
  %v2674 = vmax.f32 %v2546, 0.0
  %v2675 = vmax.f32 %v2547, 0.0
  %v2676 = vmax.f32 %v2548, 0.0
  %v2677 = vmax.f32 %v2549, 0.0
  %v2678 = vmax.f32 %v2550, 0.0
  %v2679 = vpack.c.bf16 %v2552, %v2551
  %v2680 = vpack.c.bf16 %v2554, %v2553
  %v2681 = vpack.c.bf16 %v2556, %v2555
  %v2682 = vpack.c.bf16 %v2558, %v2557
  %v2683 = vpack.c.bf16 %v2560, %v2559
  %v2684 = vpack.c.bf16 %v2562, %v2561
  %v2685 = vpack.c.bf16 %v2564, %v2563
  %v2686 = vpack.c.bf16 %v2566, %v2565
  %v2687 = vpack.c.bf16 %v2568, %v2567
  %v2688 = vpack.c.bf16 %v2570, %v2569
  %v2689 = vpack.c.bf16 %v2572, %v2571
  %v2690 = vpack.c.bf16 %v2574, %v2573
  %v2691 = vpack.c.bf16 %v2576, %v2575
  %v2692 = vpack.c.bf16 %v2578, %v2577
  %v2693 = vpack.c.bf16 %v2580, %v2579
  %v2694 = vpack.c.bf16 %v2582, %v2581
  %v2695 = vpack.c.bf16 %v2584, %v2583
  %v2696 = vpack.c.bf16 %v2586, %v2585
  %v2697 = vpack.c.bf16 %v2588, %v2587
  %v2698 = vpack.c.bf16 %v2590, %v2589
  %v2699 = vpack.c.bf16 %v2592, %v2591
  %v2700 = vpack.c.bf16 %v2594, %v2593
  %v2701 = vpack.c.bf16 %v2596, %v2595
  %v2702 = vpack.c.bf16 %v2598, %v2597
  %v2703 = vpack.c.bf16 %v2600, %v2599
  %v2704 = vpack.c.bf16 %v2602, %v2601
  %v2705 = vpack.c.bf16 %v2604, %v2603
  %v2706 = vpack.c.bf16 %v2606, %v2605
  %v2707 = vpack.c.bf16 %v2608, %v2607
  %v2708 = vpack.c.bf16 %v2610, %v2609
  %v2709 = vpack.c.bf16 %v2612, %v2611
  %v2710 = vpack.c.bf16 %v2614, %v2613
  %v2711 = vpack.c.bf16 %v2616, %v2615
  %v2712 = vpack.c.bf16 %v2618, %v2617
  %v2713 = vpack.c.bf16 %v2620, %v2619
  %v2714 = vpack.c.bf16 %v2622, %v2621
  %v2715 = vpack.c.bf16 %v2624, %v2623
  %v2716 = vpack.c.bf16 %v2626, %v2625
  %v2717 = vpack.c.bf16 %v2628, %v2627
  %v2718 = vpack.c.bf16 %v2630, %v2629
  %v2719 = vpack.c.bf16 %v2632, %v2631
  %v2720 = vpack.c.bf16 %v2634, %v2633
  %v2721 = vpack.c.bf16 %v2636, %v2635
  %v2722 = vpack.c.bf16 %v2638, %v2637
  %v2723 = vpack.c.bf16 %v2640, %v2639
  %v2724 = vpack.c.bf16 %v2642, %v2641
  %v2725 = vpack.c.bf16 %v2644, %v2643
  %v2726 = vpack.c.bf16 %v2646, %v2645
  %v2727 = vpack.c.bf16 %v2648, %v2647
  %v2728 = vpack.c.bf16 %v2650, %v2649
  %v2729 = vpack.c.bf16 %v2652, %v2651
  %v2730 = vpack.c.bf16 %v2654, %v2653
  %v2731 = vpack.c.bf16 %v2656, %v2655
  %v2732 = vpack.c.bf16 %v2658, %v2657
  %v2733 = vpack.c.bf16 %v2660, %v2659
  %v2734 = vpack.c.bf16 %v2662, %v2661
  %v2735 = vpack.c.bf16 %v2664, %v2663
  %v2736 = vpack.c.bf16 %v2666, %v2665
  %v2737 = vpack.c.bf16 %v2668, %v2667
  %v2738 = vpack.c.bf16 %v2670, %v2669
  %v2739 = vpack.c.bf16 %v2672, %v2671
  %v2740 = vpack.c.bf16 %v2674, %v2673
  %v2741 = vpack.c.bf16 %v2676, %v2675
  %v2742 = vpack.c.bf16 %v2678, %v2677
  %v2743 = vld [vmem:[%s6] sm:$0xf]
  %v2744 = vld [vmem:[%s6 + $0x4] sm:$0xf]
  %v2745 = vld [vmem:[%s6 + $0x8] sm:$0xf]
  %v2746 = vld [vmem:[%s6 + $0xc] sm:$0xf]
  %v2747 = vld [vmem:[%s6 + $0x10] sm:$0xf]
  %v2748 = vld [vmem:[%s6 + $0x14] sm:$0xf]
  %v2749 = vld [vmem:[%s6 + $0x18] sm:$0xf]
  %v2750 = vld [vmem:[%s6 + $0x1c] sm:$0xf]
  %v2751 = vld [vmem:[%s6 + $0x20] sm:$0xf]
  %v2752 = vld [vmem:[%s6 + $0x24] sm:$0xf]
  %v2753 = vld [vmem:[%s6 + $0x28] sm:$0xf]
  %v2754 = vld [vmem:[%s6 + $0x2c] sm:$0xf]
  %v2755 = vld [vmem:[%s6 + $0x30] sm:$0xf]
  %v2756 = vld [vmem:[%s6 + $0x34] sm:$0xf]
  %v2757 = vld [vmem:[%s6 + $0x38] sm:$0xf]
  %v2758 = vld [vmem:[%s6 + $0x3c] sm:$0xf]
  %v2759 = vld [vmem:[%s7] sm:$0x1]
  %v2761 = vlaneseq
  %v2762 = vshrl.u32 %v2761, 7
  %v2763 = vsub.s32 0, %v2762
  %v2764 = vrot.slane %v2759, %v2763
  %v2782 = vunpack.c.l.b16 %v2743
  %v2783 = vunpack.c.l.b16 %v2744
  %v2784 = vunpack.c.l.b16 %v2745
  %v2785 = vunpack.c.l.b16 %v2746
  %v2786 = vunpack.c.l.b16 %v2747
  %v2787 = vunpack.c.l.b16 %v2748
  %v2788 = vunpack.c.l.b16 %v2749
  %v2789 = vunpack.c.l.b16 %v2750
  %v2790 = vunpack.c.l.b16 %v2751
  %v2791 = vunpack.c.l.b16 %v2752
  %v2792 = vunpack.c.l.b16 %v2753
  %v2793 = vunpack.c.l.b16 %v2754
  %v2794 = vunpack.c.l.b16 %v2755
  %v2795 = vunpack.c.l.b16 %v2756
  %v2796 = vunpack.c.l.b16 %v2757
  %v2797 = vunpack.c.l.b16 %v2758
  %v2798 = vpack.c.b16 %v2783, %v2782
  %v2799 = vpack.c.b16 %v2785, %v2784
  %v2800 = vpack.c.b16 %v2787, %v2786
  %v2801 = vpack.c.b16 %v2789, %v2788
  %v2802 = vpack.c.b16 %v2791, %v2790
  %v2803 = vpack.c.b16 %v2793, %v2792
  %v2804 = vpack.c.b16 %v2795, %v2794
  %v2805 = vpack.c.b16 %v2797, %v2796
  %2814 = vmatprep.subr.bf16.mxu0 0
  %2815 = vmatpush1.bf16.msra.mxu0 %v2798
  %2816 = vmatprep.subr.bf16.mxu0 0
  %2817 = vmatpush1.bf16.msra.mxu0 %v2799
  %2818 = vmatprep.subr.bf16.mxu0 0
  %2819 = vmatpush1.bf16.msra.mxu0 %v2800
  %2820 = vmatprep.subr.bf16.mxu0 0
  %2821 = vmatpush1.bf16.msra.mxu0 %v2801
  %2822 = vmatprep.subr.bf16.mxu0 0
  %2823 = vmatpush1.bf16.msra.mxu0 %v2802
  %2824 = vmatprep.subr.bf16.mxu0 0
  %2825 = vmatpush1.bf16.msra.mxu0 %v2803
  %2826 = vmatprep.subr.bf16.mxu0 0
  %2827 = vmatpush1.bf16.msra.mxu0 %v2804
  %2828 = vmatprep.subr.bf16.mxu0 0
  %2829 = vmatpush1.bf16.msra.mxu0 %v2805
  %2830 = vmatprep.subr.bf16.mxu0 0
  %2831 = vmatpush1.bf16.msra.mxu0 0
  %2832 = vmatprep.subr.bf16.mxu0 0
  %2833 = vmatpush1.bf16.msra.mxu0 0
  %2834 = vmatprep.subr.bf16.mxu0 0
  %2835 = vmatpush1.bf16.msra.mxu0 0
  %2836 = vmatprep.subr.bf16.mxu0 0
  %2837 = vmatpush1.bf16.msra.mxu0 0
  %2838 = vmatprep.subr.bf16.mxu0 0
  %2839 = vmatpush1.bf16.msra.mxu0 0
  %2840 = vmatprep.subr.bf16.mxu0 0
  %2841 = vmatpush1.bf16.msra.mxu0 0
  %2842 = vmatprep.subr.bf16.mxu0 0
  %2843 = vmatpush1.bf16.msra.mxu0 0
  %2844 = vmatprep.subr.bf16.mxu0 0
  %2845 = vmatpush1.bf16.msra.mxu0 0
  %2846 = vmatprep.mubr.bf16.mxu0 0
  %2847 = vmatmul.mubr.bf16.gmra.mrb[0].mxu0 %v2679
  %v2848 = vpop.f32.mrb[0].mxu0
  %v2849 = vadd.f32 %v2764, %v2848
  %v2850 = vpop.f32.mrb[0].mxu0
  %v2851 = vpop.f32.mrb[0].mxu0
  %v2852 = vadd.f32 %v2764, %v2851
  %v2853 = vpop.f32.mrb[0].mxu0
  %2854 = vmatprep.mubr.bf16.mxu0 0
  %2855 = vmatmul.mubr.bf16.gmra.mrb[0].mxu0 %v2680
  %v2856 = vpop.f32.mrb[0].mxu0
  %v2857 = vadd.f32 %v2764, %v2856
  %v2858 = vpop.f32.mrb[0].mxu0
  %v2859 = vpop.f32.mrb[0].mxu0
  %v2860 = vadd.f32 %v2764, %v2859
  %v2861 = vpop.f32.mrb[0].mxu0
  %2862 = vmatprep.mubr.bf16.mxu0 0
  %2863 = vmatmul.mubr.bf16.gmra.mrb[0].mxu0 %v2681
  %v2864 = vpop.f32.mrb[0].mxu0
  %v2865 = vadd.f32 %v2764, %v2864
  %v2866 = vpop.f32.mrb[0].mxu0
  %v2867 = vpop.f32.mrb[0].mxu0
  %v2868 = vadd.f32 %v2764, %v2867
  %v2869 = vpop.f32.mrb[0].mxu0
  %2870 = vmatprep.mubr.bf16.mxu0 0
  %2871 = vmatmul.mubr.bf16.gmra.mrb[0].mxu0 %v2682
  %v2872 = vpop.f32.mrb[0].mxu0
  %v2873 = vadd.f32 %v2764, %v2872
  %v2874 = vpop.f32.mrb[0].mxu0
  %v2875 = vpop.f32.mrb[0].mxu0
  %v2876 = vadd.f32 %v2764, %v2875
  %v2877 = vpop.f32.mrb[0].mxu0
  %2878 = vmatprep.mubr.bf16.mxu0 0
  %2879 = vmatmul.mubr.bf16.gmra.mrb[0].mxu0 %v2683
  %v2880 = vpop.f32.mrb[0].mxu0
  %v2881 = vadd.f32 %v2764, %v2880
  %v2882 = vpop.f32.mrb[0].mxu0
  %v2883 = vpop.f32.mrb[0].mxu0
  %v2884 = vadd.f32 %v2764, %v2883
  %v2885 = vpop.f32.mrb[0].mxu0
  %2886 = vmatprep.mubr.bf16.mxu0 0
  %2887 = vmatmul.mubr.bf16.gmra.mrb[0].mxu0 %v2684
  %v2888 = vpop.f32.mrb[0].mxu0
  %v2889 = vadd.f32 %v2764, %v2888
  %v2890 = vpop.f32.mrb[0].mxu0
  %v2891 = vpop.f32.mrb[0].mxu0
  %v2892 = vadd.f32 %v2764, %v2891
  %v2893 = vpop.f32.mrb[0].mxu0
  %2894 = vmatprep.mubr.bf16.mxu0 0
  %2895 = vmatmul.mubr.bf16.gmra.mrb[0].mxu0 %v2685
  %v2896 = vpop.f32.mrb[0].mxu0
  %v2897 = vadd.f32 %v2764, %v2896
  %v2898 = vpop.f32.mrb[0].mxu0
  %v2899 = vpop.f32.mrb[0].mxu0
  %v2900 = vadd.f32 %v2764, %v2899
  %v2901 = vpop.f32.mrb[0].mxu0
  %2902 = vmatprep.mubr.bf16.mxu0 0
  %2903 = vmatmul.mubr.bf16.gmra.mrb[0].mxu0 %v2686
  %v2904 = vpop.f32.mrb[0].mxu0
  %v2905 = vadd.f32 %v2764, %v2904
  %v2906 = vpop.f32.mrb[0].mxu0
  %v2907 = vpop.f32.mrb[0].mxu0
  %v2908 = vadd.f32 %v2764, %v2907
  %v2909 = vpop.f32.mrb[0].mxu0
  %2910 = vmatprep.mubr.bf16.mxu0 0
  %2911 = vmatmul.mubr.bf16.gmra.mrb[0].mxu0 %v2687
  %v2912 = vpop.f32.mrb[0].mxu0
  %v2913 = vadd.f32 %v2764, %v2912
  %v2914 = vpop.f32.mrb[0].mxu0
  %v2915 = vpop.f32.mrb[0].mxu0
  %v2916 = vadd.f32 %v2764, %v2915
  %v2917 = vpop.f32.mrb[0].mxu0
  %2918 = vmatprep.mubr.bf16.mxu0 0
  %2919 = vmatmul.mubr.bf16.gmra.mrb[0].mxu0 %v2688
  %v2920 = vpop.f32.mrb[0].mxu0
  %v2921 = vadd.f32 %v2764, %v2920
  %v2922 = vpop.f32.mrb[0].mxu0
  %v2923 = vpop.f32.mrb[0].mxu0
  %v2924 = vadd.f32 %v2764, %v2923
  %v2925 = vpop.f32.mrb[0].mxu0
  %2926 = vmatprep.mubr.bf16.mxu0 0
  %2927 = vmatmul.mubr.bf16.gmra.mrb[0].mxu0 %v2689
  %v2928 = vpop.f32.mrb[0].mxu0
  %v2929 = vadd.f32 %v2764, %v2928
  %v2930 = vpop.f32.mrb[0].mxu0
  %v2931 = vpop.f32.mrb[0].mxu0
  %v2932 = vadd.f32 %v2764, %v2931
  %v2933 = vpop.f32.mrb[0].mxu0
  %2934 = vmatprep.mubr.bf16.mxu0 0
  %2935 = vmatmul.mubr.bf16.gmra.mrb[0].mxu0 %v2690
  %v2936 = vpop.f32.mrb[0].mxu0
  %v2937 = vadd.f32 %v2764, %v2936
  %v2938 = vpop.f32.mrb[0].mxu0
  %v2939 = vpop.f32.mrb[0].mxu0
  %v2940 = vadd.f32 %v2764, %v2939
  %v2941 = vpop.f32.mrb[0].mxu0
  %2942 = vmatprep.mubr.bf16.mxu0 0
  %2943 = vmatmul.mubr.bf16.gmra.mrb[0].mxu0 %v2691
  %v2944 = vpop.f32.mrb[0].mxu0
  %v2945 = vadd.f32 %v2764, %v2944
  %v2946 = vpop.f32.mrb[0].mxu0
  %v2947 = vpop.f32.mrb[0].mxu0
  %v2948 = vadd.f32 %v2764, %v2947
  %v2949 = vpop.f32.mrb[0].mxu0
  %2950 = vmatprep.mubr.bf16.mxu0 0
  %2951 = vmatmul.mubr.bf16.gmra.mrb[0].mxu0 %v2692
  %v2952 = vpop.f32.mrb[0].mxu0
  %v2953 = vadd.f32 %v2764, %v2952
  %v2954 = vpop.f32.mrb[0].mxu0
  %v2955 = vpop.f32.mrb[0].mxu0
  %v2956 = vadd.f32 %v2764, %v2955
  %v2957 = vpop.f32.mrb[0].mxu0
  %2958 = vmatprep.mubr.bf16.mxu0 0
  %2959 = vmatmul.mubr.bf16.gmra.mrb[0].mxu0 %v2693
  %v2960 = vpop.f32.mrb[0].mxu0
  %v2961 = vadd.f32 %v2764, %v2960
  %v2962 = vpop.f32.mrb[0].mxu0
  %v2963 = vpop.f32.mrb[0].mxu0
  %v2964 = vadd.f32 %v2764, %v2963
  %v2965 = vpop.f32.mrb[0].mxu0
  %2966 = vmatprep.mubr.bf16.mxu0 0
  %2967 = vmatmul.mubr.bf16.gmra.mrb[0].mxu0 %v2694
  %v2968 = vpop.f32.mrb[0].mxu0
  %v2969 = vadd.f32 %v2764, %v2968
  %v2970 = vpop.f32.mrb[0].mxu0
  %v2971 = vpop.f32.mrb[0].mxu0
  %v2972 = vadd.f32 %v2764, %v2971
  %v2973 = vpop.f32.mrb[0].mxu0
  %2974 = vmatprep.mubr.bf16.mxu0 0
  %2975 = vmatmul.mubr.bf16.gmra.mrb[0].mxu0 %v2695
  %v2976 = vpop.f32.mrb[0].mxu0
  %v2977 = vadd.f32 %v2764, %v2976
  %v2978 = vpop.f32.mrb[0].mxu0
  %v2979 = vpop.f32.mrb[0].mxu0
  %v2980 = vadd.f32 %v2764, %v2979
  %v2981 = vpop.f32.mrb[0].mxu0
  %2982 = vmatprep.mubr.bf16.mxu0 0
  %2983 = vmatmul.mubr.bf16.gmra.mrb[0].mxu0 %v2696
  %v2984 = vpop.f32.mrb[0].mxu0
  %v2985 = vadd.f32 %v2764, %v2984
  %v2986 = vpop.f32.mrb[0].mxu0
  %v2987 = vpop.f32.mrb[0].mxu0
  %v2988 = vadd.f32 %v2764, %v2987
  %v2989 = vpop.f32.mrb[0].mxu0
  %2990 = vmatprep.mubr.bf16.mxu0 0
  %2991 = vmatmul.mubr.bf16.gmra.mrb[0].mxu0 %v2697
  %v2992 = vpop.f32.mrb[0].mxu0
  %v2993 = vadd.f32 %v2764, %v2992
  %v2994 = vpop.f32.mrb[0].mxu0
  %v2995 = vpop.f32.mrb[0].mxu0
  %v2996 = vadd.f32 %v2764, %v2995
  %v2997 = vpop.f32.mrb[0].mxu0
  %2998 = vmatprep.mubr.bf16.mxu0 0
  %2999 = vmatmul.mubr.bf16.gmra.mrb[0].mxu0 %v2698
  %v3000 = vpop.f32.mrb[0].mxu0
  %v3001 = vadd.f32 %v2764, %v3000
  %v3002 = vpop.f32.mrb[0].mxu0
  %v3003 = vpop.f32.mrb[0].mxu0
  %v3004 = vadd.f32 %v2764, %v3003
  %v3005 = vpop.f32.mrb[0].mxu0
  %3006 = vmatprep.mubr.bf16.mxu0 0
  %3007 = vmatmul.mubr.bf16.gmra.mrb[0].mxu0 %v2699
  %v3008 = vpop.f32.mrb[0].mxu0
  %v3009 = vadd.f32 %v2764, %v3008
  %v3010 = vpop.f32.mrb[0].mxu0
  %v3011 = vpop.f32.mrb[0].mxu0
  %v3012 = vadd.f32 %v2764, %v3011
  %v3013 = vpop.f32.mrb[0].mxu0
  %3014 = vmatprep.mubr.bf16.mxu0 0
  %3015 = vmatmul.mubr.bf16.gmra.mrb[0].mxu0 %v2700
  %v3016 = vpop.f32.mrb[0].mxu0
  %v3017 = vadd.f32 %v2764, %v3016
  %v3018 = vpop.f32.mrb[0].mxu0
  %v3019 = vpop.f32.mrb[0].mxu0
  %v3020 = vadd.f32 %v2764, %v3019
  %v3021 = vpop.f32.mrb[0].mxu0
  %3022 = vmatprep.mubr.bf16.mxu0 0
  %3023 = vmatmul.mubr.bf16.gmra.mrb[0].mxu0 %v2701
  %v3024 = vpop.f32.mrb[0].mxu0
  %v3025 = vadd.f32 %v2764, %v3024
  %v3026 = vpop.f32.mrb[0].mxu0
  %v3027 = vpop.f32.mrb[0].mxu0
  %v3028 = vadd.f32 %v2764, %v3027
  %v3029 = vpop.f32.mrb[0].mxu0
  %3030 = vmatprep.mubr.bf16.mxu0 0
  %3031 = vmatmul.mubr.bf16.gmra.mrb[0].mxu0 %v2702
  %v3032 = vpop.f32.mrb[0].mxu0
  %v3033 = vadd.f32 %v2764, %v3032
  %v3034 = vpop.f32.mrb[0].mxu0
  %v3035 = vpop.f32.mrb[0].mxu0
  %v3036 = vadd.f32 %v2764, %v3035
  %v3037 = vpop.f32.mrb[0].mxu0
  %3038 = vmatprep.mubr.bf16.mxu0 0
  %3039 = vmatmul.mubr.bf16.gmra.mrb[0].mxu0 %v2703
  %v3040 = vpop.f32.mrb[0].mxu0
  %v3041 = vadd.f32 %v2764, %v3040
  %v3042 = vpop.f32.mrb[0].mxu0
  %v3043 = vpop.f32.mrb[0].mxu0
  %v3044 = vadd.f32 %v2764, %v3043
  %v3045 = vpop.f32.mrb[0].mxu0
  %3046 = vmatprep.mubr.bf16.mxu0 0
  %3047 = vmatmul.mubr.bf16.gmra.mrb[0].mxu0 %v2704
  %v3048 = vpop.f32.mrb[0].mxu0
  %v3049 = vadd.f32 %v2764, %v3048
  %v3050 = vpop.f32.mrb[0].mxu0
  %v3051 = vpop.f32.mrb[0].mxu0
  %v3052 = vadd.f32 %v2764, %v3051
  %v3053 = vpop.f32.mrb[0].mxu0
  %3054 = vmatprep.mubr.bf16.mxu0 0
  %3055 = vmatmul.mubr.bf16.gmra.mrb[0].mxu0 %v2705
  %v3056 = vpop.f32.mrb[0].mxu0
  %v3057 = vadd.f32 %v2764, %v3056
  %v3058 = vpop.f32.mrb[0].mxu0
  %v3059 = vpop.f32.mrb[0].mxu0
  %v3060 = vadd.f32 %v2764, %v3059
  %v3061 = vpop.f32.mrb[0].mxu0
  %3062 = vmatprep.mubr.bf16.mxu0 0
  %3063 = vmatmul.mubr.bf16.gmra.mrb[0].mxu0 %v2706
  %v3064 = vpop.f32.mrb[0].mxu0
  %v3065 = vadd.f32 %v2764, %v3064
  %v3066 = vpop.f32.mrb[0].mxu0
  %v3067 = vpop.f32.mrb[0].mxu0
  %v3068 = vadd.f32 %v2764, %v3067
  %v3069 = vpop.f32.mrb[0].mxu0
  %3070 = vmatprep.mubr.bf16.mxu0 0
  %3071 = vmatmul.mubr.bf16.gmra.mrb[0].mxu0 %v2707
  %v3072 = vpop.f32.mrb[0].mxu0
  %v3073 = vadd.f32 %v2764, %v3072
  %v3074 = vpop.f32.mrb[0].mxu0
  %v3075 = vpop.f32.mrb[0].mxu0
  %v3076 = vadd.f32 %v2764, %v3075
  %v3077 = vpop.f32.mrb[0].mxu0
  %3078 = vmatprep.mubr.bf16.mxu0 0
  %3079 = vmatmul.mubr.bf16.gmra.mrb[0].mxu0 %v2708
  %v3080 = vpop.f32.mrb[0].mxu0
  %v3081 = vadd.f32 %v2764, %v3080
  %v3082 = vpop.f32.mrb[0].mxu0
  %v3083 = vpop.f32.mrb[0].mxu0
  %v3084 = vadd.f32 %v2764, %v3083
  %v3085 = vpop.f32.mrb[0].mxu0
  %3086 = vmatprep.mubr.bf16.mxu0 0
  %3087 = vmatmul.mubr.bf16.gmra.mrb[0].mxu0 %v2709
  %v3088 = vpop.f32.mrb[0].mxu0
  %v3089 = vadd.f32 %v2764, %v3088
  %v3090 = vpop.f32.mrb[0].mxu0
  %v3091 = vpop.f32.mrb[0].mxu0
  %v3092 = vadd.f32 %v2764, %v3091
  %v3093 = vpop.f32.mrb[0].mxu0
  %3094 = vmatprep.mubr.bf16.mxu0 0
  %3095 = vmatmul.mubr.bf16.gmra.mrb[0].mxu0 %v2710
  %v3096 = vpop.f32.mrb[0].mxu0
  %v3097 = vadd.f32 %v2764, %v3096
  %v3098 = vpop.f32.mrb[0].mxu0
  %v3099 = vpop.f32.mrb[0].mxu0
  %v3100 = vadd.f32 %v2764, %v3099
  %v3101 = vpop.f32.mrb[0].mxu0
  %3102 = vmatprep.mubr.bf16.mxu0 0
  %3103 = vmatmul.mubr.bf16.gmra.mrb[0].mxu0 %v2711
  %v3104 = vpop.f32.mrb[0].mxu0
  %v3105 = vadd.f32 %v2764, %v3104
  %v3106 = vpop.f32.mrb[0].mxu0
  %v3107 = vpop.f32.mrb[0].mxu0
  %v3108 = vadd.f32 %v2764, %v3107
  %v3109 = vpop.f32.mrb[0].mxu0
  %3110 = vmatprep.mubr.bf16.mxu0 0
  %3111 = vmatmul.mubr.bf16.gmra.mrb[0].mxu0 %v2712
  %v3112 = vpop.f32.mrb[0].mxu0
  %v3113 = vadd.f32 %v2764, %v3112
  %v3114 = vpop.f32.mrb[0].mxu0
  %v3115 = vpop.f32.mrb[0].mxu0
  %v3116 = vadd.f32 %v2764, %v3115
  %v3117 = vpop.f32.mrb[0].mxu0
  %3118 = vmatprep.mubr.bf16.mxu0 0
  %3119 = vmatmul.mubr.bf16.gmra.mrb[0].mxu0 %v2713
  %v3120 = vpop.f32.mrb[0].mxu0
  %v3121 = vadd.f32 %v2764, %v3120
  %v3122 = vpop.f32.mrb[0].mxu0
  %v3123 = vpop.f32.mrb[0].mxu0
  %v3124 = vadd.f32 %v2764, %v3123
  %v3125 = vpop.f32.mrb[0].mxu0
  %3126 = vmatprep.mubr.bf16.mxu0 0
  %3127 = vmatmul.mubr.bf16.gmra.mrb[0].mxu0 %v2714
  %v3128 = vpop.f32.mrb[0].mxu0
  %v3129 = vadd.f32 %v2764, %v3128
  %v3130 = vpop.f32.mrb[0].mxu0
  %v3131 = vpop.f32.mrb[0].mxu0
  %v3132 = vadd.f32 %v2764, %v3131
  %v3133 = vpop.f32.mrb[0].mxu0
  %3134 = vmatprep.mubr.bf16.mxu0 0
  %3135 = vmatmul.mubr.bf16.gmra.mrb[0].mxu0 %v2715
  %v3136 = vpop.f32.mrb[0].mxu0
  %v3137 = vadd.f32 %v2764, %v3136
  %v3138 = vpop.f32.mrb[0].mxu0
  %v3139 = vpop.f32.mrb[0].mxu0
  %v3140 = vadd.f32 %v2764, %v3139
  %v3141 = vpop.f32.mrb[0].mxu0
  %3142 = vmatprep.mubr.bf16.mxu0 0
  %3143 = vmatmul.mubr.bf16.gmra.mrb[0].mxu0 %v2716
  %v3144 = vpop.f32.mrb[0].mxu0
  %v3145 = vadd.f32 %v2764, %v3144
  %v3146 = vpop.f32.mrb[0].mxu0
  %v3147 = vpop.f32.mrb[0].mxu0
  %v3148 = vadd.f32 %v2764, %v3147
  %v3149 = vpop.f32.mrb[0].mxu0
  %3150 = vmatprep.mubr.bf16.mxu0 0
  %3151 = vmatmul.mubr.bf16.gmra.mrb[0].mxu0 %v2717
  %v3152 = vpop.f32.mrb[0].mxu0
  %v3153 = vadd.f32 %v2764, %v3152
  %v3154 = vpop.f32.mrb[0].mxu0
  %v3155 = vpop.f32.mrb[0].mxu0
  %v3156 = vadd.f32 %v2764, %v3155
  %v3157 = vpop.f32.mrb[0].mxu0
  %3158 = vmatprep.mubr.bf16.mxu0 0
  %3159 = vmatmul.mubr.bf16.gmra.mrb[0].mxu0 %v2718
  %v3160 = vpop.f32.mrb[0].mxu0
  %v3161 = vadd.f32 %v2764, %v3160
  %v3162 = vpop.f32.mrb[0].mxu0
  %v3163 = vpop.f32.mrb[0].mxu0
  %v3164 = vadd.f32 %v2764, %v3163
  %v3165 = vpop.f32.mrb[0].mxu0
  %3166 = vmatprep.mubr.bf16.mxu0 0
  %3167 = vmatmul.mubr.bf16.gmra.mrb[0].mxu0 %v2719
  %v3168 = vpop.f32.mrb[0].mxu0
  %v3169 = vadd.f32 %v2764, %v3168
  %v3170 = vpop.f32.mrb[0].mxu0
  %v3171 = vpop.f32.mrb[0].mxu0
  %v3172 = vadd.f32 %v2764, %v3171
  %v3173 = vpop.f32.mrb[0].mxu0
  %3174 = vmatprep.mubr.bf16.mxu0 0
  %3175 = vmatmul.mubr.bf16.gmra.mrb[0].mxu0 %v2720
  %v3176 = vpop.f32.mrb[0].mxu0
  %v3177 = vadd.f32 %v2764, %v3176
  %v3178 = vpop.f32.mrb[0].mxu0
  %v3179 = vpop.f32.mrb[0].mxu0
  %v3180 = vadd.f32 %v2764, %v3179
  %v3181 = vpop.f32.mrb[0].mxu0
  %3182 = vmatprep.mubr.bf16.mxu0 0
  %3183 = vmatmul.mubr.bf16.gmra.mrb[0].mxu0 %v2721
  %v3184 = vpop.f32.mrb[0].mxu0
  %v3185 = vadd.f32 %v2764, %v3184
  %v3186 = vpop.f32.mrb[0].mxu0
  %v3187 = vpop.f32.mrb[0].mxu0
  %v3188 = vadd.f32 %v2764, %v3187
  %v3189 = vpop.f32.mrb[0].mxu0
  %3190 = vmatprep.mubr.bf16.mxu0 0
  %3191 = vmatmul.mubr.bf16.gmra.mrb[0].mxu0 %v2722
  %v3192 = vpop.f32.mrb[0].mxu0
  %v3193 = vadd.f32 %v2764, %v3192
  %v3194 = vpop.f32.mrb[0].mxu0
  %v3195 = vpop.f32.mrb[0].mxu0
  %v3196 = vadd.f32 %v2764, %v3195
  %v3197 = vpop.f32.mrb[0].mxu0
  %3198 = vmatprep.mubr.bf16.mxu0 0
  %3199 = vmatmul.mubr.bf16.gmra.mrb[0].mxu0 %v2723
  %v3200 = vpop.f32.mrb[0].mxu0
  %v3201 = vadd.f32 %v2764, %v3200
  %v3202 = vpop.f32.mrb[0].mxu0
  %v3203 = vpop.f32.mrb[0].mxu0
  %v3204 = vadd.f32 %v2764, %v3203
  %v3205 = vpop.f32.mrb[0].mxu0
  %3206 = vmatprep.mubr.bf16.mxu0 0
  %3207 = vmatmul.mubr.bf16.gmra.mrb[0].mxu0 %v2724
  %v3208 = vpop.f32.mrb[0].mxu0
  %v3209 = vadd.f32 %v2764, %v3208
  %v3210 = vpop.f32.mrb[0].mxu0
  %v3211 = vpop.f32.mrb[0].mxu0
  %v3212 = vadd.f32 %v2764, %v3211
  %v3213 = vpop.f32.mrb[0].mxu0
  %3214 = vmatprep.mubr.bf16.mxu0 0
  %3215 = vmatmul.mubr.bf16.gmra.mrb[0].mxu0 %v2725
  %v3216 = vpop.f32.mrb[0].mxu0
  %v3217 = vadd.f32 %v2764, %v3216
  %v3218 = vpop.f32.mrb[0].mxu0
  %v3219 = vpop.f32.mrb[0].mxu0
  %v3220 = vadd.f32 %v2764, %v3219
  %v3221 = vpop.f32.mrb[0].mxu0
  %3222 = vmatprep.mubr.bf16.mxu0 0
  %3223 = vmatmul.mubr.bf16.gmra.mrb[0].mxu0 %v2726
  %v3224 = vpop.f32.mrb[0].mxu0
  %v3225 = vadd.f32 %v2764, %v3224
  %v3226 = vpop.f32.mrb[0].mxu0
  %v3227 = vpop.f32.mrb[0].mxu0
  %v3228 = vadd.f32 %v2764, %v3227
  %v3229 = vpop.f32.mrb[0].mxu0
  %3230 = vmatprep.mubr.bf16.mxu0 0
  %3231 = vmatmul.mubr.bf16.gmra.mrb[0].mxu0 %v2727
  %v3232 = vpop.f32.mrb[0].mxu0
  %v3233 = vadd.f32 %v2764, %v3232
  %v3234 = vpop.f32.mrb[0].mxu0
  %v3235 = vpop.f32.mrb[0].mxu0
  %v3236 = vadd.f32 %v2764, %v3235
  %v3237 = vpop.f32.mrb[0].mxu0
  %3238 = vmatprep.mubr.bf16.mxu0 0
  %3239 = vmatmul.mubr.bf16.gmra.mrb[0].mxu0 %v2728
  %v3240 = vpop.f32.mrb[0].mxu0
  %v3241 = vadd.f32 %v2764, %v3240
  %v3242 = vpop.f32.mrb[0].mxu0
  %v3243 = vpop.f32.mrb[0].mxu0
  %v3244 = vadd.f32 %v2764, %v3243
  %v3245 = vpop.f32.mrb[0].mxu0
  %3246 = vmatprep.mubr.bf16.mxu0 0
  %3247 = vmatmul.mubr.bf16.gmra.mrb[0].mxu0 %v2729
  %v3248 = vpop.f32.mrb[0].mxu0
  %v3249 = vadd.f32 %v2764, %v3248
  %v3250 = vpop.f32.mrb[0].mxu0
  %v3251 = vpop.f32.mrb[0].mxu0
  %v3252 = vadd.f32 %v2764, %v3251
  %v3253 = vpop.f32.mrb[0].mxu0
  %3254 = vmatprep.mubr.bf16.mxu0 0
  %3255 = vmatmul.mubr.bf16.gmra.mrb[0].mxu0 %v2730
  %v3256 = vpop.f32.mrb[0].mxu0
  %v3257 = vadd.f32 %v2764, %v3256
  %v3258 = vpop.f32.mrb[0].mxu0
  %v3259 = vpop.f32.mrb[0].mxu0
  %v3260 = vadd.f32 %v2764, %v3259
  %v3261 = vpop.f32.mrb[0].mxu0
  %3262 = vmatprep.mubr.bf16.mxu0 0
  %3263 = vmatmul.mubr.bf16.gmra.mrb[0].mxu0 %v2731
  %v3264 = vpop.f32.mrb[0].mxu0
  %v3265 = vadd.f32 %v2764, %v3264
  %v3266 = vpop.f32.mrb[0].mxu0
  %v3267 = vpop.f32.mrb[0].mxu0
  %v3268 = vadd.f32 %v2764, %v3267
  %v3269 = vpop.f32.mrb[0].mxu0
  %3270 = vmatprep.mubr.bf16.mxu0 0
  %3271 = vmatmul.mubr.bf16.gmra.mrb[0].mxu0 %v2732
  %v3272 = vpop.f32.mrb[0].mxu0
  %v3273 = vadd.f32 %v2764, %v3272
  %v3274 = vpop.f32.mrb[0].mxu0
  %v3275 = vpop.f32.mrb[0].mxu0
  %v3276 = vadd.f32 %v2764, %v3275
  %v3277 = vpop.f32.mrb[0].mxu0
  %3278 = vmatprep.mubr.bf16.mxu0 0
  %3279 = vmatmul.mubr.bf16.gmra.mrb[0].mxu0 %v2733
  %v3280 = vpop.f32.mrb[0].mxu0
  %v3281 = vadd.f32 %v2764, %v3280
  %v3282 = vpop.f32.mrb[0].mxu0
  %v3283 = vpop.f32.mrb[0].mxu0
  %v3284 = vadd.f32 %v2764, %v3283
  %v3285 = vpop.f32.mrb[0].mxu0
  %3286 = vmatprep.mubr.bf16.mxu0 0
  %3287 = vmatmul.mubr.bf16.gmra.mrb[0].mxu0 %v2734
  %v3288 = vpop.f32.mrb[0].mxu0
  %v3289 = vadd.f32 %v2764, %v3288
  %v3290 = vpop.f32.mrb[0].mxu0
  %v3291 = vpop.f32.mrb[0].mxu0
  %v3292 = vadd.f32 %v2764, %v3291
  %v3293 = vpop.f32.mrb[0].mxu0
  %3294 = vmatprep.mubr.bf16.mxu0 0
  %3295 = vmatmul.mubr.bf16.gmra.mrb[0].mxu0 %v2735
  %v3296 = vpop.f32.mrb[0].mxu0
  %v3297 = vadd.f32 %v2764, %v3296
  %v3298 = vpop.f32.mrb[0].mxu0
  %v3299 = vpop.f32.mrb[0].mxu0
  %v3300 = vadd.f32 %v2764, %v3299
  %v3301 = vpop.f32.mrb[0].mxu0
  %3302 = vmatprep.mubr.bf16.mxu0 0
  %3303 = vmatmul.mubr.bf16.gmra.mrb[0].mxu0 %v2736
  %v3304 = vpop.f32.mrb[0].mxu0
  %v3305 = vadd.f32 %v2764, %v3304
  %v3306 = vpop.f32.mrb[0].mxu0
  %v3307 = vpop.f32.mrb[0].mxu0
  %v3308 = vadd.f32 %v2764, %v3307
  %v3309 = vpop.f32.mrb[0].mxu0
  %3310 = vmatprep.mubr.bf16.mxu0 0
  %3311 = vmatmul.mubr.bf16.gmra.mrb[0].mxu0 %v2737
  %v3312 = vpop.f32.mrb[0].mxu0
  %v3313 = vadd.f32 %v2764, %v3312
  %v3314 = vpop.f32.mrb[0].mxu0
  %v3315 = vpop.f32.mrb[0].mxu0
  %v3316 = vadd.f32 %v2764, %v3315
  %v3317 = vpop.f32.mrb[0].mxu0
  %3318 = vmatprep.mubr.bf16.mxu0 0
  %3319 = vmatmul.mubr.bf16.gmra.mrb[0].mxu0 %v2738
  %v3320 = vpop.f32.mrb[0].mxu0
  %v3321 = vadd.f32 %v2764, %v3320
  %v3322 = vpop.f32.mrb[0].mxu0
  %v3323 = vpop.f32.mrb[0].mxu0
  %v3324 = vadd.f32 %v2764, %v3323
  %v3325 = vpop.f32.mrb[0].mxu0
  %3326 = vmatprep.mubr.bf16.mxu0 0
  %3327 = vmatmul.mubr.bf16.gmra.mrb[0].mxu0 %v2739
  %v3328 = vpop.f32.mrb[0].mxu0
  %v3329 = vadd.f32 %v2764, %v3328
  %v3330 = vpop.f32.mrb[0].mxu0
  %v3331 = vpop.f32.mrb[0].mxu0
  %v3332 = vadd.f32 %v2764, %v3331
  %v3333 = vpop.f32.mrb[0].mxu0
  %3334 = vmatprep.mubr.bf16.mxu0 0
  %3335 = vmatmul.mubr.bf16.gmra.mrb[0].mxu0 %v2740
  %v3336 = vpop.f32.mrb[0].mxu0
  %v3337 = vadd.f32 %v2764, %v3336
  %v3338 = vpop.f32.mrb[0].mxu0
  %v3339 = vpop.f32.mrb[0].mxu0
  %v3340 = vadd.f32 %v2764, %v3339
  %v3341 = vpop.f32.mrb[0].mxu0
  %3342 = vmatprep.mubr.bf16.mxu0 0
  %3343 = vmatmul.mubr.bf16.gmra.mrb[0].mxu0 %v2741
  %v3344 = vpop.f32.mrb[0].mxu0
  %v3345 = vadd.f32 %v2764, %v3344
  %v3346 = vpop.f32.mrb[0].mxu0
  %v3347 = vpop.f32.mrb[0].mxu0
  %v3348 = vadd.f32 %v2764, %v3347
  %v3349 = vpop.f32.mrb[0].mxu0
  %3350 = vmatprep.mubr.bf16.mxu0 0
  %3351 = vmatmul.mubr.bf16.gmra.mrb[0].mxu0 %v2742
  %v3352 = vpop.f32.mrb[0].mxu0
  %v3353 = vadd.f32 %v2764, %v3352
  %v3354 = vpop.f32.mrb[0].mxu0
  %v3355 = vpop.f32.mrb[0].mxu0
  %v3356 = vadd.f32 %v2764, %v3355
  %v3357 = vpop.f32.mrb[0].mxu0
  %3358 = vdwg.mxu0
  %v3359 = vmax.f32 %v2849, 0.0
  %v3360 = vmax.f32 %v2852, 0.0
  %v3361 = vmax.f32 %v2857, 0.0
  %v3362 = vmax.f32 %v2860, 0.0
  %v3363 = vmax.f32 %v2865, 0.0
  %v3364 = vmax.f32 %v2868, 0.0
  %v3365 = vmax.f32 %v2873, 0.0
  %v3366 = vmax.f32 %v2876, 0.0
  %v3367 = vmax.f32 %v2881, 0.0
  %v3368 = vmax.f32 %v2884, 0.0
  %v3369 = vmax.f32 %v2889, 0.0
  %v3370 = vmax.f32 %v2892, 0.0
  %v3371 = vmax.f32 %v2897, 0.0
  %v3372 = vmax.f32 %v2900, 0.0
  %v3373 = vmax.f32 %v2905, 0.0
  %v3374 = vmax.f32 %v2908, 0.0
  %v3375 = vmax.f32 %v2913, 0.0
  %v3376 = vmax.f32 %v2916, 0.0
  %v3377 = vmax.f32 %v2921, 0.0
  %v3378 = vmax.f32 %v2924, 0.0
  %v3379 = vmax.f32 %v2929, 0.0
  %v3380 = vmax.f32 %v2932, 0.0
  %v3381 = vmax.f32 %v2937, 0.0
  %v3382 = vmax.f32 %v2940, 0.0
  %v3383 = vmax.f32 %v2945, 0.0
  %v3384 = vmax.f32 %v2948, 0.0
  %v3385 = vmax.f32 %v2953, 0.0
  %v3386 = vmax.f32 %v2956, 0.0
  %v3387 = vmax.f32 %v2961, 0.0
  %v3388 = vmax.f32 %v2964, 0.0
  %v3389 = vmax.f32 %v2969, 0.0
  %v3390 = vmax.f32 %v2972, 0.0
  %v3391 = vmax.f32 %v2977, 0.0
  %v3392 = vmax.f32 %v2980, 0.0
  %v3393 = vmax.f32 %v2985, 0.0
  %v3394 = vmax.f32 %v2988, 0.0
  %v3395 = vmax.f32 %v2993, 0.0
  %v3396 = vmax.f32 %v2996, 0.0
  %v3397 = vmax.f32 %v3001, 0.0
  %v3398 = vmax.f32 %v3004, 0.0
  %v3399 = vmax.f32 %v3009, 0.0
  %v3400 = vmax.f32 %v3012, 0.0
  %v3401 = vmax.f32 %v3017, 0.0
  %v3402 = vmax.f32 %v3020, 0.0
  %v3403 = vmax.f32 %v3025, 0.0
  %v3404 = vmax.f32 %v3028, 0.0
  %v3405 = vmax.f32 %v3033, 0.0
  %v3406 = vmax.f32 %v3036, 0.0
  %v3407 = vmax.f32 %v3041, 0.0
  %v3408 = vmax.f32 %v3044, 0.0
  %v3409 = vmax.f32 %v3049, 0.0
  %v3410 = vmax.f32 %v3052, 0.0
  %v3411 = vmax.f32 %v3057, 0.0
  %v3412 = vmax.f32 %v3060, 0.0
  %v3413 = vmax.f32 %v3065, 0.0
  %v3414 = vmax.f32 %v3068, 0.0
  %v3415 = vmax.f32 %v3073, 0.0
  %v3416 = vmax.f32 %v3076, 0.0
  %v3417 = vmax.f32 %v3081, 0.0
  %v3418 = vmax.f32 %v3084, 0.0
  %v3419 = vmax.f32 %v3089, 0.0
  %v3420 = vmax.f32 %v3092, 0.0
  %v3421 = vmax.f32 %v3097, 0.0
  %v3422 = vmax.f32 %v3100, 0.0
  %v3423 = vmax.f32 %v3105, 0.0
  %v3424 = vmax.f32 %v3108, 0.0
  %v3425 = vmax.f32 %v3113, 0.0
  %v3426 = vmax.f32 %v3116, 0.0
  %v3427 = vmax.f32 %v3121, 0.0
  %v3428 = vmax.f32 %v3124, 0.0
  %v3429 = vmax.f32 %v3129, 0.0
  %v3430 = vmax.f32 %v3132, 0.0
  %v3431 = vmax.f32 %v3137, 0.0
  %v3432 = vmax.f32 %v3140, 0.0
  %v3433 = vmax.f32 %v3145, 0.0
  %v3434 = vmax.f32 %v3148, 0.0
  %v3435 = vmax.f32 %v3153, 0.0
  %v3436 = vmax.f32 %v3156, 0.0
  %v3437 = vmax.f32 %v3161, 0.0
  %v3438 = vmax.f32 %v3164, 0.0
  %v3439 = vmax.f32 %v3169, 0.0
  %v3440 = vmax.f32 %v3172, 0.0
  %v3441 = vmax.f32 %v3177, 0.0
  %v3442 = vmax.f32 %v3180, 0.0
  %v3443 = vmax.f32 %v3185, 0.0
  %v3444 = vmax.f32 %v3188, 0.0
  %v3445 = vmax.f32 %v3193, 0.0
  %v3446 = vmax.f32 %v3196, 0.0
  %v3447 = vmax.f32 %v3201, 0.0
  %v3448 = vmax.f32 %v3204, 0.0
  %v3449 = vmax.f32 %v3209, 0.0
  %v3450 = vmax.f32 %v3212, 0.0
  %v3451 = vmax.f32 %v3217, 0.0
  %v3452 = vmax.f32 %v3220, 0.0
  %v3453 = vmax.f32 %v3225, 0.0
  %v3454 = vmax.f32 %v3228, 0.0
  %v3455 = vmax.f32 %v3233, 0.0
  %v3456 = vmax.f32 %v3236, 0.0
  %v3457 = vmax.f32 %v3241, 0.0
  %v3458 = vmax.f32 %v3244, 0.0
  %v3459 = vmax.f32 %v3249, 0.0
  %v3460 = vmax.f32 %v3252, 0.0
  %v3461 = vmax.f32 %v3257, 0.0
  %v3462 = vmax.f32 %v3260, 0.0
  %v3463 = vmax.f32 %v3265, 0.0
  %v3464 = vmax.f32 %v3268, 0.0
  %v3465 = vmax.f32 %v3273, 0.0
  %v3466 = vmax.f32 %v3276, 0.0
  %v3467 = vmax.f32 %v3281, 0.0
  %v3468 = vmax.f32 %v3284, 0.0
  %v3469 = vmax.f32 %v3289, 0.0
  %v3470 = vmax.f32 %v3292, 0.0
  %v3471 = vmax.f32 %v3297, 0.0
  %v3472 = vmax.f32 %v3300, 0.0
  %v3473 = vmax.f32 %v3305, 0.0
  %v3474 = vmax.f32 %v3308, 0.0
  %v3475 = vmax.f32 %v3313, 0.0
  %v3476 = vmax.f32 %v3316, 0.0
  %v3477 = vmax.f32 %v3321, 0.0
  %v3478 = vmax.f32 %v3324, 0.0
  %v3479 = vmax.f32 %v3329, 0.0
  %v3480 = vmax.f32 %v3332, 0.0
  %v3481 = vmax.f32 %v3337, 0.0
  %v3482 = vmax.f32 %v3340, 0.0
  %v3483 = vmax.f32 %v3345, 0.0
  %v3484 = vmax.f32 %v3348, 0.0
  %v3485 = vmax.f32 %v3353, 0.0
  %v3486 = vmax.f32 %v3356, 0.0
  %v3487 = vpack.c.bf16 %v3360, %v3359
  %v3488 = vpack.c.bf16 %v3362, %v3361
  %v3489 = vpack.c.bf16 %v3364, %v3363
  %v3490 = vpack.c.bf16 %v3366, %v3365
  %v3491 = vpack.c.bf16 %v3368, %v3367
  %v3492 = vpack.c.bf16 %v3370, %v3369
  %v3493 = vpack.c.bf16 %v3372, %v3371
  %v3494 = vpack.c.bf16 %v3374, %v3373
  %v3495 = vpack.c.bf16 %v3376, %v3375
  %v3496 = vpack.c.bf16 %v3378, %v3377
  %v3497 = vpack.c.bf16 %v3380, %v3379
  %v3498 = vpack.c.bf16 %v3382, %v3381
  %v3499 = vpack.c.bf16 %v3384, %v3383
  %v3500 = vpack.c.bf16 %v3386, %v3385
  %v3501 = vpack.c.bf16 %v3388, %v3387
  %v3502 = vpack.c.bf16 %v3390, %v3389
  %v3503 = vpack.c.bf16 %v3392, %v3391
  %v3504 = vpack.c.bf16 %v3394, %v3393
  %v3505 = vpack.c.bf16 %v3396, %v3395
  %v3506 = vpack.c.bf16 %v3398, %v3397
  %v3507 = vpack.c.bf16 %v3400, %v3399
  %v3508 = vpack.c.bf16 %v3402, %v3401
  %v3509 = vpack.c.bf16 %v3404, %v3403
  %v3510 = vpack.c.bf16 %v3406, %v3405
  %v3511 = vpack.c.bf16 %v3408, %v3407
  %v3512 = vpack.c.bf16 %v3410, %v3409
  %v3513 = vpack.c.bf16 %v3412, %v3411
  %v3514 = vpack.c.bf16 %v3414, %v3413
  %v3515 = vpack.c.bf16 %v3416, %v3415
  %v3516 = vpack.c.bf16 %v3418, %v3417
  %v3517 = vpack.c.bf16 %v3420, %v3419
  %v3518 = vpack.c.bf16 %v3422, %v3421
  %v3519 = vpack.c.bf16 %v3424, %v3423
  %v3520 = vpack.c.bf16 %v3426, %v3425
  %v3521 = vpack.c.bf16 %v3428, %v3427
  %v3522 = vpack.c.bf16 %v3430, %v3429
  %v3523 = vpack.c.bf16 %v3432, %v3431
  %v3524 = vpack.c.bf16 %v3434, %v3433
  %v3525 = vpack.c.bf16 %v3436, %v3435
  %v3526 = vpack.c.bf16 %v3438, %v3437
  %v3527 = vpack.c.bf16 %v3440, %v3439
  %v3528 = vpack.c.bf16 %v3442, %v3441
  %v3529 = vpack.c.bf16 %v3444, %v3443
  %v3530 = vpack.c.bf16 %v3446, %v3445
  %v3531 = vpack.c.bf16 %v3448, %v3447
  %v3532 = vpack.c.bf16 %v3450, %v3449
  %v3533 = vpack.c.bf16 %v3452, %v3451
  %v3534 = vpack.c.bf16 %v3454, %v3453
  %v3535 = vpack.c.bf16 %v3456, %v3455
  %v3536 = vpack.c.bf16 %v3458, %v3457
  %v3537 = vpack.c.bf16 %v3460, %v3459
  %v3538 = vpack.c.bf16 %v3462, %v3461
  %v3539 = vpack.c.bf16 %v3464, %v3463
  %v3540 = vpack.c.bf16 %v3466, %v3465
  %v3541 = vpack.c.bf16 %v3468, %v3467
  %v3542 = vpack.c.bf16 %v3470, %v3469
  %v3543 = vpack.c.bf16 %v3472, %v3471
  %v3544 = vpack.c.bf16 %v3474, %v3473
  %v3545 = vpack.c.bf16 %v3476, %v3475
  %v3546 = vpack.c.bf16 %v3478, %v3477
  %v3547 = vpack.c.bf16 %v3480, %v3479
  %v3548 = vpack.c.bf16 %v3482, %v3481
  %v3549 = vpack.c.bf16 %v3484, %v3483
  %v3550 = vpack.c.bf16 %v3486, %v3485
  %v3551 = vld [vmem:[%s8] sm:$0xf]
  %v3552 = vld [vmem:[%s8 + $0x4] sm:$0xf]
  %v3553 = vld [vmem:[%s8 + $0x8] sm:$0xf]
  %v3554 = vld [vmem:[%s8 + $0xc] sm:$0xf]
  %v3555 = vld [vmem:[%s8 + $0x10] sm:$0xf]
  %v3556 = vld [vmem:[%s8 + $0x14] sm:$0xf]
  %v3557 = vld [vmem:[%s8 + $0x18] sm:$0xf]
  %v3558 = vld [vmem:[%s8 + $0x1c] sm:$0xf]
  %v3559 = vld [vmem:[%s8 + $0x20] sm:$0xf]
  %v3560 = vld [vmem:[%s8 + $0x24] sm:$0xf]
  %v3561 = vld [vmem:[%s8 + $0x28] sm:$0xf]
  %v3562 = vld [vmem:[%s8 + $0x2c] sm:$0xf]
  %v3563 = vld [vmem:[%s8 + $0x30] sm:$0xf]
  %v3564 = vld [vmem:[%s8 + $0x34] sm:$0xf]
  %v3565 = vld [vmem:[%s8 + $0x38] sm:$0xf]
  %v3566 = vld [vmem:[%s8 + $0x3c] sm:$0xf]
  %v3567 = vld [vmem:[%s9] sm:$0x1]
  %v3569 = vlaneseq
  %v3570 = vshrl.u32 %v3569, 7
  %v3571 = vsub.s32 0, %v3570
  %v3572 = vrot.slane %v3567, %v3571
  %v3590 = vunpack.c.l.b16 %v3551
  %v3591 = vunpack.c.l.b16 %v3552
  %v3592 = vunpack.c.l.b16 %v3553
  %v3593 = vunpack.c.l.b16 %v3554
  %v3594 = vunpack.c.l.b16 %v3555
  %v3595 = vunpack.c.l.b16 %v3556
  %v3596 = vunpack.c.l.b16 %v3557
  %v3597 = vunpack.c.l.b16 %v3558
  %v3598 = vunpack.c.l.b16 %v3559
  %v3599 = vunpack.c.l.b16 %v3560
  %v3600 = vunpack.c.l.b16 %v3561
  %v3601 = vunpack.c.l.b16 %v3562
  %v3602 = vunpack.c.l.b16 %v3563
  %v3603 = vunpack.c.l.b16 %v3564
  %v3604 = vunpack.c.l.b16 %v3565
  %v3605 = vunpack.c.l.b16 %v3566
  %v3606 = vpack.c.b16 %v3591, %v3590
  %v3607 = vpack.c.b16 %v3593, %v3592
  %v3608 = vpack.c.b16 %v3595, %v3594
  %v3609 = vpack.c.b16 %v3597, %v3596
  %v3610 = vpack.c.b16 %v3599, %v3598
  %v3611 = vpack.c.b16 %v3601, %v3600
  %v3612 = vpack.c.b16 %v3603, %v3602
  %v3613 = vpack.c.b16 %v3605, %v3604
  %3622 = vmatprep.subr.bf16.mxu0 0
  %3623 = vmatpush1.bf16.msra.mxu0 %v3606
  %3624 = vmatprep.subr.bf16.mxu0 0
  %3625 = vmatpush1.bf16.msra.mxu0 %v3607
  %3626 = vmatprep.subr.bf16.mxu0 0
  %3627 = vmatpush1.bf16.msra.mxu0 %v3608
  %3628 = vmatprep.subr.bf16.mxu0 0
  %3629 = vmatpush1.bf16.msra.mxu0 %v3609
  %3630 = vmatprep.subr.bf16.mxu0 0
  %3631 = vmatpush1.bf16.msra.mxu0 %v3610
  %3632 = vmatprep.subr.bf16.mxu0 0
  %3633 = vmatpush1.bf16.msra.mxu0 %v3611
  %3634 = vmatprep.subr.bf16.mxu0 0
  %3635 = vmatpush1.bf16.msra.mxu0 %v3612
  %3636 = vmatprep.subr.bf16.mxu0 0
  %3637 = vmatpush1.bf16.msra.mxu0 %v3613
  %3638 = vmatprep.subr.bf16.mxu0 0
  %3639 = vmatpush1.bf16.msra.mxu0 0
  %3640 = vmatprep.subr.bf16.mxu0 0
  %3641 = vmatpush1.bf16.msra.mxu0 0
  %3642 = vmatprep.subr.bf16.mxu0 0
  %3643 = vmatpush1.bf16.msra.mxu0 0
  %3644 = vmatprep.subr.bf16.mxu0 0
  %3645 = vmatpush1.bf16.msra.mxu0 0
  %3646 = vmatprep.subr.bf16.mxu0 0
  %3647 = vmatpush1.bf16.msra.mxu0 0
  %3648 = vmatprep.subr.bf16.mxu0 0
  %3649 = vmatpush1.bf16.msra.mxu0 0
  %3650 = vmatprep.subr.bf16.mxu0 0
  %3651 = vmatpush1.bf16.msra.mxu0 0
  %3652 = vmatprep.subr.bf16.mxu0 0
  %3653 = vmatpush1.bf16.msra.mxu0 0
  %3654 = vmatprep.mubr.bf16.mxu0 0
  %3655 = vmatmul.mubr.bf16.gmra.mrb[0].mxu0 %v3487
  %v3656 = vpop.f32.mrb[0].mxu0
  %v3657 = vadd.f32 %v3572, %v3656
  %v3658 = vpop.f32.mrb[0].mxu0
  %v3659 = vpop.f32.mrb[0].mxu0
  %v3660 = vadd.f32 %v3572, %v3659
  %v3661 = vpop.f32.mrb[0].mxu0
  %3662 = vmatprep.mubr.bf16.mxu0 0
  %3663 = vmatmul.mubr.bf16.gmra.mrb[0].mxu0 %v3488
  %v3664 = vpop.f32.mrb[0].mxu0
  %v3665 = vadd.f32 %v3572, %v3664
  %v3666 = vpop.f32.mrb[0].mxu0
  %v3667 = vpop.f32.mrb[0].mxu0
  %v3668 = vadd.f32 %v3572, %v3667
  %v3669 = vpop.f32.mrb[0].mxu0
  %3670 = vmatprep.mubr.bf16.mxu0 0
  %3671 = vmatmul.mubr.bf16.gmra.mrb[0].mxu0 %v3489
  %v3672 = vpop.f32.mrb[0].mxu0
  %v3673 = vadd.f32 %v3572, %v3672
  %v3674 = vpop.f32.mrb[0].mxu0
  %v3675 = vpop.f32.mrb[0].mxu0
  %v3676 = vadd.f32 %v3572, %v3675
  %v3677 = vpop.f32.mrb[0].mxu0
  %3678 = vmatprep.mubr.bf16.mxu0 0
  %3679 = vmatmul.mubr.bf16.gmra.mrb[0].mxu0 %v3490
  %v3680 = vpop.f32.mrb[0].mxu0
  %v3681 = vadd.f32 %v3572, %v3680
  %v3682 = vpop.f32.mrb[0].mxu0
  %v3683 = vpop.f32.mrb[0].mxu0
  %v3684 = vadd.f32 %v3572, %v3683
  %v3685 = vpop.f32.mrb[0].mxu0
  %3686 = vmatprep.mubr.bf16.mxu0 0
  %3687 = vmatmul.mubr.bf16.gmra.mrb[0].mxu0 %v3491
  %v3688 = vpop.f32.mrb[0].mxu0
  %v3689 = vadd.f32 %v3572, %v3688
  %v3690 = vpop.f32.mrb[0].mxu0
  %v3691 = vpop.f32.mrb[0].mxu0
  %v3692 = vadd.f32 %v3572, %v3691
  %v3693 = vpop.f32.mrb[0].mxu0
  %3694 = vmatprep.mubr.bf16.mxu0 0
  %3695 = vmatmul.mubr.bf16.gmra.mrb[0].mxu0 %v3492
  %v3696 = vpop.f32.mrb[0].mxu0
  %v3697 = vadd.f32 %v3572, %v3696
  %v3698 = vpop.f32.mrb[0].mxu0
  %v3699 = vpop.f32.mrb[0].mxu0
  %v3700 = vadd.f32 %v3572, %v3699
  %v3701 = vpop.f32.mrb[0].mxu0
  %3702 = vmatprep.mubr.bf16.mxu0 0
  %3703 = vmatmul.mubr.bf16.gmra.mrb[0].mxu0 %v3493
  %v3704 = vpop.f32.mrb[0].mxu0
  %v3705 = vadd.f32 %v3572, %v3704
  %v3706 = vpop.f32.mrb[0].mxu0
  %v3707 = vpop.f32.mrb[0].mxu0
  %v3708 = vadd.f32 %v3572, %v3707
  %v3709 = vpop.f32.mrb[0].mxu0
  %3710 = vmatprep.mubr.bf16.mxu0 0
  %3711 = vmatmul.mubr.bf16.gmra.mrb[0].mxu0 %v3494
  %v3712 = vpop.f32.mrb[0].mxu0
  %v3713 = vadd.f32 %v3572, %v3712
  %v3714 = vpop.f32.mrb[0].mxu0
  %v3715 = vpop.f32.mrb[0].mxu0
  %v3716 = vadd.f32 %v3572, %v3715
  %v3717 = vpop.f32.mrb[0].mxu0
  %3718 = vmatprep.mubr.bf16.mxu0 0
  %3719 = vmatmul.mubr.bf16.gmra.mrb[0].mxu0 %v3495
  %v3720 = vpop.f32.mrb[0].mxu0
  %v3721 = vadd.f32 %v3572, %v3720
  %v3722 = vpop.f32.mrb[0].mxu0
  %v3723 = vpop.f32.mrb[0].mxu0
  %v3724 = vadd.f32 %v3572, %v3723
  %v3725 = vpop.f32.mrb[0].mxu0
  %3726 = vmatprep.mubr.bf16.mxu0 0
  %3727 = vmatmul.mubr.bf16.gmra.mrb[0].mxu0 %v3496
  %v3728 = vpop.f32.mrb[0].mxu0
  %v3729 = vadd.f32 %v3572, %v3728
  %v3730 = vpop.f32.mrb[0].mxu0
  %v3731 = vpop.f32.mrb[0].mxu0
  %v3732 = vadd.f32 %v3572, %v3731
  %v3733 = vpop.f32.mrb[0].mxu0
  %3734 = vmatprep.mubr.bf16.mxu0 0
  %3735 = vmatmul.mubr.bf16.gmra.mrb[0].mxu0 %v3497
  %v3736 = vpop.f32.mrb[0].mxu0
  %v3737 = vadd.f32 %v3572, %v3736
  %v3738 = vpop.f32.mrb[0].mxu0
  %v3739 = vpop.f32.mrb[0].mxu0
  %v3740 = vadd.f32 %v3572, %v3739
  %v3741 = vpop.f32.mrb[0].mxu0
  %3742 = vmatprep.mubr.bf16.mxu0 0
  %3743 = vmatmul.mubr.bf16.gmra.mrb[0].mxu0 %v3498
  %v3744 = vpop.f32.mrb[0].mxu0
  %v3745 = vadd.f32 %v3572, %v3744
  %v3746 = vpop.f32.mrb[0].mxu0
  %v3747 = vpop.f32.mrb[0].mxu0
  %v3748 = vadd.f32 %v3572, %v3747
  %v3749 = vpop.f32.mrb[0].mxu0
  %3750 = vmatprep.mubr.bf16.mxu0 0
  %3751 = vmatmul.mubr.bf16.gmra.mrb[0].mxu0 %v3499
  %v3752 = vpop.f32.mrb[0].mxu0
  %v3753 = vadd.f32 %v3572, %v3752
  %v3754 = vpop.f32.mrb[0].mxu0
  %v3755 = vpop.f32.mrb[0].mxu0
  %v3756 = vadd.f32 %v3572, %v3755
  %v3757 = vpop.f32.mrb[0].mxu0
  %3758 = vmatprep.mubr.bf16.mxu0 0
  %3759 = vmatmul.mubr.bf16.gmra.mrb[0].mxu0 %v3500
  %v3760 = vpop.f32.mrb[0].mxu0
  %v3761 = vadd.f32 %v3572, %v3760
  %v3762 = vpop.f32.mrb[0].mxu0
  %v3763 = vpop.f32.mrb[0].mxu0
  %v3764 = vadd.f32 %v3572, %v3763
  %v3765 = vpop.f32.mrb[0].mxu0
  %3766 = vmatprep.mubr.bf16.mxu0 0
  %3767 = vmatmul.mubr.bf16.gmra.mrb[0].mxu0 %v3501
  %v3768 = vpop.f32.mrb[0].mxu0
  %v3769 = vadd.f32 %v3572, %v3768
  %v3770 = vpop.f32.mrb[0].mxu0
  %v3771 = vpop.f32.mrb[0].mxu0
  %v3772 = vadd.f32 %v3572, %v3771
  %v3773 = vpop.f32.mrb[0].mxu0
  %3774 = vmatprep.mubr.bf16.mxu0 0
  %3775 = vmatmul.mubr.bf16.gmra.mrb[0].mxu0 %v3502
  %v3776 = vpop.f32.mrb[0].mxu0
  %v3777 = vadd.f32 %v3572, %v3776
  %v3778 = vpop.f32.mrb[0].mxu0
  %v3779 = vpop.f32.mrb[0].mxu0
  %v3780 = vadd.f32 %v3572, %v3779
  %v3781 = vpop.f32.mrb[0].mxu0
  %3782 = vmatprep.mubr.bf16.mxu0 0
  %3783 = vmatmul.mubr.bf16.gmra.mrb[0].mxu0 %v3503
  %v3784 = vpop.f32.mrb[0].mxu0
  %v3785 = vadd.f32 %v3572, %v3784
  %v3786 = vpop.f32.mrb[0].mxu0
  %v3787 = vpop.f32.mrb[0].mxu0
  %v3788 = vadd.f32 %v3572, %v3787
  %v3789 = vpop.f32.mrb[0].mxu0
  %3790 = vmatprep.mubr.bf16.mxu0 0
  %3791 = vmatmul.mubr.bf16.gmra.mrb[0].mxu0 %v3504
  %v3792 = vpop.f32.mrb[0].mxu0
  %v3793 = vadd.f32 %v3572, %v3792
  %v3794 = vpop.f32.mrb[0].mxu0
  %v3795 = vpop.f32.mrb[0].mxu0
  %v3796 = vadd.f32 %v3572, %v3795
  %v3797 = vpop.f32.mrb[0].mxu0
  %3798 = vmatprep.mubr.bf16.mxu0 0
  %3799 = vmatmul.mubr.bf16.gmra.mrb[0].mxu0 %v3505
  %v3800 = vpop.f32.mrb[0].mxu0
  %v3801 = vadd.f32 %v3572, %v3800
  %v3802 = vpop.f32.mrb[0].mxu0
  %v3803 = vpop.f32.mrb[0].mxu0
  %v3804 = vadd.f32 %v3572, %v3803
  %v3805 = vpop.f32.mrb[0].mxu0
  %3806 = vmatprep.mubr.bf16.mxu0 0
  %3807 = vmatmul.mubr.bf16.gmra.mrb[0].mxu0 %v3506
  %v3808 = vpop.f32.mrb[0].mxu0
  %v3809 = vadd.f32 %v3572, %v3808
  %v3810 = vpop.f32.mrb[0].mxu0
  %v3811 = vpop.f32.mrb[0].mxu0
  %v3812 = vadd.f32 %v3572, %v3811
  %v3813 = vpop.f32.mrb[0].mxu0
  %3814 = vmatprep.mubr.bf16.mxu0 0
  %3815 = vmatmul.mubr.bf16.gmra.mrb[0].mxu0 %v3507
  %v3816 = vpop.f32.mrb[0].mxu0
  %v3817 = vadd.f32 %v3572, %v3816
  %v3818 = vpop.f32.mrb[0].mxu0
  %v3819 = vpop.f32.mrb[0].mxu0
  %v3820 = vadd.f32 %v3572, %v3819
  %v3821 = vpop.f32.mrb[0].mxu0
  %3822 = vmatprep.mubr.bf16.mxu0 0
  %3823 = vmatmul.mubr.bf16.gmra.mrb[0].mxu0 %v3508
  %v3824 = vpop.f32.mrb[0].mxu0
  %v3825 = vadd.f32 %v3572, %v3824
  %v3826 = vpop.f32.mrb[0].mxu0
  %v3827 = vpop.f32.mrb[0].mxu0
  %v3828 = vadd.f32 %v3572, %v3827
  %v3829 = vpop.f32.mrb[0].mxu0
  %3830 = vmatprep.mubr.bf16.mxu0 0
  %3831 = vmatmul.mubr.bf16.gmra.mrb[0].mxu0 %v3509
  %v3832 = vpop.f32.mrb[0].mxu0
  %v3833 = vadd.f32 %v3572, %v3832
  %v3834 = vpop.f32.mrb[0].mxu0
  %v3835 = vpop.f32.mrb[0].mxu0
  %v3836 = vadd.f32 %v3572, %v3835
  %v3837 = vpop.f32.mrb[0].mxu0
  %3838 = vmatprep.mubr.bf16.mxu0 0
  %3839 = vmatmul.mubr.bf16.gmra.mrb[0].mxu0 %v3510
  %v3840 = vpop.f32.mrb[0].mxu0
  %v3841 = vadd.f32 %v3572, %v3840
  %v3842 = vpop.f32.mrb[0].mxu0
  %v3843 = vpop.f32.mrb[0].mxu0
  %v3844 = vadd.f32 %v3572, %v3843
  %v3845 = vpop.f32.mrb[0].mxu0
  %3846 = vmatprep.mubr.bf16.mxu0 0
  %3847 = vmatmul.mubr.bf16.gmra.mrb[0].mxu0 %v3511
  %v3848 = vpop.f32.mrb[0].mxu0
  %v3849 = vadd.f32 %v3572, %v3848
  %v3850 = vpop.f32.mrb[0].mxu0
  %v3851 = vpop.f32.mrb[0].mxu0
  %v3852 = vadd.f32 %v3572, %v3851
  %v3853 = vpop.f32.mrb[0].mxu0
  %3854 = vmatprep.mubr.bf16.mxu0 0
  %3855 = vmatmul.mubr.bf16.gmra.mrb[0].mxu0 %v3512
  %v3856 = vpop.f32.mrb[0].mxu0
  %v3857 = vadd.f32 %v3572, %v3856
  %v3858 = vpop.f32.mrb[0].mxu0
  %v3859 = vpop.f32.mrb[0].mxu0
  %v3860 = vadd.f32 %v3572, %v3859
  %v3861 = vpop.f32.mrb[0].mxu0
  %3862 = vmatprep.mubr.bf16.mxu0 0
  %3863 = vmatmul.mubr.bf16.gmra.mrb[0].mxu0 %v3513
  %v3864 = vpop.f32.mrb[0].mxu0
  %v3865 = vadd.f32 %v3572, %v3864
  %v3866 = vpop.f32.mrb[0].mxu0
  %v3867 = vpop.f32.mrb[0].mxu0
  %v3868 = vadd.f32 %v3572, %v3867
  %v3869 = vpop.f32.mrb[0].mxu0
  %3870 = vmatprep.mubr.bf16.mxu0 0
  %3871 = vmatmul.mubr.bf16.gmra.mrb[0].mxu0 %v3514
  %v3872 = vpop.f32.mrb[0].mxu0
  %v3873 = vadd.f32 %v3572, %v3872
  %v3874 = vpop.f32.mrb[0].mxu0
  %v3875 = vpop.f32.mrb[0].mxu0
  %v3876 = vadd.f32 %v3572, %v3875
  %v3877 = vpop.f32.mrb[0].mxu0
  %3878 = vmatprep.mubr.bf16.mxu0 0
  %3879 = vmatmul.mubr.bf16.gmra.mrb[0].mxu0 %v3515
  %v3880 = vpop.f32.mrb[0].mxu0
  %v3881 = vadd.f32 %v3572, %v3880
  %v3882 = vpop.f32.mrb[0].mxu0
  %v3883 = vpop.f32.mrb[0].mxu0
  %v3884 = vadd.f32 %v3572, %v3883
  %v3885 = vpop.f32.mrb[0].mxu0
  %3886 = vmatprep.mubr.bf16.mxu0 0
  %3887 = vmatmul.mubr.bf16.gmra.mrb[0].mxu0 %v3516
  %v3888 = vpop.f32.mrb[0].mxu0
  %v3889 = vadd.f32 %v3572, %v3888
  %v3890 = vpop.f32.mrb[0].mxu0
  %v3891 = vpop.f32.mrb[0].mxu0
  %v3892 = vadd.f32 %v3572, %v3891
  %v3893 = vpop.f32.mrb[0].mxu0
  %3894 = vmatprep.mubr.bf16.mxu0 0
  %3895 = vmatmul.mubr.bf16.gmra.mrb[0].mxu0 %v3517
  %v3896 = vpop.f32.mrb[0].mxu0
  %v3897 = vadd.f32 %v3572, %v3896
  %v3898 = vpop.f32.mrb[0].mxu0
  %v3899 = vpop.f32.mrb[0].mxu0
  %v3900 = vadd.f32 %v3572, %v3899
  %v3901 = vpop.f32.mrb[0].mxu0
  %3902 = vmatprep.mubr.bf16.mxu0 0
  %3903 = vmatmul.mubr.bf16.gmra.mrb[0].mxu0 %v3518
  %v3904 = vpop.f32.mrb[0].mxu0
  %v3905 = vadd.f32 %v3572, %v3904
  %v3906 = vpop.f32.mrb[0].mxu0
  %v3907 = vpop.f32.mrb[0].mxu0
  %v3908 = vadd.f32 %v3572, %v3907
  %v3909 = vpop.f32.mrb[0].mxu0
  %3910 = vmatprep.mubr.bf16.mxu0 0
  %3911 = vmatmul.mubr.bf16.gmra.mrb[0].mxu0 %v3519
  %v3912 = vpop.f32.mrb[0].mxu0
  %v3913 = vadd.f32 %v3572, %v3912
  %v3914 = vpop.f32.mrb[0].mxu0
  %v3915 = vpop.f32.mrb[0].mxu0
  %v3916 = vadd.f32 %v3572, %v3915
  %v3917 = vpop.f32.mrb[0].mxu0
  %3918 = vmatprep.mubr.bf16.mxu0 0
  %3919 = vmatmul.mubr.bf16.gmra.mrb[0].mxu0 %v3520
  %v3920 = vpop.f32.mrb[0].mxu0
  %v3921 = vadd.f32 %v3572, %v3920
  %v3922 = vpop.f32.mrb[0].mxu0
  %v3923 = vpop.f32.mrb[0].mxu0
  %v3924 = vadd.f32 %v3572, %v3923
  %v3925 = vpop.f32.mrb[0].mxu0
  %3926 = vmatprep.mubr.bf16.mxu0 0
  %3927 = vmatmul.mubr.bf16.gmra.mrb[0].mxu0 %v3521
  %v3928 = vpop.f32.mrb[0].mxu0
  %v3929 = vadd.f32 %v3572, %v3928
  %v3930 = vpop.f32.mrb[0].mxu0
  %v3931 = vpop.f32.mrb[0].mxu0
  %v3932 = vadd.f32 %v3572, %v3931
  %v3933 = vpop.f32.mrb[0].mxu0
  %3934 = vmatprep.mubr.bf16.mxu0 0
  %3935 = vmatmul.mubr.bf16.gmra.mrb[0].mxu0 %v3522
  %v3936 = vpop.f32.mrb[0].mxu0
  %v3937 = vadd.f32 %v3572, %v3936
  %v3938 = vpop.f32.mrb[0].mxu0
  %v3939 = vpop.f32.mrb[0].mxu0
  %v3940 = vadd.f32 %v3572, %v3939
  %v3941 = vpop.f32.mrb[0].mxu0
  %3942 = vmatprep.mubr.bf16.mxu0 0
  %3943 = vmatmul.mubr.bf16.gmra.mrb[0].mxu0 %v3523
  %v3944 = vpop.f32.mrb[0].mxu0
  %v3945 = vadd.f32 %v3572, %v3944
  %v3946 = vpop.f32.mrb[0].mxu0
  %v3947 = vpop.f32.mrb[0].mxu0
  %v3948 = vadd.f32 %v3572, %v3947
  %v3949 = vpop.f32.mrb[0].mxu0
  %3950 = vmatprep.mubr.bf16.mxu0 0
  %3951 = vmatmul.mubr.bf16.gmra.mrb[0].mxu0 %v3524
  %v3952 = vpop.f32.mrb[0].mxu0
  %v3953 = vadd.f32 %v3572, %v3952
  %v3954 = vpop.f32.mrb[0].mxu0
  %v3955 = vpop.f32.mrb[0].mxu0
  %v3956 = vadd.f32 %v3572, %v3955
  %v3957 = vpop.f32.mrb[0].mxu0
  %3958 = vmatprep.mubr.bf16.mxu0 0
  %3959 = vmatmul.mubr.bf16.gmra.mrb[0].mxu0 %v3525
  %v3960 = vpop.f32.mrb[0].mxu0
  %v3961 = vadd.f32 %v3572, %v3960
  %v3962 = vpop.f32.mrb[0].mxu0
  %v3963 = vpop.f32.mrb[0].mxu0
  %v3964 = vadd.f32 %v3572, %v3963
  %v3965 = vpop.f32.mrb[0].mxu0
  %3966 = vmatprep.mubr.bf16.mxu0 0
  %3967 = vmatmul.mubr.bf16.gmra.mrb[0].mxu0 %v3526
  %v3968 = vpop.f32.mrb[0].mxu0
  %v3969 = vadd.f32 %v3572, %v3968
  %v3970 = vpop.f32.mrb[0].mxu0
  %v3971 = vpop.f32.mrb[0].mxu0
  %v3972 = vadd.f32 %v3572, %v3971
  %v3973 = vpop.f32.mrb[0].mxu0
  %3974 = vmatprep.mubr.bf16.mxu0 0
  %3975 = vmatmul.mubr.bf16.gmra.mrb[0].mxu0 %v3527
  %v3976 = vpop.f32.mrb[0].mxu0
  %v3977 = vadd.f32 %v3572, %v3976
  %v3978 = vpop.f32.mrb[0].mxu0
  %v3979 = vpop.f32.mrb[0].mxu0
  %v3980 = vadd.f32 %v3572, %v3979
  %v3981 = vpop.f32.mrb[0].mxu0
  %3982 = vmatprep.mubr.bf16.mxu0 0
  %3983 = vmatmul.mubr.bf16.gmra.mrb[0].mxu0 %v3528
  %v3984 = vpop.f32.mrb[0].mxu0
  %v3985 = vadd.f32 %v3572, %v3984
  %v3986 = vpop.f32.mrb[0].mxu0
  %v3987 = vpop.f32.mrb[0].mxu0
  %v3988 = vadd.f32 %v3572, %v3987
  %v3989 = vpop.f32.mrb[0].mxu0
  %3990 = vmatprep.mubr.bf16.mxu0 0
  %3991 = vmatmul.mubr.bf16.gmra.mrb[0].mxu0 %v3529
  %v3992 = vpop.f32.mrb[0].mxu0
  %v3993 = vadd.f32 %v3572, %v3992
  %v3994 = vpop.f32.mrb[0].mxu0
  %v3995 = vpop.f32.mrb[0].mxu0
  %v3996 = vadd.f32 %v3572, %v3995
  %v3997 = vpop.f32.mrb[0].mxu0
  %3998 = vmatprep.mubr.bf16.mxu0 0
  %3999 = vmatmul.mubr.bf16.gmra.mrb[0].mxu0 %v3530
  %v4000 = vpop.f32.mrb[0].mxu0
  %v4001 = vadd.f32 %v3572, %v4000
  %v4002 = vpop.f32.mrb[0].mxu0
  %v4003 = vpop.f32.mrb[0].mxu0
  %v4004 = vadd.f32 %v3572, %v4003
  %v4005 = vpop.f32.mrb[0].mxu0
  %4006 = vmatprep.mubr.bf16.mxu0 0
  %4007 = vmatmul.mubr.bf16.gmra.mrb[0].mxu0 %v3531
  %v4008 = vpop.f32.mrb[0].mxu0
  %v4009 = vadd.f32 %v3572, %v4008
  %v4010 = vpop.f32.mrb[0].mxu0
  %v4011 = vpop.f32.mrb[0].mxu0
  %v4012 = vadd.f32 %v3572, %v4011
  %v4013 = vpop.f32.mrb[0].mxu0
  %4014 = vmatprep.mubr.bf16.mxu0 0
  %4015 = vmatmul.mubr.bf16.gmra.mrb[0].mxu0 %v3532
  %v4016 = vpop.f32.mrb[0].mxu0
  %v4017 = vadd.f32 %v3572, %v4016
  %v4018 = vpop.f32.mrb[0].mxu0
  %v4019 = vpop.f32.mrb[0].mxu0
  %v4020 = vadd.f32 %v3572, %v4019
  %v4021 = vpop.f32.mrb[0].mxu0
  %4022 = vmatprep.mubr.bf16.mxu0 0
  %4023 = vmatmul.mubr.bf16.gmra.mrb[0].mxu0 %v3533
  %v4024 = vpop.f32.mrb[0].mxu0
  %v4025 = vadd.f32 %v3572, %v4024
  %v4026 = vpop.f32.mrb[0].mxu0
  %v4027 = vpop.f32.mrb[0].mxu0
  %v4028 = vadd.f32 %v3572, %v4027
  %v4029 = vpop.f32.mrb[0].mxu0
  %4030 = vmatprep.mubr.bf16.mxu0 0
  %4031 = vmatmul.mubr.bf16.gmra.mrb[0].mxu0 %v3534
  %v4032 = vpop.f32.mrb[0].mxu0
  %v4033 = vadd.f32 %v3572, %v4032
  %v4034 = vpop.f32.mrb[0].mxu0
  %v4035 = vpop.f32.mrb[0].mxu0
  %v4036 = vadd.f32 %v3572, %v4035
  %v4037 = vpop.f32.mrb[0].mxu0
  %4038 = vmatprep.mubr.bf16.mxu0 0
  %4039 = vmatmul.mubr.bf16.gmra.mrb[0].mxu0 %v3535
  %v4040 = vpop.f32.mrb[0].mxu0
  %v4041 = vadd.f32 %v3572, %v4040
  %v4042 = vpop.f32.mrb[0].mxu0
  %v4043 = vpop.f32.mrb[0].mxu0
  %v4044 = vadd.f32 %v3572, %v4043
  %v4045 = vpop.f32.mrb[0].mxu0
  %4046 = vmatprep.mubr.bf16.mxu0 0
  %4047 = vmatmul.mubr.bf16.gmra.mrb[0].mxu0 %v3536
  %v4048 = vpop.f32.mrb[0].mxu0
  %v4049 = vadd.f32 %v3572, %v4048
  %v4050 = vpop.f32.mrb[0].mxu0
  %v4051 = vpop.f32.mrb[0].mxu0
  %v4052 = vadd.f32 %v3572, %v4051
  %v4053 = vpop.f32.mrb[0].mxu0
  %4054 = vmatprep.mubr.bf16.mxu0 0
  %4055 = vmatmul.mubr.bf16.gmra.mrb[0].mxu0 %v3537
  %v4056 = vpop.f32.mrb[0].mxu0
  %v4057 = vadd.f32 %v3572, %v4056
  %v4058 = vpop.f32.mrb[0].mxu0
  %v4059 = vpop.f32.mrb[0].mxu0
  %v4060 = vadd.f32 %v3572, %v4059
  %v4061 = vpop.f32.mrb[0].mxu0
  %4062 = vmatprep.mubr.bf16.mxu0 0
  %4063 = vmatmul.mubr.bf16.gmra.mrb[0].mxu0 %v3538
  %v4064 = vpop.f32.mrb[0].mxu0
  %v4065 = vadd.f32 %v3572, %v4064
  %v4066 = vpop.f32.mrb[0].mxu0
  %v4067 = vpop.f32.mrb[0].mxu0
  %v4068 = vadd.f32 %v3572, %v4067
  %v4069 = vpop.f32.mrb[0].mxu0
  %4070 = vmatprep.mubr.bf16.mxu0 0
  %4071 = vmatmul.mubr.bf16.gmra.mrb[0].mxu0 %v3539
  %v4072 = vpop.f32.mrb[0].mxu0
  %v4073 = vadd.f32 %v3572, %v4072
  %v4074 = vpop.f32.mrb[0].mxu0
  %v4075 = vpop.f32.mrb[0].mxu0
  %v4076 = vadd.f32 %v3572, %v4075
  %v4077 = vpop.f32.mrb[0].mxu0
  %4078 = vmatprep.mubr.bf16.mxu0 0
  %4079 = vmatmul.mubr.bf16.gmra.mrb[0].mxu0 %v3540
  %v4080 = vpop.f32.mrb[0].mxu0
  %v4081 = vadd.f32 %v3572, %v4080
  %v4082 = vpop.f32.mrb[0].mxu0
  %v4083 = vpop.f32.mrb[0].mxu0
  %v4084 = vadd.f32 %v3572, %v4083
  %v4085 = vpop.f32.mrb[0].mxu0
  %4086 = vmatprep.mubr.bf16.mxu0 0
  %4087 = vmatmul.mubr.bf16.gmra.mrb[0].mxu0 %v3541
  %v4088 = vpop.f32.mrb[0].mxu0
  %v4089 = vadd.f32 %v3572, %v4088
  %v4090 = vpop.f32.mrb[0].mxu0
  %v4091 = vpop.f32.mrb[0].mxu0
  %v4092 = vadd.f32 %v3572, %v4091
  %v4093 = vpop.f32.mrb[0].mxu0
  %4094 = vmatprep.mubr.bf16.mxu0 0
  %4095 = vmatmul.mubr.bf16.gmra.mrb[0].mxu0 %v3542
  %v4096 = vpop.f32.mrb[0].mxu0
  %v4097 = vadd.f32 %v3572, %v4096
  %v4098 = vpop.f32.mrb[0].mxu0
  %v4099 = vpop.f32.mrb[0].mxu0
  %v4100 = vadd.f32 %v3572, %v4099
  %v4101 = vpop.f32.mrb[0].mxu0
  %4102 = vmatprep.mubr.bf16.mxu0 0
  %4103 = vmatmul.mubr.bf16.gmra.mrb[0].mxu0 %v3543
  %v4104 = vpop.f32.mrb[0].mxu0
  %v4105 = vadd.f32 %v3572, %v4104
  %v4106 = vpop.f32.mrb[0].mxu0
  %v4107 = vpop.f32.mrb[0].mxu0
  %v4108 = vadd.f32 %v3572, %v4107
  %v4109 = vpop.f32.mrb[0].mxu0
  %4110 = vmatprep.mubr.bf16.mxu0 0
  %4111 = vmatmul.mubr.bf16.gmra.mrb[0].mxu0 %v3544
  %v4112 = vpop.f32.mrb[0].mxu0
  %v4113 = vadd.f32 %v3572, %v4112
  %v4114 = vpop.f32.mrb[0].mxu0
  %v4115 = vpop.f32.mrb[0].mxu0
  %v4116 = vadd.f32 %v3572, %v4115
  %v4117 = vpop.f32.mrb[0].mxu0
  %4118 = vmatprep.mubr.bf16.mxu0 0
  %4119 = vmatmul.mubr.bf16.gmra.mrb[0].mxu0 %v3545
  %v4120 = vpop.f32.mrb[0].mxu0
  %v4121 = vadd.f32 %v3572, %v4120
  %v4122 = vpop.f32.mrb[0].mxu0
  %v4123 = vpop.f32.mrb[0].mxu0
  %v4124 = vadd.f32 %v3572, %v4123
  %v4125 = vpop.f32.mrb[0].mxu0
  %4126 = vmatprep.mubr.bf16.mxu0 0
  %4127 = vmatmul.mubr.bf16.gmra.mrb[0].mxu0 %v3546
  %v4128 = vpop.f32.mrb[0].mxu0
  %v4129 = vadd.f32 %v3572, %v4128
  %v4130 = vpop.f32.mrb[0].mxu0
  %v4131 = vpop.f32.mrb[0].mxu0
  %v4132 = vadd.f32 %v3572, %v4131
  %v4133 = vpop.f32.mrb[0].mxu0
  %4134 = vmatprep.mubr.bf16.mxu0 0
  %4135 = vmatmul.mubr.bf16.gmra.mrb[0].mxu0 %v3547
  %v4136 = vpop.f32.mrb[0].mxu0
  %v4137 = vadd.f32 %v3572, %v4136
  %v4138 = vpop.f32.mrb[0].mxu0
  %v4139 = vpop.f32.mrb[0].mxu0
  %v4140 = vadd.f32 %v3572, %v4139
  %v4141 = vpop.f32.mrb[0].mxu0
  %4142 = vmatprep.mubr.bf16.mxu0 0
  %4143 = vmatmul.mubr.bf16.gmra.mrb[0].mxu0 %v3548
  %v4144 = vpop.f32.mrb[0].mxu0
  %v4145 = vadd.f32 %v3572, %v4144
  %v4146 = vpop.f32.mrb[0].mxu0
  %v4147 = vpop.f32.mrb[0].mxu0
  %v4148 = vadd.f32 %v3572, %v4147
  %v4149 = vpop.f32.mrb[0].mxu0
  %4150 = vmatprep.mubr.bf16.mxu0 0
  %4151 = vmatmul.mubr.bf16.gmra.mrb[0].mxu0 %v3549
  %v4152 = vpop.f32.mrb[0].mxu0
  %v4153 = vadd.f32 %v3572, %v4152
  %v4154 = vpop.f32.mrb[0].mxu0
  %v4155 = vpop.f32.mrb[0].mxu0
  %v4156 = vadd.f32 %v3572, %v4155
  %v4157 = vpop.f32.mrb[0].mxu0
  %4158 = vmatprep.mubr.bf16.mxu0 0
  %4159 = vmatmul.mubr.bf16.gmra.mrb[0].mxu0 %v3550
  %v4160 = vpop.f32.mrb[0].mxu0
  %v4161 = vadd.f32 %v3572, %v4160
  %v4162 = vpop.f32.mrb[0].mxu0
  %v4163 = vpop.f32.mrb[0].mxu0
  %v4164 = vadd.f32 %v3572, %v4163
  %v4165 = vpop.f32.mrb[0].mxu0
  %4166 = vdwg.mxu0
  %v4167 = vlaneseq
  %v4168 = vand.u32 %v4167, 127
  %v4169 = vld [vmem:[%s2] sm:$0xff]
  %v4170 = vld [vmem:[%s2 + $0x8] sm:$0xff]
  %v4171 = vld [vmem:[%s2 + $0x10] sm:$0xff]
  %v4172 = vld [vmem:[%s2 + $0x18] sm:$0xff]
  %4173 = vset.pattern.permute.xlu0 0
  %4174 = vperm.xlu0 %4173, %v4169
  %v4175 = vpop.permute.xlu0 %4174
  %4176 = vset.pattern.permute.xlu0 0
  %4177 = vperm.xlu0 %4176, %v4170
  %v4178 = vpop.permute.xlu0 %4177
  %4179 = vset.pattern.permute.xlu0 0
  %4180 = vperm.xlu0 %4179, %v4171
  %v4181 = vpop.permute.xlu0 %4180
  %4182 = vset.pattern.permute.xlu0 0
  %4183 = vperm.xlu0 %4182, %v4172
  %v4184 = vpop.permute.xlu0 %4183
  %vm4185 = vcmp.lt.s32.totalorder %v4168, %v4175
  %vm4186 = vcmp.lt.s32.totalorder %v4168, %v4178
  %vm4187 = vcmp.lt.s32.totalorder %v4168, %v4181
  %vm4188 = vcmp.lt.s32.totalorder %v4168, %v4184
  %v4189 = vsel %vm4185, 0.0, -1e+30
  %v4190 = vsel %vm4186, 0.0, -1e+30
  %v4191 = vsel %vm4187, 0.0, -1e+30
  %v4192 = vsel %vm4188, 0.0, -1e+30
  %v4193 = vlaneseq
  %v4194 = vshrl.u32 %v4193, 7
  %v4195 = vsub.s32 0, %v4194
  %v4196 = vrot.slane %v4189, %v4195
  %4198 = vbcast.lane.b32.xlu0 %v4196, 256
  %v4199 = vpop.permute.xlu0 %4198
  %s4201 = sor.u32 256, 8
  %4202 = vbcast.lane.b32.xlu0 %v4196, %s4201
  %v4203 = vpop.permute.xlu0 %4202
  %s4205 = sor.u32 256, 16
  %4206 = vbcast.lane.b32.xlu0 %v4196, %s4205
  %v4207 = vpop.permute.xlu0 %4206
  %s4209 = sor.u32 256, 24
  %4210 = vbcast.lane.b32.xlu0 %v4196, %s4209
  %v4211 = vpop.permute.xlu0 %4210
  %v4212 = vlaneseq
  %v4213 = vshrl.u32 %v4212, 7
  %v4214 = vsub.s32 1, %v4213
  %v4215 = vrot.slane %v4189, %v4214
  %4217 = vbcast.lane.b32.xlu0 %v4215, 256
  %v4218 = vpop.permute.xlu0 %4217
  %s4220 = sor.u32 256, 8
  %4221 = vbcast.lane.b32.xlu0 %v4215, %s4220
  %v4222 = vpop.permute.xlu0 %4221
  %s4224 = sor.u32 256, 16
  %4225 = vbcast.lane.b32.xlu0 %v4215, %s4224
  %v4226 = vpop.permute.xlu0 %4225
  %s4228 = sor.u32 256, 24
  %4229 = vbcast.lane.b32.xlu0 %v4215, %s4228
  %v4230 = vpop.permute.xlu0 %4229
  %v4231 = vlaneseq
  %v4232 = vshrl.u32 %v4231, 7
  %v4233 = vsub.s32 2, %v4232
  %v4234 = vrot.slane %v4189, %v4233
  %4236 = vbcast.lane.b32.xlu0 %v4234, 256
  %v4237 = vpop.permute.xlu0 %4236
  %s4239 = sor.u32 256, 8
  %4240 = vbcast.lane.b32.xlu0 %v4234, %s4239
  %v4241 = vpop.permute.xlu0 %4240
  %s4243 = sor.u32 256, 16
  %4244 = vbcast.lane.b32.xlu0 %v4234, %s4243
  %v4245 = vpop.permute.xlu0 %4244
  %s4247 = sor.u32 256, 24
  %4248 = vbcast.lane.b32.xlu0 %v4234, %s4247
  %v4249 = vpop.permute.xlu0 %4248
  %v4250 = vlaneseq
  %v4251 = vshrl.u32 %v4250, 7
  %v4252 = vsub.s32 3, %v4251
  %v4253 = vrot.slane %v4189, %v4252
  %4255 = vbcast.lane.b32.xlu0 %v4253, 256
  %v4256 = vpop.permute.xlu0 %4255
  %s4258 = sor.u32 256, 8
  %4259 = vbcast.lane.b32.xlu0 %v4253, %s4258
  %v4260 = vpop.permute.xlu0 %4259
  %s4262 = sor.u32 256, 16
  %4263 = vbcast.lane.b32.xlu0 %v4253, %s4262
  %v4264 = vpop.permute.xlu0 %4263
  %s4266 = sor.u32 256, 24
  %4267 = vbcast.lane.b32.xlu0 %v4253, %s4266
  %v4268 = vpop.permute.xlu0 %4267
  %v4269 = vlaneseq
  %v4270 = vshrl.u32 %v4269, 7
  %v4271 = vsub.s32 4, %v4270
  %v4272 = vrot.slane %v4189, %v4271
  %4274 = vbcast.lane.b32.xlu0 %v4272, 256
  %v4275 = vpop.permute.xlu0 %4274
  %s4277 = sor.u32 256, 8
  %4278 = vbcast.lane.b32.xlu0 %v4272, %s4277
  %v4279 = vpop.permute.xlu0 %4278
  %s4281 = sor.u32 256, 16
  %4282 = vbcast.lane.b32.xlu0 %v4272, %s4281
  %v4283 = vpop.permute.xlu0 %4282
  %s4285 = sor.u32 256, 24
  %4286 = vbcast.lane.b32.xlu0 %v4272, %s4285
  %v4287 = vpop.permute.xlu0 %4286
  %v4288 = vlaneseq
  %v4289 = vshrl.u32 %v4288, 7
  %v4290 = vsub.s32 5, %v4289
  %v4291 = vrot.slane %v4189, %v4290
  %4293 = vbcast.lane.b32.xlu0 %v4291, 256
  %v4294 = vpop.permute.xlu0 %4293
  %s4296 = sor.u32 256, 8
  %4297 = vbcast.lane.b32.xlu0 %v4291, %s4296
  %v4298 = vpop.permute.xlu0 %4297
  %s4300 = sor.u32 256, 16
  %4301 = vbcast.lane.b32.xlu0 %v4291, %s4300
  %v4302 = vpop.permute.xlu0 %4301
  %s4304 = sor.u32 256, 24
  %4305 = vbcast.lane.b32.xlu0 %v4291, %s4304
  %v4306 = vpop.permute.xlu0 %4305
  %v4307 = vlaneseq
  %v4308 = vshrl.u32 %v4307, 7
  %v4309 = vsub.s32 6, %v4308
  %v4310 = vrot.slane %v4189, %v4309
  %4312 = vbcast.lane.b32.xlu0 %v4310, 256
  %v4313 = vpop.permute.xlu0 %4312
  %s4315 = sor.u32 256, 8
  %4316 = vbcast.lane.b32.xlu0 %v4310, %s4315
  %v4317 = vpop.permute.xlu0 %4316
  %s4319 = sor.u32 256, 16
  %4320 = vbcast.lane.b32.xlu0 %v4310, %s4319
  %v4321 = vpop.permute.xlu0 %4320
  %s4323 = sor.u32 256, 24
  %4324 = vbcast.lane.b32.xlu0 %v4310, %s4323
  %v4325 = vpop.permute.xlu0 %4324
  %v4326 = vlaneseq
  %v4327 = vshrl.u32 %v4326, 7
  %v4328 = vsub.s32 7, %v4327
  %v4329 = vrot.slane %v4189, %v4328
  %4331 = vbcast.lane.b32.xlu0 %v4329, 256
  %v4332 = vpop.permute.xlu0 %4331
  %s4334 = sor.u32 256, 8
  %4335 = vbcast.lane.b32.xlu0 %v4329, %s4334
  %v4336 = vpop.permute.xlu0 %4335
  %s4338 = sor.u32 256, 16
  %4339 = vbcast.lane.b32.xlu0 %v4329, %s4338
  %v4340 = vpop.permute.xlu0 %4339
  %s4342 = sor.u32 256, 24
  %4343 = vbcast.lane.b32.xlu0 %v4329, %s4342
  %v4344 = vpop.permute.xlu0 %4343
  %v4345 = vlaneseq
  %v4346 = vshrl.u32 %v4345, 7
  %v4347 = vsub.s32 0, %v4346
  %v4348 = vrot.slane %v4190, %v4347
  %4350 = vbcast.lane.b32.xlu0 %v4348, 256
  %v4351 = vpop.permute.xlu0 %4350
  %s4353 = sor.u32 256, 8
  %4354 = vbcast.lane.b32.xlu0 %v4348, %s4353
  %v4355 = vpop.permute.xlu0 %4354
  %s4357 = sor.u32 256, 16
  %4358 = vbcast.lane.b32.xlu0 %v4348, %s4357
  %v4359 = vpop.permute.xlu0 %4358
  %s4361 = sor.u32 256, 24
  %4362 = vbcast.lane.b32.xlu0 %v4348, %s4361
  %v4363 = vpop.permute.xlu0 %4362
  %v4364 = vlaneseq
  %v4365 = vshrl.u32 %v4364, 7
  %v4366 = vsub.s32 1, %v4365
  %v4367 = vrot.slane %v4190, %v4366
  %4369 = vbcast.lane.b32.xlu0 %v4367, 256
  %v4370 = vpop.permute.xlu0 %4369
  %s4372 = sor.u32 256, 8
  %4373 = vbcast.lane.b32.xlu0 %v4367, %s4372
  %v4374 = vpop.permute.xlu0 %4373
  %s4376 = sor.u32 256, 16
  %4377 = vbcast.lane.b32.xlu0 %v4367, %s4376
  %v4378 = vpop.permute.xlu0 %4377
  %s4380 = sor.u32 256, 24
  %4381 = vbcast.lane.b32.xlu0 %v4367, %s4380
  %v4382 = vpop.permute.xlu0 %4381
  %v4383 = vlaneseq
  %v4384 = vshrl.u32 %v4383, 7
  %v4385 = vsub.s32 2, %v4384
  %v4386 = vrot.slane %v4190, %v4385
  %4388 = vbcast.lane.b32.xlu0 %v4386, 256
  %v4389 = vpop.permute.xlu0 %4388
  %s4391 = sor.u32 256, 8
  %4392 = vbcast.lane.b32.xlu0 %v4386, %s4391
  %v4393 = vpop.permute.xlu0 %4392
  %s4395 = sor.u32 256, 16
  %4396 = vbcast.lane.b32.xlu0 %v4386, %s4395
  %v4397 = vpop.permute.xlu0 %4396
  %s4399 = sor.u32 256, 24
  %4400 = vbcast.lane.b32.xlu0 %v4386, %s4399
  %v4401 = vpop.permute.xlu0 %4400
  %v4402 = vlaneseq
  %v4403 = vshrl.u32 %v4402, 7
  %v4404 = vsub.s32 3, %v4403
  %v4405 = vrot.slane %v4190, %v4404
  %4407 = vbcast.lane.b32.xlu0 %v4405, 256
  %v4408 = vpop.permute.xlu0 %4407
  %s4410 = sor.u32 256, 8
  %4411 = vbcast.lane.b32.xlu0 %v4405, %s4410
  %v4412 = vpop.permute.xlu0 %4411
  %s4414 = sor.u32 256, 16
  %4415 = vbcast.lane.b32.xlu0 %v4405, %s4414
  %v4416 = vpop.permute.xlu0 %4415
  %s4418 = sor.u32 256, 24
  %4419 = vbcast.lane.b32.xlu0 %v4405, %s4418
  %v4420 = vpop.permute.xlu0 %4419
  %v4421 = vlaneseq
  %v4422 = vshrl.u32 %v4421, 7
  %v4423 = vsub.s32 4, %v4422
  %v4424 = vrot.slane %v4190, %v4423
  %4426 = vbcast.lane.b32.xlu0 %v4424, 256
  %v4427 = vpop.permute.xlu0 %4426
  %s4429 = sor.u32 256, 8
  %4430 = vbcast.lane.b32.xlu0 %v4424, %s4429
  %v4431 = vpop.permute.xlu0 %4430
  %s4433 = sor.u32 256, 16
  %4434 = vbcast.lane.b32.xlu0 %v4424, %s4433
  %v4435 = vpop.permute.xlu0 %4434
  %s4437 = sor.u32 256, 24
  %4438 = vbcast.lane.b32.xlu0 %v4424, %s4437
  %v4439 = vpop.permute.xlu0 %4438
  %v4440 = vlaneseq
  %v4441 = vshrl.u32 %v4440, 7
  %v4442 = vsub.s32 5, %v4441
  %v4443 = vrot.slane %v4190, %v4442
  %4445 = vbcast.lane.b32.xlu0 %v4443, 256
  %v4446 = vpop.permute.xlu0 %4445
  %s4448 = sor.u32 256, 8
  %4449 = vbcast.lane.b32.xlu0 %v4443, %s4448
  %v4450 = vpop.permute.xlu0 %4449
  %s4452 = sor.u32 256, 16
  %4453 = vbcast.lane.b32.xlu0 %v4443, %s4452
  %v4454 = vpop.permute.xlu0 %4453
  %s4456 = sor.u32 256, 24
  %4457 = vbcast.lane.b32.xlu0 %v4443, %s4456
  %v4458 = vpop.permute.xlu0 %4457
  %v4459 = vlaneseq
  %v4460 = vshrl.u32 %v4459, 7
  %v4461 = vsub.s32 6, %v4460
  %v4462 = vrot.slane %v4190, %v4461
  %4464 = vbcast.lane.b32.xlu0 %v4462, 256
  %v4465 = vpop.permute.xlu0 %4464
  %s4467 = sor.u32 256, 8
  %4468 = vbcast.lane.b32.xlu0 %v4462, %s4467
  %v4469 = vpop.permute.xlu0 %4468
  %s4471 = sor.u32 256, 16
  %4472 = vbcast.lane.b32.xlu0 %v4462, %s4471
  %v4473 = vpop.permute.xlu0 %4472
  %s4475 = sor.u32 256, 24
  %4476 = vbcast.lane.b32.xlu0 %v4462, %s4475
  %v4477 = vpop.permute.xlu0 %4476
  %v4478 = vlaneseq
  %v4479 = vshrl.u32 %v4478, 7
  %v4480 = vsub.s32 7, %v4479
  %v4481 = vrot.slane %v4190, %v4480
  %4483 = vbcast.lane.b32.xlu0 %v4481, 256
  %v4484 = vpop.permute.xlu0 %4483
  %s4486 = sor.u32 256, 8
  %4487 = vbcast.lane.b32.xlu0 %v4481, %s4486
  %v4488 = vpop.permute.xlu0 %4487
  %s4490 = sor.u32 256, 16
  %4491 = vbcast.lane.b32.xlu0 %v4481, %s4490
  %v4492 = vpop.permute.xlu0 %4491
  %s4494 = sor.u32 256, 24
  %4495 = vbcast.lane.b32.xlu0 %v4481, %s4494
  %v4496 = vpop.permute.xlu0 %4495
  %v4497 = vlaneseq
  %v4498 = vshrl.u32 %v4497, 7
  %v4499 = vsub.s32 0, %v4498
  %v4500 = vrot.slane %v4191, %v4499
  %4502 = vbcast.lane.b32.xlu0 %v4500, 256
  %v4503 = vpop.permute.xlu0 %4502
  %s4505 = sor.u32 256, 8
  %4506 = vbcast.lane.b32.xlu0 %v4500, %s4505
  %v4507 = vpop.permute.xlu0 %4506
  %s4509 = sor.u32 256, 16
  %4510 = vbcast.lane.b32.xlu0 %v4500, %s4509
  %v4511 = vpop.permute.xlu0 %4510
  %s4513 = sor.u32 256, 24
  %4514 = vbcast.lane.b32.xlu0 %v4500, %s4513
  %v4515 = vpop.permute.xlu0 %4514
  %v4516 = vlaneseq
  %v4517 = vshrl.u32 %v4516, 7
  %v4518 = vsub.s32 1, %v4517
  %v4519 = vrot.slane %v4191, %v4518
  %4521 = vbcast.lane.b32.xlu0 %v4519, 256
  %v4522 = vpop.permute.xlu0 %4521
  %s4524 = sor.u32 256, 8
  %4525 = vbcast.lane.b32.xlu0 %v4519, %s4524
  %v4526 = vpop.permute.xlu0 %4525
  %s4528 = sor.u32 256, 16
  %4529 = vbcast.lane.b32.xlu0 %v4519, %s4528
  %v4530 = vpop.permute.xlu0 %4529
  %s4532 = sor.u32 256, 24
  %4533 = vbcast.lane.b32.xlu0 %v4519, %s4532
  %v4534 = vpop.permute.xlu0 %4533
  %v4535 = vlaneseq
  %v4536 = vshrl.u32 %v4535, 7
  %v4537 = vsub.s32 2, %v4536
  %v4538 = vrot.slane %v4191, %v4537
  %4540 = vbcast.lane.b32.xlu0 %v4538, 256
  %v4541 = vpop.permute.xlu0 %4540
  %s4543 = sor.u32 256, 8
  %4544 = vbcast.lane.b32.xlu0 %v4538, %s4543
  %v4545 = vpop.permute.xlu0 %4544
  %s4547 = sor.u32 256, 16
  %4548 = vbcast.lane.b32.xlu0 %v4538, %s4547
  %v4549 = vpop.permute.xlu0 %4548
  %s4551 = sor.u32 256, 24
  %4552 = vbcast.lane.b32.xlu0 %v4538, %s4551
  %v4553 = vpop.permute.xlu0 %4552
  %v4554 = vlaneseq
  %v4555 = vshrl.u32 %v4554, 7
  %v4556 = vsub.s32 3, %v4555
  %v4557 = vrot.slane %v4191, %v4556
  %4559 = vbcast.lane.b32.xlu0 %v4557, 256
  %v4560 = vpop.permute.xlu0 %4559
  %s4562 = sor.u32 256, 8
  %4563 = vbcast.lane.b32.xlu0 %v4557, %s4562
  %v4564 = vpop.permute.xlu0 %4563
  %s4566 = sor.u32 256, 16
  %4567 = vbcast.lane.b32.xlu0 %v4557, %s4566
  %v4568 = vpop.permute.xlu0 %4567
  %s4570 = sor.u32 256, 24
  %4571 = vbcast.lane.b32.xlu0 %v4557, %s4570
  %v4572 = vpop.permute.xlu0 %4571
  %v4573 = vlaneseq
  %v4574 = vshrl.u32 %v4573, 7
  %v4575 = vsub.s32 4, %v4574
  %v4576 = vrot.slane %v4191, %v4575
  %4578 = vbcast.lane.b32.xlu0 %v4576, 256
  %v4579 = vpop.permute.xlu0 %4578
  %s4581 = sor.u32 256, 8
  %4582 = vbcast.lane.b32.xlu0 %v4576, %s4581
  %v4583 = vpop.permute.xlu0 %4582
  %s4585 = sor.u32 256, 16
  %4586 = vbcast.lane.b32.xlu0 %v4576, %s4585
  %v4587 = vpop.permute.xlu0 %4586
  %s4589 = sor.u32 256, 24
  %4590 = vbcast.lane.b32.xlu0 %v4576, %s4589
  %v4591 = vpop.permute.xlu0 %4590
  %v4592 = vlaneseq
  %v4593 = vshrl.u32 %v4592, 7
  %v4594 = vsub.s32 5, %v4593
  %v4595 = vrot.slane %v4191, %v4594
  %4597 = vbcast.lane.b32.xlu0 %v4595, 256
  %v4598 = vpop.permute.xlu0 %4597
  %s4600 = sor.u32 256, 8
  %4601 = vbcast.lane.b32.xlu0 %v4595, %s4600
  %v4602 = vpop.permute.xlu0 %4601
  %s4604 = sor.u32 256, 16
  %4605 = vbcast.lane.b32.xlu0 %v4595, %s4604
  %v4606 = vpop.permute.xlu0 %4605
  %s4608 = sor.u32 256, 24
  %4609 = vbcast.lane.b32.xlu0 %v4595, %s4608
  %v4610 = vpop.permute.xlu0 %4609
  %v4611 = vlaneseq
  %v4612 = vshrl.u32 %v4611, 7
  %v4613 = vsub.s32 6, %v4612
  %v4614 = vrot.slane %v4191, %v4613
  %4616 = vbcast.lane.b32.xlu0 %v4614, 256
  %v4617 = vpop.permute.xlu0 %4616
  %s4619 = sor.u32 256, 8
  %4620 = vbcast.lane.b32.xlu0 %v4614, %s4619
  %v4621 = vpop.permute.xlu0 %4620
  %s4623 = sor.u32 256, 16
  %4624 = vbcast.lane.b32.xlu0 %v4614, %s4623
  %v4625 = vpop.permute.xlu0 %4624
  %s4627 = sor.u32 256, 24
  %4628 = vbcast.lane.b32.xlu0 %v4614, %s4627
  %v4629 = vpop.permute.xlu0 %4628
  %v4630 = vlaneseq
  %v4631 = vshrl.u32 %v4630, 7
  %v4632 = vsub.s32 7, %v4631
  %v4633 = vrot.slane %v4191, %v4632
  %4635 = vbcast.lane.b32.xlu0 %v4633, 256
  %v4636 = vpop.permute.xlu0 %4635
  %s4638 = sor.u32 256, 8
  %4639 = vbcast.lane.b32.xlu0 %v4633, %s4638
  %v4640 = vpop.permute.xlu0 %4639
  %s4642 = sor.u32 256, 16
  %4643 = vbcast.lane.b32.xlu0 %v4633, %s4642
  %v4644 = vpop.permute.xlu0 %4643
  %s4646 = sor.u32 256, 24
  %4647 = vbcast.lane.b32.xlu0 %v4633, %s4646
  %v4648 = vpop.permute.xlu0 %4647
  %v4649 = vlaneseq
  %v4650 = vshrl.u32 %v4649, 7
  %v4651 = vsub.s32 0, %v4650
  %v4652 = vrot.slane %v4192, %v4651
  %4654 = vbcast.lane.b32.xlu0 %v4652, 256
  %v4655 = vpop.permute.xlu0 %4654
  %s4657 = sor.u32 256, 8
  %4658 = vbcast.lane.b32.xlu0 %v4652, %s4657
  %v4659 = vpop.permute.xlu0 %4658
  %s4661 = sor.u32 256, 16
  %4662 = vbcast.lane.b32.xlu0 %v4652, %s4661
  %v4663 = vpop.permute.xlu0 %4662
  %s4665 = sor.u32 256, 24
  %4666 = vbcast.lane.b32.xlu0 %v4652, %s4665
  %v4667 = vpop.permute.xlu0 %4666
  %v4668 = vlaneseq
  %v4669 = vshrl.u32 %v4668, 7
  %v4670 = vsub.s32 1, %v4669
  %v4671 = vrot.slane %v4192, %v4670
  %4673 = vbcast.lane.b32.xlu0 %v4671, 256
  %v4674 = vpop.permute.xlu0 %4673
  %s4676 = sor.u32 256, 8
  %4677 = vbcast.lane.b32.xlu0 %v4671, %s4676
  %v4678 = vpop.permute.xlu0 %4677
  %s4680 = sor.u32 256, 16
  %4681 = vbcast.lane.b32.xlu0 %v4671, %s4680
  %v4682 = vpop.permute.xlu0 %4681
  %s4684 = sor.u32 256, 24
  %4685 = vbcast.lane.b32.xlu0 %v4671, %s4684
  %v4686 = vpop.permute.xlu0 %4685
  %v4687 = vlaneseq
  %v4688 = vshrl.u32 %v4687, 7
  %v4689 = vsub.s32 2, %v4688
  %v4690 = vrot.slane %v4192, %v4689
  %4692 = vbcast.lane.b32.xlu0 %v4690, 256
  %v4693 = vpop.permute.xlu0 %4692
  %s4695 = sor.u32 256, 8
  %4696 = vbcast.lane.b32.xlu0 %v4690, %s4695
  %v4697 = vpop.permute.xlu0 %4696
  %s4699 = sor.u32 256, 16
  %4700 = vbcast.lane.b32.xlu0 %v4690, %s4699
  %v4701 = vpop.permute.xlu0 %4700
  %s4703 = sor.u32 256, 24
  %4704 = vbcast.lane.b32.xlu0 %v4690, %s4703
  %v4705 = vpop.permute.xlu0 %4704
  %v4706 = vlaneseq
  %v4707 = vshrl.u32 %v4706, 7
  %v4708 = vsub.s32 3, %v4707
  %v4709 = vrot.slane %v4192, %v4708
  %4711 = vbcast.lane.b32.xlu0 %v4709, 256
  %v4712 = vpop.permute.xlu0 %4711
  %s4714 = sor.u32 256, 8
  %4715 = vbcast.lane.b32.xlu0 %v4709, %s4714
  %v4716 = vpop.permute.xlu0 %4715
  %s4718 = sor.u32 256, 16
  %4719 = vbcast.lane.b32.xlu0 %v4709, %s4718
  %v4720 = vpop.permute.xlu0 %4719
  %s4722 = sor.u32 256, 24
  %4723 = vbcast.lane.b32.xlu0 %v4709, %s4722
  %v4724 = vpop.permute.xlu0 %4723
  %v4725 = vlaneseq
  %v4726 = vshrl.u32 %v4725, 7
  %v4727 = vsub.s32 4, %v4726
  %v4728 = vrot.slane %v4192, %v4727
  %4730 = vbcast.lane.b32.xlu0 %v4728, 256
  %v4731 = vpop.permute.xlu0 %4730
  %s4733 = sor.u32 256, 8
  %4734 = vbcast.lane.b32.xlu0 %v4728, %s4733
  %v4735 = vpop.permute.xlu0 %4734
  %s4737 = sor.u32 256, 16
  %4738 = vbcast.lane.b32.xlu0 %v4728, %s4737
  %v4739 = vpop.permute.xlu0 %4738
  %s4741 = sor.u32 256, 24
  %4742 = vbcast.lane.b32.xlu0 %v4728, %s4741
  %v4743 = vpop.permute.xlu0 %4742
  %v4744 = vlaneseq
  %v4745 = vshrl.u32 %v4744, 7
  %v4746 = vsub.s32 5, %v4745
  %v4747 = vrot.slane %v4192, %v4746
  %4749 = vbcast.lane.b32.xlu0 %v4747, 256
  %v4750 = vpop.permute.xlu0 %4749
  %s4752 = sor.u32 256, 8
  %4753 = vbcast.lane.b32.xlu0 %v4747, %s4752
  %v4754 = vpop.permute.xlu0 %4753
  %s4756 = sor.u32 256, 16
  %4757 = vbcast.lane.b32.xlu0 %v4747, %s4756
  %v4758 = vpop.permute.xlu0 %4757
  %s4760 = sor.u32 256, 24
  %4761 = vbcast.lane.b32.xlu0 %v4747, %s4760
  %v4762 = vpop.permute.xlu0 %4761
  %v4763 = vlaneseq
  %v4764 = vshrl.u32 %v4763, 7
  %v4765 = vsub.s32 6, %v4764
  %v4766 = vrot.slane %v4192, %v4765
  %4768 = vbcast.lane.b32.xlu0 %v4766, 256
  %v4769 = vpop.permute.xlu0 %4768
  %s4771 = sor.u32 256, 8
  %4772 = vbcast.lane.b32.xlu0 %v4766, %s4771
  %v4773 = vpop.permute.xlu0 %4772
  %s4775 = sor.u32 256, 16
  %4776 = vbcast.lane.b32.xlu0 %v4766, %s4775
  %v4777 = vpop.permute.xlu0 %4776
  %s4779 = sor.u32 256, 24
  %4780 = vbcast.lane.b32.xlu0 %v4766, %s4779
  %v4781 = vpop.permute.xlu0 %4780
  %v4782 = vlaneseq
  %v4783 = vshrl.u32 %v4782, 7
  %v4784 = vsub.s32 7, %v4783
  %v4785 = vrot.slane %v4192, %v4784
  %4787 = vbcast.lane.b32.xlu0 %v4785, 256
  %v4788 = vpop.permute.xlu0 %4787
  %s4790 = sor.u32 256, 8
  %4791 = vbcast.lane.b32.xlu0 %v4785, %s4790
  %v4792 = vpop.permute.xlu0 %4791
  %s4794 = sor.u32 256, 16
  %4795 = vbcast.lane.b32.xlu0 %v4785, %s4794
  %v4796 = vpop.permute.xlu0 %4795
  %s4798 = sor.u32 256, 24
  %4799 = vbcast.lane.b32.xlu0 %v4785, %s4798
  %v4800 = vpop.permute.xlu0 %4799
  %v4801 = vadd.f32 %v3657, %v4199
  %v4802 = vadd.f32 %v3660, %v4203
  %v4803 = vadd.f32 %v3665, %v4207
  %v4804 = vadd.f32 %v3668, %v4211
  %v4805 = vadd.f32 %v3673, %v4218
  %v4806 = vadd.f32 %v3676, %v4222
  %v4807 = vadd.f32 %v3681, %v4226
  %v4808 = vadd.f32 %v3684, %v4230
  %v4809 = vadd.f32 %v3689, %v4237
  %v4810 = vadd.f32 %v3692, %v4241
  %v4811 = vadd.f32 %v3697, %v4245
  %v4812 = vadd.f32 %v3700, %v4249
  %v4813 = vadd.f32 %v3705, %v4256
  %v4814 = vadd.f32 %v3708, %v4260
  %v4815 = vadd.f32 %v3713, %v4264
  %v4816 = vadd.f32 %v3716, %v4268
  %v4817 = vadd.f32 %v3721, %v4275
  %v4818 = vadd.f32 %v3724, %v4279
  %v4819 = vadd.f32 %v3729, %v4283
  %v4820 = vadd.f32 %v3732, %v4287
  %v4821 = vadd.f32 %v3737, %v4294
  %v4822 = vadd.f32 %v3740, %v4298
  %v4823 = vadd.f32 %v3745, %v4302
  %v4824 = vadd.f32 %v3748, %v4306
  %v4825 = vadd.f32 %v3753, %v4313
  %v4826 = vadd.f32 %v3756, %v4317
  %v4827 = vadd.f32 %v3761, %v4321
  %v4828 = vadd.f32 %v3764, %v4325
  %v4829 = vadd.f32 %v3769, %v4332
  %v4830 = vadd.f32 %v3772, %v4336
  %v4831 = vadd.f32 %v3777, %v4340
  %v4832 = vadd.f32 %v3780, %v4344
  %v4833 = vadd.f32 %v3785, %v4351
  %v4834 = vadd.f32 %v3788, %v4355
  %v4835 = vadd.f32 %v3793, %v4359
  %v4836 = vadd.f32 %v3796, %v4363
  %v4837 = vadd.f32 %v3801, %v4370
  %v4838 = vadd.f32 %v3804, %v4374
  %v4839 = vadd.f32 %v3809, %v4378
  %v4840 = vadd.f32 %v3812, %v4382
  %v4841 = vadd.f32 %v3817, %v4389
  %v4842 = vadd.f32 %v3820, %v4393
  %v4843 = vadd.f32 %v3825, %v4397
  %v4844 = vadd.f32 %v3828, %v4401
  %v4845 = vadd.f32 %v3833, %v4408
  %v4846 = vadd.f32 %v3836, %v4412
  %v4847 = vadd.f32 %v3841, %v4416
  %v4848 = vadd.f32 %v3844, %v4420
  %v4849 = vadd.f32 %v3849, %v4427
  %v4850 = vadd.f32 %v3852, %v4431
  %v4851 = vadd.f32 %v3857, %v4435
  %v4852 = vadd.f32 %v3860, %v4439
  %v4853 = vadd.f32 %v3865, %v4446
  %v4854 = vadd.f32 %v3868, %v4450
  %v4855 = vadd.f32 %v3873, %v4454
  %v4856 = vadd.f32 %v3876, %v4458
  %v4857 = vadd.f32 %v3881, %v4465
  %v4858 = vadd.f32 %v3884, %v4469
  %v4859 = vadd.f32 %v3889, %v4473
  %v4860 = vadd.f32 %v3892, %v4477
  %v4861 = vadd.f32 %v3897, %v4484
  %v4862 = vadd.f32 %v3900, %v4488
  %v4863 = vadd.f32 %v3905, %v4492
  %v4864 = vadd.f32 %v3908, %v4496
  %v4865 = vadd.f32 %v3913, %v4503
  %v4866 = vadd.f32 %v3916, %v4507
  %v4867 = vadd.f32 %v3921, %v4511
  %v4868 = vadd.f32 %v3924, %v4515
  %v4869 = vadd.f32 %v3929, %v4522
  %v4870 = vadd.f32 %v3932, %v4526
  %v4871 = vadd.f32 %v3937, %v4530
  %v4872 = vadd.f32 %v3940, %v4534
  %v4873 = vadd.f32 %v3945, %v4541
  %v4874 = vadd.f32 %v3948, %v4545
  %v4875 = vadd.f32 %v3953, %v4549
  %v4876 = vadd.f32 %v3956, %v4553
  %v4877 = vadd.f32 %v3961, %v4560
  %v4878 = vadd.f32 %v3964, %v4564
  %v4879 = vadd.f32 %v3969, %v4568
  %v4880 = vadd.f32 %v3972, %v4572
  %v4881 = vadd.f32 %v3977, %v4579
  %v4882 = vadd.f32 %v3980, %v4583
  %v4883 = vadd.f32 %v3985, %v4587
  %v4884 = vadd.f32 %v3988, %v4591
  %v4885 = vadd.f32 %v3993, %v4598
  %v4886 = vadd.f32 %v3996, %v4602
  %v4887 = vadd.f32 %v4001, %v4606
  %v4888 = vadd.f32 %v4004, %v4610
  %v4889 = vadd.f32 %v4009, %v4617
  %v4890 = vadd.f32 %v4012, %v4621
  %v4891 = vadd.f32 %v4017, %v4625
  %v4892 = vadd.f32 %v4020, %v4629
  %v4893 = vadd.f32 %v4025, %v4636
  %v4894 = vadd.f32 %v4028, %v4640
  %v4895 = vadd.f32 %v4033, %v4644
  %v4896 = vadd.f32 %v4036, %v4648
  %v4897 = vadd.f32 %v4041, %v4655
  %v4898 = vadd.f32 %v4044, %v4659
  %v4899 = vadd.f32 %v4049, %v4663
  %v4900 = vadd.f32 %v4052, %v4667
  %v4901 = vadd.f32 %v4057, %v4674
  %v4902 = vadd.f32 %v4060, %v4678
  %v4903 = vadd.f32 %v4065, %v4682
  %v4904 = vadd.f32 %v4068, %v4686
  %v4905 = vadd.f32 %v4073, %v4693
  %v4906 = vadd.f32 %v4076, %v4697
  %v4907 = vadd.f32 %v4081, %v4701
  %v4908 = vadd.f32 %v4084, %v4705
  %v4909 = vadd.f32 %v4089, %v4712
  %v4910 = vadd.f32 %v4092, %v4716
  %v4911 = vadd.f32 %v4097, %v4720
  %v4912 = vadd.f32 %v4100, %v4724
  %v4913 = vadd.f32 %v4105, %v4731
  %v4914 = vadd.f32 %v4108, %v4735
  %v4915 = vadd.f32 %v4113, %v4739
  %v4916 = vadd.f32 %v4116, %v4743
  %v4917 = vadd.f32 %v4121, %v4750
  %v4918 = vadd.f32 %v4124, %v4754
  %v4919 = vadd.f32 %v4129, %v4758
  %v4920 = vadd.f32 %v4132, %v4762
  %v4921 = vadd.f32 %v4137, %v4769
  %v4922 = vadd.f32 %v4140, %v4773
  %v4923 = vadd.f32 %v4145, %v4777
  %v4924 = vadd.f32 %v4148, %v4781
  %v4925 = vadd.f32 %v4153, %v4788
  %v4926 = vadd.f32 %v4156, %v4792
  %v4927 = vadd.f32 %v4161, %v4796
  %v4928 = vadd.f32 %v4164, %v4800
  %v4929 = vmax.f32 %v4801, %v4802
  %v4930 = vmax.f32 %v4929, %v4803
  %v4931 = vmax.f32 %v4930, %v4804
  %v4932 = vrot.slane %v4931, 4
  %v4933 = vmax.f32 %v4931, %v4932
  %v4934 = vrot.slane %v4933, 2
  %v4935 = vmax.f32 %v4933, %v4934
  %v4936 = vrot.slane %v4935, 1
  %v4937 = vmax.f32 %v4935, %v4936
  %v4938 = vmax.f32 %v4805, %v4806
  %v4939 = vmax.f32 %v4938, %v4807
  %v4940 = vmax.f32 %v4939, %v4808
  %v4941 = vrot.slane %v4940, 4
  %v4942 = vmax.f32 %v4940, %v4941
  %v4943 = vrot.slane %v4942, 2
  %v4944 = vmax.f32 %v4942, %v4943
  %v4945 = vrot.slane %v4944, 1
  %v4946 = vmax.f32 %v4944, %v4945
  %v4947 = vmax.f32 %v4809, %v4810
  %v4948 = vmax.f32 %v4947, %v4811
  %v4949 = vmax.f32 %v4948, %v4812
  %v4950 = vrot.slane %v4949, 4
  %v4951 = vmax.f32 %v4949, %v4950
  %v4952 = vrot.slane %v4951, 2
  %v4953 = vmax.f32 %v4951, %v4952
  %v4954 = vrot.slane %v4953, 1
  %v4955 = vmax.f32 %v4953, %v4954
  %v4956 = vmax.f32 %v4813, %v4814
  %v4957 = vmax.f32 %v4956, %v4815
  %v4958 = vmax.f32 %v4957, %v4816
  %v4959 = vrot.slane %v4958, 4
  %v4960 = vmax.f32 %v4958, %v4959
  %v4961 = vrot.slane %v4960, 2
  %v4962 = vmax.f32 %v4960, %v4961
  %v4963 = vrot.slane %v4962, 1
  %v4964 = vmax.f32 %v4962, %v4963
  %v4965 = vmax.f32 %v4817, %v4818
  %v4966 = vmax.f32 %v4965, %v4819
  %v4967 = vmax.f32 %v4966, %v4820
  %v4968 = vrot.slane %v4967, 4
  %v4969 = vmax.f32 %v4967, %v4968
  %v4970 = vrot.slane %v4969, 2
  %v4971 = vmax.f32 %v4969, %v4970
  %v4972 = vrot.slane %v4971, 1
  %v4973 = vmax.f32 %v4971, %v4972
  %v4974 = vmax.f32 %v4821, %v4822
  %v4975 = vmax.f32 %v4974, %v4823
  %v4976 = vmax.f32 %v4975, %v4824
  %v4977 = vrot.slane %v4976, 4
  %v4978 = vmax.f32 %v4976, %v4977
  %v4979 = vrot.slane %v4978, 2
  %v4980 = vmax.f32 %v4978, %v4979
  %v4981 = vrot.slane %v4980, 1
  %v4982 = vmax.f32 %v4980, %v4981
  %v4983 = vmax.f32 %v4825, %v4826
  %v4984 = vmax.f32 %v4983, %v4827
  %v4985 = vmax.f32 %v4984, %v4828
  %v4986 = vrot.slane %v4985, 4
  %v4987 = vmax.f32 %v4985, %v4986
  %v4988 = vrot.slane %v4987, 2
  %v4989 = vmax.f32 %v4987, %v4988
  %v4990 = vrot.slane %v4989, 1
  %v4991 = vmax.f32 %v4989, %v4990
  %v4992 = vmax.f32 %v4829, %v4830
  %v4993 = vmax.f32 %v4992, %v4831
  %v4994 = vmax.f32 %v4993, %v4832
  %v4995 = vrot.slane %v4994, 4
  %v4996 = vmax.f32 %v4994, %v4995
  %v4997 = vrot.slane %v4996, 2
  %v4998 = vmax.f32 %v4996, %v4997
  %v4999 = vrot.slane %v4998, 1
  %v5000 = vmax.f32 %v4998, %v4999
  %v5001 = vmax.f32 %v4833, %v4834
  %v5002 = vmax.f32 %v5001, %v4835
  %v5003 = vmax.f32 %v5002, %v4836
  %v5004 = vrot.slane %v5003, 4
  %v5005 = vmax.f32 %v5003, %v5004
  %v5006 = vrot.slane %v5005, 2
  %v5007 = vmax.f32 %v5005, %v5006
  %v5008 = vrot.slane %v5007, 1
  %v5009 = vmax.f32 %v5007, %v5008
  %v5010 = vmax.f32 %v4837, %v4838
  %v5011 = vmax.f32 %v5010, %v4839
  %v5012 = vmax.f32 %v5011, %v4840
  %v5013 = vrot.slane %v5012, 4
  %v5014 = vmax.f32 %v5012, %v5013
  %v5015 = vrot.slane %v5014, 2
  %v5016 = vmax.f32 %v5014, %v5015
  %v5017 = vrot.slane %v5016, 1
  %v5018 = vmax.f32 %v5016, %v5017
  %v5019 = vmax.f32 %v4841, %v4842
  %v5020 = vmax.f32 %v5019, %v4843
  %v5021 = vmax.f32 %v5020, %v4844
  %v5022 = vrot.slane %v5021, 4
  %v5023 = vmax.f32 %v5021, %v5022
  %v5024 = vrot.slane %v5023, 2
  %v5025 = vmax.f32 %v5023, %v5024
  %v5026 = vrot.slane %v5025, 1
  %v5027 = vmax.f32 %v5025, %v5026
  %v5028 = vmax.f32 %v4845, %v4846
  %v5029 = vmax.f32 %v5028, %v4847
  %v5030 = vmax.f32 %v5029, %v4848
  %v5031 = vrot.slane %v5030, 4
  %v5032 = vmax.f32 %v5030, %v5031
  %v5033 = vrot.slane %v5032, 2
  %v5034 = vmax.f32 %v5032, %v5033
  %v5035 = vrot.slane %v5034, 1
  %v5036 = vmax.f32 %v5034, %v5035
  %v5037 = vmax.f32 %v4849, %v4850
  %v5038 = vmax.f32 %v5037, %v4851
  %v5039 = vmax.f32 %v5038, %v4852
  %v5040 = vrot.slane %v5039, 4
  %v5041 = vmax.f32 %v5039, %v5040
  %v5042 = vrot.slane %v5041, 2
  %v5043 = vmax.f32 %v5041, %v5042
  %v5044 = vrot.slane %v5043, 1
  %v5045 = vmax.f32 %v5043, %v5044
  %v5046 = vmax.f32 %v4853, %v4854
  %v5047 = vmax.f32 %v5046, %v4855
  %v5048 = vmax.f32 %v5047, %v4856
  %v5049 = vrot.slane %v5048, 4
  %v5050 = vmax.f32 %v5048, %v5049
  %v5051 = vrot.slane %v5050, 2
  %v5052 = vmax.f32 %v5050, %v5051
  %v5053 = vrot.slane %v5052, 1
  %v5054 = vmax.f32 %v5052, %v5053
  %v5055 = vmax.f32 %v4857, %v4858
  %v5056 = vmax.f32 %v5055, %v4859
  %v5057 = vmax.f32 %v5056, %v4860
  %v5058 = vrot.slane %v5057, 4
  %v5059 = vmax.f32 %v5057, %v5058
  %v5060 = vrot.slane %v5059, 2
  %v5061 = vmax.f32 %v5059, %v5060
  %v5062 = vrot.slane %v5061, 1
  %v5063 = vmax.f32 %v5061, %v5062
  %v5064 = vmax.f32 %v4861, %v4862
  %v5065 = vmax.f32 %v5064, %v4863
  %v5066 = vmax.f32 %v5065, %v4864
  %v5067 = vrot.slane %v5066, 4
  %v5068 = vmax.f32 %v5066, %v5067
  %v5069 = vrot.slane %v5068, 2
  %v5070 = vmax.f32 %v5068, %v5069
  %v5071 = vrot.slane %v5070, 1
  %v5072 = vmax.f32 %v5070, %v5071
  %v5073 = vmax.f32 %v4865, %v4866
  %v5074 = vmax.f32 %v5073, %v4867
  %v5075 = vmax.f32 %v5074, %v4868
  %v5076 = vrot.slane %v5075, 4
  %v5077 = vmax.f32 %v5075, %v5076
  %v5078 = vrot.slane %v5077, 2
  %v5079 = vmax.f32 %v5077, %v5078
  %v5080 = vrot.slane %v5079, 1
  %v5081 = vmax.f32 %v5079, %v5080
  %v5082 = vmax.f32 %v4869, %v4870
  %v5083 = vmax.f32 %v5082, %v4871
  %v5084 = vmax.f32 %v5083, %v4872
  %v5085 = vrot.slane %v5084, 4
  %v5086 = vmax.f32 %v5084, %v5085
  %v5087 = vrot.slane %v5086, 2
  %v5088 = vmax.f32 %v5086, %v5087
  %v5089 = vrot.slane %v5088, 1
  %v5090 = vmax.f32 %v5088, %v5089
  %v5091 = vmax.f32 %v4873, %v4874
  %v5092 = vmax.f32 %v5091, %v4875
  %v5093 = vmax.f32 %v5092, %v4876
  %v5094 = vrot.slane %v5093, 4
  %v5095 = vmax.f32 %v5093, %v5094
  %v5096 = vrot.slane %v5095, 2
  %v5097 = vmax.f32 %v5095, %v5096
  %v5098 = vrot.slane %v5097, 1
  %v5099 = vmax.f32 %v5097, %v5098
  %v5100 = vmax.f32 %v4877, %v4878
  %v5101 = vmax.f32 %v5100, %v4879
  %v5102 = vmax.f32 %v5101, %v4880
  %v5103 = vrot.slane %v5102, 4
  %v5104 = vmax.f32 %v5102, %v5103
  %v5105 = vrot.slane %v5104, 2
  %v5106 = vmax.f32 %v5104, %v5105
  %v5107 = vrot.slane %v5106, 1
  %v5108 = vmax.f32 %v5106, %v5107
  %v5109 = vmax.f32 %v4881, %v4882
  %v5110 = vmax.f32 %v5109, %v4883
  %v5111 = vmax.f32 %v5110, %v4884
  %v5112 = vrot.slane %v5111, 4
  %v5113 = vmax.f32 %v5111, %v5112
  %v5114 = vrot.slane %v5113, 2
  %v5115 = vmax.f32 %v5113, %v5114
  %v5116 = vrot.slane %v5115, 1
  %v5117 = vmax.f32 %v5115, %v5116
  %v5118 = vmax.f32 %v4885, %v4886
  %v5119 = vmax.f32 %v5118, %v4887
  %v5120 = vmax.f32 %v5119, %v4888
  %v5121 = vrot.slane %v5120, 4
  %v5122 = vmax.f32 %v5120, %v5121
  %v5123 = vrot.slane %v5122, 2
  %v5124 = vmax.f32 %v5122, %v5123
  %v5125 = vrot.slane %v5124, 1
  %v5126 = vmax.f32 %v5124, %v5125
  %v5127 = vmax.f32 %v4889, %v4890
  %v5128 = vmax.f32 %v5127, %v4891
  %v5129 = vmax.f32 %v5128, %v4892
  %v5130 = vrot.slane %v5129, 4
  %v5131 = vmax.f32 %v5129, %v5130
  %v5132 = vrot.slane %v5131, 2
  %v5133 = vmax.f32 %v5131, %v5132
  %v5134 = vrot.slane %v5133, 1
  %v5135 = vmax.f32 %v5133, %v5134
  %v5136 = vmax.f32 %v4893, %v4894
  %v5137 = vmax.f32 %v5136, %v4895
  %v5138 = vmax.f32 %v5137, %v4896
  %v5139 = vrot.slane %v5138, 4
  %v5140 = vmax.f32 %v5138, %v5139
  %v5141 = vrot.slane %v5140, 2
  %v5142 = vmax.f32 %v5140, %v5141
  %v5143 = vrot.slane %v5142, 1
  %v5144 = vmax.f32 %v5142, %v5143
  %v5145 = vmax.f32 %v4897, %v4898
  %v5146 = vmax.f32 %v5145, %v4899
  %v5147 = vmax.f32 %v5146, %v4900
  %v5148 = vrot.slane %v5147, 4
  %v5149 = vmax.f32 %v5147, %v5148
  %v5150 = vrot.slane %v5149, 2
  %v5151 = vmax.f32 %v5149, %v5150
  %v5152 = vrot.slane %v5151, 1
  %v5153 = vmax.f32 %v5151, %v5152
  %v5154 = vmax.f32 %v4901, %v4902
  %v5155 = vmax.f32 %v5154, %v4903
  %v5156 = vmax.f32 %v5155, %v4904
  %v5157 = vrot.slane %v5156, 4
  %v5158 = vmax.f32 %v5156, %v5157
  %v5159 = vrot.slane %v5158, 2
  %v5160 = vmax.f32 %v5158, %v5159
  %v5161 = vrot.slane %v5160, 1
  %v5162 = vmax.f32 %v5160, %v5161
  %v5163 = vmax.f32 %v4905, %v4906
  %v5164 = vmax.f32 %v5163, %v4907
  %v5165 = vmax.f32 %v5164, %v4908
  %v5166 = vrot.slane %v5165, 4
  %v5167 = vmax.f32 %v5165, %v5166
  %v5168 = vrot.slane %v5167, 2
  %v5169 = vmax.f32 %v5167, %v5168
  %v5170 = vrot.slane %v5169, 1
  %v5171 = vmax.f32 %v5169, %v5170
  %v5172 = vmax.f32 %v4909, %v4910
  %v5173 = vmax.f32 %v5172, %v4911
  %v5174 = vmax.f32 %v5173, %v4912
  %v5175 = vrot.slane %v5174, 4
  %v5176 = vmax.f32 %v5174, %v5175
  %v5177 = vrot.slane %v5176, 2
  %v5178 = vmax.f32 %v5176, %v5177
  %v5179 = vrot.slane %v5178, 1
  %v5180 = vmax.f32 %v5178, %v5179
  %v5181 = vmax.f32 %v4913, %v4914
  %v5182 = vmax.f32 %v5181, %v4915
  %v5183 = vmax.f32 %v5182, %v4916
  %v5184 = vrot.slane %v5183, 4
  %v5185 = vmax.f32 %v5183, %v5184
  %v5186 = vrot.slane %v5185, 2
  %v5187 = vmax.f32 %v5185, %v5186
  %v5188 = vrot.slane %v5187, 1
  %v5189 = vmax.f32 %v5187, %v5188
  %v5190 = vmax.f32 %v4917, %v4918
  %v5191 = vmax.f32 %v5190, %v4919
  %v5192 = vmax.f32 %v5191, %v4920
  %v5193 = vrot.slane %v5192, 4
  %v5194 = vmax.f32 %v5192, %v5193
  %v5195 = vrot.slane %v5194, 2
  %v5196 = vmax.f32 %v5194, %v5195
  %v5197 = vrot.slane %v5196, 1
  %v5198 = vmax.f32 %v5196, %v5197
  %v5199 = vmax.f32 %v4921, %v4922
  %v5200 = vmax.f32 %v5199, %v4923
  %v5201 = vmax.f32 %v5200, %v4924
  %v5202 = vrot.slane %v5201, 4
  %v5203 = vmax.f32 %v5201, %v5202
  %v5204 = vrot.slane %v5203, 2
  %v5205 = vmax.f32 %v5203, %v5204
  %v5206 = vrot.slane %v5205, 1
  %v5207 = vmax.f32 %v5205, %v5206
  %v5208 = vmax.f32 %v4925, %v4926
  %v5209 = vmax.f32 %v5208, %v4927
  %v5210 = vmax.f32 %v5209, %v4928
  %v5211 = vrot.slane %v5210, 4
  %v5212 = vmax.f32 %v5210, %v5211
  %v5213 = vrot.slane %v5212, 2
  %v5214 = vmax.f32 %v5212, %v5213
  %v5215 = vrot.slane %v5214, 1
  %v5216 = vmax.f32 %v5214, %v5215
  %vm5249 = vcmask 1041409
  %v5250 = vsel %vm5249, %v4946, %v4937
  %vm5251 = vcmask 1042434
  %v5252 = vsel %vm5251, %v4955, %v5250
  %vm5253 = vcmask 1043459
  %v5254 = vsel %vm5253, %v4964, %v5252
  %vm5255 = vcmask 1044484
  %v5256 = vsel %vm5255, %v4973, %v5254
  %vm5257 = vcmask 1045509
  %v5258 = vsel %vm5257, %v4982, %v5256
  %vm5259 = vcmask 1046534
  %v5260 = vsel %vm5259, %v4991, %v5258
  %vm5261 = vcmask 1047559
  %v5262 = vsel %vm5261, %v5000, %v5260
  %v5263 = vsel %vm5249, %v5018, %v5009
  %v5264 = vsel %vm5251, %v5027, %v5263
  %v5265 = vsel %vm5253, %v5036, %v5264
  %v5266 = vsel %vm5255, %v5045, %v5265
  %v5267 = vsel %vm5257, %v5054, %v5266
  %v5268 = vsel %vm5259, %v5063, %v5267
  %v5269 = vsel %vm5261, %v5072, %v5268
  %v5270 = vsel %vm5249, %v5090, %v5081
  %v5271 = vsel %vm5251, %v5099, %v5270
  %v5272 = vsel %vm5253, %v5108, %v5271
  %v5273 = vsel %vm5255, %v5117, %v5272
  %v5274 = vsel %vm5257, %v5126, %v5273
  %v5275 = vsel %vm5259, %v5135, %v5274
  %v5276 = vsel %vm5261, %v5144, %v5275
  %v5277 = vsel %vm5249, %v5162, %v5153
  %v5278 = vsel %vm5251, %v5171, %v5277
  %v5279 = vsel %vm5253, %v5180, %v5278
  %v5280 = vsel %vm5255, %v5189, %v5279
  %v5281 = vsel %vm5257, %v5198, %v5280
  %v5282 = vsel %vm5259, %v5207, %v5281
  %v5283 = vsel %vm5261, %v5216, %v5282
  %5288 = vst [vmem:[%s10] sm:$0xff] %v5262
  %5289 = vst [vmem:[%s10 + $0x8] sm:$0xff] %v5269
  %5290 = vst [vmem:[%s10 + $0x10] sm:$0xff] %v5276
  %5291 = vst [vmem:[%s10 + $0x18] sm:$0xff] %v5283
  // Predicated region
  $region42: #{pointnet2_cls_forward.3} parent=0 // pred_check
    _
  $region43: #{pointnet2_cls_forward.3} parent=0 // pred_check_branch
    %5293 = sbr.rel (0) target = $region45
  $region44: #{pointnet2_cls_forward.3} parent=0 // pred_region
    _
  $region45: #{pointnet2_cls_forward.3} parent=0 // pred_fallthru
    _
  // Predicated region
  $region46: #{pointnet2_cls_forward.3} parent=0 // pred_check
    _
  $region47: #{pointnet2_cls_forward.3} parent=0 // pred_check_branch
    %5295 = sbr.rel (0) target = $region49
  $region48: #{pointnet2_cls_forward.3} parent=0 // pred_region
    _
  $region49: #{pointnet2_cls_forward.3} parent=0 // pred_fallthru
    _

// kernel: pointnet2_cls_forward.4
$region0: #{pointnet2_cls_forward.4}
  #allocation0 [shape = 'u32[]', space=smem, size = 0x4, offset = 0x4, fixed_abs, tag = 'smem constant byte address 0x4 - core index']
  #allocation1 [shape = 'u32[144,128]{1,0:T(1,128)}', space=vmem, size = 0x12000, scoped, tag = 'internal scratch']
  %s0 = inlined_call_operand.vmem [shape: bf16[128,128], index: 0, kind: input, shape index: {}]
  %s1 = inlined_call_operand.vmem [shape: bf16[128,8], index: 1, kind: input, shape index: {}]
  %s2 = inlined_call_operand.vmem [shape: s32[8,1], index: 2, kind: input, shape index: {}]
  %s3 = inlined_call_operand.vmem [shape: bf16[128,128], index: 3, kind: input, shape index: {}]
  %s4 = inlined_call_operand.vmem [shape: bf16[8,128], index: 4, kind: input, shape index: {}]
  %s5 = inlined_call_operand.vmem [shape: f32[1,128], index: 5, kind: input, shape index: {}]
  %s6 = inlined_call_operand.vmem [shape: bf16[128,128], index: 6, kind: input, shape index: {}]
  %s7 = inlined_call_operand.vmem [shape: f32[1,128], index: 7, kind: input, shape index: {}]
  %s8 = inlined_call_operand.vmem [shape: bf16[128,256], index: 8, kind: input, shape index: {}]
  %s9 = inlined_call_operand.vmem [shape: f32[1,256], index: 9, kind: input, shape index: {}]
  %s10 = inlined_call_operand.vmem [shape: f32[8,256], index: 10, kind: output, shape index: {}]
  %s11 = sld [smem:[#allocation0]]
  $region50: #{pointnet2_cls_forward.4} parent=0
    _
  %s13 = ssub.s32 1, %s11
  %s14 = scalar_select 0, %s13, %s11
  // Predicated region
  $region2: #{pointnet2_cls_forward.4} parent=0 // pred_check
    _
  $region3: #{pointnet2_cls_forward.4} parent=0 // pred_check_branch
    %16 = sbr.rel (0) target = $region5
  $region4: #{pointnet2_cls_forward.4} parent=0 // pred_region
    _
  $region5: #{pointnet2_cls_forward.4} parent=0 // pred_fallthru
    _
  // Predicated region
  $region6: #{pointnet2_cls_forward.4} parent=0 // pred_check
    _
  $region7: #{pointnet2_cls_forward.4} parent=0 // pred_check_branch
    %18 = sbr.rel (0) target = $region9
  $region8: #{pointnet2_cls_forward.4} parent=0 // pred_region
    _
  $region9: #{pointnet2_cls_forward.4} parent=0 // pred_fallthru
    _
  // Predicated region
  $region10: #{pointnet2_cls_forward.4} parent=0 // pred_check
    _
  $region11: #{pointnet2_cls_forward.4} parent=0 // pred_check_branch
    %20 = sbr.rel (0) target = $region13
  $region12: #{pointnet2_cls_forward.4} parent=0 // pred_region
    _
  $region13: #{pointnet2_cls_forward.4} parent=0 // pred_fallthru
    _
  // Predicated region
  $region14: #{pointnet2_cls_forward.4} parent=0 // pred_check
    _
  $region15: #{pointnet2_cls_forward.4} parent=0 // pred_check_branch
    %22 = sbr.rel (0) target = $region17
  $region16: #{pointnet2_cls_forward.4} parent=0 // pred_region
    _
  $region17: #{pointnet2_cls_forward.4} parent=0 // pred_fallthru
    _
  // Predicated region
  $region18: #{pointnet2_cls_forward.4} parent=0 // pred_check
    _
  $region19: #{pointnet2_cls_forward.4} parent=0 // pred_check_branch
    %24 = sbr.rel (0) target = $region21
  $region20: #{pointnet2_cls_forward.4} parent=0 // pred_region
    _
  $region21: #{pointnet2_cls_forward.4} parent=0 // pred_fallthru
    _
  // Predicated region
  $region22: #{pointnet2_cls_forward.4} parent=0 // pred_check
    _
  $region23: #{pointnet2_cls_forward.4} parent=0 // pred_check_branch
    %26 = sbr.rel (0) target = $region25
  $region24: #{pointnet2_cls_forward.4} parent=0 // pred_region
    _
  $region25: #{pointnet2_cls_forward.4} parent=0 // pred_fallthru
    _
  // Predicated region
  $region26: #{pointnet2_cls_forward.4} parent=0 // pred_check
    _
  $region27: #{pointnet2_cls_forward.4} parent=0 // pred_check_branch
    %28 = sbr.rel (0) target = $region29
  $region28: #{pointnet2_cls_forward.4} parent=0 // pred_region
    _
  $region29: #{pointnet2_cls_forward.4} parent=0 // pred_fallthru
    _
  // Predicated region
  $region30: #{pointnet2_cls_forward.4} parent=0 // pred_check
    _
  $region31: #{pointnet2_cls_forward.4} parent=0 // pred_check_branch
    %30 = sbr.rel (0) target = $region33
  $region32: #{pointnet2_cls_forward.4} parent=0 // pred_region
    _
  $region33: #{pointnet2_cls_forward.4} parent=0 // pred_fallthru
    _
  // Predicated region
  $region34: #{pointnet2_cls_forward.4} parent=0 // pred_check
    _
  $region35: #{pointnet2_cls_forward.4} parent=0 // pred_check_branch
    %32 = sbr.rel (0) target = $region37
  $region36: #{pointnet2_cls_forward.4} parent=0 // pred_region
    _
  $region37: #{pointnet2_cls_forward.4} parent=0 // pred_fallthru
    _
  // Predicated region
  $region38: #{pointnet2_cls_forward.4} parent=0 // pred_check
    _
  $region39: #{pointnet2_cls_forward.4} parent=0 // pred_check_branch
    %34 = sbr.rel (0) target = $region41
  $region40: #{pointnet2_cls_forward.4} parent=0 // pred_region
    _
  $region41: #{pointnet2_cls_forward.4} parent=0 // pred_fallthru
    _
  %v36 = vld [vmem:[%s0] sm:$0xf]
  %v37 = vld [vmem:[%s0 + $0x4] sm:$0xf]
  %v38 = vld [vmem:[%s0 + $0x8] sm:$0xf]
  %v39 = vld [vmem:[%s0 + $0xc] sm:$0xf]
  %v40 = vld [vmem:[%s0 + $0x10] sm:$0xf]
  %v41 = vld [vmem:[%s0 + $0x14] sm:$0xf]
  %v42 = vld [vmem:[%s0 + $0x18] sm:$0xf]
  %v43 = vld [vmem:[%s0 + $0x1c] sm:$0xf]
  %v44 = vld [vmem:[%s0 + $0x20] sm:$0xf]
  %v45 = vld [vmem:[%s0 + $0x24] sm:$0xf]
  %v46 = vld [vmem:[%s0 + $0x28] sm:$0xf]
  %v47 = vld [vmem:[%s0 + $0x2c] sm:$0xf]
  %v48 = vld [vmem:[%s0 + $0x30] sm:$0xf]
  %v49 = vld [vmem:[%s0 + $0x34] sm:$0xf]
  %v50 = vld [vmem:[%s0 + $0x38] sm:$0xf]
  %v51 = vld [vmem:[%s0 + $0x3c] sm:$0xf]
  %v52 = vld [vmem:[%s3] sm:$0xf]
  %v53 = vld [vmem:[%s3 + $0x4] sm:$0xf]
  %v54 = vld [vmem:[%s3 + $0x8] sm:$0xf]
  %v55 = vld [vmem:[%s3 + $0xc] sm:$0xf]
  %v56 = vld [vmem:[%s3 + $0x10] sm:$0xf]
  %v57 = vld [vmem:[%s3 + $0x14] sm:$0xf]
  %v58 = vld [vmem:[%s3 + $0x18] sm:$0xf]
  %v59 = vld [vmem:[%s3 + $0x1c] sm:$0xf]
  %v60 = vld [vmem:[%s3 + $0x20] sm:$0xf]
  %v61 = vld [vmem:[%s3 + $0x24] sm:$0xf]
  %v62 = vld [vmem:[%s3 + $0x28] sm:$0xf]
  %v63 = vld [vmem:[%s3 + $0x2c] sm:$0xf]
  %v64 = vld [vmem:[%s3 + $0x30] sm:$0xf]
  %v65 = vld [vmem:[%s3 + $0x34] sm:$0xf]
  %v66 = vld [vmem:[%s3 + $0x38] sm:$0xf]
  %v67 = vld [vmem:[%s3 + $0x3c] sm:$0xf]
  %v68 = vld [vmem:[%s1] sm:$0xf]
  %v69 = vld [vmem:[%s1 + $0x4] sm:$0xf]
  %v70 = vld [vmem:[%s1 + $0x8] sm:$0xf]
  %v71 = vld [vmem:[%s1 + $0xc] sm:$0xf]
  %v72 = vld [vmem:[%s1 + $0x10] sm:$0xf]
  %v73 = vld [vmem:[%s1 + $0x14] sm:$0xf]
  %v74 = vld [vmem:[%s1 + $0x18] sm:$0xf]
  %v75 = vld [vmem:[%s1 + $0x1c] sm:$0xf]
  %v76 = vld [vmem:[%s1 + $0x20] sm:$0xf]
  %v77 = vld [vmem:[%s1 + $0x24] sm:$0xf]
  %v78 = vld [vmem:[%s1 + $0x28] sm:$0xf]
  %v79 = vld [vmem:[%s1 + $0x2c] sm:$0xf]
  %v80 = vld [vmem:[%s1 + $0x30] sm:$0xf]
  %v81 = vld [vmem:[%s1 + $0x34] sm:$0xf]
  %v82 = vld [vmem:[%s1 + $0x38] sm:$0xf]
  %v83 = vld [vmem:[%s1 + $0x3c] sm:$0xf]
  %v84 = vld [vmem:[%s4] sm:$0xf]
  %v101 = vunpack.c.l.b16 %v68
  %v102 = vunpack.c.l.b16 %v69
  %v103 = vunpack.c.l.b16 %v70
  %v104 = vunpack.c.l.b16 %v71
  %v105 = vunpack.c.l.b16 %v72
  %v106 = vunpack.c.l.b16 %v73
  %v107 = vunpack.c.l.b16 %v74
  %v108 = vunpack.c.l.b16 %v75
  %v109 = vunpack.c.l.b16 %v76
  %v110 = vunpack.c.l.b16 %v77
  %v111 = vunpack.c.l.b16 %v78
  %v112 = vunpack.c.l.b16 %v79
  %v113 = vunpack.c.l.b16 %v80
  %v114 = vunpack.c.l.b16 %v81
  %v115 = vunpack.c.l.b16 %v82
  %v116 = vunpack.c.l.b16 %v83
  %v117 = vpack.c.b16 %v102, %v101
  %v118 = vpack.c.b16 %v104, %v103
  %v119 = vpack.c.b16 %v106, %v105
  %v120 = vpack.c.b16 %v108, %v107
  %v121 = vpack.c.b16 %v110, %v109
  %v122 = vpack.c.b16 %v112, %v111
  %v123 = vpack.c.b16 %v114, %v113
  %v124 = vpack.c.b16 %v116, %v115
  %vm125 = vcmask 64512
  %v127 = vsel %vm125, %v117, 0
  %v130 = vsel %vm125, %v118, 0
  %v133 = vsel %vm125, %v119, 0
  %v136 = vsel %vm125, %v120, 0
  %v139 = vsel %vm125, %v121, 0
  %v142 = vsel %vm125, %v122, 0
  %v145 = vsel %vm125, %v123, 0
  %v148 = vsel %vm125, %v124, 0
  %vm150 = vcmask 1043456
  %v152 = vsel %vm150, %v84, 0
  %154 = vmatprep.subr.bf16.mxu0 0
  %155 = vmatpush1.bf16.msra.mxu0 %v152
  %156 = vmatprep.subr.bf16.mxu0 0
  %157 = vmatpush1.bf16.msra.mxu0 0
  %158 = vmatprep.subr.bf16.mxu0 0
  %159 = vmatpush1.bf16.msra.mxu0 0
  %160 = vmatprep.subr.bf16.mxu0 0
  %161 = vmatpush1.bf16.msra.mxu0 0
  %162 = vmatprep.subr.bf16.mxu0 0
  %163 = vmatpush1.bf16.msra.mxu0 0
  %164 = vmatprep.subr.bf16.mxu0 0
  %165 = vmatpush1.bf16.msra.mxu0 0
  %166 = vmatprep.subr.bf16.mxu0 0
  %167 = vmatpush1.bf16.msra.mxu0 0
  %168 = vmatprep.subr.bf16.mxu0 0
  %169 = vmatpush1.bf16.msra.mxu0 0
  %170 = vmatprep.subr.bf16.mxu0 0
  %171 = vmatpush1.bf16.msra.mxu0 0
  %172 = vmatprep.subr.bf16.mxu0 0
  %173 = vmatpush1.bf16.msra.mxu0 0
  %174 = vmatprep.subr.bf16.mxu0 0
  %175 = vmatpush1.bf16.msra.mxu0 0
  %176 = vmatprep.subr.bf16.mxu0 0
  %177 = vmatpush1.bf16.msra.mxu0 0
  %178 = vmatprep.subr.bf16.mxu0 0
  %179 = vmatpush1.bf16.msra.mxu0 0
  %180 = vmatprep.subr.bf16.mxu0 0
  %181 = vmatpush1.bf16.msra.mxu0 0
  %182 = vmatprep.subr.bf16.mxu0 0
  %183 = vmatpush1.bf16.msra.mxu0 0
  %184 = vmatprep.subr.bf16.mxu0 0
  %185 = vmatpush1.bf16.msra.mxu0 0
  %186 = vmatprep.mubr.bf16.mxu0 0
  %187 = vmatmul.mubr.bf16.gmra.mrb[0].mxu0 %v127
  %v188 = vpop.f32.mrb[0].mxu0
  %v189 = vadd.f32 0.0, %v188
  %v190 = vpop.f32.mrb[0].mxu0
  %v191 = vpop.f32.mrb[0].mxu0
  %v192 = vadd.f32 0.0, %v191
  %v193 = vpop.f32.mrb[0].mxu0
  %194 = vmatprep.mubr.bf16.mxu0 0
  %195 = vmatmul.mubr.bf16.gmra.mrb[0].mxu0 %v130
  %v196 = vpop.f32.mrb[0].mxu0
  %v197 = vadd.f32 0.0, %v196
  %v198 = vpop.f32.mrb[0].mxu0
  %v199 = vpop.f32.mrb[0].mxu0
  %v200 = vadd.f32 0.0, %v199
  %v201 = vpop.f32.mrb[0].mxu0
  %202 = vmatprep.mubr.bf16.mxu0 0
  %203 = vmatmul.mubr.bf16.gmra.mrb[0].mxu0 %v133
  %v204 = vpop.f32.mrb[0].mxu0
  %v205 = vadd.f32 0.0, %v204
  %v206 = vpop.f32.mrb[0].mxu0
  %v207 = vpop.f32.mrb[0].mxu0
  %v208 = vadd.f32 0.0, %v207
  %v209 = vpop.f32.mrb[0].mxu0
  %210 = vmatprep.mubr.bf16.mxu0 0
  %211 = vmatmul.mubr.bf16.gmra.mrb[0].mxu0 %v136
  %v212 = vpop.f32.mrb[0].mxu0
  %v213 = vadd.f32 0.0, %v212
  %v214 = vpop.f32.mrb[0].mxu0
  %v215 = vpop.f32.mrb[0].mxu0
  %v216 = vadd.f32 0.0, %v215
  %v217 = vpop.f32.mrb[0].mxu0
  %218 = vmatprep.mubr.bf16.mxu0 0
  %219 = vmatmul.mubr.bf16.gmra.mrb[0].mxu0 %v139
  %v220 = vpop.f32.mrb[0].mxu0
  %v221 = vadd.f32 0.0, %v220
  %v222 = vpop.f32.mrb[0].mxu0
  %v223 = vpop.f32.mrb[0].mxu0
  %v224 = vadd.f32 0.0, %v223
  %v225 = vpop.f32.mrb[0].mxu0
  %226 = vmatprep.mubr.bf16.mxu0 0
  %227 = vmatmul.mubr.bf16.gmra.mrb[0].mxu0 %v142
  %v228 = vpop.f32.mrb[0].mxu0
  %v229 = vadd.f32 0.0, %v228
  %v230 = vpop.f32.mrb[0].mxu0
  %v231 = vpop.f32.mrb[0].mxu0
  %v232 = vadd.f32 0.0, %v231
  %v233 = vpop.f32.mrb[0].mxu0
  %234 = vmatprep.mubr.bf16.mxu0 0
  %235 = vmatmul.mubr.bf16.gmra.mrb[0].mxu0 %v145
  %v236 = vpop.f32.mrb[0].mxu0
  %v237 = vadd.f32 0.0, %v236
  %v238 = vpop.f32.mrb[0].mxu0
  %v239 = vpop.f32.mrb[0].mxu0
  %v240 = vadd.f32 0.0, %v239
  %v241 = vpop.f32.mrb[0].mxu0
  %242 = vmatprep.mubr.bf16.mxu0 0
  %243 = vmatmul.mubr.bf16.gmra.mrb[0].mxu0 %v148
  %v244 = vpop.f32.mrb[0].mxu0
  %v245 = vadd.f32 0.0, %v244
  %v246 = vpop.f32.mrb[0].mxu0
  %v247 = vpop.f32.mrb[0].mxu0
  %v248 = vadd.f32 0.0, %v247
  %v249 = vpop.f32.mrb[0].mxu0
  %250 = vdwg.mxu0
  %v267 = vunpack.c.l.b16 %v36
  %v268 = vunpack.c.l.b16 %v37
  %v269 = vunpack.c.l.b16 %v38
  %v270 = vunpack.c.l.b16 %v39
  %v271 = vunpack.c.l.b16 %v40
  %v272 = vunpack.c.l.b16 %v41
  %v273 = vunpack.c.l.b16 %v42
  %v274 = vunpack.c.l.b16 %v43
  %v275 = vunpack.c.l.b16 %v44
  %v276 = vunpack.c.l.b16 %v45
  %v277 = vunpack.c.l.b16 %v46
  %v278 = vunpack.c.l.b16 %v47
  %v279 = vunpack.c.l.b16 %v48
  %v280 = vunpack.c.l.b16 %v49
  %v281 = vunpack.c.l.b16 %v50
  %v282 = vunpack.c.l.b16 %v51
  %v283 = vpack.c.b16 %v268, %v267
  %v284 = vpack.c.b16 %v270, %v269
  %v285 = vpack.c.b16 %v272, %v271
  %v286 = vpack.c.b16 %v274, %v273
  %v287 = vpack.c.b16 %v276, %v275
  %v288 = vpack.c.b16 %v278, %v277
  %v289 = vpack.c.b16 %v280, %v279
  %v290 = vpack.c.b16 %v282, %v281
  %v315 = vunpack.c.l.b16 %v52
  %v316 = vunpack.c.l.b16 %v53
  %v317 = vunpack.c.l.b16 %v54
  %v318 = vunpack.c.l.b16 %v55
  %v319 = vunpack.c.l.b16 %v56
  %v320 = vunpack.c.l.b16 %v57
  %v321 = vunpack.c.l.b16 %v58
  %v322 = vunpack.c.l.b16 %v59
  %v323 = vunpack.c.l.b16 %v60
  %v324 = vunpack.c.l.b16 %v61
  %v325 = vunpack.c.l.b16 %v62
  %v326 = vunpack.c.l.b16 %v63
  %v327 = vunpack.c.l.b16 %v64
  %v328 = vunpack.c.l.b16 %v65
  %v329 = vunpack.c.l.b16 %v66
  %v330 = vunpack.c.l.b16 %v67
  %v331 = vpack.c.b16 %v316, %v315
  %v332 = vpack.c.b16 %v318, %v317
  %v333 = vpack.c.b16 %v320, %v319
  %v334 = vpack.c.b16 %v322, %v321
  %v335 = vpack.c.b16 %v324, %v323
  %v336 = vpack.c.b16 %v326, %v325
  %v337 = vpack.c.b16 %v328, %v327
  %v338 = vpack.c.b16 %v330, %v329
  %347 = vmatprep.subr.bf16.mxu0 0
  %348 = vmatpush1.bf16.msra.mxu0 %v331
  %349 = vmatprep.subr.bf16.mxu0 0
  %350 = vmatpush1.bf16.msra.mxu0 %v332
  %351 = vmatprep.subr.bf16.mxu0 0
  %352 = vmatpush1.bf16.msra.mxu0 %v333
  %353 = vmatprep.subr.bf16.mxu0 0
  %354 = vmatpush1.bf16.msra.mxu0 %v334
  %355 = vmatprep.subr.bf16.mxu0 0
  %356 = vmatpush1.bf16.msra.mxu0 %v335
  %357 = vmatprep.subr.bf16.mxu0 0
  %358 = vmatpush1.bf16.msra.mxu0 %v336
  %359 = vmatprep.subr.bf16.mxu0 0
  %360 = vmatpush1.bf16.msra.mxu0 %v337
  %361 = vmatprep.subr.bf16.mxu0 0
  %362 = vmatpush1.bf16.msra.mxu0 %v338
  %363 = vmatprep.subr.bf16.mxu0 0
  %364 = vmatpush1.bf16.msra.mxu0 0
  %365 = vmatprep.subr.bf16.mxu0 0
  %366 = vmatpush1.bf16.msra.mxu0 0
  %367 = vmatprep.subr.bf16.mxu0 0
  %368 = vmatpush1.bf16.msra.mxu0 0
  %369 = vmatprep.subr.bf16.mxu0 0
  %370 = vmatpush1.bf16.msra.mxu0 0
  %371 = vmatprep.subr.bf16.mxu0 0
  %372 = vmatpush1.bf16.msra.mxu0 0
  %373 = vmatprep.subr.bf16.mxu0 0
  %374 = vmatpush1.bf16.msra.mxu0 0
  %375 = vmatprep.subr.bf16.mxu0 0
  %376 = vmatpush1.bf16.msra.mxu0 0
  %377 = vmatprep.subr.bf16.mxu0 0
  %378 = vmatpush1.bf16.msra.mxu0 0
  %379 = vmatprep.mubr.bf16.mxu0 0
  %380 = vmatmul.mubr.bf16.gmra.mrb[0].mxu0 %v283
  %v381 = vpop.f32.mrb[0].mxu0
  %v382 = vadd.f32 %v189, %v381
  %v383 = vpop.f32.mrb[0].mxu0
  %v384 = vpop.f32.mrb[0].mxu0
  %v385 = vadd.f32 %v192, %v384
  %v386 = vpop.f32.mrb[0].mxu0
  %387 = vmatprep.mubr.bf16.mxu0 0
  %388 = vmatmul.mubr.bf16.gmra.mrb[0].mxu0 %v284
  %v389 = vpop.f32.mrb[0].mxu0
  %v390 = vadd.f32 %v197, %v389
  %v391 = vpop.f32.mrb[0].mxu0
  %v392 = vpop.f32.mrb[0].mxu0
  %v393 = vadd.f32 %v200, %v392
  %v394 = vpop.f32.mrb[0].mxu0
  %395 = vmatprep.mubr.bf16.mxu0 0
  %396 = vmatmul.mubr.bf16.gmra.mrb[0].mxu0 %v285
  %v397 = vpop.f32.mrb[0].mxu0
  %v398 = vadd.f32 %v205, %v397
  %v399 = vpop.f32.mrb[0].mxu0
  %v400 = vpop.f32.mrb[0].mxu0
  %v401 = vadd.f32 %v208, %v400
  %v402 = vpop.f32.mrb[0].mxu0
  %403 = vmatprep.mubr.bf16.mxu0 0
  %404 = vmatmul.mubr.bf16.gmra.mrb[0].mxu0 %v286
  %v405 = vpop.f32.mrb[0].mxu0
  %v406 = vadd.f32 %v213, %v405
  %v407 = vpop.f32.mrb[0].mxu0
  %v408 = vpop.f32.mrb[0].mxu0
  %v409 = vadd.f32 %v216, %v408
  %v410 = vpop.f32.mrb[0].mxu0
  %411 = vmatprep.mubr.bf16.mxu0 0
  %412 = vmatmul.mubr.bf16.gmra.mrb[0].mxu0 %v287
  %v413 = vpop.f32.mrb[0].mxu0
  %v414 = vadd.f32 %v221, %v413
  %v415 = vpop.f32.mrb[0].mxu0
  %v416 = vpop.f32.mrb[0].mxu0
  %v417 = vadd.f32 %v224, %v416
  %v418 = vpop.f32.mrb[0].mxu0
  %419 = vmatprep.mubr.bf16.mxu0 0
  %420 = vmatmul.mubr.bf16.gmra.mrb[0].mxu0 %v288
  %v421 = vpop.f32.mrb[0].mxu0
  %v422 = vadd.f32 %v229, %v421
  %v423 = vpop.f32.mrb[0].mxu0
  %v424 = vpop.f32.mrb[0].mxu0
  %v425 = vadd.f32 %v232, %v424
  %v426 = vpop.f32.mrb[0].mxu0
  %427 = vmatprep.mubr.bf16.mxu0 0
  %428 = vmatmul.mubr.bf16.gmra.mrb[0].mxu0 %v289
  %v429 = vpop.f32.mrb[0].mxu0
  %v430 = vadd.f32 %v237, %v429
  %v431 = vpop.f32.mrb[0].mxu0
  %v432 = vpop.f32.mrb[0].mxu0
  %v433 = vadd.f32 %v240, %v432
  %v434 = vpop.f32.mrb[0].mxu0
  %435 = vmatprep.mubr.bf16.mxu0 0
  %436 = vmatmul.mubr.bf16.gmra.mrb[0].mxu0 %v290
  %v437 = vpop.f32.mrb[0].mxu0
  %v438 = vadd.f32 %v245, %v437
  %v439 = vpop.f32.mrb[0].mxu0
  %v440 = vpop.f32.mrb[0].mxu0
  %v441 = vadd.f32 %v248, %v440
  %v442 = vpop.f32.mrb[0].mxu0
  %443 = vdwg.mxu0
  %v444 = vld [vmem:[%s5] sm:$0x1]
  %v446 = vlaneseq
  %v447 = vshrl.u32 %v446, 7
  %v448 = vsub.s32 0, %v447
  %v449 = vrot.slane %v444, %v448
  %v451 = vadd.f32 %v382, %v449
  %v452 = vadd.f32 %v385, %v449
  %v453 = vadd.f32 %v390, %v449
  %v454 = vadd.f32 %v393, %v449
  %v455 = vadd.f32 %v398, %v449
  %v456 = vadd.f32 %v401, %v449
  %v457 = vadd.f32 %v406, %v449
  %v458 = vadd.f32 %v409, %v449
  %v459 = vadd.f32 %v414, %v449
  %v460 = vadd.f32 %v417, %v449
  %v461 = vadd.f32 %v422, %v449
  %v462 = vadd.f32 %v425, %v449
  %v463 = vadd.f32 %v430, %v449
  %v464 = vadd.f32 %v433, %v449
  %v465 = vadd.f32 %v438, %v449
  %v466 = vadd.f32 %v441, %v449
  %v467 = vmax.f32 %v451, 0.0
  %v468 = vmax.f32 %v452, 0.0
  %v469 = vmax.f32 %v453, 0.0
  %v470 = vmax.f32 %v454, 0.0
  %v471 = vmax.f32 %v455, 0.0
  %v472 = vmax.f32 %v456, 0.0
  %v473 = vmax.f32 %v457, 0.0
  %v474 = vmax.f32 %v458, 0.0
  %v475 = vmax.f32 %v459, 0.0
  %v476 = vmax.f32 %v460, 0.0
  %v477 = vmax.f32 %v461, 0.0
  %v478 = vmax.f32 %v462, 0.0
  %v479 = vmax.f32 %v463, 0.0
  %v480 = vmax.f32 %v464, 0.0
  %v481 = vmax.f32 %v465, 0.0
  %v482 = vmax.f32 %v466, 0.0
  %v483 = vpack.c.bf16 %v468, %v467
  %v484 = vpack.c.bf16 %v470, %v469
  %v485 = vpack.c.bf16 %v472, %v471
  %v486 = vpack.c.bf16 %v474, %v473
  %v487 = vpack.c.bf16 %v476, %v475
  %v488 = vpack.c.bf16 %v478, %v477
  %v489 = vpack.c.bf16 %v480, %v479
  %v490 = vpack.c.bf16 %v482, %v481
  %v491 = vld [vmem:[%s6] sm:$0xf]
  %v492 = vld [vmem:[%s6 + $0x4] sm:$0xf]
  %v493 = vld [vmem:[%s6 + $0x8] sm:$0xf]
  %v494 = vld [vmem:[%s6 + $0xc] sm:$0xf]
  %v495 = vld [vmem:[%s6 + $0x10] sm:$0xf]
  %v496 = vld [vmem:[%s6 + $0x14] sm:$0xf]
  %v497 = vld [vmem:[%s6 + $0x18] sm:$0xf]
  %v498 = vld [vmem:[%s6 + $0x1c] sm:$0xf]
  %v499 = vld [vmem:[%s6 + $0x20] sm:$0xf]
  %v500 = vld [vmem:[%s6 + $0x24] sm:$0xf]
  %v501 = vld [vmem:[%s6 + $0x28] sm:$0xf]
  %v502 = vld [vmem:[%s6 + $0x2c] sm:$0xf]
  %v503 = vld [vmem:[%s6 + $0x30] sm:$0xf]
  %v504 = vld [vmem:[%s6 + $0x34] sm:$0xf]
  %v505 = vld [vmem:[%s6 + $0x38] sm:$0xf]
  %v506 = vld [vmem:[%s6 + $0x3c] sm:$0xf]
  %v507 = vld [vmem:[%s7] sm:$0x1]
  %v509 = vlaneseq
  %v510 = vshrl.u32 %v509, 7
  %v511 = vsub.s32 0, %v510
  %v512 = vrot.slane %v507, %v511
  %v530 = vunpack.c.l.b16 %v491
  %v531 = vunpack.c.l.b16 %v492
  %v532 = vunpack.c.l.b16 %v493
  %v533 = vunpack.c.l.b16 %v494
  %v534 = vunpack.c.l.b16 %v495
  %v535 = vunpack.c.l.b16 %v496
  %v536 = vunpack.c.l.b16 %v497
  %v537 = vunpack.c.l.b16 %v498
  %v538 = vunpack.c.l.b16 %v499
  %v539 = vunpack.c.l.b16 %v500
  %v540 = vunpack.c.l.b16 %v501
  %v541 = vunpack.c.l.b16 %v502
  %v542 = vunpack.c.l.b16 %v503
  %v543 = vunpack.c.l.b16 %v504
  %v544 = vunpack.c.l.b16 %v505
  %v545 = vunpack.c.l.b16 %v506
  %v546 = vpack.c.b16 %v531, %v530
  %v547 = vpack.c.b16 %v533, %v532
  %v548 = vpack.c.b16 %v535, %v534
  %v549 = vpack.c.b16 %v537, %v536
  %v550 = vpack.c.b16 %v539, %v538
  %v551 = vpack.c.b16 %v541, %v540
  %v552 = vpack.c.b16 %v543, %v542
  %v553 = vpack.c.b16 %v545, %v544
  %562 = vmatprep.subr.bf16.mxu0 0
  %563 = vmatpush1.bf16.msra.mxu0 %v546
  %564 = vmatprep.subr.bf16.mxu0 0
  %565 = vmatpush1.bf16.msra.mxu0 %v547
  %566 = vmatprep.subr.bf16.mxu0 0
  %567 = vmatpush1.bf16.msra.mxu0 %v548
  %568 = vmatprep.subr.bf16.mxu0 0
  %569 = vmatpush1.bf16.msra.mxu0 %v549
  %570 = vmatprep.subr.bf16.mxu0 0
  %571 = vmatpush1.bf16.msra.mxu0 %v550
  %572 = vmatprep.subr.bf16.mxu0 0
  %573 = vmatpush1.bf16.msra.mxu0 %v551
  %574 = vmatprep.subr.bf16.mxu0 0
  %575 = vmatpush1.bf16.msra.mxu0 %v552
  %576 = vmatprep.subr.bf16.mxu0 0
  %577 = vmatpush1.bf16.msra.mxu0 %v553
  %578 = vmatprep.subr.bf16.mxu0 0
  %579 = vmatpush1.bf16.msra.mxu0 0
  %580 = vmatprep.subr.bf16.mxu0 0
  %581 = vmatpush1.bf16.msra.mxu0 0
  %582 = vmatprep.subr.bf16.mxu0 0
  %583 = vmatpush1.bf16.msra.mxu0 0
  %584 = vmatprep.subr.bf16.mxu0 0
  %585 = vmatpush1.bf16.msra.mxu0 0
  %586 = vmatprep.subr.bf16.mxu0 0
  %587 = vmatpush1.bf16.msra.mxu0 0
  %588 = vmatprep.subr.bf16.mxu0 0
  %589 = vmatpush1.bf16.msra.mxu0 0
  %590 = vmatprep.subr.bf16.mxu0 0
  %591 = vmatpush1.bf16.msra.mxu0 0
  %592 = vmatprep.subr.bf16.mxu0 0
  %593 = vmatpush1.bf16.msra.mxu0 0
  %594 = vmatprep.mubr.bf16.mxu0 0
  %595 = vmatmul.mubr.bf16.gmra.mrb[0].mxu0 %v483
  %v596 = vpop.f32.mrb[0].mxu0
  %v597 = vadd.f32 %v512, %v596
  %v598 = vpop.f32.mrb[0].mxu0
  %v599 = vpop.f32.mrb[0].mxu0
  %v600 = vadd.f32 %v512, %v599
  %v601 = vpop.f32.mrb[0].mxu0
  %602 = vmatprep.mubr.bf16.mxu0 0
  %603 = vmatmul.mubr.bf16.gmra.mrb[0].mxu0 %v484
  %v604 = vpop.f32.mrb[0].mxu0
  %v605 = vadd.f32 %v512, %v604
  %v606 = vpop.f32.mrb[0].mxu0
  %v607 = vpop.f32.mrb[0].mxu0
  %v608 = vadd.f32 %v512, %v607
  %v609 = vpop.f32.mrb[0].mxu0
  %610 = vmatprep.mubr.bf16.mxu0 0
  %611 = vmatmul.mubr.bf16.gmra.mrb[0].mxu0 %v485
  %v612 = vpop.f32.mrb[0].mxu0
  %v613 = vadd.f32 %v512, %v612
  %v614 = vpop.f32.mrb[0].mxu0
  %v615 = vpop.f32.mrb[0].mxu0
  %v616 = vadd.f32 %v512, %v615
  %v617 = vpop.f32.mrb[0].mxu0
  %618 = vmatprep.mubr.bf16.mxu0 0
  %619 = vmatmul.mubr.bf16.gmra.mrb[0].mxu0 %v486
  %v620 = vpop.f32.mrb[0].mxu0
  %v621 = vadd.f32 %v512, %v620
  %v622 = vpop.f32.mrb[0].mxu0
  %v623 = vpop.f32.mrb[0].mxu0
  %v624 = vadd.f32 %v512, %v623
  %v625 = vpop.f32.mrb[0].mxu0
  %626 = vmatprep.mubr.bf16.mxu0 0
  %627 = vmatmul.mubr.bf16.gmra.mrb[0].mxu0 %v487
  %v628 = vpop.f32.mrb[0].mxu0
  %v629 = vadd.f32 %v512, %v628
  %v630 = vpop.f32.mrb[0].mxu0
  %v631 = vpop.f32.mrb[0].mxu0
  %v632 = vadd.f32 %v512, %v631
  %v633 = vpop.f32.mrb[0].mxu0
  %634 = vmatprep.mubr.bf16.mxu0 0
  %635 = vmatmul.mubr.bf16.gmra.mrb[0].mxu0 %v488
  %v636 = vpop.f32.mrb[0].mxu0
  %v637 = vadd.f32 %v512, %v636
  %v638 = vpop.f32.mrb[0].mxu0
  %v639 = vpop.f32.mrb[0].mxu0
  %v640 = vadd.f32 %v512, %v639
  %v641 = vpop.f32.mrb[0].mxu0
  %642 = vmatprep.mubr.bf16.mxu0 0
  %643 = vmatmul.mubr.bf16.gmra.mrb[0].mxu0 %v489
  %v644 = vpop.f32.mrb[0].mxu0
  %v645 = vadd.f32 %v512, %v644
  %v646 = vpop.f32.mrb[0].mxu0
  %v647 = vpop.f32.mrb[0].mxu0
  %v648 = vadd.f32 %v512, %v647
  %v649 = vpop.f32.mrb[0].mxu0
  %650 = vmatprep.mubr.bf16.mxu0 0
  %651 = vmatmul.mubr.bf16.gmra.mrb[0].mxu0 %v490
  %v652 = vpop.f32.mrb[0].mxu0
  %v653 = vadd.f32 %v512, %v652
  %v654 = vpop.f32.mrb[0].mxu0
  %v655 = vpop.f32.mrb[0].mxu0
  %v656 = vadd.f32 %v512, %v655
  %v657 = vpop.f32.mrb[0].mxu0
  %658 = vdwg.mxu0
  %v659 = vmax.f32 %v597, 0.0
  %v660 = vmax.f32 %v600, 0.0
  %v661 = vmax.f32 %v605, 0.0
  %v662 = vmax.f32 %v608, 0.0
  %v663 = vmax.f32 %v613, 0.0
  %v664 = vmax.f32 %v616, 0.0
  %v665 = vmax.f32 %v621, 0.0
  %v666 = vmax.f32 %v624, 0.0
  %v667 = vmax.f32 %v629, 0.0
  %v668 = vmax.f32 %v632, 0.0
  %v669 = vmax.f32 %v637, 0.0
  %v670 = vmax.f32 %v640, 0.0
  %v671 = vmax.f32 %v645, 0.0
  %v672 = vmax.f32 %v648, 0.0
  %v673 = vmax.f32 %v653, 0.0
  %v674 = vmax.f32 %v656, 0.0
  %v675 = vpack.c.bf16 %v660, %v659
  %v676 = vpack.c.bf16 %v662, %v661
  %v677 = vpack.c.bf16 %v664, %v663
  %v678 = vpack.c.bf16 %v666, %v665
  %v679 = vpack.c.bf16 %v668, %v667
  %v680 = vpack.c.bf16 %v670, %v669
  %v681 = vpack.c.bf16 %v672, %v671
  %v682 = vpack.c.bf16 %v674, %v673
  %v683 = vld [vmem:[%s8] sm:$0xff]
  %v684 = vld [vmem:[%s8 + $0x8] sm:$0xff]
  %v685 = vld [vmem:[%s8 + $0x10] sm:$0xff]
  %v686 = vld [vmem:[%s8 + $0x18] sm:$0xff]
  %v687 = vld [vmem:[%s8 + $0x20] sm:$0xff]
  %v688 = vld [vmem:[%s8 + $0x28] sm:$0xff]
  %v689 = vld [vmem:[%s8 + $0x30] sm:$0xff]
  %v690 = vld [vmem:[%s8 + $0x38] sm:$0xff]
  %v691 = vld [vmem:[%s8 + $0x40] sm:$0xff]
  %v692 = vld [vmem:[%s8 + $0x48] sm:$0xff]
  %v693 = vld [vmem:[%s8 + $0x50] sm:$0xff]
  %v694 = vld [vmem:[%s8 + $0x58] sm:$0xff]
  %v695 = vld [vmem:[%s8 + $0x60] sm:$0xff]
  %v696 = vld [vmem:[%s8 + $0x68] sm:$0xff]
  %v697 = vld [vmem:[%s8 + $0x70] sm:$0xff]
  %v698 = vld [vmem:[%s8 + $0x78] sm:$0xff]
  %v699 = vld [vmem:[%s9] sm:$0x3]
  %v701 = vlaneseq
  %v702 = vshrl.u32 %v701, 7
  %v703 = vsub.s32 0, %v702
  %v704 = vrot.slane %v699, %v703
  %v705 = vlaneseq
  %v706 = vshrl.u32 %v705, 7
  %v707 = vsub.s32 1, %v706
  %v708 = vrot.slane %v699, %v707
  %v727 = vunpack.c.l.b16 %v683
  %v728 = vunpack.c.h.b16 %v683
  %v729 = vunpack.c.l.b16 %v684
  %v730 = vunpack.c.h.b16 %v684
  %v731 = vunpack.c.l.b16 %v685
  %v732 = vunpack.c.h.b16 %v685
  %v733 = vunpack.c.l.b16 %v686
  %v734 = vunpack.c.h.b16 %v686
  %v735 = vunpack.c.l.b16 %v687
  %v736 = vunpack.c.h.b16 %v687
  %v737 = vunpack.c.l.b16 %v688
  %v738 = vunpack.c.h.b16 %v688
  %v739 = vunpack.c.l.b16 %v689
  %v740 = vunpack.c.h.b16 %v689
  %v741 = vunpack.c.l.b16 %v690
  %v742 = vunpack.c.h.b16 %v690
  %v743 = vunpack.c.l.b16 %v691
  %v744 = vunpack.c.h.b16 %v691
  %v745 = vunpack.c.l.b16 %v692
  %v746 = vunpack.c.h.b16 %v692
  %v747 = vunpack.c.l.b16 %v693
  %v748 = vunpack.c.h.b16 %v693
  %v749 = vunpack.c.l.b16 %v694
  %v750 = vunpack.c.h.b16 %v694
  %v751 = vunpack.c.l.b16 %v695
  %v752 = vunpack.c.h.b16 %v695
  %v753 = vunpack.c.l.b16 %v696
  %v754 = vunpack.c.h.b16 %v696
  %v755 = vunpack.c.l.b16 %v697
  %v756 = vunpack.c.h.b16 %v697
  %v757 = vunpack.c.l.b16 %v698
  %v758 = vunpack.c.h.b16 %v698
  %v759 = vpack.c.b16 %v729, %v727
  %v760 = vpack.c.b16 %v730, %v728
  %v761 = vpack.c.b16 %v733, %v731
  %v762 = vpack.c.b16 %v734, %v732
  %v763 = vpack.c.b16 %v737, %v735
  %v764 = vpack.c.b16 %v738, %v736
  %v765 = vpack.c.b16 %v741, %v739
  %v766 = vpack.c.b16 %v742, %v740
  %v767 = vpack.c.b16 %v745, %v743
  %v768 = vpack.c.b16 %v746, %v744
  %v769 = vpack.c.b16 %v749, %v747
  %v770 = vpack.c.b16 %v750, %v748
  %v771 = vpack.c.b16 %v753, %v751
  %v772 = vpack.c.b16 %v754, %v752
  %v773 = vpack.c.b16 %v757, %v755
  %v774 = vpack.c.b16 %v758, %v756
  %791 = vmatprep.subr.bf16.mxu0 %v760
  %792 = vmatpush1.bf16.msra.mxu0 %v759
  %793 = vmatprep.subr.bf16.mxu0 %v762
  %794 = vmatpush1.bf16.msra.mxu0 %v761
  %795 = vmatprep.subr.bf16.mxu0 %v764
  %796 = vmatpush1.bf16.msra.mxu0 %v763
  %797 = vmatprep.subr.bf16.mxu0 %v766
  %798 = vmatpush1.bf16.msra.mxu0 %v765
  %799 = vmatprep.subr.bf16.mxu0 %v768
  %800 = vmatpush1.bf16.msra.mxu0 %v767
  %801 = vmatprep.subr.bf16.mxu0 %v770
  %802 = vmatpush1.bf16.msra.mxu0 %v769
  %803 = vmatprep.subr.bf16.mxu0 %v772
  %804 = vmatpush1.bf16.msra.mxu0 %v771
  %805 = vmatprep.subr.bf16.mxu0 %v774
  %806 = vmatpush1.bf16.msra.mxu0 %v773
  %807 = vmatprep.subr.bf16.mxu0 0
  %808 = vmatpush1.bf16.msra.mxu0 0
  %809 = vmatprep.subr.bf16.mxu0 0
  %810 = vmatpush1.bf16.msra.mxu0 0
  %811 = vmatprep.subr.bf16.mxu0 0
  %812 = vmatpush1.bf16.msra.mxu0 0
  %813 = vmatprep.subr.bf16.mxu0 0
  %814 = vmatpush1.bf16.msra.mxu0 0
  %815 = vmatprep.subr.bf16.mxu0 0
  %816 = vmatpush1.bf16.msra.mxu0 0
  %817 = vmatprep.subr.bf16.mxu0 0
  %818 = vmatpush1.bf16.msra.mxu0 0
  %819 = vmatprep.subr.bf16.mxu0 0
  %820 = vmatpush1.bf16.msra.mxu0 0
  %821 = vmatprep.subr.bf16.mxu0 0
  %822 = vmatpush1.bf16.msra.mxu0 0
  %823 = vmatprep.mubr.bf16.mxu0 0
  %824 = vmatmul.mubr.bf16.gmra.mrb[0].mxu0 %v675
  %v825 = vpop.f32.mrb[0].mxu0
  %v826 = vadd.f32 %v704, %v825
  %v827 = vpop.f32.mrb[0].mxu0
  %v828 = vadd.f32 %v708, %v827
  %v829 = vpop.f32.mrb[0].mxu0
  %v830 = vadd.f32 %v704, %v829
  %v831 = vpop.f32.mrb[0].mxu0
  %v832 = vadd.f32 %v708, %v831
  %833 = vmatprep.mubr.bf16.mxu0 0
  %834 = vmatmul.mubr.bf16.gmra.mrb[0].mxu0 %v676
  %v835 = vpop.f32.mrb[0].mxu0
  %v836 = vadd.f32 %v704, %v835
  %v837 = vpop.f32.mrb[0].mxu0
  %v838 = vadd.f32 %v708, %v837
  %v839 = vpop.f32.mrb[0].mxu0
  %v840 = vadd.f32 %v704, %v839
  %v841 = vpop.f32.mrb[0].mxu0
  %v842 = vadd.f32 %v708, %v841
  %843 = vmatprep.mubr.bf16.mxu0 0
  %844 = vmatmul.mubr.bf16.gmra.mrb[0].mxu0 %v677
  %v845 = vpop.f32.mrb[0].mxu0
  %v846 = vadd.f32 %v704, %v845
  %v847 = vpop.f32.mrb[0].mxu0
  %v848 = vadd.f32 %v708, %v847
  %v849 = vpop.f32.mrb[0].mxu0
  %v850 = vadd.f32 %v704, %v849
  %v851 = vpop.f32.mrb[0].mxu0
  %v852 = vadd.f32 %v708, %v851
  %853 = vmatprep.mubr.bf16.mxu0 0
  %854 = vmatmul.mubr.bf16.gmra.mrb[0].mxu0 %v678
  %v855 = vpop.f32.mrb[0].mxu0
  %v856 = vadd.f32 %v704, %v855
  %v857 = vpop.f32.mrb[0].mxu0
  %v858 = vadd.f32 %v708, %v857
  %v859 = vpop.f32.mrb[0].mxu0
  %v860 = vadd.f32 %v704, %v859
  %v861 = vpop.f32.mrb[0].mxu0
  %v862 = vadd.f32 %v708, %v861
  %863 = vmatprep.mubr.bf16.mxu0 0
  %864 = vmatmul.mubr.bf16.gmra.mrb[0].mxu0 %v679
  %v865 = vpop.f32.mrb[0].mxu0
  %v866 = vadd.f32 %v704, %v865
  %v867 = vpop.f32.mrb[0].mxu0
  %v868 = vadd.f32 %v708, %v867
  %v869 = vpop.f32.mrb[0].mxu0
  %v870 = vadd.f32 %v704, %v869
  %v871 = vpop.f32.mrb[0].mxu0
  %v872 = vadd.f32 %v708, %v871
  %873 = vmatprep.mubr.bf16.mxu0 0
  %874 = vmatmul.mubr.bf16.gmra.mrb[0].mxu0 %v680
  %v875 = vpop.f32.mrb[0].mxu0
  %v876 = vadd.f32 %v704, %v875
  %v877 = vpop.f32.mrb[0].mxu0
  %v878 = vadd.f32 %v708, %v877
  %v879 = vpop.f32.mrb[0].mxu0
  %v880 = vadd.f32 %v704, %v879
  %v881 = vpop.f32.mrb[0].mxu0
  %v882 = vadd.f32 %v708, %v881
  %883 = vmatprep.mubr.bf16.mxu0 0
  %884 = vmatmul.mubr.bf16.gmra.mrb[0].mxu0 %v681
  %v885 = vpop.f32.mrb[0].mxu0
  %v886 = vadd.f32 %v704, %v885
  %v887 = vpop.f32.mrb[0].mxu0
  %v888 = vadd.f32 %v708, %v887
  %v889 = vpop.f32.mrb[0].mxu0
  %v890 = vadd.f32 %v704, %v889
  %v891 = vpop.f32.mrb[0].mxu0
  %v892 = vadd.f32 %v708, %v891
  %893 = vmatprep.mubr.bf16.mxu0 0
  %894 = vmatmul.mubr.bf16.gmra.mrb[0].mxu0 %v682
  %v895 = vpop.f32.mrb[0].mxu0
  %v896 = vadd.f32 %v704, %v895
  %v897 = vpop.f32.mrb[0].mxu0
  %v898 = vadd.f32 %v708, %v897
  %v899 = vpop.f32.mrb[0].mxu0
  %v900 = vadd.f32 %v704, %v899
  %v901 = vpop.f32.mrb[0].mxu0
  %v902 = vadd.f32 %v708, %v901
  %903 = vdwg.mxu0
  %v904 = vlaneseq
  %v905 = vand.u32 %v904, 127
  %v906 = vld [vmem:[%s2] sm:$0xff]
  %907 = vset.pattern.permute.xlu0 0
  %908 = vperm.xlu0 %907, %v906
  %v909 = vpop.permute.xlu0 %908
  %vm910 = vcmp.lt.s32.totalorder %v905, %v909
  %v911 = vsel %vm910, 0.0, -1e+30
  %v912 = vlaneseq
  %v913 = vshrl.u32 %v912, 7
  %v914 = vsub.s32 0, %v913
  %v915 = vrot.slane %v911, %v914
  %917 = vbcast.lane.b32.xlu0 %v915, 256
  %v918 = vpop.permute.xlu0 %917
  %s920 = sor.u32 256, 8
  %921 = vbcast.lane.b32.xlu0 %v915, %s920
  %v922 = vpop.permute.xlu0 %921
  %v923 = vlaneseq
  %v924 = vshrl.u32 %v923, 7
  %v925 = vsub.s32 1, %v924
  %v926 = vrot.slane %v911, %v925
  %928 = vbcast.lane.b32.xlu0 %v926, 256
  %v929 = vpop.permute.xlu0 %928
  %s931 = sor.u32 256, 8
  %932 = vbcast.lane.b32.xlu0 %v926, %s931
  %v933 = vpop.permute.xlu0 %932
  %v934 = vlaneseq
  %v935 = vshrl.u32 %v934, 7
  %v936 = vsub.s32 2, %v935
  %v937 = vrot.slane %v911, %v936
  %939 = vbcast.lane.b32.xlu0 %v937, 256
  %v940 = vpop.permute.xlu0 %939
  %s942 = sor.u32 256, 8
  %943 = vbcast.lane.b32.xlu0 %v937, %s942
  %v944 = vpop.permute.xlu0 %943
  %v945 = vlaneseq
  %v946 = vshrl.u32 %v945, 7
  %v947 = vsub.s32 3, %v946
  %v948 = vrot.slane %v911, %v947
  %950 = vbcast.lane.b32.xlu0 %v948, 256
  %v951 = vpop.permute.xlu0 %950
  %s953 = sor.u32 256, 8
  %954 = vbcast.lane.b32.xlu0 %v948, %s953
  %v955 = vpop.permute.xlu0 %954
  %v956 = vlaneseq
  %v957 = vshrl.u32 %v956, 7
  %v958 = vsub.s32 4, %v957
  %v959 = vrot.slane %v911, %v958
  %961 = vbcast.lane.b32.xlu0 %v959, 256
  %v962 = vpop.permute.xlu0 %961
  %s964 = sor.u32 256, 8
  %965 = vbcast.lane.b32.xlu0 %v959, %s964
  %v966 = vpop.permute.xlu0 %965
  %v967 = vlaneseq
  %v968 = vshrl.u32 %v967, 7
  %v969 = vsub.s32 5, %v968
  %v970 = vrot.slane %v911, %v969
  %972 = vbcast.lane.b32.xlu0 %v970, 256
  %v973 = vpop.permute.xlu0 %972
  %s975 = sor.u32 256, 8
  %976 = vbcast.lane.b32.xlu0 %v970, %s975
  %v977 = vpop.permute.xlu0 %976
  %v978 = vlaneseq
  %v979 = vshrl.u32 %v978, 7
  %v980 = vsub.s32 6, %v979
  %v981 = vrot.slane %v911, %v980
  %983 = vbcast.lane.b32.xlu0 %v981, 256
  %v984 = vpop.permute.xlu0 %983
  %s986 = sor.u32 256, 8
  %987 = vbcast.lane.b32.xlu0 %v981, %s986
  %v988 = vpop.permute.xlu0 %987
  %v989 = vlaneseq
  %v990 = vshrl.u32 %v989, 7
  %v991 = vsub.s32 7, %v990
  %v992 = vrot.slane %v911, %v991
  %994 = vbcast.lane.b32.xlu0 %v992, 256
  %v995 = vpop.permute.xlu0 %994
  %s997 = sor.u32 256, 8
  %998 = vbcast.lane.b32.xlu0 %v992, %s997
  %v999 = vpop.permute.xlu0 %998
  %v1000 = vadd.f32 %v826, %v918
  %v1001 = vadd.f32 %v828, %v918
  %v1002 = vadd.f32 %v830, %v922
  %v1003 = vadd.f32 %v832, %v922
  %v1004 = vadd.f32 %v836, %v929
  %v1005 = vadd.f32 %v838, %v929
  %v1006 = vadd.f32 %v840, %v933
  %v1007 = vadd.f32 %v842, %v933
  %v1008 = vadd.f32 %v846, %v940
  %v1009 = vadd.f32 %v848, %v940
  %v1010 = vadd.f32 %v850, %v944
  %v1011 = vadd.f32 %v852, %v944
  %v1012 = vadd.f32 %v856, %v951
  %v1013 = vadd.f32 %v858, %v951
  %v1014 = vadd.f32 %v860, %v955
  %v1015 = vadd.f32 %v862, %v955
  %v1016 = vadd.f32 %v866, %v962
  %v1017 = vadd.f32 %v868, %v962
  %v1018 = vadd.f32 %v870, %v966
  %v1019 = vadd.f32 %v872, %v966
  %v1020 = vadd.f32 %v876, %v973
  %v1021 = vadd.f32 %v878, %v973
  %v1022 = vadd.f32 %v880, %v977
  %v1023 = vadd.f32 %v882, %v977
  %v1024 = vadd.f32 %v886, %v984
  %v1025 = vadd.f32 %v888, %v984
  %v1026 = vadd.f32 %v890, %v988
  %v1027 = vadd.f32 %v892, %v988
  %v1028 = vadd.f32 %v896, %v995
  %v1029 = vadd.f32 %v898, %v995
  %v1030 = vadd.f32 %v900, %v999
  %v1031 = vadd.f32 %v902, %v999
  %v1032 = vmax.f32 %v1000, %v1002
  %v1033 = vrot.slane %v1032, 4
  %v1034 = vmax.f32 %v1032, %v1033
  %v1035 = vrot.slane %v1034, 2
  %v1036 = vmax.f32 %v1034, %v1035
  %v1037 = vrot.slane %v1036, 1
  %v1038 = vmax.f32 %v1036, %v1037
  %v1039 = vmax.f32 %v1001, %v1003
  %v1040 = vrot.slane %v1039, 4
  %v1041 = vmax.f32 %v1039, %v1040
  %v1042 = vrot.slane %v1041, 2
  %v1043 = vmax.f32 %v1041, %v1042
  %v1044 = vrot.slane %v1043, 1
  %v1045 = vmax.f32 %v1043, %v1044
  %v1046 = vmax.f32 %v1004, %v1006
  %v1047 = vrot.slane %v1046, 4
  %v1048 = vmax.f32 %v1046, %v1047
  %v1049 = vrot.slane %v1048, 2
  %v1050 = vmax.f32 %v1048, %v1049
  %v1051 = vrot.slane %v1050, 1
  %v1052 = vmax.f32 %v1050, %v1051
  %v1053 = vmax.f32 %v1005, %v1007
  %v1054 = vrot.slane %v1053, 4
  %v1055 = vmax.f32 %v1053, %v1054
  %v1056 = vrot.slane %v1055, 2
  %v1057 = vmax.f32 %v1055, %v1056
  %v1058 = vrot.slane %v1057, 1
  %v1059 = vmax.f32 %v1057, %v1058
  %v1060 = vmax.f32 %v1008, %v1010
  %v1061 = vrot.slane %v1060, 4
  %v1062 = vmax.f32 %v1060, %v1061
  %v1063 = vrot.slane %v1062, 2
  %v1064 = vmax.f32 %v1062, %v1063
  %v1065 = vrot.slane %v1064, 1
  %v1066 = vmax.f32 %v1064, %v1065
  %v1067 = vmax.f32 %v1009, %v1011
  %v1068 = vrot.slane %v1067, 4
  %v1069 = vmax.f32 %v1067, %v1068
  %v1070 = vrot.slane %v1069, 2
  %v1071 = vmax.f32 %v1069, %v1070
  %v1072 = vrot.slane %v1071, 1
  %v1073 = vmax.f32 %v1071, %v1072
  %v1074 = vmax.f32 %v1012, %v1014
  %v1075 = vrot.slane %v1074, 4
  %v1076 = vmax.f32 %v1074, %v1075
  %v1077 = vrot.slane %v1076, 2
  %v1078 = vmax.f32 %v1076, %v1077
  %v1079 = vrot.slane %v1078, 1
  %v1080 = vmax.f32 %v1078, %v1079
  %v1081 = vmax.f32 %v1013, %v1015
  %v1082 = vrot.slane %v1081, 4
  %v1083 = vmax.f32 %v1081, %v1082
  %v1084 = vrot.slane %v1083, 2
  %v1085 = vmax.f32 %v1083, %v1084
  %v1086 = vrot.slane %v1085, 1
  %v1087 = vmax.f32 %v1085, %v1086
  %v1088 = vmax.f32 %v1016, %v1018
  %v1089 = vrot.slane %v1088, 4
  %v1090 = vmax.f32 %v1088, %v1089
  %v1091 = vrot.slane %v1090, 2
  %v1092 = vmax.f32 %v1090, %v1091
  %v1093 = vrot.slane %v1092, 1
  %v1094 = vmax.f32 %v1092, %v1093
  %v1095 = vmax.f32 %v1017, %v1019
  %v1096 = vrot.slane %v1095, 4
  %v1097 = vmax.f32 %v1095, %v1096
  %v1098 = vrot.slane %v1097, 2
  %v1099 = vmax.f32 %v1097, %v1098
  %v1100 = vrot.slane %v1099, 1
  %v1101 = vmax.f32 %v1099, %v1100
  %v1102 = vmax.f32 %v1020, %v1022
  %v1103 = vrot.slane %v1102, 4
  %v1104 = vmax.f32 %v1102, %v1103
  %v1105 = vrot.slane %v1104, 2
  %v1106 = vmax.f32 %v1104, %v1105
  %v1107 = vrot.slane %v1106, 1
  %v1108 = vmax.f32 %v1106, %v1107
  %v1109 = vmax.f32 %v1021, %v1023
  %v1110 = vrot.slane %v1109, 4
  %v1111 = vmax.f32 %v1109, %v1110
  %v1112 = vrot.slane %v1111, 2
  %v1113 = vmax.f32 %v1111, %v1112
  %v1114 = vrot.slane %v1113, 1
  %v1115 = vmax.f32 %v1113, %v1114
  %v1116 = vmax.f32 %v1024, %v1026
  %v1117 = vrot.slane %v1116, 4
  %v1118 = vmax.f32 %v1116, %v1117
  %v1119 = vrot.slane %v1118, 2
  %v1120 = vmax.f32 %v1118, %v1119
  %v1121 = vrot.slane %v1120, 1
  %v1122 = vmax.f32 %v1120, %v1121
  %v1123 = vmax.f32 %v1025, %v1027
  %v1124 = vrot.slane %v1123, 4
  %v1125 = vmax.f32 %v1123, %v1124
  %v1126 = vrot.slane %v1125, 2
  %v1127 = vmax.f32 %v1125, %v1126
  %v1128 = vrot.slane %v1127, 1
  %v1129 = vmax.f32 %v1127, %v1128
  %v1130 = vmax.f32 %v1028, %v1030
  %v1131 = vrot.slane %v1130, 4
  %v1132 = vmax.f32 %v1130, %v1131
  %v1133 = vrot.slane %v1132, 2
  %v1134 = vmax.f32 %v1132, %v1133
  %v1135 = vrot.slane %v1134, 1
  %v1136 = vmax.f32 %v1134, %v1135
  %v1137 = vmax.f32 %v1029, %v1031
  %v1138 = vrot.slane %v1137, 4
  %v1139 = vmax.f32 %v1137, %v1138
  %v1140 = vrot.slane %v1139, 2
  %v1141 = vmax.f32 %v1139, %v1140
  %v1142 = vrot.slane %v1141, 1
  %v1143 = vmax.f32 %v1141, %v1142
  %vm1160 = vcmask 1041409
  %v1161 = vsel %vm1160, %v1052, %v1038
  %vm1162 = vcmask 1042434
  %v1163 = vsel %vm1162, %v1066, %v1161
  %vm1164 = vcmask 1043459
  %v1165 = vsel %vm1164, %v1080, %v1163
  %vm1166 = vcmask 1044484
  %v1167 = vsel %vm1166, %v1094, %v1165
  %vm1168 = vcmask 1045509
  %v1169 = vsel %vm1168, %v1108, %v1167
  %vm1170 = vcmask 1046534
  %v1171 = vsel %vm1170, %v1122, %v1169
  %vm1172 = vcmask 1047559
  %v1173 = vsel %vm1172, %v1136, %v1171
  %v1174 = vsel %vm1160, %v1059, %v1045
  %v1175 = vsel %vm1162, %v1073, %v1174
  %v1176 = vsel %vm1164, %v1087, %v1175
  %v1177 = vsel %vm1166, %v1101, %v1176
  %v1178 = vsel %vm1168, %v1115, %v1177
  %v1179 = vsel %vm1170, %v1129, %v1178
  %v1180 = vsel %vm1172, %v1143, %v1179
  %1183 = vst [vmem:[%s10] sm:$0xff] %v1173
  %1184 = vst [vmem:[%s10 + $0x8] sm:$0xff] %v1180
  // Predicated region
  $region42: #{pointnet2_cls_forward.4} parent=0 // pred_check
    _
  $region43: #{pointnet2_cls_forward.4} parent=0 // pred_check_branch
    %1186 = sbr.rel (0) target = $region45
  $region44: #{pointnet2_cls_forward.4} parent=0 // pred_region
    _
  $region45: #{pointnet2_cls_forward.4} parent=0 // pred_fallthru
    _
  // Predicated region
  $region46: #{pointnet2_cls_forward.4} parent=0 // pred_check
    _
  $region47: #{pointnet2_cls_forward.4} parent=0 // pred_check_branch
    %1188 = sbr.rel (0) target = $region49
  $region48: #{pointnet2_cls_forward.4} parent=0 // pred_region
    _
  $region49: #{pointnet2_cls_forward.4} parent=0 // pred_fallthru
    _

// kernel: pointnet2_cls_forward.5
$region0: #{pointnet2_cls_forward.5}
  #allocation0 [shape = 'u32[]', space=smem, size = 0x4, offset = 0x4, fixed_abs, tag = 'smem constant byte address 0x4 - core index']
  #allocation1 [shape = 'u32[144,128]{1,0:T(1,128)}', space=vmem, size = 0x12000, scoped, tag = 'internal scratch']
  #allocation2 [shape = 'f32[8,1024]{1,0:T(8,128)}', space=vmem, size = 0x8000, scoped, tag = 'scratch operand']
  %s0 = inlined_call_operand.vmem [shape: bf16[8,8,256], index: 0, kind: input, shape index: {}]
  %s1 = inlined_call_operand.vmem [shape: bf16[8,8,8], index: 1, kind: input, shape index: {}]
  %s2 = inlined_call_operand.vmem [shape: bf16[256,256], index: 2, kind: input, shape index: {}]
  %s3 = inlined_call_operand.vmem [shape: bf16[8,256], index: 3, kind: input, shape index: {}]
  %s4 = inlined_call_operand.vmem [shape: f32[1,256], index: 4, kind: input, shape index: {}]
  %s5 = inlined_call_operand.vmem [shape: bf16[256,512], index: 5, kind: input, shape index: {}]
  %s6 = inlined_call_operand.vmem [shape: f32[1,512], index: 6, kind: input, shape index: {}]
  %s7 = inlined_call_operand.vmem [shape: bf16[512,1024], index: 7, kind: input, shape index: {}]
  %s8 = inlined_call_operand.vmem [shape: f32[1,1024], index: 8, kind: input, shape index: {}]
  %s9 = inlined_call_operand.vmem [shape: bf16[1024,512], index: 9, kind: input, shape index: {}]
  %s10 = inlined_call_operand.vmem [shape: f32[1,512], index: 10, kind: input, shape index: {}]
  %s11 = inlined_call_operand.vmem [shape: bf16[512,256], index: 11, kind: input, shape index: {}]
  %s12 = inlined_call_operand.vmem [shape: f32[1,256], index: 12, kind: input, shape index: {}]
  %s13 = inlined_call_operand.vmem [shape: bf16[256,128], index: 13, kind: input, shape index: {}]
  %s14 = inlined_call_operand.vmem [shape: f32[1,128], index: 14, kind: input, shape index: {}]
  %s15 = inlined_call_operand.vmem [shape: f32[8,128], index: 15, kind: output, shape index: {}]
  %s16 = sld [smem:[#allocation0]]
  $region78: #{pointnet2_cls_forward.5} parent=0
    _
  %s18 = ssub.s32 1, %s16
  %s19 = scalar_select 0, %s18, %s16
  // Predicated region
  $region2: #{pointnet2_cls_forward.5} parent=0 // pred_check
    _
  $region3: #{pointnet2_cls_forward.5} parent=0 // pred_check_branch
    %21 = sbr.rel (0) target = $region5
  $region4: #{pointnet2_cls_forward.5} parent=0 // pred_region
    _
  $region5: #{pointnet2_cls_forward.5} parent=0 // pred_fallthru
    _
  // Predicated region
  $region6: #{pointnet2_cls_forward.5} parent=0 // pred_check
    _
  $region7: #{pointnet2_cls_forward.5} parent=0 // pred_check_branch
    %23 = sbr.rel (0) target = $region9
  $region8: #{pointnet2_cls_forward.5} parent=0 // pred_region
    _
  $region9: #{pointnet2_cls_forward.5} parent=0 // pred_fallthru
    _
  // Predicated region
  $region10: #{pointnet2_cls_forward.5} parent=0 // pred_check
    _
  $region11: #{pointnet2_cls_forward.5} parent=0 // pred_check_branch
    %25 = sbr.rel (0) target = $region13
  $region12: #{pointnet2_cls_forward.5} parent=0 // pred_region
    _
  $region13: #{pointnet2_cls_forward.5} parent=0 // pred_fallthru
    _
  // Predicated region
  $region14: #{pointnet2_cls_forward.5} parent=0 // pred_check
    _
  $region15: #{pointnet2_cls_forward.5} parent=0 // pred_check_branch
    %27 = sbr.rel (0) target = $region17
  $region16: #{pointnet2_cls_forward.5} parent=0 // pred_region
    _
  $region17: #{pointnet2_cls_forward.5} parent=0 // pred_fallthru
    _
  // Predicated region
  $region18: #{pointnet2_cls_forward.5} parent=0 // pred_check
    _
  $region19: #{pointnet2_cls_forward.5} parent=0 // pred_check_branch
    %29 = sbr.rel (0) target = $region21
  $region20: #{pointnet2_cls_forward.5} parent=0 // pred_region
    _
  $region21: #{pointnet2_cls_forward.5} parent=0 // pred_fallthru
    _
  // Predicated region
  $region22: #{pointnet2_cls_forward.5} parent=0 // pred_check
    _
  $region23: #{pointnet2_cls_forward.5} parent=0 // pred_check_branch
    %31 = sbr.rel (0) target = $region25
  $region24: #{pointnet2_cls_forward.5} parent=0 // pred_region
    _
  $region25: #{pointnet2_cls_forward.5} parent=0 // pred_fallthru
    _
  // Predicated region
  $region26: #{pointnet2_cls_forward.5} parent=0 // pred_check
    _
  $region27: #{pointnet2_cls_forward.5} parent=0 // pred_check_branch
    %33 = sbr.rel (0) target = $region29
  $region28: #{pointnet2_cls_forward.5} parent=0 // pred_region
    _
  $region29: #{pointnet2_cls_forward.5} parent=0 // pred_fallthru
    _
  // Predicated region
  $region30: #{pointnet2_cls_forward.5} parent=0 // pred_check
    _
  $region31: #{pointnet2_cls_forward.5} parent=0 // pred_check_branch
    %35 = sbr.rel (0) target = $region33
  $region32: #{pointnet2_cls_forward.5} parent=0 // pred_region
    _
  $region33: #{pointnet2_cls_forward.5} parent=0 // pred_fallthru
    _
  // Predicated region
  $region34: #{pointnet2_cls_forward.5} parent=0 // pred_check
    _
  $region35: #{pointnet2_cls_forward.5} parent=0 // pred_check_branch
    %37 = sbr.rel (0) target = $region37
  $region36: #{pointnet2_cls_forward.5} parent=0 // pred_region
    _
  $region37: #{pointnet2_cls_forward.5} parent=0 // pred_fallthru
    _
  // Predicated region
  $region38: #{pointnet2_cls_forward.5} parent=0 // pred_check
    _
  $region39: #{pointnet2_cls_forward.5} parent=0 // pred_check_branch
    %39 = sbr.rel (0) target = $region41
  $region40: #{pointnet2_cls_forward.5} parent=0 // pred_region
    _
  $region41: #{pointnet2_cls_forward.5} parent=0 // pred_fallthru
    _
  // Predicated region
  $region42: #{pointnet2_cls_forward.5} parent=0 // pred_check
    _
  $region43: #{pointnet2_cls_forward.5} parent=0 // pred_check_branch
    %41 = sbr.rel (0) target = $region45
  $region44: #{pointnet2_cls_forward.5} parent=0 // pred_region
    _
  $region45: #{pointnet2_cls_forward.5} parent=0 // pred_fallthru
    _
  // Predicated region
  $region46: #{pointnet2_cls_forward.5} parent=0 // pred_check
    _
  $region47: #{pointnet2_cls_forward.5} parent=0 // pred_check_branch
    %43 = sbr.rel (0) target = $region49
  $region48: #{pointnet2_cls_forward.5} parent=0 // pred_region
    _
  $region49: #{pointnet2_cls_forward.5} parent=0 // pred_fallthru
    _
  // Predicated region
  $region50: #{pointnet2_cls_forward.5} parent=0 // pred_check
    _
  $region51: #{pointnet2_cls_forward.5} parent=0 // pred_check_branch
    %45 = sbr.rel (0) target = $region53
  $region52: #{pointnet2_cls_forward.5} parent=0 // pred_region
    _
  $region53: #{pointnet2_cls_forward.5} parent=0 // pred_fallthru
    _
  // Predicated region
  $region54: #{pointnet2_cls_forward.5} parent=0 // pred_check
    _
  $region55: #{pointnet2_cls_forward.5} parent=0 // pred_check_branch
    %47 = sbr.rel (0) target = $region57
  $region56: #{pointnet2_cls_forward.5} parent=0 // pred_region
    _
  $region57: #{pointnet2_cls_forward.5} parent=0 // pred_fallthru
    _
  // Predicated region
  $region58: #{pointnet2_cls_forward.5} parent=0 // pred_check
    _
  $region59: #{pointnet2_cls_forward.5} parent=0 // pred_check_branch
    %49 = sbr.rel (0) target = $region61
  $region60: #{pointnet2_cls_forward.5} parent=0 // pred_region
    _
  $region61: #{pointnet2_cls_forward.5} parent=0 // pred_fallthru
    _
  %p51 = scmp.eq.s32.totalorder 0, 0
  // Predicated region
  $region62: #{pointnet2_cls_forward.5} parent=0 // pred_check
    %p52 = pneg %p51
  $region63: #{pointnet2_cls_forward.5} parent=0 // pred_check_branch
    %54 = sbr.rel (%p52) target = $region65
  $region64: #{pointnet2_cls_forward.5} parent=0 // pred_region
    %55 = vst [vmem:[#allocation2] sm:$0xff] -1e+30
    %56 = vst [vmem:[#allocation2 + $0x8] sm:$0xff] -1e+30
    %57 = vst [vmem:[#allocation2 + $0x10] sm:$0xff] -1e+30
    %58 = vst [vmem:[#allocation2 + $0x18] sm:$0xff] -1e+30
    %59 = vst [vmem:[#allocation2 + $0x20] sm:$0xff] -1e+30
    %60 = vst [vmem:[#allocation2 + $0x28] sm:$0xff] -1e+30
    %61 = vst [vmem:[#allocation2 + $0x30] sm:$0xff] -1e+30
    %62 = vst [vmem:[#allocation2 + $0x38] sm:$0xff] -1e+30
  $region65: #{pointnet2_cls_forward.5} parent=0 // pred_fallthru
    _
  %v63 = vld [vmem:[%s0] sm:$0xff]
  %v64 = vld [vmem:[%s0 + $0x8] sm:$0xff]
  %v65 = vld [vmem:[%s0 + $0x10] sm:$0xff]
  %v66 = vld [vmem:[%s0 + $0x18] sm:$0xff]
  %v67 = vld [vmem:[%s0 + $0x20] sm:$0xff]
  %v68 = vld [vmem:[%s0 + $0x28] sm:$0xff]
  %v69 = vld [vmem:[%s0 + $0x30] sm:$0xff]
  %v70 = vld [vmem:[%s0 + $0x38] sm:$0xff]
  %v71 = vld [vmem:[%s1] sm:$0xf]
  %v72 = vld [vmem:[%s1 + $0x4] sm:$0xf]
  %v73 = vld [vmem:[%s1 + $0x8] sm:$0xf]
  %v74 = vld [vmem:[%s1 + $0xc] sm:$0xf]
  %v75 = vld [vmem:[%s1 + $0x10] sm:$0xf]
  %v76 = vld [vmem:[%s1 + $0x14] sm:$0xf]
  %v77 = vld [vmem:[%s1 + $0x18] sm:$0xf]
  %v78 = vld [vmem:[%s1 + $0x1c] sm:$0xf]
  %v79 = vld [vmem:[%s2] sm:$0xff]
  %v80 = vld [vmem:[%s2 + $0x8] sm:$0xff]
  %v81 = vld [vmem:[%s2 + $0x10] sm:$0xff]
  %v82 = vld [vmem:[%s2 + $0x18] sm:$0xff]
  %v83 = vld [vmem:[%s2 + $0x20] sm:$0xff]
  %v84 = vld [vmem:[%s2 + $0x28] sm:$0xff]
  %v85 = vld [vmem:[%s2 + $0x30] sm:$0xff]
  %v86 = vld [vmem:[%s2 + $0x38] sm:$0xff]
  %v87 = vld [vmem:[%s2 + $0x40] sm:$0xff]
  %v88 = vld [vmem:[%s2 + $0x48] sm:$0xff]
  %v89 = vld [vmem:[%s2 + $0x50] sm:$0xff]
  %v90 = vld [vmem:[%s2 + $0x58] sm:$0xff]
  %v91 = vld [vmem:[%s2 + $0x60] sm:$0xff]
  %v92 = vld [vmem:[%s2 + $0x68] sm:$0xff]
  %v93 = vld [vmem:[%s2 + $0x70] sm:$0xff]
  %v94 = vld [vmem:[%s2 + $0x78] sm:$0xff]
  %v95 = vld [vmem:[%s2 + $0x80] sm:$0xff]
  %v96 = vld [vmem:[%s2 + $0x88] sm:$0xff]
  %v97 = vld [vmem:[%s2 + $0x90] sm:$0xff]
  %v98 = vld [vmem:[%s2 + $0x98] sm:$0xff]
  %v99 = vld [vmem:[%s2 + $0xa0] sm:$0xff]
  %v100 = vld [vmem:[%s2 + $0xa8] sm:$0xff]
  %v101 = vld [vmem:[%s2 + $0xb0] sm:$0xff]
  %v102 = vld [vmem:[%s2 + $0xb8] sm:$0xff]
  %v103 = vld [vmem:[%s2 + $0xc0] sm:$0xff]
  %v104 = vld [vmem:[%s2 + $0xc8] sm:$0xff]
  %v105 = vld [vmem:[%s2 + $0xd0] sm:$0xff]
  %v106 = vld [vmem:[%s2 + $0xd8] sm:$0xff]
  %v107 = vld [vmem:[%s2 + $0xe0] sm:$0xff]
  %v108 = vld [vmem:[%s2 + $0xe8] sm:$0xff]
  %v109 = vld [vmem:[%s2 + $0xf0] sm:$0xff]
  %v110 = vld [vmem:[%s2 + $0xf8] sm:$0xff]
  %v111 = vld [vmem:[%s3] sm:$0xff]
  %v120 = vunpack.c.l.b16 %v71
  %v121 = vunpack.c.l.b16 %v72
  %v122 = vunpack.c.l.b16 %v73
  %v123 = vunpack.c.l.b16 %v74
  %v124 = vunpack.c.l.b16 %v75
  %v125 = vunpack.c.l.b16 %v76
  %v126 = vunpack.c.l.b16 %v77
  %v127 = vunpack.c.l.b16 %v78
  %v128 = vpack.c.b16 %v121, %v120
  %v129 = vpack.c.b16 %v123, %v122
  %v130 = vpack.c.b16 %v125, %v124
  %v131 = vpack.c.b16 %v127, %v126
  %v133 = vunpack.c.l.b16 %v111
  %v134 = vunpack.c.h.b16 %v111
  %v135 = vpack.c.b16 %v133, %v133
  %v136 = vpack.c.b16 %v134, %v134
  %vm137 = vcmask 64512
  %v139 = vsel %vm137, %v128, 0
  %v142 = vsel %vm137, %v129, 0
  %v145 = vsel %vm137, %v130, 0
  %v148 = vsel %vm137, %v131, 0
  %vm150 = vcmask 1043456
  %v152 = vsel %vm150, %v135, 0
  %v155 = vsel %vm150, %v136, 0
  %157 = vmatprep.subr.bf16.mxu0 %v155
  %158 = vmatpush1.bf16.msra.mxu0 %v152
  %159 = vmatprep.subr.bf16.mxu0 0
  %160 = vmatpush1.bf16.msra.mxu0 0
  %161 = vmatprep.subr.bf16.mxu0 0
  %162 = vmatpush1.bf16.msra.mxu0 0
  %163 = vmatprep.subr.bf16.mxu0 0
  %164 = vmatpush1.bf16.msra.mxu0 0
  %165 = vmatprep.subr.bf16.mxu0 0
  %166 = vmatpush1.bf16.msra.mxu0 0
  %167 = vmatprep.subr.bf16.mxu0 0
  %168 = vmatpush1.bf16.msra.mxu0 0
  %169 = vmatprep.subr.bf16.mxu0 0
  %170 = vmatpush1.bf16.msra.mxu0 0
  %171 = vmatprep.subr.bf16.mxu0 0
  %172 = vmatpush1.bf16.msra.mxu0 0
  %173 = vmatprep.subr.bf16.mxu0 0
  %174 = vmatpush1.bf16.msra.mxu0 0
  %175 = vmatprep.subr.bf16.mxu0 0
  %176 = vmatpush1.bf16.msra.mxu0 0
  %177 = vmatprep.subr.bf16.mxu0 0
  %178 = vmatpush1.bf16.msra.mxu0 0
  %179 = vmatprep.subr.bf16.mxu0 0
  %180 = vmatpush1.bf16.msra.mxu0 0
  %181 = vmatprep.subr.bf16.mxu0 0
  %182 = vmatpush1.bf16.msra.mxu0 0
  %183 = vmatprep.subr.bf16.mxu0 0
  %184 = vmatpush1.bf16.msra.mxu0 0
  %185 = vmatprep.subr.bf16.mxu0 0
  %186 = vmatpush1.bf16.msra.mxu0 0
  %187 = vmatprep.subr.bf16.mxu0 0
  %188 = vmatpush1.bf16.msra.mxu0 0
  %189 = vmatprep.mubr.bf16.mxu0 0
  %190 = vmatmul.mubr.bf16.gmra.mrb[0].mxu0 %v139
  %v191 = vpop.f32.mrb[0].mxu0
  %v192 = vadd.f32 0.0, %v191
  %v193 = vpop.f32.mrb[0].mxu0
  %v194 = vadd.f32 0.0, %v193
  %v195 = vpop.f32.mrb[0].mxu0
  %v196 = vadd.f32 0.0, %v195
  %v197 = vpop.f32.mrb[0].mxu0
  %v198 = vadd.f32 0.0, %v197
  %199 = vmatprep.mubr.bf16.mxu0 0
  %200 = vmatmul.mubr.bf16.gmra.mrb[0].mxu0 %v142
  %v201 = vpop.f32.mrb[0].mxu0
  %v202 = vadd.f32 0.0, %v201
  %v203 = vpop.f32.mrb[0].mxu0
  %v204 = vadd.f32 0.0, %v203
  %v205 = vpop.f32.mrb[0].mxu0
  %v206 = vadd.f32 0.0, %v205
  %v207 = vpop.f32.mrb[0].mxu0
  %v208 = vadd.f32 0.0, %v207
  %209 = vmatprep.mubr.bf16.mxu0 0
  %210 = vmatmul.mubr.bf16.gmra.mrb[0].mxu0 %v145
  %v211 = vpop.f32.mrb[0].mxu0
  %v212 = vadd.f32 0.0, %v211
  %v213 = vpop.f32.mrb[0].mxu0
  %v214 = vadd.f32 0.0, %v213
  %v215 = vpop.f32.mrb[0].mxu0
  %v216 = vadd.f32 0.0, %v215
  %v217 = vpop.f32.mrb[0].mxu0
  %v218 = vadd.f32 0.0, %v217
  %219 = vmatprep.mubr.bf16.mxu0 0
  %220 = vmatmul.mubr.bf16.gmra.mrb[0].mxu0 %v148
  %v221 = vpop.f32.mrb[0].mxu0
  %v222 = vadd.f32 0.0, %v221
  %v223 = vpop.f32.mrb[0].mxu0
  %v224 = vadd.f32 0.0, %v223
  %v225 = vpop.f32.mrb[0].mxu0
  %v226 = vadd.f32 0.0, %v225
  %v227 = vpop.f32.mrb[0].mxu0
  %v228 = vadd.f32 0.0, %v227
  %229 = vdwg.mxu0
  %v238 = vunpack.c.l.b16 %v63
  %v239 = vunpack.c.h.b16 %v63
  %v240 = vunpack.c.l.b16 %v64
  %v241 = vunpack.c.h.b16 %v64
  %v242 = vunpack.c.l.b16 %v65
  %v243 = vunpack.c.h.b16 %v65
  %v244 = vunpack.c.l.b16 %v66
  %v245 = vunpack.c.h.b16 %v66
  %v246 = vunpack.c.l.b16 %v67
  %v247 = vunpack.c.h.b16 %v67
  %v248 = vunpack.c.l.b16 %v68
  %v249 = vunpack.c.h.b16 %v68
  %v250 = vunpack.c.l.b16 %v69
  %v251 = vunpack.c.h.b16 %v69
  %v252 = vunpack.c.l.b16 %v70
  %v253 = vunpack.c.h.b16 %v70
  %v254 = vpack.c.b16 %v240, %v238
  %v255 = vpack.c.b16 %v241, %v239
  %v256 = vpack.c.b16 %v244, %v242
  %v257 = vpack.c.b16 %v245, %v243
  %v258 = vpack.c.b16 %v248, %v246
  %v259 = vpack.c.b16 %v249, %v247
  %v260 = vpack.c.b16 %v252, %v250
  %v261 = vpack.c.b16 %v253, %v251
  %v302 = vunpack.c.l.b16 %v79
  %v303 = vunpack.c.h.b16 %v79
  %v304 = vunpack.c.l.b16 %v80
  %v305 = vunpack.c.h.b16 %v80
  %v306 = vunpack.c.l.b16 %v81
  %v307 = vunpack.c.h.b16 %v81
  %v308 = vunpack.c.l.b16 %v82
  %v309 = vunpack.c.h.b16 %v82
  %v310 = vunpack.c.l.b16 %v83
  %v311 = vunpack.c.h.b16 %v83
  %v312 = vunpack.c.l.b16 %v84
  %v313 = vunpack.c.h.b16 %v84
  %v314 = vunpack.c.l.b16 %v85
  %v315 = vunpack.c.h.b16 %v85
  %v316 = vunpack.c.l.b16 %v86
  %v317 = vunpack.c.h.b16 %v86
  %v318 = vunpack.c.l.b16 %v87
  %v319 = vunpack.c.h.b16 %v87
  %v320 = vunpack.c.l.b16 %v88
  %v321 = vunpack.c.h.b16 %v88
  %v322 = vunpack.c.l.b16 %v89
  %v323 = vunpack.c.h.b16 %v89
  %v324 = vunpack.c.l.b16 %v90
  %v325 = vunpack.c.h.b16 %v90
  %v326 = vunpack.c.l.b16 %v91
  %v327 = vunpack.c.h.b16 %v91
  %v328 = vunpack.c.l.b16 %v92
  %v329 = vunpack.c.h.b16 %v92
  %v330 = vunpack.c.l.b16 %v93
  %v331 = vunpack.c.h.b16 %v93
  %v332 = vunpack.c.l.b16 %v94
  %v333 = vunpack.c.h.b16 %v94
  %v334 = vunpack.c.l.b16 %v95
  %v335 = vunpack.c.h.b16 %v95
  %v336 = vunpack.c.l.b16 %v96
  %v337 = vunpack.c.h.b16 %v96
  %v338 = vunpack.c.l.b16 %v97
  %v339 = vunpack.c.h.b16 %v97
  %v340 = vunpack.c.l.b16 %v98
  %v341 = vunpack.c.h.b16 %v98
  %v342 = vunpack.c.l.b16 %v99
  %v343 = vunpack.c.h.b16 %v99
  %v344 = vunpack.c.l.b16 %v100
  %v345 = vunpack.c.h.b16 %v100
  %v346 = vunpack.c.l.b16 %v101
  %v347 = vunpack.c.h.b16 %v101
  %v348 = vunpack.c.l.b16 %v102
  %v349 = vunpack.c.h.b16 %v102
  %v350 = vunpack.c.l.b16 %v103
  %v351 = vunpack.c.h.b16 %v103
  %v352 = vunpack.c.l.b16 %v104
  %v353 = vunpack.c.h.b16 %v104
  %v354 = vunpack.c.l.b16 %v105
  %v355 = vunpack.c.h.b16 %v105
  %v356 = vunpack.c.l.b16 %v106
  %v357 = vunpack.c.h.b16 %v106
  %v358 = vunpack.c.l.b16 %v107
  %v359 = vunpack.c.h.b16 %v107
  %v360 = vunpack.c.l.b16 %v108
  %v361 = vunpack.c.h.b16 %v108
  %v362 = vunpack.c.l.b16 %v109
  %v363 = vunpack.c.h.b16 %v109
  %v364 = vunpack.c.l.b16 %v110
  %v365 = vunpack.c.h.b16 %v110
  %v366 = vpack.c.b16 %v304, %v302
  %v367 = vpack.c.b16 %v305, %v303
  %v368 = vpack.c.b16 %v308, %v306
  %v369 = vpack.c.b16 %v309, %v307
  %v370 = vpack.c.b16 %v312, %v310
  %v371 = vpack.c.b16 %v313, %v311
  %v372 = vpack.c.b16 %v316, %v314
  %v373 = vpack.c.b16 %v317, %v315
  %v374 = vpack.c.b16 %v320, %v318
  %v375 = vpack.c.b16 %v321, %v319
  %v376 = vpack.c.b16 %v324, %v322
  %v377 = vpack.c.b16 %v325, %v323
  %v378 = vpack.c.b16 %v328, %v326
  %v379 = vpack.c.b16 %v329, %v327
  %v380 = vpack.c.b16 %v332, %v330
  %v381 = vpack.c.b16 %v333, %v331
  %v382 = vpack.c.b16 %v336, %v334
  %v383 = vpack.c.b16 %v337, %v335
  %v384 = vpack.c.b16 %v340, %v338
  %v385 = vpack.c.b16 %v341, %v339
  %v386 = vpack.c.b16 %v344, %v342
  %v387 = vpack.c.b16 %v345, %v343
  %v388 = vpack.c.b16 %v348, %v346
  %v389 = vpack.c.b16 %v349, %v347
  %v390 = vpack.c.b16 %v352, %v350
  %v391 = vpack.c.b16 %v353, %v351
  %v392 = vpack.c.b16 %v356, %v354
  %v393 = vpack.c.b16 %v357, %v355
  %v394 = vpack.c.b16 %v360, %v358
  %v395 = vpack.c.b16 %v361, %v359
  %v396 = vpack.c.b16 %v364, %v362
  %v397 = vpack.c.b16 %v365, %v363
  %430 = vmatprep.subr.bf16.mxu0 %v367
  %431 = vmatpush1.bf16.msra.mxu0 %v366
  %432 = vmatprep.subr.bf16.mxu0 %v369
  %433 = vmatpush1.bf16.msra.mxu0 %v368
  %434 = vmatprep.subr.bf16.mxu0 %v371
  %435 = vmatpush1.bf16.msra.mxu0 %v370
  %436 = vmatprep.subr.bf16.mxu0 %v373
  %437 = vmatpush1.bf16.msra.mxu0 %v372
  %438 = vmatprep.subr.bf16.mxu0 %v375
  %439 = vmatpush1.bf16.msra.mxu0 %v374
  %440 = vmatprep.subr.bf16.mxu0 %v377
  %441 = vmatpush1.bf16.msra.mxu0 %v376
  %442 = vmatprep.subr.bf16.mxu0 %v379
  %443 = vmatpush1.bf16.msra.mxu0 %v378
  %444 = vmatprep.subr.bf16.mxu0 %v381
  %445 = vmatpush1.bf16.msra.mxu0 %v380
  %446 = vmatprep.subr.bf16.mxu0 %v383
  %447 = vmatpush1.bf16.msra.mxu0 %v382
  %448 = vmatprep.subr.bf16.mxu0 %v385
  %449 = vmatpush1.bf16.msra.mxu0 %v384
  %450 = vmatprep.subr.bf16.mxu0 %v387
  %451 = vmatpush1.bf16.msra.mxu0 %v386
  %452 = vmatprep.subr.bf16.mxu0 %v389
  %453 = vmatpush1.bf16.msra.mxu0 %v388
  %454 = vmatprep.subr.bf16.mxu0 %v391
  %455 = vmatpush1.bf16.msra.mxu0 %v390
  %456 = vmatprep.subr.bf16.mxu0 %v393
  %457 = vmatpush1.bf16.msra.mxu0 %v392
  %458 = vmatprep.subr.bf16.mxu0 %v395
  %459 = vmatpush1.bf16.msra.mxu0 %v394
  %460 = vmatprep.subr.bf16.mxu0 %v397
  %461 = vmatpush1.bf16.msra.mxu0 %v396
  %462 = vmatprep.mubr.bf16.mxu0 %v255
  %463 = vmatmul.mubr.bf16.gmra.mrb[0].mxu0 %v254
  %v464 = vpop.f32.mrb[0].mxu0
  %v465 = vadd.f32 %v192, %v464
  %v466 = vpop.f32.mrb[0].mxu0
  %v467 = vadd.f32 %v194, %v466
  %v468 = vpop.f32.mrb[0].mxu0
  %v469 = vadd.f32 %v196, %v468
  %v470 = vpop.f32.mrb[0].mxu0
  %v471 = vadd.f32 %v198, %v470
  %472 = vmatprep.mubr.bf16.mxu0 %v257
  %473 = vmatmul.mubr.bf16.gmra.mrb[0].mxu0 %v256
  %v474 = vpop.f32.mrb[0].mxu0
  %v475 = vadd.f32 %v202, %v474
  %v476 = vpop.f32.mrb[0].mxu0
  %v477 = vadd.f32 %v204, %v476
  %v478 = vpop.f32.mrb[0].mxu0
  %v479 = vadd.f32 %v206, %v478
  %v480 = vpop.f32.mrb[0].mxu0
  %v481 = vadd.f32 %v208, %v480
  %482 = vmatprep.mubr.bf16.mxu0 %v259
  %483 = vmatmul.mubr.bf16.gmra.mrb[0].mxu0 %v258
  %v484 = vpop.f32.mrb[0].mxu0
  %v485 = vadd.f32 %v212, %v484
  %v486 = vpop.f32.mrb[0].mxu0
  %v487 = vadd.f32 %v214, %v486
  %v488 = vpop.f32.mrb[0].mxu0
  %v489 = vadd.f32 %v216, %v488
  %v490 = vpop.f32.mrb[0].mxu0
  %v491 = vadd.f32 %v218, %v490
  %492 = vmatprep.mubr.bf16.mxu0 %v261
  %493 = vmatmul.mubr.bf16.gmra.mrb[0].mxu0 %v260
  %v494 = vpop.f32.mrb[0].mxu0
  %v495 = vadd.f32 %v222, %v494
  %v496 = vpop.f32.mrb[0].mxu0
  %v497 = vadd.f32 %v224, %v496
  %v498 = vpop.f32.mrb[0].mxu0
  %v499 = vadd.f32 %v226, %v498
  %v500 = vpop.f32.mrb[0].mxu0
  %v501 = vadd.f32 %v228, %v500
  %502 = vdwg.mxu0
  %v503 = vld [vmem:[%s4] sm:$0x3]
  %v505 = vlaneseq
  %v506 = vshrl.u32 %v505, 7
  %v507 = vsub.s32 0, %v506
  %v508 = vrot.slane %v503, %v507
  %v509 = vlaneseq
  %v510 = vshrl.u32 %v509, 7
  %v511 = vsub.s32 1, %v510
  %v512 = vrot.slane %v503, %v511
  %v515 = vadd.f32 %v465, %v508
  %v516 = vadd.f32 %v467, %v512
  %v517 = vadd.f32 %v469, %v508
  %v518 = vadd.f32 %v471, %v512
  %v519 = vadd.f32 %v475, %v508
  %v520 = vadd.f32 %v477, %v512
  %v521 = vadd.f32 %v479, %v508
  %v522 = vadd.f32 %v481, %v512
  %v523 = vadd.f32 %v485, %v508
  %v524 = vadd.f32 %v487, %v512
  %v525 = vadd.f32 %v489, %v508
  %v526 = vadd.f32 %v491, %v512
  %v527 = vadd.f32 %v495, %v508
  %v528 = vadd.f32 %v497, %v512
  %v529 = vadd.f32 %v499, %v508
  %v530 = vadd.f32 %v501, %v512
  %v531 = vmax.f32 %v515, 0.0
  %v532 = vmax.f32 %v516, 0.0
  %v533 = vmax.f32 %v517, 0.0
  %v534 = vmax.f32 %v518, 0.0
  %v535 = vmax.f32 %v519, 0.0
  %v536 = vmax.f32 %v520, 0.0
  %v537 = vmax.f32 %v521, 0.0
  %v538 = vmax.f32 %v522, 0.0
  %v539 = vmax.f32 %v523, 0.0
  %v540 = vmax.f32 %v524, 0.0
  %v541 = vmax.f32 %v525, 0.0
  %v542 = vmax.f32 %v526, 0.0
  %v543 = vmax.f32 %v527, 0.0
  %v544 = vmax.f32 %v528, 0.0
  %v545 = vmax.f32 %v529, 0.0
  %v546 = vmax.f32 %v530, 0.0
  %v547 = vpack.c.bf16 %v533, %v531
  %v548 = vpack.c.bf16 %v534, %v532
  %v549 = vpack.c.bf16 %v537, %v535
  %v550 = vpack.c.bf16 %v538, %v536
  %v551 = vpack.c.bf16 %v541, %v539
  %v552 = vpack.c.bf16 %v542, %v540
  %v553 = vpack.c.bf16 %v545, %v543
  %v554 = vpack.c.bf16 %v546, %v544
  %v555 = vld [vmem:[%s5] sm:$0xff]
  %v556 = vld [vmem:[%s5 + $0x8] sm:$0xff]
  %v557 = vld [vmem:[%s5 + $0x10] sm:$0xff]
  %v558 = vld [vmem:[%s5 + $0x18] sm:$0xff]
  %v559 = vld [vmem:[%s5 + $0x20] sm:$0xff]
  %v560 = vld [vmem:[%s5 + $0x28] sm:$0xff]
  %v561 = vld [vmem:[%s5 + $0x30] sm:$0xff]
  %v562 = vld [vmem:[%s5 + $0x38] sm:$0xff]
  %v563 = vld [vmem:[%s5 + $0x40] sm:$0xff]
  %v564 = vld [vmem:[%s5 + $0x48] sm:$0xff]
  %v565 = vld [vmem:[%s5 + $0x50] sm:$0xff]
  %v566 = vld [vmem:[%s5 + $0x58] sm:$0xff]
  %v567 = vld [vmem:[%s5 + $0x60] sm:$0xff]
  %v568 = vld [vmem:[%s5 + $0x68] sm:$0xff]
  %v569 = vld [vmem:[%s5 + $0x70] sm:$0xff]
  %v570 = vld [vmem:[%s5 + $0x78] sm:$0xff]
  %v571 = vld [vmem:[%s5 + $0x80] sm:$0xff]
  %v572 = vld [vmem:[%s5 + $0x88] sm:$0xff]
  %v573 = vld [vmem:[%s5 + $0x90] sm:$0xff]
  %v574 = vld [vmem:[%s5 + $0x98] sm:$0xff]
  %v575 = vld [vmem:[%s5 + $0xa0] sm:$0xff]
  %v576 = vld [vmem:[%s5 + $0xa8] sm:$0xff]
  %v577 = vld [vmem:[%s5 + $0xb0] sm:$0xff]
  %v578 = vld [vmem:[%s5 + $0xb8] sm:$0xff]
  %v579 = vld [vmem:[%s5 + $0xc0] sm:$0xff]
  %v580 = vld [vmem:[%s5 + $0xc8] sm:$0xff]
  %v581 = vld [vmem:[%s5 + $0xd0] sm:$0xff]
  %v582 = vld [vmem:[%s5 + $0xd8] sm:$0xff]
  %v583 = vld [vmem:[%s5 + $0xe0] sm:$0xff]
  %v584 = vld [vmem:[%s5 + $0xe8] sm:$0xff]
  %v585 = vld [vmem:[%s5 + $0xf0] sm:$0xff]
  %v586 = vld [vmem:[%s5 + $0xf8] sm:$0xff]
  %v587 = vld [vmem:[%s5 + $0x100] sm:$0xff]
  %v588 = vld [vmem:[%s5 + $0x108] sm:$0xff]
  %v589 = vld [vmem:[%s5 + $0x110] sm:$0xff]
  %v590 = vld [vmem:[%s5 + $0x118] sm:$0xff]
  %v591 = vld [vmem:[%s5 + $0x120] sm:$0xff]
  %v592 = vld [vmem:[%s5 + $0x128] sm:$0xff]
  %v593 = vld [vmem:[%s5 + $0x130] sm:$0xff]
  %v594 = vld [vmem:[%s5 + $0x138] sm:$0xff]
  %v595 = vld [vmem:[%s5 + $0x140] sm:$0xff]
  %v596 = vld [vmem:[%s5 + $0x148] sm:$0xff]
  %v597 = vld [vmem:[%s5 + $0x150] sm:$0xff]
  %v598 = vld [vmem:[%s5 + $0x158] sm:$0xff]
  %v599 = vld [vmem:[%s5 + $0x160] sm:$0xff]
  %v600 = vld [vmem:[%s5 + $0x168] sm:$0xff]
  %v601 = vld [vmem:[%s5 + $0x170] sm:$0xff]
  %v602 = vld [vmem:[%s5 + $0x178] sm:$0xff]
  %v603 = vld [vmem:[%s5 + $0x180] sm:$0xff]
  %v604 = vld [vmem:[%s5 + $0x188] sm:$0xff]
  %v605 = vld [vmem:[%s5 + $0x190] sm:$0xff]
  %v606 = vld [vmem:[%s5 + $0x198] sm:$0xff]
  %v607 = vld [vmem:[%s5 + $0x1a0] sm:$0xff]
  %v608 = vld [vmem:[%s5 + $0x1a8] sm:$0xff]
  %v609 = vld [vmem:[%s5 + $0x1b0] sm:$0xff]
  %v610 = vld [vmem:[%s5 + $0x1b8] sm:$0xff]
  %v611 = vld [vmem:[%s5 + $0x1c0] sm:$0xff]
  %v612 = vld [vmem:[%s5 + $0x1c8] sm:$0xff]
  %v613 = vld [vmem:[%s5 + $0x1d0] sm:$0xff]
  %v614 = vld [vmem:[%s5 + $0x1d8] sm:$0xff]
  %v615 = vld [vmem:[%s5 + $0x1e0] sm:$0xff]
  %v616 = vld [vmem:[%s5 + $0x1e8] sm:$0xff]
  %v617 = vld [vmem:[%s5 + $0x1f0] sm:$0xff]
  %v618 = vld [vmem:[%s5 + $0x1f8] sm:$0xff]
  %v619 = vld [vmem:[%s6] sm:$0xf]
  %v621 = vlaneseq
  %v622 = vshrl.u32 %v621, 7
  %v623 = vsub.s32 0, %v622
  %v624 = vrot.slane %v619, %v623
  %v625 = vlaneseq
  %v626 = vshrl.u32 %v625, 7
  %v627 = vsub.s32 1, %v626
  %v628 = vrot.slane %v619, %v627
  %v629 = vlaneseq
  %v630 = vshrl.u32 %v629, 7
  %v631 = vsub.s32 2, %v630
  %v632 = vrot.slane %v619, %v631
  %v633 = vlaneseq
  %v634 = vshrl.u32 %v633, 7
  %v635 = vsub.s32 3, %v634
  %v636 = vrot.slane %v619, %v635
  %v705 = vunpack.c.l.b16 %v555
  %v706 = vunpack.c.h.b16 %v555
  %v707 = vunpack.c.l.b16 %v556
  %v708 = vunpack.c.h.b16 %v556
  %v709 = vunpack.c.l.b16 %v557
  %v710 = vunpack.c.h.b16 %v557
  %v711 = vunpack.c.l.b16 %v558
  %v712 = vunpack.c.h.b16 %v558
  %v713 = vunpack.c.l.b16 %v559
  %v714 = vunpack.c.h.b16 %v559
  %v715 = vunpack.c.l.b16 %v560
  %v716 = vunpack.c.h.b16 %v560
  %v717 = vunpack.c.l.b16 %v561
  %v718 = vunpack.c.h.b16 %v561
  %v719 = vunpack.c.l.b16 %v562
  %v720 = vunpack.c.h.b16 %v562
  %v721 = vunpack.c.l.b16 %v563
  %v722 = vunpack.c.h.b16 %v563
  %v723 = vunpack.c.l.b16 %v564
  %v724 = vunpack.c.h.b16 %v564
  %v725 = vunpack.c.l.b16 %v565
  %v726 = vunpack.c.h.b16 %v565
  %v727 = vunpack.c.l.b16 %v566
  %v728 = vunpack.c.h.b16 %v566
  %v729 = vunpack.c.l.b16 %v567
  %v730 = vunpack.c.h.b16 %v567
  %v731 = vunpack.c.l.b16 %v568
  %v732 = vunpack.c.h.b16 %v568
  %v733 = vunpack.c.l.b16 %v569
  %v734 = vunpack.c.h.b16 %v569
  %v735 = vunpack.c.l.b16 %v570
  %v736 = vunpack.c.h.b16 %v570
  %v737 = vunpack.c.l.b16 %v571
  %v738 = vunpack.c.h.b16 %v571
  %v739 = vunpack.c.l.b16 %v572
  %v740 = vunpack.c.h.b16 %v572
  %v741 = vunpack.c.l.b16 %v573
  %v742 = vunpack.c.h.b16 %v573
  %v743 = vunpack.c.l.b16 %v574
  %v744 = vunpack.c.h.b16 %v574
  %v745 = vunpack.c.l.b16 %v575
  %v746 = vunpack.c.h.b16 %v575
  %v747 = vunpack.c.l.b16 %v576
  %v748 = vunpack.c.h.b16 %v576
  %v749 = vunpack.c.l.b16 %v577
  %v750 = vunpack.c.h.b16 %v577
  %v751 = vunpack.c.l.b16 %v578
  %v752 = vunpack.c.h.b16 %v578
  %v753 = vunpack.c.l.b16 %v579
  %v754 = vunpack.c.h.b16 %v579
  %v755 = vunpack.c.l.b16 %v580
  %v756 = vunpack.c.h.b16 %v580
  %v757 = vunpack.c.l.b16 %v581
  %v758 = vunpack.c.h.b16 %v581
  %v759 = vunpack.c.l.b16 %v582
  %v760 = vunpack.c.h.b16 %v582
  %v761 = vunpack.c.l.b16 %v583
  %v762 = vunpack.c.h.b16 %v583
  %v763 = vunpack.c.l.b16 %v584
  %v764 = vunpack.c.h.b16 %v584
  %v765 = vunpack.c.l.b16 %v585
  %v766 = vunpack.c.h.b16 %v585
  %v767 = vunpack.c.l.b16 %v586
  %v768 = vunpack.c.h.b16 %v586
  %v769 = vunpack.c.l.b16 %v587
  %v770 = vunpack.c.h.b16 %v587
  %v771 = vunpack.c.l.b16 %v588
  %v772 = vunpack.c.h.b16 %v588
  %v773 = vunpack.c.l.b16 %v589
  %v774 = vunpack.c.h.b16 %v589
  %v775 = vunpack.c.l.b16 %v590
  %v776 = vunpack.c.h.b16 %v590
  %v777 = vunpack.c.l.b16 %v591
  %v778 = vunpack.c.h.b16 %v591
  %v779 = vunpack.c.l.b16 %v592
  %v780 = vunpack.c.h.b16 %v592
  %v781 = vunpack.c.l.b16 %v593
  %v782 = vunpack.c.h.b16 %v593
  %v783 = vunpack.c.l.b16 %v594
  %v784 = vunpack.c.h.b16 %v594
  %v785 = vunpack.c.l.b16 %v595
  %v786 = vunpack.c.h.b16 %v595
  %v787 = vunpack.c.l.b16 %v596
  %v788 = vunpack.c.h.b16 %v596
  %v789 = vunpack.c.l.b16 %v597
  %v790 = vunpack.c.h.b16 %v597
  %v791 = vunpack.c.l.b16 %v598
  %v792 = vunpack.c.h.b16 %v598
  %v793 = vunpack.c.l.b16 %v599
  %v794 = vunpack.c.h.b16 %v599
  %v795 = vunpack.c.l.b16 %v600
  %v796 = vunpack.c.h.b16 %v600
  %v797 = vunpack.c.l.b16 %v601
  %v798 = vunpack.c.h.b16 %v601
  %v799 = vunpack.c.l.b16 %v602
  %v800 = vunpack.c.h.b16 %v602
  %v801 = vunpack.c.l.b16 %v603
  %v802 = vunpack.c.h.b16 %v603
  %v803 = vunpack.c.l.b16 %v604
  %v804 = vunpack.c.h.b16 %v604
  %v805 = vunpack.c.l.b16 %v605
  %v806 = vunpack.c.h.b16 %v605
  %v807 = vunpack.c.l.b16 %v606
  %v808 = vunpack.c.h.b16 %v606
  %v809 = vunpack.c.l.b16 %v607
  %v810 = vunpack.c.h.b16 %v607
  %v811 = vunpack.c.l.b16 %v608
  %v812 = vunpack.c.h.b16 %v608
  %v813 = vunpack.c.l.b16 %v609
  %v814 = vunpack.c.h.b16 %v609
  %v815 = vunpack.c.l.b16 %v610
  %v816 = vunpack.c.h.b16 %v610
  %v817 = vunpack.c.l.b16 %v611
  %v818 = vunpack.c.h.b16 %v611
  %v819 = vunpack.c.l.b16 %v612
  %v820 = vunpack.c.h.b16 %v612
  %v821 = vunpack.c.l.b16 %v613
  %v822 = vunpack.c.h.b16 %v613
  %v823 = vunpack.c.l.b16 %v614
  %v824 = vunpack.c.h.b16 %v614
  %v825 = vunpack.c.l.b16 %v615
  %v826 = vunpack.c.h.b16 %v615
  %v827 = vunpack.c.l.b16 %v616
  %v828 = vunpack.c.h.b16 %v616
  %v829 = vunpack.c.l.b16 %v617
  %v830 = vunpack.c.h.b16 %v617
  %v831 = vunpack.c.l.b16 %v618
  %v832 = vunpack.c.h.b16 %v618
  %v833 = vpack.c.b16 %v709, %v705
  %v834 = vpack.c.b16 %v710, %v706
  %v835 = vpack.c.b16 %v711, %v707
  %v836 = vpack.c.b16 %v712, %v708
  %v837 = vpack.c.b16 %v717, %v713
  %v838 = vpack.c.b16 %v718, %v714
  %v839 = vpack.c.b16 %v719, %v715
  %v840 = vpack.c.b16 %v720, %v716
  %v841 = vpack.c.b16 %v725, %v721
  %v842 = vpack.c.b16 %v726, %v722
  %v843 = vpack.c.b16 %v727, %v723
  %v844 = vpack.c.b16 %v728, %v724
  %v845 = vpack.c.b16 %v733, %v729
  %v846 = vpack.c.b16 %v734, %v730
  %v847 = vpack.c.b16 %v735, %v731
  %v848 = vpack.c.b16 %v736, %v732
  %v849 = vpack.c.b16 %v741, %v737
  %v850 = vpack.c.b16 %v742, %v738
  %v851 = vpack.c.b16 %v743, %v739
  %v852 = vpack.c.b16 %v744, %v740
  %v853 = vpack.c.b16 %v749, %v745
  %v854 = vpack.c.b16 %v750, %v746
  %v855 = vpack.c.b16 %v751, %v747
  %v856 = vpack.c.b16 %v752, %v748
  %v857 = vpack.c.b16 %v757, %v753
  %v858 = vpack.c.b16 %v758, %v754
  %v859 = vpack.c.b16 %v759, %v755
  %v860 = vpack.c.b16 %v760, %v756
  %v861 = vpack.c.b16 %v765, %v761
  %v862 = vpack.c.b16 %v766, %v762
  %v863 = vpack.c.b16 %v767, %v763
  %v864 = vpack.c.b16 %v768, %v764
  %v865 = vpack.c.b16 %v773, %v769
  %v866 = vpack.c.b16 %v774, %v770
  %v867 = vpack.c.b16 %v775, %v771
  %v868 = vpack.c.b16 %v776, %v772
  %v869 = vpack.c.b16 %v781, %v777
  %v870 = vpack.c.b16 %v782, %v778
  %v871 = vpack.c.b16 %v783, %v779
  %v872 = vpack.c.b16 %v784, %v780
  %v873 = vpack.c.b16 %v789, %v785
  %v874 = vpack.c.b16 %v790, %v786
  %v875 = vpack.c.b16 %v791, %v787
  %v876 = vpack.c.b16 %v792, %v788
  %v877 = vpack.c.b16 %v797, %v793
  %v878 = vpack.c.b16 %v798, %v794
  %v879 = vpack.c.b16 %v799, %v795
  %v880 = vpack.c.b16 %v800, %v796
  %v881 = vpack.c.b16 %v805, %v801
  %v882 = vpack.c.b16 %v806, %v802
  %v883 = vpack.c.b16 %v807, %v803
  %v884 = vpack.c.b16 %v808, %v804
  %v885 = vpack.c.b16 %v813, %v809
  %v886 = vpack.c.b16 %v814, %v810
  %v887 = vpack.c.b16 %v815, %v811
  %v888 = vpack.c.b16 %v816, %v812
  %v889 = vpack.c.b16 %v821, %v817
  %v890 = vpack.c.b16 %v822, %v818
  %v891 = vpack.c.b16 %v823, %v819
  %v892 = vpack.c.b16 %v824, %v820
  %v893 = vpack.c.b16 %v829, %v825
  %v894 = vpack.c.b16 %v830, %v826
  %v895 = vpack.c.b16 %v831, %v827
  %v896 = vpack.c.b16 %v832, %v828
  %961 = vmatprep.subr.bf16.mxu0 %v834
  %962 = vmatpush1.bf16.msra.mxu0 %v833
  %963 = vmatprep.subr.bf16.mxu0 %v838
  %964 = vmatpush1.bf16.msra.mxu0 %v837
  %965 = vmatprep.subr.bf16.mxu0 %v842
  %966 = vmatpush1.bf16.msra.mxu0 %v841
  %967 = vmatprep.subr.bf16.mxu0 %v846
  %968 = vmatpush1.bf16.msra.mxu0 %v845
  %969 = vmatprep.subr.bf16.mxu0 %v850
  %970 = vmatpush1.bf16.msra.mxu0 %v849
  %971 = vmatprep.subr.bf16.mxu0 %v854
  %972 = vmatpush1.bf16.msra.mxu0 %v853
  %973 = vmatprep.subr.bf16.mxu0 %v858
  %974 = vmatpush1.bf16.msra.mxu0 %v857
  %975 = vmatprep.subr.bf16.mxu0 %v862
  %976 = vmatpush1.bf16.msra.mxu0 %v861
  %977 = vmatprep.subr.bf16.mxu0 %v866
  %978 = vmatpush1.bf16.msra.mxu0 %v865
  %979 = vmatprep.subr.bf16.mxu0 %v870
  %980 = vmatpush1.bf16.msra.mxu0 %v869
  %981 = vmatprep.subr.bf16.mxu0 %v874
  %982 = vmatpush1.bf16.msra.mxu0 %v873
  %983 = vmatprep.subr.bf16.mxu0 %v878
  %984 = vmatpush1.bf16.msra.mxu0 %v877
  %985 = vmatprep.subr.bf16.mxu0 %v882
  %986 = vmatpush1.bf16.msra.mxu0 %v881
  %987 = vmatprep.subr.bf16.mxu0 %v886
  %988 = vmatpush1.bf16.msra.mxu0 %v885
  %989 = vmatprep.subr.bf16.mxu0 %v890
  %990 = vmatpush1.bf16.msra.mxu0 %v889
  %991 = vmatprep.subr.bf16.mxu0 %v894
  %992 = vmatpush1.bf16.msra.mxu0 %v893
  %993 = vmatprep.mubr.bf16.mxu0 %v548
  %994 = vmatmul.mubr.bf16.gmra.mrb[0].mxu0 %v547
  %v995 = vpop.f32.mrb[0].mxu0
  %v996 = vadd.f32 %v624, %v995
  %v997 = vpop.f32.mrb[0].mxu0
  %v998 = vadd.f32 %v628, %v997
  %v999 = vpop.f32.mrb[0].mxu0
  %v1000 = vadd.f32 %v624, %v999
  %v1001 = vpop.f32.mrb[0].mxu0
  %v1002 = vadd.f32 %v628, %v1001
  %1003 = vmatprep.mubr.bf16.mxu0 %v550
  %1004 = vmatmul.mubr.bf16.gmra.mrb[0].mxu0 %v549
  %v1005 = vpop.f32.mrb[0].mxu0
  %v1006 = vadd.f32 %v624, %v1005
  %v1007 = vpop.f32.mrb[0].mxu0
  %v1008 = vadd.f32 %v628, %v1007
  %v1009 = vpop.f32.mrb[0].mxu0
  %v1010 = vadd.f32 %v624, %v1009
  %v1011 = vpop.f32.mrb[0].mxu0
  %v1012 = vadd.f32 %v628, %v1011
  %1013 = vmatprep.mubr.bf16.mxu0 %v552
  %1014 = vmatmul.mubr.bf16.gmra.mrb[0].mxu0 %v551
  %v1015 = vpop.f32.mrb[0].mxu0
  %v1016 = vadd.f32 %v624, %v1015
  %v1017 = vpop.f32.mrb[0].mxu0
  %v1018 = vadd.f32 %v628, %v1017
  %v1019 = vpop.f32.mrb[0].mxu0
  %v1020 = vadd.f32 %v624, %v1019
  %v1021 = vpop.f32.mrb[0].mxu0
  %v1022 = vadd.f32 %v628, %v1021
  %1023 = vmatprep.mubr.bf16.mxu0 %v554
  %1024 = vmatmul.mubr.bf16.gmra.mrb[0].mxu0 %v553
  %v1025 = vpop.f32.mrb[0].mxu0
  %v1026 = vadd.f32 %v624, %v1025
  %v1027 = vpop.f32.mrb[0].mxu0
  %v1028 = vadd.f32 %v628, %v1027
  %v1029 = vpop.f32.mrb[0].mxu0
  %v1030 = vadd.f32 %v624, %v1029
  %v1031 = vpop.f32.mrb[0].mxu0
  %v1032 = vadd.f32 %v628, %v1031
  %1033 = vdwg.mxu0
  %1034 = vmatprep.subr.bf16.mxu0 %v836
  %1035 = vmatpush1.bf16.msra.mxu0 %v835
  %1036 = vmatprep.subr.bf16.mxu0 %v840
  %1037 = vmatpush1.bf16.msra.mxu0 %v839
  %1038 = vmatprep.subr.bf16.mxu0 %v844
  %1039 = vmatpush1.bf16.msra.mxu0 %v843
  %1040 = vmatprep.subr.bf16.mxu0 %v848
  %1041 = vmatpush1.bf16.msra.mxu0 %v847
  %1042 = vmatprep.subr.bf16.mxu0 %v852
  %1043 = vmatpush1.bf16.msra.mxu0 %v851
  %1044 = vmatprep.subr.bf16.mxu0 %v856
  %1045 = vmatpush1.bf16.msra.mxu0 %v855
  %1046 = vmatprep.subr.bf16.mxu0 %v860
  %1047 = vmatpush1.bf16.msra.mxu0 %v859
  %1048 = vmatprep.subr.bf16.mxu0 %v864
  %1049 = vmatpush1.bf16.msra.mxu0 %v863
  %1050 = vmatprep.subr.bf16.mxu0 %v868
  %1051 = vmatpush1.bf16.msra.mxu0 %v867
  %1052 = vmatprep.subr.bf16.mxu0 %v872
  %1053 = vmatpush1.bf16.msra.mxu0 %v871
  %1054 = vmatprep.subr.bf16.mxu0 %v876
  %1055 = vmatpush1.bf16.msra.mxu0 %v875
  %1056 = vmatprep.subr.bf16.mxu0 %v880
  %1057 = vmatpush1.bf16.msra.mxu0 %v879
  %1058 = vmatprep.subr.bf16.mxu0 %v884
  %1059 = vmatpush1.bf16.msra.mxu0 %v883
  %1060 = vmatprep.subr.bf16.mxu0 %v888
  %1061 = vmatpush1.bf16.msra.mxu0 %v887
  %1062 = vmatprep.subr.bf16.mxu0 %v892
  %1063 = vmatpush1.bf16.msra.mxu0 %v891
  %1064 = vmatprep.subr.bf16.mxu0 %v896
  %1065 = vmatpush1.bf16.msra.mxu0 %v895
  %1066 = vmatprep.mubr.bf16.mxu0 %v548
  %1067 = vmatmul.mubr.bf16.gmra.mrb[0].mxu0 %v547
  %v1068 = vpop.f32.mrb[0].mxu0
  %v1069 = vadd.f32 %v632, %v1068
  %v1070 = vpop.f32.mrb[0].mxu0
  %v1071 = vadd.f32 %v636, %v1070
  %v1072 = vpop.f32.mrb[0].mxu0
  %v1073 = vadd.f32 %v632, %v1072
  %v1074 = vpop.f32.mrb[0].mxu0
  %v1075 = vadd.f32 %v636, %v1074
  %1076 = vmatprep.mubr.bf16.mxu0 %v550
  %1077 = vmatmul.mubr.bf16.gmra.mrb[0].mxu0 %v549
  %v1078 = vpop.f32.mrb[0].mxu0
  %v1079 = vadd.f32 %v632, %v1078
  %v1080 = vpop.f32.mrb[0].mxu0
  %v1081 = vadd.f32 %v636, %v1080
  %v1082 = vpop.f32.mrb[0].mxu0
  %v1083 = vadd.f32 %v632, %v1082
  %v1084 = vpop.f32.mrb[0].mxu0
  %v1085 = vadd.f32 %v636, %v1084
  %1086 = vmatprep.mubr.bf16.mxu0 %v552
  %1087 = vmatmul.mubr.bf16.gmra.mrb[0].mxu0 %v551
  %v1088 = vpop.f32.mrb[0].mxu0
  %v1089 = vadd.f32 %v632, %v1088
  %v1090 = vpop.f32.mrb[0].mxu0
  %v1091 = vadd.f32 %v636, %v1090
  %v1092 = vpop.f32.mrb[0].mxu0
  %v1093 = vadd.f32 %v632, %v1092
  %v1094 = vpop.f32.mrb[0].mxu0
  %v1095 = vadd.f32 %v636, %v1094
  %1096 = vmatprep.mubr.bf16.mxu0 %v554
  %1097 = vmatmul.mubr.bf16.gmra.mrb[0].mxu0 %v553
  %v1098 = vpop.f32.mrb[0].mxu0
  %v1099 = vadd.f32 %v632, %v1098
  %v1100 = vpop.f32.mrb[0].mxu0
  %v1101 = vadd.f32 %v636, %v1100
  %v1102 = vpop.f32.mrb[0].mxu0
  %v1103 = vadd.f32 %v632, %v1102
  %v1104 = vpop.f32.mrb[0].mxu0
  %v1105 = vadd.f32 %v636, %v1104
  %1106 = vdwg.mxu0
  %v1107 = vmax.f32 %v996, 0.0
  %v1108 = vmax.f32 %v998, 0.0
  %v1109 = vmax.f32 %v1069, 0.0
  %v1110 = vmax.f32 %v1071, 0.0
  %v1111 = vmax.f32 %v1000, 0.0
  %v1112 = vmax.f32 %v1002, 0.0
  %v1113 = vmax.f32 %v1073, 0.0
  %v1114 = vmax.f32 %v1075, 0.0
  %v1115 = vmax.f32 %v1006, 0.0
  %v1116 = vmax.f32 %v1008, 0.0
  %v1117 = vmax.f32 %v1079, 0.0
  %v1118 = vmax.f32 %v1081, 0.0
  %v1119 = vmax.f32 %v1010, 0.0
  %v1120 = vmax.f32 %v1012, 0.0
  %v1121 = vmax.f32 %v1083, 0.0
  %v1122 = vmax.f32 %v1085, 0.0
  %v1123 = vmax.f32 %v1016, 0.0
  %v1124 = vmax.f32 %v1018, 0.0
  %v1125 = vmax.f32 %v1089, 0.0
  %v1126 = vmax.f32 %v1091, 0.0
  %v1127 = vmax.f32 %v1020, 0.0
  %v1128 = vmax.f32 %v1022, 0.0
  %v1129 = vmax.f32 %v1093, 0.0
  %v1130 = vmax.f32 %v1095, 0.0
  %v1131 = vmax.f32 %v1026, 0.0
  %v1132 = vmax.f32 %v1028, 0.0
  %v1133 = vmax.f32 %v1099, 0.0
  %v1134 = vmax.f32 %v1101, 0.0
  %v1135 = vmax.f32 %v1030, 0.0
  %v1136 = vmax.f32 %v1032, 0.0
  %v1137 = vmax.f32 %v1103, 0.0
  %v1138 = vmax.f32 %v1105, 0.0
  %v1139 = vpack.c.bf16 %v1111, %v1107
  %v1140 = vpack.c.bf16 %v1112, %v1108
  %v1141 = vpack.c.bf16 %v1113, %v1109
  %v1142 = vpack.c.bf16 %v1114, %v1110
  %v1143 = vpack.c.bf16 %v1119, %v1115
  %v1144 = vpack.c.bf16 %v1120, %v1116
  %v1145 = vpack.c.bf16 %v1121, %v1117
  %v1146 = vpack.c.bf16 %v1122, %v1118
  %v1147 = vpack.c.bf16 %v1127, %v1123
  %v1148 = vpack.c.bf16 %v1128, %v1124
  %v1149 = vpack.c.bf16 %v1129, %v1125
  %v1150 = vpack.c.bf16 %v1130, %v1126
  %v1151 = vpack.c.bf16 %v1135, %v1131
  %v1152 = vpack.c.bf16 %v1136, %v1132
  %v1153 = vpack.c.bf16 %v1137, %v1133
  %v1154 = vpack.c.bf16 %v1138, %v1134
  %v1155 = vld [vmem:[%s7] sm:$0xff]
  %v1156 = vld [vmem:[%s7 + $0x8] sm:$0xff]
  %v1157 = vld [vmem:[%s7 + $0x10] sm:$0xff]
  %v1158 = vld [vmem:[%s7 + $0x18] sm:$0xff]
  %v1159 = vld [vmem:[%s7 + $0x20] sm:$0xff]
  %v1160 = vld [vmem:[%s7 + $0x28] sm:$0xff]
  %v1161 = vld [vmem:[%s7 + $0x30] sm:$0xff]
  %v1162 = vld [vmem:[%s7 + $0x38] sm:$0xff]
  %v1163 = vld [vmem:[%s7 + $0x40] sm:$0xff]
  %v1164 = vld [vmem:[%s7 + $0x48] sm:$0xff]
  %v1165 = vld [vmem:[%s7 + $0x50] sm:$0xff]
  %v1166 = vld [vmem:[%s7 + $0x58] sm:$0xff]
  %v1167 = vld [vmem:[%s7 + $0x60] sm:$0xff]
  %v1168 = vld [vmem:[%s7 + $0x68] sm:$0xff]
  %v1169 = vld [vmem:[%s7 + $0x70] sm:$0xff]
  %v1170 = vld [vmem:[%s7 + $0x78] sm:$0xff]
  %v1171 = vld [vmem:[%s7 + $0x80] sm:$0xff]
  %v1172 = vld [vmem:[%s7 + $0x88] sm:$0xff]
  %v1173 = vld [vmem:[%s7 + $0x90] sm:$0xff]
  %v1174 = vld [vmem:[%s7 + $0x98] sm:$0xff]
  %v1175 = vld [vmem:[%s7 + $0xa0] sm:$0xff]
  %v1176 = vld [vmem:[%s7 + $0xa8] sm:$0xff]
  %v1177 = vld [vmem:[%s7 + $0xb0] sm:$0xff]
  %v1178 = vld [vmem:[%s7 + $0xb8] sm:$0xff]
  %v1179 = vld [vmem:[%s7 + $0xc0] sm:$0xff]
  %v1180 = vld [vmem:[%s7 + $0xc8] sm:$0xff]
  %v1181 = vld [vmem:[%s7 + $0xd0] sm:$0xff]
  %v1182 = vld [vmem:[%s7 + $0xd8] sm:$0xff]
  %v1183 = vld [vmem:[%s7 + $0xe0] sm:$0xff]
  %v1184 = vld [vmem:[%s7 + $0xe8] sm:$0xff]
  %v1185 = vld [vmem:[%s7 + $0xf0] sm:$0xff]
  %v1186 = vld [vmem:[%s7 + $0xf8] sm:$0xff]
  %v1187 = vld [vmem:[%s7 + $0x100] sm:$0xff]
  %v1188 = vld [vmem:[%s7 + $0x108] sm:$0xff]
  %v1189 = vld [vmem:[%s7 + $0x110] sm:$0xff]
  %v1190 = vld [vmem:[%s7 + $0x118] sm:$0xff]
  %v1191 = vld [vmem:[%s7 + $0x120] sm:$0xff]
  %v1192 = vld [vmem:[%s7 + $0x128] sm:$0xff]
  %v1193 = vld [vmem:[%s7 + $0x130] sm:$0xff]
  %v1194 = vld [vmem:[%s7 + $0x138] sm:$0xff]
  %v1195 = vld [vmem:[%s7 + $0x140] sm:$0xff]
  %v1196 = vld [vmem:[%s7 + $0x148] sm:$0xff]
  %v1197 = vld [vmem:[%s7 + $0x150] sm:$0xff]
  %v1198 = vld [vmem:[%s7 + $0x158] sm:$0xff]
  %v1199 = vld [vmem:[%s7 + $0x160] sm:$0xff]
  %v1200 = vld [vmem:[%s7 + $0x168] sm:$0xff]
  %v1201 = vld [vmem:[%s7 + $0x170] sm:$0xff]
  %v1202 = vld [vmem:[%s7 + $0x178] sm:$0xff]
  %v1203 = vld [vmem:[%s7 + $0x180] sm:$0xff]
  %v1204 = vld [vmem:[%s7 + $0x188] sm:$0xff]
  %v1205 = vld [vmem:[%s7 + $0x190] sm:$0xff]
  %v1206 = vld [vmem:[%s7 + $0x198] sm:$0xff]
  %v1207 = vld [vmem:[%s7 + $0x1a0] sm:$0xff]
  %v1208 = vld [vmem:[%s7 + $0x1a8] sm:$0xff]
  %v1209 = vld [vmem:[%s7 + $0x1b0] sm:$0xff]
  %v1210 = vld [vmem:[%s7 + $0x1b8] sm:$0xff]
  %v1211 = vld [vmem:[%s7 + $0x1c0] sm:$0xff]
  %v1212 = vld [vmem:[%s7 + $0x1c8] sm:$0xff]
  %v1213 = vld [vmem:[%s7 + $0x1d0] sm:$0xff]
  %v1214 = vld [vmem:[%s7 + $0x1d8] sm:$0xff]
  %v1215 = vld [vmem:[%s7 + $0x1e0] sm:$0xff]
  %v1216 = vld [vmem:[%s7 + $0x1e8] sm:$0xff]
  %v1217 = vld [vmem:[%s7 + $0x1f0] sm:$0xff]
  %v1218 = vld [vmem:[%s7 + $0x1f8] sm:$0xff]
  %v1219 = vld [vmem:[%s7 + $0x200] sm:$0xff]
  %v1220 = vld [vmem:[%s7 + $0x208] sm:$0xff]
  %v1221 = vld [vmem:[%s7 + $0x210] sm:$0xff]
  %v1222 = vld [vmem:[%s7 + $0x218] sm:$0xff]
  %v1223 = vld [vmem:[%s7 + $0x220] sm:$0xff]
  %v1224 = vld [vmem:[%s7 + $0x228] sm:$0xff]
  %v1225 = vld [vmem:[%s7 + $0x230] sm:$0xff]
  %v1226 = vld [vmem:[%s7 + $0x238] sm:$0xff]
  %v1227 = vld [vmem:[%s7 + $0x240] sm:$0xff]
  %v1228 = vld [vmem:[%s7 + $0x248] sm:$0xff]
  %v1229 = vld [vmem:[%s7 + $0x250] sm:$0xff]
  %v1230 = vld [vmem:[%s7 + $0x258] sm:$0xff]
  %v1231 = vld [vmem:[%s7 + $0x260] sm:$0xff]
  %v1232 = vld [vmem:[%s7 + $0x268] sm:$0xff]
  %v1233 = vld [vmem:[%s7 + $0x270] sm:$0xff]
  %v1234 = vld [vmem:[%s7 + $0x278] sm:$0xff]
  %v1235 = vld [vmem:[%s7 + $0x280] sm:$0xff]
  %v1236 = vld [vmem:[%s7 + $0x288] sm:$0xff]
  %v1237 = vld [vmem:[%s7 + $0x290] sm:$0xff]
  %v1238 = vld [vmem:[%s7 + $0x298] sm:$0xff]
  %v1239 = vld [vmem:[%s7 + $0x2a0] sm:$0xff]
  %v1240 = vld [vmem:[%s7 + $0x2a8] sm:$0xff]
  %v1241 = vld [vmem:[%s7 + $0x2b0] sm:$0xff]
  %v1242 = vld [vmem:[%s7 + $0x2b8] sm:$0xff]
  %v1243 = vld [vmem:[%s7 + $0x2c0] sm:$0xff]
  %v1244 = vld [vmem:[%s7 + $0x2c8] sm:$0xff]
  %v1245 = vld [vmem:[%s7 + $0x2d0] sm:$0xff]
  %v1246 = vld [vmem:[%s7 + $0x2d8] sm:$0xff]
  %v1247 = vld [vmem:[%s7 + $0x2e0] sm:$0xff]
  %v1248 = vld [vmem:[%s7 + $0x2e8] sm:$0xff]
  %v1249 = vld [vmem:[%s7 + $0x2f0] sm:$0xff]
  %v1250 = vld [vmem:[%s7 + $0x2f8] sm:$0xff]
  %v1251 = vld [vmem:[%s7 + $0x300] sm:$0xff]
  %v1252 = vld [vmem:[%s7 + $0x308] sm:$0xff]
  %v1253 = vld [vmem:[%s7 + $0x310] sm:$0xff]
  %v1254 = vld [vmem:[%s7 + $0x318] sm:$0xff]
  %v1255 = vld [vmem:[%s7 + $0x320] sm:$0xff]
  %v1256 = vld [vmem:[%s7 + $0x328] sm:$0xff]
  %v1257 = vld [vmem:[%s7 + $0x330] sm:$0xff]
  %v1258 = vld [vmem:[%s7 + $0x338] sm:$0xff]
  %v1259 = vld [vmem:[%s7 + $0x340] sm:$0xff]
  %v1260 = vld [vmem:[%s7 + $0x348] sm:$0xff]
  %v1261 = vld [vmem:[%s7 + $0x350] sm:$0xff]
  %v1262 = vld [vmem:[%s7 + $0x358] sm:$0xff]
  %v1263 = vld [vmem:[%s7 + $0x360] sm:$0xff]
  %v1264 = vld [vmem:[%s7 + $0x368] sm:$0xff]
  %v1265 = vld [vmem:[%s7 + $0x370] sm:$0xff]
  %v1266 = vld [vmem:[%s7 + $0x378] sm:$0xff]
  %v1267 = vld [vmem:[%s7 + $0x380] sm:$0xff]
  %v1268 = vld [vmem:[%s7 + $0x388] sm:$0xff]
  %v1269 = vld [vmem:[%s7 + $0x390] sm:$0xff]
  %v1270 = vld [vmem:[%s7 + $0x398] sm:$0xff]
  %v1271 = vld [vmem:[%s7 + $0x3a0] sm:$0xff]
  %v1272 = vld [vmem:[%s7 + $0x3a8] sm:$0xff]
  %v1273 = vld [vmem:[%s7 + $0x3b0] sm:$0xff]
  %v1274 = vld [vmem:[%s7 + $0x3b8] sm:$0xff]
  %v1275 = vld [vmem:[%s7 + $0x3c0] sm:$0xff]
  %v1276 = vld [vmem:[%s7 + $0x3c8] sm:$0xff]
  %v1277 = vld [vmem:[%s7 + $0x3d0] sm:$0xff]
  %v1278 = vld [vmem:[%s7 + $0x3d8] sm:$0xff]
  %v1279 = vld [vmem:[%s7 + $0x3e0] sm:$0xff]
  %v1280 = vld [vmem:[%s7 + $0x3e8] sm:$0xff]
  %v1281 = vld [vmem:[%s7 + $0x3f0] sm:$0xff]
  %v1282 = vld [vmem:[%s7 + $0x3f8] sm:$0xff]
  %v1283 = vld [vmem:[%s7 + $0x400] sm:$0xff]
  %v1284 = vld [vmem:[%s7 + $0x408] sm:$0xff]
  %v1285 = vld [vmem:[%s7 + $0x410] sm:$0xff]
  %v1286 = vld [vmem:[%s7 + $0x418] sm:$0xff]
  %v1287 = vld [vmem:[%s7 + $0x420] sm:$0xff]
  %v1288 = vld [vmem:[%s7 + $0x428] sm:$0xff]
  %v1289 = vld [vmem:[%s7 + $0x430] sm:$0xff]
  %v1290 = vld [vmem:[%s7 + $0x438] sm:$0xff]
  %v1291 = vld [vmem:[%s7 + $0x440] sm:$0xff]
  %v1292 = vld [vmem:[%s7 + $0x448] sm:$0xff]
  %v1293 = vld [vmem:[%s7 + $0x450] sm:$0xff]
  %v1294 = vld [vmem:[%s7 + $0x458] sm:$0xff]
  %v1295 = vld [vmem:[%s7 + $0x460] sm:$0xff]
  %v1296 = vld [vmem:[%s7 + $0x468] sm:$0xff]
  %v1297 = vld [vmem:[%s7 + $0x470] sm:$0xff]
  %v1298 = vld [vmem:[%s7 + $0x478] sm:$0xff]
  %v1299 = vld [vmem:[%s7 + $0x480] sm:$0xff]
  %v1300 = vld [vmem:[%s7 + $0x488] sm:$0xff]
  %v1301 = vld [vmem:[%s7 + $0x490] sm:$0xff]
  %v1302 = vld [vmem:[%s7 + $0x498] sm:$0xff]
  %v1303 = vld [vmem:[%s7 + $0x4a0] sm:$0xff]
  %v1304 = vld [vmem:[%s7 + $0x4a8] sm:$0xff]
  %v1305 = vld [vmem:[%s7 + $0x4b0] sm:$0xff]
  %v1306 = vld [vmem:[%s7 + $0x4b8] sm:$0xff]
  %v1307 = vld [vmem:[%s7 + $0x4c0] sm:$0xff]
  %v1308 = vld [vmem:[%s7 + $0x4c8] sm:$0xff]
  %v1309 = vld [vmem:[%s7 + $0x4d0] sm:$0xff]
  %v1310 = vld [vmem:[%s7 + $0x4d8] sm:$0xff]
  %v1311 = vld [vmem:[%s7 + $0x4e0] sm:$0xff]
  %v1312 = vld [vmem:[%s7 + $0x4e8] sm:$0xff]
  %v1313 = vld [vmem:[%s7 + $0x4f0] sm:$0xff]
  %v1314 = vld [vmem:[%s7 + $0x4f8] sm:$0xff]
  %v1315 = vld [vmem:[%s7 + $0x500] sm:$0xff]
  %v1316 = vld [vmem:[%s7 + $0x508] sm:$0xff]
  %v1317 = vld [vmem:[%s7 + $0x510] sm:$0xff]
  %v1318 = vld [vmem:[%s7 + $0x518] sm:$0xff]
  %v1319 = vld [vmem:[%s7 + $0x520] sm:$0xff]
  %v1320 = vld [vmem:[%s7 + $0x528] sm:$0xff]
  %v1321 = vld [vmem:[%s7 + $0x530] sm:$0xff]
  %v1322 = vld [vmem:[%s7 + $0x538] sm:$0xff]
  %v1323 = vld [vmem:[%s7 + $0x540] sm:$0xff]
  %v1324 = vld [vmem:[%s7 + $0x548] sm:$0xff]
  %v1325 = vld [vmem:[%s7 + $0x550] sm:$0xff]
  %v1326 = vld [vmem:[%s7 + $0x558] sm:$0xff]
  %v1327 = vld [vmem:[%s7 + $0x560] sm:$0xff]
  %v1328 = vld [vmem:[%s7 + $0x568] sm:$0xff]
  %v1329 = vld [vmem:[%s7 + $0x570] sm:$0xff]
  %v1330 = vld [vmem:[%s7 + $0x578] sm:$0xff]
  %v1331 = vld [vmem:[%s7 + $0x580] sm:$0xff]
  %v1332 = vld [vmem:[%s7 + $0x588] sm:$0xff]
  %v1333 = vld [vmem:[%s7 + $0x590] sm:$0xff]
  %v1334 = vld [vmem:[%s7 + $0x598] sm:$0xff]
  %v1335 = vld [vmem:[%s7 + $0x5a0] sm:$0xff]
  %v1336 = vld [vmem:[%s7 + $0x5a8] sm:$0xff]
  %v1337 = vld [vmem:[%s7 + $0x5b0] sm:$0xff]
  %v1338 = vld [vmem:[%s7 + $0x5b8] sm:$0xff]
  %v1339 = vld [vmem:[%s7 + $0x5c0] sm:$0xff]
  %v1340 = vld [vmem:[%s7 + $0x5c8] sm:$0xff]
  %v1341 = vld [vmem:[%s7 + $0x5d0] sm:$0xff]
  %v1342 = vld [vmem:[%s7 + $0x5d8] sm:$0xff]
  %v1343 = vld [vmem:[%s7 + $0x5e0] sm:$0xff]
  %v1344 = vld [vmem:[%s7 + $0x5e8] sm:$0xff]
  %v1345 = vld [vmem:[%s7 + $0x5f0] sm:$0xff]
  %v1346 = vld [vmem:[%s7 + $0x5f8] sm:$0xff]
  %v1347 = vld [vmem:[%s7 + $0x600] sm:$0xff]
  %v1348 = vld [vmem:[%s7 + $0x608] sm:$0xff]
  %v1349 = vld [vmem:[%s7 + $0x610] sm:$0xff]
  %v1350 = vld [vmem:[%s7 + $0x618] sm:$0xff]
  %v1351 = vld [vmem:[%s7 + $0x620] sm:$0xff]
  %v1352 = vld [vmem:[%s7 + $0x628] sm:$0xff]
  %v1353 = vld [vmem:[%s7 + $0x630] sm:$0xff]
  %v1354 = vld [vmem:[%s7 + $0x638] sm:$0xff]
  %v1355 = vld [vmem:[%s7 + $0x640] sm:$0xff]
  %v1356 = vld [vmem:[%s7 + $0x648] sm:$0xff]
  %v1357 = vld [vmem:[%s7 + $0x650] sm:$0xff]
  %v1358 = vld [vmem:[%s7 + $0x658] sm:$0xff]
  %v1359 = vld [vmem:[%s7 + $0x660] sm:$0xff]
  %v1360 = vld [vmem:[%s7 + $0x668] sm:$0xff]
  %v1361 = vld [vmem:[%s7 + $0x670] sm:$0xff]
  %v1362 = vld [vmem:[%s7 + $0x678] sm:$0xff]
  %v1363 = vld [vmem:[%s7 + $0x680] sm:$0xff]
  %v1364 = vld [vmem:[%s7 + $0x688] sm:$0xff]
  %v1365 = vld [vmem:[%s7 + $0x690] sm:$0xff]
  %v1366 = vld [vmem:[%s7 + $0x698] sm:$0xff]
  %v1367 = vld [vmem:[%s7 + $0x6a0] sm:$0xff]
  %v1368 = vld [vmem:[%s7 + $0x6a8] sm:$0xff]
  %v1369 = vld [vmem:[%s7 + $0x6b0] sm:$0xff]
  %v1370 = vld [vmem:[%s7 + $0x6b8] sm:$0xff]
  %v1371 = vld [vmem:[%s7 + $0x6c0] sm:$0xff]
  %v1372 = vld [vmem:[%s7 + $0x6c8] sm:$0xff]
  %v1373 = vld [vmem:[%s7 + $0x6d0] sm:$0xff]
  %v1374 = vld [vmem:[%s7 + $0x6d8] sm:$0xff]
  %v1375 = vld [vmem:[%s7 + $0x6e0] sm:$0xff]
  %v1376 = vld [vmem:[%s7 + $0x6e8] sm:$0xff]
  %v1377 = vld [vmem:[%s7 + $0x6f0] sm:$0xff]
  %v1378 = vld [vmem:[%s7 + $0x6f8] sm:$0xff]
  %v1379 = vld [vmem:[%s7 + $0x700] sm:$0xff]
  %v1380 = vld [vmem:[%s7 + $0x708] sm:$0xff]
  %v1381 = vld [vmem:[%s7 + $0x710] sm:$0xff]
  %v1382 = vld [vmem:[%s7 + $0x718] sm:$0xff]
  %v1383 = vld [vmem:[%s7 + $0x720] sm:$0xff]
  %v1384 = vld [vmem:[%s7 + $0x728] sm:$0xff]
  %v1385 = vld [vmem:[%s7 + $0x730] sm:$0xff]
  %v1386 = vld [vmem:[%s7 + $0x738] sm:$0xff]
  %v1387 = vld [vmem:[%s7 + $0x740] sm:$0xff]
  %v1388 = vld [vmem:[%s7 + $0x748] sm:$0xff]
  %v1389 = vld [vmem:[%s7 + $0x750] sm:$0xff]
  %v1390 = vld [vmem:[%s7 + $0x758] sm:$0xff]
  %v1391 = vld [vmem:[%s7 + $0x760] sm:$0xff]
  %v1392 = vld [vmem:[%s7 + $0x768] sm:$0xff]
  %v1393 = vld [vmem:[%s7 + $0x770] sm:$0xff]
  %v1394 = vld [vmem:[%s7 + $0x778] sm:$0xff]
  %v1395 = vld [vmem:[%s7 + $0x780] sm:$0xff]
  %v1396 = vld [vmem:[%s7 + $0x788] sm:$0xff]
  %v1397 = vld [vmem:[%s7 + $0x790] sm:$0xff]
  %v1398 = vld [vmem:[%s7 + $0x798] sm:$0xff]
  %v1399 = vld [vmem:[%s7 + $0x7a0] sm:$0xff]
  %v1400 = vld [vmem:[%s7 + $0x7a8] sm:$0xff]
  %v1401 = vld [vmem:[%s7 + $0x7b0] sm:$0xff]
  %v1402 = vld [vmem:[%s7 + $0x7b8] sm:$0xff]
  %v1403 = vld [vmem:[%s7 + $0x7c0] sm:$0xff]
  %v1404 = vld [vmem:[%s7 + $0x7c8] sm:$0xff]
  %v1405 = vld [vmem:[%s7 + $0x7d0] sm:$0xff]
  %v1406 = vld [vmem:[%s7 + $0x7d8] sm:$0xff]
  %v1407 = vld [vmem:[%s7 + $0x7e0] sm:$0xff]
  %v1408 = vld [vmem:[%s7 + $0x7e8] sm:$0xff]
  %v1409 = vld [vmem:[%s7 + $0x7f0] sm:$0xff]
  %v1410 = vld [vmem:[%s7 + $0x7f8] sm:$0xff]
  %v1411 = vld [vmem:[%s8] sm:$0xff]
  %v1413 = vlaneseq
  %v1414 = vshrl.u32 %v1413, 7
  %v1415 = vsub.s32 0, %v1414
  %v1416 = vrot.slane %v1411, %v1415
  %v1417 = vlaneseq
  %v1418 = vshrl.u32 %v1417, 7
  %v1419 = vsub.s32 1, %v1418
  %v1420 = vrot.slane %v1411, %v1419
  %v1421 = vlaneseq
  %v1422 = vshrl.u32 %v1421, 7
  %v1423 = vsub.s32 2, %v1422
  %v1424 = vrot.slane %v1411, %v1423
  %v1425 = vlaneseq
  %v1426 = vshrl.u32 %v1425, 7
  %v1427 = vsub.s32 3, %v1426
  %v1428 = vrot.slane %v1411, %v1427
  %v1429 = vlaneseq
  %v1430 = vshrl.u32 %v1429, 7
  %v1431 = vsub.s32 4, %v1430
  %v1432 = vrot.slane %v1411, %v1431
  %v1433 = vlaneseq
  %v1434 = vshrl.u32 %v1433, 7
  %v1435 = vsub.s32 5, %v1434
  %v1436 = vrot.slane %v1411, %v1435
  %v1437 = vlaneseq
  %v1438 = vshrl.u32 %v1437, 7
  %v1439 = vsub.s32 6, %v1438
  %v1440 = vrot.slane %v1411, %v1439
  %v1441 = vlaneseq
  %v1442 = vshrl.u32 %v1441, 7
  %v1443 = vsub.s32 7, %v1442
  %v1444 = vrot.slane %v1411, %v1443
  %v1709 = vunpack.c.l.b16 %v1155
  %v1710 = vunpack.c.h.b16 %v1155
  %v1711 = vunpack.c.l.b16 %v1156
  %v1712 = vunpack.c.h.b16 %v1156
  %v1713 = vunpack.c.l.b16 %v1157
  %v1714 = vunpack.c.h.b16 %v1157
  %v1715 = vunpack.c.l.b16 %v1158
  %v1716 = vunpack.c.h.b16 %v1158
  %v1717 = vunpack.c.l.b16 %v1159
  %v1718 = vunpack.c.h.b16 %v1159
  %v1719 = vunpack.c.l.b16 %v1160
  %v1720 = vunpack.c.h.b16 %v1160
  %v1721 = vunpack.c.l.b16 %v1161
  %v1722 = vunpack.c.h.b16 %v1161
  %v1723 = vunpack.c.l.b16 %v1162
  %v1724 = vunpack.c.h.b16 %v1162
  %v1725 = vunpack.c.l.b16 %v1163
  %v1726 = vunpack.c.h.b16 %v1163
  %v1727 = vunpack.c.l.b16 %v1164
  %v1728 = vunpack.c.h.b16 %v1164
  %v1729 = vunpack.c.l.b16 %v1165
  %v1730 = vunpack.c.h.b16 %v1165
  %v1731 = vunpack.c.l.b16 %v1166
  %v1732 = vunpack.c.h.b16 %v1166
  %v1733 = vunpack.c.l.b16 %v1167
  %v1734 = vunpack.c.h.b16 %v1167
  %v1735 = vunpack.c.l.b16 %v1168
  %v1736 = vunpack.c.h.b16 %v1168
  %v1737 = vunpack.c.l.b16 %v1169
  %v1738 = vunpack.c.h.b16 %v1169
  %v1739 = vunpack.c.l.b16 %v1170
  %v1740 = vunpack.c.h.b16 %v1170
  %v1741 = vunpack.c.l.b16 %v1171
  %v1742 = vunpack.c.h.b16 %v1171
  %v1743 = vunpack.c.l.b16 %v1172
  %v1744 = vunpack.c.h.b16 %v1172
  %v1745 = vunpack.c.l.b16 %v1173
  %v1746 = vunpack.c.h.b16 %v1173
  %v1747 = vunpack.c.l.b16 %v1174
  %v1748 = vunpack.c.h.b16 %v1174
  %v1749 = vunpack.c.l.b16 %v1175
  %v1750 = vunpack.c.h.b16 %v1175
  %v1751 = vunpack.c.l.b16 %v1176
  %v1752 = vunpack.c.h.b16 %v1176
  %v1753 = vunpack.c.l.b16 %v1177
  %v1754 = vunpack.c.h.b16 %v1177
  %v1755 = vunpack.c.l.b16 %v1178
  %v1756 = vunpack.c.h.b16 %v1178
  %v1757 = vunpack.c.l.b16 %v1179
  %v1758 = vunpack.c.h.b16 %v1179
  %v1759 = vunpack.c.l.b16 %v1180
  %v1760 = vunpack.c.h.b16 %v1180
  %v1761 = vunpack.c.l.b16 %v1181
  %v1762 = vunpack.c.h.b16 %v1181
  %v1763 = vunpack.c.l.b16 %v1182
  %v1764 = vunpack.c.h.b16 %v1182
  %v1765 = vunpack.c.l.b16 %v1183
  %v1766 = vunpack.c.h.b16 %v1183
  %v1767 = vunpack.c.l.b16 %v1184
  %v1768 = vunpack.c.h.b16 %v1184
  %v1769 = vunpack.c.l.b16 %v1185
  %v1770 = vunpack.c.h.b16 %v1185
  %v1771 = vunpack.c.l.b16 %v1186
  %v1772 = vunpack.c.h.b16 %v1186
  %v1773 = vunpack.c.l.b16 %v1187
  %v1774 = vunpack.c.h.b16 %v1187
  %v1775 = vunpack.c.l.b16 %v1188
  %v1776 = vunpack.c.h.b16 %v1188
  %v1777 = vunpack.c.l.b16 %v1189
  %v1778 = vunpack.c.h.b16 %v1189
  %v1779 = vunpack.c.l.b16 %v1190
  %v1780 = vunpack.c.h.b16 %v1190
  %v1781 = vunpack.c.l.b16 %v1191
  %v1782 = vunpack.c.h.b16 %v1191
  %v1783 = vunpack.c.l.b16 %v1192
  %v1784 = vunpack.c.h.b16 %v1192
  %v1785 = vunpack.c.l.b16 %v1193
  %v1786 = vunpack.c.h.b16 %v1193
  %v1787 = vunpack.c.l.b16 %v1194
  %v1788 = vunpack.c.h.b16 %v1194
  %v1789 = vunpack.c.l.b16 %v1195
  %v1790 = vunpack.c.h.b16 %v1195
  %v1791 = vunpack.c.l.b16 %v1196
  %v1792 = vunpack.c.h.b16 %v1196
  %v1793 = vunpack.c.l.b16 %v1197
  %v1794 = vunpack.c.h.b16 %v1197
  %v1795 = vunpack.c.l.b16 %v1198
  %v1796 = vunpack.c.h.b16 %v1198
  %v1797 = vunpack.c.l.b16 %v1199
  %v1798 = vunpack.c.h.b16 %v1199
  %v1799 = vunpack.c.l.b16 %v1200
  %v1800 = vunpack.c.h.b16 %v1200
  %v1801 = vunpack.c.l.b16 %v1201
  %v1802 = vunpack.c.h.b16 %v1201
  %v1803 = vunpack.c.l.b16 %v1202
  %v1804 = vunpack.c.h.b16 %v1202
  %v1805 = vunpack.c.l.b16 %v1203
  %v1806 = vunpack.c.h.b16 %v1203
  %v1807 = vunpack.c.l.b16 %v1204
  %v1808 = vunpack.c.h.b16 %v1204
  %v1809 = vunpack.c.l.b16 %v1205
  %v1810 = vunpack.c.h.b16 %v1205
  %v1811 = vunpack.c.l.b16 %v1206
  %v1812 = vunpack.c.h.b16 %v1206
  %v1813 = vunpack.c.l.b16 %v1207
  %v1814 = vunpack.c.h.b16 %v1207
  %v1815 = vunpack.c.l.b16 %v1208
  %v1816 = vunpack.c.h.b16 %v1208
  %v1817 = vunpack.c.l.b16 %v1209
  %v1818 = vunpack.c.h.b16 %v1209
  %v1819 = vunpack.c.l.b16 %v1210
  %v1820 = vunpack.c.h.b16 %v1210
  %v1821 = vunpack.c.l.b16 %v1211
  %v1822 = vunpack.c.h.b16 %v1211
  %v1823 = vunpack.c.l.b16 %v1212
  %v1824 = vunpack.c.h.b16 %v1212
  %v1825 = vunpack.c.l.b16 %v1213
  %v1826 = vunpack.c.h.b16 %v1213
  %v1827 = vunpack.c.l.b16 %v1214
  %v1828 = vunpack.c.h.b16 %v1214
  %v1829 = vunpack.c.l.b16 %v1215
  %v1830 = vunpack.c.h.b16 %v1215
  %v1831 = vunpack.c.l.b16 %v1216
  %v1832 = vunpack.c.h.b16 %v1216
  %v1833 = vunpack.c.l.b16 %v1217
  %v1834 = vunpack.c.h.b16 %v1217
  %v1835 = vunpack.c.l.b16 %v1218
  %v1836 = vunpack.c.h.b16 %v1218
  %v1837 = vunpack.c.l.b16 %v1219
  %v1838 = vunpack.c.h.b16 %v1219
  %v1839 = vunpack.c.l.b16 %v1220
  %v1840 = vunpack.c.h.b16 %v1220
  %v1841 = vunpack.c.l.b16 %v1221
  %v1842 = vunpack.c.h.b16 %v1221
  %v1843 = vunpack.c.l.b16 %v1222
  %v1844 = vunpack.c.h.b16 %v1222
  %v1845 = vunpack.c.l.b16 %v1223
  %v1846 = vunpack.c.h.b16 %v1223
  %v1847 = vunpack.c.l.b16 %v1224
  %v1848 = vunpack.c.h.b16 %v1224
  %v1849 = vunpack.c.l.b16 %v1225
  %v1850 = vunpack.c.h.b16 %v1225
  %v1851 = vunpack.c.l.b16 %v1226
  %v1852 = vunpack.c.h.b16 %v1226
  %v1853 = vunpack.c.l.b16 %v1227
  %v1854 = vunpack.c.h.b16 %v1227
  %v1855 = vunpack.c.l.b16 %v1228
  %v1856 = vunpack.c.h.b16 %v1228
  %v1857 = vunpack.c.l.b16 %v1229
  %v1858 = vunpack.c.h.b16 %v1229
  %v1859 = vunpack.c.l.b16 %v1230
  %v1860 = vunpack.c.h.b16 %v1230
  %v1861 = vunpack.c.l.b16 %v1231
  %v1862 = vunpack.c.h.b16 %v1231
  %v1863 = vunpack.c.l.b16 %v1232
  %v1864 = vunpack.c.h.b16 %v1232
  %v1865 = vunpack.c.l.b16 %v1233
  %v1866 = vunpack.c.h.b16 %v1233
  %v1867 = vunpack.c.l.b16 %v1234
  %v1868 = vunpack.c.h.b16 %v1234
  %v1869 = vunpack.c.l.b16 %v1235
  %v1870 = vunpack.c.h.b16 %v1235
  %v1871 = vunpack.c.l.b16 %v1236
  %v1872 = vunpack.c.h.b16 %v1236
  %v1873 = vunpack.c.l.b16 %v1237
  %v1874 = vunpack.c.h.b16 %v1237
  %v1875 = vunpack.c.l.b16 %v1238
  %v1876 = vunpack.c.h.b16 %v1238
  %v1877 = vunpack.c.l.b16 %v1239
  %v1878 = vunpack.c.h.b16 %v1239
  %v1879 = vunpack.c.l.b16 %v1240
  %v1880 = vunpack.c.h.b16 %v1240
  %v1881 = vunpack.c.l.b16 %v1241
  %v1882 = vunpack.c.h.b16 %v1241
  %v1883 = vunpack.c.l.b16 %v1242
  %v1884 = vunpack.c.h.b16 %v1242
  %v1885 = vunpack.c.l.b16 %v1243
  %v1886 = vunpack.c.h.b16 %v1243
  %v1887 = vunpack.c.l.b16 %v1244
  %v1888 = vunpack.c.h.b16 %v1244
  %v1889 = vunpack.c.l.b16 %v1245
  %v1890 = vunpack.c.h.b16 %v1245
  %v1891 = vunpack.c.l.b16 %v1246
  %v1892 = vunpack.c.h.b16 %v1246
  %v1893 = vunpack.c.l.b16 %v1247
  %v1894 = vunpack.c.h.b16 %v1247
  %v1895 = vunpack.c.l.b16 %v1248
  %v1896 = vunpack.c.h.b16 %v1248
  %v1897 = vunpack.c.l.b16 %v1249
  %v1898 = vunpack.c.h.b16 %v1249
  %v1899 = vunpack.c.l.b16 %v1250
  %v1900 = vunpack.c.h.b16 %v1250
  %v1901 = vunpack.c.l.b16 %v1251
  %v1902 = vunpack.c.h.b16 %v1251
  %v1903 = vunpack.c.l.b16 %v1252
  %v1904 = vunpack.c.h.b16 %v1252
  %v1905 = vunpack.c.l.b16 %v1253
  %v1906 = vunpack.c.h.b16 %v1253
  %v1907 = vunpack.c.l.b16 %v1254
  %v1908 = vunpack.c.h.b16 %v1254
  %v1909 = vunpack.c.l.b16 %v1255
  %v1910 = vunpack.c.h.b16 %v1255
  %v1911 = vunpack.c.l.b16 %v1256
  %v1912 = vunpack.c.h.b16 %v1256
  %v1913 = vunpack.c.l.b16 %v1257
  %v1914 = vunpack.c.h.b16 %v1257
  %v1915 = vunpack.c.l.b16 %v1258
  %v1916 = vunpack.c.h.b16 %v1258
  %v1917 = vunpack.c.l.b16 %v1259
  %v1918 = vunpack.c.h.b16 %v1259
  %v1919 = vunpack.c.l.b16 %v1260
  %v1920 = vunpack.c.h.b16 %v1260
  %v1921 = vunpack.c.l.b16 %v1261
  %v1922 = vunpack.c.h.b16 %v1261
  %v1923 = vunpack.c.l.b16 %v1262
  %v1924 = vunpack.c.h.b16 %v1262
  %v1925 = vunpack.c.l.b16 %v1263
  %v1926 = vunpack.c.h.b16 %v1263
  %v1927 = vunpack.c.l.b16 %v1264
  %v1928 = vunpack.c.h.b16 %v1264
  %v1929 = vunpack.c.l.b16 %v1265
  %v1930 = vunpack.c.h.b16 %v1265
  %v1931 = vunpack.c.l.b16 %v1266
  %v1932 = vunpack.c.h.b16 %v1266
  %v1933 = vunpack.c.l.b16 %v1267
  %v1934 = vunpack.c.h.b16 %v1267
  %v1935 = vunpack.c.l.b16 %v1268
  %v1936 = vunpack.c.h.b16 %v1268
  %v1937 = vunpack.c.l.b16 %v1269
  %v1938 = vunpack.c.h.b16 %v1269
  %v1939 = vunpack.c.l.b16 %v1270
  %v1940 = vunpack.c.h.b16 %v1270
  %v1941 = vunpack.c.l.b16 %v1271
  %v1942 = vunpack.c.h.b16 %v1271
  %v1943 = vunpack.c.l.b16 %v1272
  %v1944 = vunpack.c.h.b16 %v1272
  %v1945 = vunpack.c.l.b16 %v1273
  %v1946 = vunpack.c.h.b16 %v1273
  %v1947 = vunpack.c.l.b16 %v1274
  %v1948 = vunpack.c.h.b16 %v1274
  %v1949 = vunpack.c.l.b16 %v1275
  %v1950 = vunpack.c.h.b16 %v1275
  %v1951 = vunpack.c.l.b16 %v1276
  %v1952 = vunpack.c.h.b16 %v1276
  %v1953 = vunpack.c.l.b16 %v1277
  %v1954 = vunpack.c.h.b16 %v1277
  %v1955 = vunpack.c.l.b16 %v1278
  %v1956 = vunpack.c.h.b16 %v1278
  %v1957 = vunpack.c.l.b16 %v1279
  %v1958 = vunpack.c.h.b16 %v1279
  %v1959 = vunpack.c.l.b16 %v1280
  %v1960 = vunpack.c.h.b16 %v1280
  %v1961 = vunpack.c.l.b16 %v1281
  %v1962 = vunpack.c.h.b16 %v1281
  %v1963 = vunpack.c.l.b16 %v1282
  %v1964 = vunpack.c.h.b16 %v1282
  %v1965 = vunpack.c.l.b16 %v1283
  %v1966 = vunpack.c.h.b16 %v1283
  %v1967 = vunpack.c.l.b16 %v1284
  %v1968 = vunpack.c.h.b16 %v1284
  %v1969 = vunpack.c.l.b16 %v1285
  %v1970 = vunpack.c.h.b16 %v1285
  %v1971 = vunpack.c.l.b16 %v1286
  %v1972 = vunpack.c.h.b16 %v1286
  %v1973 = vunpack.c.l.b16 %v1287
  %v1974 = vunpack.c.h.b16 %v1287
  %v1975 = vunpack.c.l.b16 %v1288
  %v1976 = vunpack.c.h.b16 %v1288
  %v1977 = vunpack.c.l.b16 %v1289
  %v1978 = vunpack.c.h.b16 %v1289
  %v1979 = vunpack.c.l.b16 %v1290
  %v1980 = vunpack.c.h.b16 %v1290
  %v1981 = vunpack.c.l.b16 %v1291
  %v1982 = vunpack.c.h.b16 %v1291
  %v1983 = vunpack.c.l.b16 %v1292
  %v1984 = vunpack.c.h.b16 %v1292
  %v1985 = vunpack.c.l.b16 %v1293
  %v1986 = vunpack.c.h.b16 %v1293
  %v1987 = vunpack.c.l.b16 %v1294
  %v1988 = vunpack.c.h.b16 %v1294
  %v1989 = vunpack.c.l.b16 %v1295
  %v1990 = vunpack.c.h.b16 %v1295
  %v1991 = vunpack.c.l.b16 %v1296
  %v1992 = vunpack.c.h.b16 %v1296
  %v1993 = vunpack.c.l.b16 %v1297
  %v1994 = vunpack.c.h.b16 %v1297
  %v1995 = vunpack.c.l.b16 %v1298
  %v1996 = vunpack.c.h.b16 %v1298
  %v1997 = vunpack.c.l.b16 %v1299
  %v1998 = vunpack.c.h.b16 %v1299
  %v1999 = vunpack.c.l.b16 %v1300
  %v2000 = vunpack.c.h.b16 %v1300
  %v2001 = vunpack.c.l.b16 %v1301
  %v2002 = vunpack.c.h.b16 %v1301
  %v2003 = vunpack.c.l.b16 %v1302
  %v2004 = vunpack.c.h.b16 %v1302
  %v2005 = vunpack.c.l.b16 %v1303
  %v2006 = vunpack.c.h.b16 %v1303
  %v2007 = vunpack.c.l.b16 %v1304
  %v2008 = vunpack.c.h.b16 %v1304
  %v2009 = vunpack.c.l.b16 %v1305
  %v2010 = vunpack.c.h.b16 %v1305
  %v2011 = vunpack.c.l.b16 %v1306
  %v2012 = vunpack.c.h.b16 %v1306
  %v2013 = vunpack.c.l.b16 %v1307
  %v2014 = vunpack.c.h.b16 %v1307
  %v2015 = vunpack.c.l.b16 %v1308
  %v2016 = vunpack.c.h.b16 %v1308
  %v2017 = vunpack.c.l.b16 %v1309
  %v2018 = vunpack.c.h.b16 %v1309
  %v2019 = vunpack.c.l.b16 %v1310
  %v2020 = vunpack.c.h.b16 %v1310
  %v2021 = vunpack.c.l.b16 %v1311
  %v2022 = vunpack.c.h.b16 %v1311
  %v2023 = vunpack.c.l.b16 %v1312
  %v2024 = vunpack.c.h.b16 %v1312
  %v2025 = vunpack.c.l.b16 %v1313
  %v2026 = vunpack.c.h.b16 %v1313
  %v2027 = vunpack.c.l.b16 %v1314
  %v2028 = vunpack.c.h.b16 %v1314
  %v2029 = vunpack.c.l.b16 %v1315
  %v2030 = vunpack.c.h.b16 %v1315
  %v2031 = vunpack.c.l.b16 %v1316
  %v2032 = vunpack.c.h.b16 %v1316
  %v2033 = vunpack.c.l.b16 %v1317
  %v2034 = vunpack.c.h.b16 %v1317
  %v2035 = vunpack.c.l.b16 %v1318
  %v2036 = vunpack.c.h.b16 %v1318
  %v2037 = vunpack.c.l.b16 %v1319
  %v2038 = vunpack.c.h.b16 %v1319
  %v2039 = vunpack.c.l.b16 %v1320
  %v2040 = vunpack.c.h.b16 %v1320
  %v2041 = vunpack.c.l.b16 %v1321
  %v2042 = vunpack.c.h.b16 %v1321
  %v2043 = vunpack.c.l.b16 %v1322
  %v2044 = vunpack.c.h.b16 %v1322
  %v2045 = vunpack.c.l.b16 %v1323
  %v2046 = vunpack.c.h.b16 %v1323
  %v2047 = vunpack.c.l.b16 %v1324
  %v2048 = vunpack.c.h.b16 %v1324
  %v2049 = vunpack.c.l.b16 %v1325
  %v2050 = vunpack.c.h.b16 %v1325
  %v2051 = vunpack.c.l.b16 %v1326
  %v2052 = vunpack.c.h.b16 %v1326
  %v2053 = vunpack.c.l.b16 %v1327
  %v2054 = vunpack.c.h.b16 %v1327
  %v2055 = vunpack.c.l.b16 %v1328
  %v2056 = vunpack.c.h.b16 %v1328
  %v2057 = vunpack.c.l.b16 %v1329
  %v2058 = vunpack.c.h.b16 %v1329
  %v2059 = vunpack.c.l.b16 %v1330
  %v2060 = vunpack.c.h.b16 %v1330
  %v2061 = vunpack.c.l.b16 %v1331
  %v2062 = vunpack.c.h.b16 %v1331
  %v2063 = vunpack.c.l.b16 %v1332
  %v2064 = vunpack.c.h.b16 %v1332
  %v2065 = vunpack.c.l.b16 %v1333
  %v2066 = vunpack.c.h.b16 %v1333
  %v2067 = vunpack.c.l.b16 %v1334
  %v2068 = vunpack.c.h.b16 %v1334
  %v2069 = vunpack.c.l.b16 %v1335
  %v2070 = vunpack.c.h.b16 %v1335
  %v2071 = vunpack.c.l.b16 %v1336
  %v2072 = vunpack.c.h.b16 %v1336
  %v2073 = vunpack.c.l.b16 %v1337
  %v2074 = vunpack.c.h.b16 %v1337
  %v2075 = vunpack.c.l.b16 %v1338
  %v2076 = vunpack.c.h.b16 %v1338
  %v2077 = vunpack.c.l.b16 %v1339
  %v2078 = vunpack.c.h.b16 %v1339
  %v2079 = vunpack.c.l.b16 %v1340
  %v2080 = vunpack.c.h.b16 %v1340
  %v2081 = vunpack.c.l.b16 %v1341
  %v2082 = vunpack.c.h.b16 %v1341
  %v2083 = vunpack.c.l.b16 %v1342
  %v2084 = vunpack.c.h.b16 %v1342
  %v2085 = vunpack.c.l.b16 %v1343
  %v2086 = vunpack.c.h.b16 %v1343
  %v2087 = vunpack.c.l.b16 %v1344
  %v2088 = vunpack.c.h.b16 %v1344
  %v2089 = vunpack.c.l.b16 %v1345
  %v2090 = vunpack.c.h.b16 %v1345
  %v2091 = vunpack.c.l.b16 %v1346
  %v2092 = vunpack.c.h.b16 %v1346
  %v2093 = vunpack.c.l.b16 %v1347
  %v2094 = vunpack.c.h.b16 %v1347
  %v2095 = vunpack.c.l.b16 %v1348
  %v2096 = vunpack.c.h.b16 %v1348
  %v2097 = vunpack.c.l.b16 %v1349
  %v2098 = vunpack.c.h.b16 %v1349
  %v2099 = vunpack.c.l.b16 %v1350
  %v2100 = vunpack.c.h.b16 %v1350
  %v2101 = vunpack.c.l.b16 %v1351
  %v2102 = vunpack.c.h.b16 %v1351
  %v2103 = vunpack.c.l.b16 %v1352
  %v2104 = vunpack.c.h.b16 %v1352
  %v2105 = vunpack.c.l.b16 %v1353
  %v2106 = vunpack.c.h.b16 %v1353
  %v2107 = vunpack.c.l.b16 %v1354
  %v2108 = vunpack.c.h.b16 %v1354
  %v2109 = vunpack.c.l.b16 %v1355
  %v2110 = vunpack.c.h.b16 %v1355
  %v2111 = vunpack.c.l.b16 %v1356
  %v2112 = vunpack.c.h.b16 %v1356
  %v2113 = vunpack.c.l.b16 %v1357
  %v2114 = vunpack.c.h.b16 %v1357
  %v2115 = vunpack.c.l.b16 %v1358
  %v2116 = vunpack.c.h.b16 %v1358
  %v2117 = vunpack.c.l.b16 %v1359
  %v2118 = vunpack.c.h.b16 %v1359
  %v2119 = vunpack.c.l.b16 %v1360
  %v2120 = vunpack.c.h.b16 %v1360
  %v2121 = vunpack.c.l.b16 %v1361
  %v2122 = vunpack.c.h.b16 %v1361
  %v2123 = vunpack.c.l.b16 %v1362
  %v2124 = vunpack.c.h.b16 %v1362
  %v2125 = vunpack.c.l.b16 %v1363
  %v2126 = vunpack.c.h.b16 %v1363
  %v2127 = vunpack.c.l.b16 %v1364
  %v2128 = vunpack.c.h.b16 %v1364
  %v2129 = vunpack.c.l.b16 %v1365
  %v2130 = vunpack.c.h.b16 %v1365
  %v2131 = vunpack.c.l.b16 %v1366
  %v2132 = vunpack.c.h.b16 %v1366
  %v2133 = vunpack.c.l.b16 %v1367
  %v2134 = vunpack.c.h.b16 %v1367
  %v2135 = vunpack.c.l.b16 %v1368
  %v2136 = vunpack.c.h.b16 %v1368
  %v2137 = vunpack.c.l.b16 %v1369
  %v2138 = vunpack.c.h.b16 %v1369
  %v2139 = vunpack.c.l.b16 %v1370
  %v2140 = vunpack.c.h.b16 %v1370
  %v2141 = vunpack.c.l.b16 %v1371
  %v2142 = vunpack.c.h.b16 %v1371
  %v2143 = vunpack.c.l.b16 %v1372
  %v2144 = vunpack.c.h.b16 %v1372
  %v2145 = vunpack.c.l.b16 %v1373
  %v2146 = vunpack.c.h.b16 %v1373
  %v2147 = vunpack.c.l.b16 %v1374
  %v2148 = vunpack.c.h.b16 %v1374
  %v2149 = vunpack.c.l.b16 %v1375
  %v2150 = vunpack.c.h.b16 %v1375
  %v2151 = vunpack.c.l.b16 %v1376
  %v2152 = vunpack.c.h.b16 %v1376
  %v2153 = vunpack.c.l.b16 %v1377
  %v2154 = vunpack.c.h.b16 %v1377
  %v2155 = vunpack.c.l.b16 %v1378
  %v2156 = vunpack.c.h.b16 %v1378
  %v2157 = vunpack.c.l.b16 %v1379
  %v2158 = vunpack.c.h.b16 %v1379
  %v2159 = vunpack.c.l.b16 %v1380
  %v2160 = vunpack.c.h.b16 %v1380
  %v2161 = vunpack.c.l.b16 %v1381
  %v2162 = vunpack.c.h.b16 %v1381
  %v2163 = vunpack.c.l.b16 %v1382
  %v2164 = vunpack.c.h.b16 %v1382
  %v2165 = vunpack.c.l.b16 %v1383
  %v2166 = vunpack.c.h.b16 %v1383
  %v2167 = vunpack.c.l.b16 %v1384
  %v2168 = vunpack.c.h.b16 %v1384
  %v2169 = vunpack.c.l.b16 %v1385
  %v2170 = vunpack.c.h.b16 %v1385
  %v2171 = vunpack.c.l.b16 %v1386
  %v2172 = vunpack.c.h.b16 %v1386
  %v2173 = vunpack.c.l.b16 %v1387
  %v2174 = vunpack.c.h.b16 %v1387
  %v2175 = vunpack.c.l.b16 %v1388
  %v2176 = vunpack.c.h.b16 %v1388
  %v2177 = vunpack.c.l.b16 %v1389
  %v2178 = vunpack.c.h.b16 %v1389
  %v2179 = vunpack.c.l.b16 %v1390
  %v2180 = vunpack.c.h.b16 %v1390
  %v2181 = vunpack.c.l.b16 %v1391
  %v2182 = vunpack.c.h.b16 %v1391
  %v2183 = vunpack.c.l.b16 %v1392
  %v2184 = vunpack.c.h.b16 %v1392
  %v2185 = vunpack.c.l.b16 %v1393
  %v2186 = vunpack.c.h.b16 %v1393
  %v2187 = vunpack.c.l.b16 %v1394
  %v2188 = vunpack.c.h.b16 %v1394
  %v2189 = vunpack.c.l.b16 %v1395
  %v2190 = vunpack.c.h.b16 %v1395
  %v2191 = vunpack.c.l.b16 %v1396
  %v2192 = vunpack.c.h.b16 %v1396
  %v2193 = vunpack.c.l.b16 %v1397
  %v2194 = vunpack.c.h.b16 %v1397
  %v2195 = vunpack.c.l.b16 %v1398
  %v2196 = vunpack.c.h.b16 %v1398
  %v2197 = vunpack.c.l.b16 %v1399
  %v2198 = vunpack.c.h.b16 %v1399
  %v2199 = vunpack.c.l.b16 %v1400
  %v2200 = vunpack.c.h.b16 %v1400
  %v2201 = vunpack.c.l.b16 %v1401
  %v2202 = vunpack.c.h.b16 %v1401
  %v2203 = vunpack.c.l.b16 %v1402
  %v2204 = vunpack.c.h.b16 %v1402
  %v2205 = vunpack.c.l.b16 %v1403
  %v2206 = vunpack.c.h.b16 %v1403
  %v2207 = vunpack.c.l.b16 %v1404
  %v2208 = vunpack.c.h.b16 %v1404
  %v2209 = vunpack.c.l.b16 %v1405
  %v2210 = vunpack.c.h.b16 %v1405
  %v2211 = vunpack.c.l.b16 %v1406
  %v2212 = vunpack.c.h.b16 %v1406
  %v2213 = vunpack.c.l.b16 %v1407
  %v2214 = vunpack.c.h.b16 %v1407
  %v2215 = vunpack.c.l.b16 %v1408
  %v2216 = vunpack.c.h.b16 %v1408
  %v2217 = vunpack.c.l.b16 %v1409
  %v2218 = vunpack.c.h.b16 %v1409
  %v2219 = vunpack.c.l.b16 %v1410
  %v2220 = vunpack.c.h.b16 %v1410
  %v2221 = vpack.c.b16 %v1717, %v1709
  %v2222 = vpack.c.b16 %v1718, %v1710
  %v2223 = vpack.c.b16 %v1719, %v1711
  %v2224 = vpack.c.b16 %v1720, %v1712
  %v2225 = vpack.c.b16 %v1721, %v1713
  %v2226 = vpack.c.b16 %v1722, %v1714
  %v2227 = vpack.c.b16 %v1723, %v1715
  %v2228 = vpack.c.b16 %v1724, %v1716
  %v2229 = vpack.c.b16 %v1733, %v1725
  %v2230 = vpack.c.b16 %v1734, %v1726
  %v2231 = vpack.c.b16 %v1735, %v1727
  %v2232 = vpack.c.b16 %v1736, %v1728
  %v2233 = vpack.c.b16 %v1737, %v1729
  %v2234 = vpack.c.b16 %v1738, %v1730
  %v2235 = vpack.c.b16 %v1739, %v1731
  %v2236 = vpack.c.b16 %v1740, %v1732
  %v2237 = vpack.c.b16 %v1749, %v1741
  %v2238 = vpack.c.b16 %v1750, %v1742
  %v2239 = vpack.c.b16 %v1751, %v1743
  %v2240 = vpack.c.b16 %v1752, %v1744
  %v2241 = vpack.c.b16 %v1753, %v1745
  %v2242 = vpack.c.b16 %v1754, %v1746
  %v2243 = vpack.c.b16 %v1755, %v1747
  %v2244 = vpack.c.b16 %v1756, %v1748
  %v2245 = vpack.c.b16 %v1765, %v1757
  %v2246 = vpack.c.b16 %v1766, %v1758
  %v2247 = vpack.c.b16 %v1767, %v1759
  %v2248 = vpack.c.b16 %v1768, %v1760
  %v2249 = vpack.c.b16 %v1769, %v1761
  %v2250 = vpack.c.b16 %v1770, %v1762
  %v2251 = vpack.c.b16 %v1771, %v1763
  %v2252 = vpack.c.b16 %v1772, %v1764
  %v2253 = vpack.c.b16 %v1781, %v1773
  %v2254 = vpack.c.b16 %v1782, %v1774
  %v2255 = vpack.c.b16 %v1783, %v1775
  %v2256 = vpack.c.b16 %v1784, %v1776
  %v2257 = vpack.c.b16 %v1785, %v1777
  %v2258 = vpack.c.b16 %v1786, %v1778
  %v2259 = vpack.c.b16 %v1787, %v1779
  %v2260 = vpack.c.b16 %v1788, %v1780
  %v2261 = vpack.c.b16 %v1797, %v1789
  %v2262 = vpack.c.b16 %v1798, %v1790
  %v2263 = vpack.c.b16 %v1799, %v1791
  %v2264 = vpack.c.b16 %v1800, %v1792
  %v2265 = vpack.c.b16 %v1801, %v1793
  %v2266 = vpack.c.b16 %v1802, %v1794
  %v2267 = vpack.c.b16 %v1803, %v1795
  %v2268 = vpack.c.b16 %v1804, %v1796
  %v2269 = vpack.c.b16 %v1813, %v1805
  %v2270 = vpack.c.b16 %v1814, %v1806
  %v2271 = vpack.c.b16 %v1815, %v1807
  %v2272 = vpack.c.b16 %v1816, %v1808
  %v2273 = vpack.c.b16 %v1817, %v1809
  %v2274 = vpack.c.b16 %v1818, %v1810
  %v2275 = vpack.c.b16 %v1819, %v1811
  %v2276 = vpack.c.b16 %v1820, %v1812
  %v2277 = vpack.c.b16 %v1829, %v1821
  %v2278 = vpack.c.b16 %v1830, %v1822
  %v2279 = vpack.c.b16 %v1831, %v1823
  %v2280 = vpack.c.b16 %v1832, %v1824
  %v2281 = vpack.c.b16 %v1833, %v1825
  %v2282 = vpack.c.b16 %v1834, %v1826
  %v2283 = vpack.c.b16 %v1835, %v1827
  %v2284 = vpack.c.b16 %v1836, %v1828
  %v2285 = vpack.c.b16 %v1845, %v1837
  %v2286 = vpack.c.b16 %v1846, %v1838
  %v2287 = vpack.c.b16 %v1847, %v1839
  %v2288 = vpack.c.b16 %v1848, %v1840
  %v2289 = vpack.c.b16 %v1849, %v1841
  %v2290 = vpack.c.b16 %v1850, %v1842
  %v2291 = vpack.c.b16 %v1851, %v1843
  %v2292 = vpack.c.b16 %v1852, %v1844
  %v2293 = vpack.c.b16 %v1861, %v1853
  %v2294 = vpack.c.b16 %v1862, %v1854
  %v2295 = vpack.c.b16 %v1863, %v1855
  %v2296 = vpack.c.b16 %v1864, %v1856
  %v2297 = vpack.c.b16 %v1865, %v1857
  %v2298 = vpack.c.b16 %v1866, %v1858
  %v2299 = vpack.c.b16 %v1867, %v1859
  %v2300 = vpack.c.b16 %v1868, %v1860
  %v2301 = vpack.c.b16 %v1877, %v1869
  %v2302 = vpack.c.b16 %v1878, %v1870
  %v2303 = vpack.c.b16 %v1879, %v1871
  %v2304 = vpack.c.b16 %v1880, %v1872
  %v2305 = vpack.c.b16 %v1881, %v1873
  %v2306 = vpack.c.b16 %v1882, %v1874
  %v2307 = vpack.c.b16 %v1883, %v1875
  %v2308 = vpack.c.b16 %v1884, %v1876
  %v2309 = vpack.c.b16 %v1893, %v1885
  %v2310 = vpack.c.b16 %v1894, %v1886
  %v2311 = vpack.c.b16 %v1895, %v1887
  %v2312 = vpack.c.b16 %v1896, %v1888
  %v2313 = vpack.c.b16 %v1897, %v1889
  %v2314 = vpack.c.b16 %v1898, %v1890
  %v2315 = vpack.c.b16 %v1899, %v1891
  %v2316 = vpack.c.b16 %v1900, %v1892
  %v2317 = vpack.c.b16 %v1909, %v1901
  %v2318 = vpack.c.b16 %v1910, %v1902
  %v2319 = vpack.c.b16 %v1911, %v1903
  %v2320 = vpack.c.b16 %v1912, %v1904
  %v2321 = vpack.c.b16 %v1913, %v1905
  %v2322 = vpack.c.b16 %v1914, %v1906
  %v2323 = vpack.c.b16 %v1915, %v1907
  %v2324 = vpack.c.b16 %v1916, %v1908
  %v2325 = vpack.c.b16 %v1925, %v1917
  %v2326 = vpack.c.b16 %v1926, %v1918
  %v2327 = vpack.c.b16 %v1927, %v1919
  %v2328 = vpack.c.b16 %v1928, %v1920
  %v2329 = vpack.c.b16 %v1929, %v1921
  %v2330 = vpack.c.b16 %v1930, %v1922
  %v2331 = vpack.c.b16 %v1931, %v1923
  %v2332 = vpack.c.b16 %v1932, %v1924
  %v2333 = vpack.c.b16 %v1941, %v1933
  %v2334 = vpack.c.b16 %v1942, %v1934
  %v2335 = vpack.c.b16 %v1943, %v1935
  %v2336 = vpack.c.b16 %v1944, %v1936
  %v2337 = vpack.c.b16 %v1945, %v1937
  %v2338 = vpack.c.b16 %v1946, %v1938
  %v2339 = vpack.c.b16 %v1947, %v1939
  %v2340 = vpack.c.b16 %v1948, %v1940
  %v2341 = vpack.c.b16 %v1957, %v1949
  %v2342 = vpack.c.b16 %v1958, %v1950
  %v2343 = vpack.c.b16 %v1959, %v1951
  %v2344 = vpack.c.b16 %v1960, %v1952
  %v2345 = vpack.c.b16 %v1961, %v1953
  %v2346 = vpack.c.b16 %v1962, %v1954
  %v2347 = vpack.c.b16 %v1963, %v1955
  %v2348 = vpack.c.b16 %v1964, %v1956
  %v2349 = vpack.c.b16 %v1973, %v1965
  %v2350 = vpack.c.b16 %v1974, %v1966
  %v2351 = vpack.c.b16 %v1975, %v1967
  %v2352 = vpack.c.b16 %v1976, %v1968
  %v2353 = vpack.c.b16 %v1977, %v1969
  %v2354 = vpack.c.b16 %v1978, %v1970
  %v2355 = vpack.c.b16 %v1979, %v1971
  %v2356 = vpack.c.b16 %v1980, %v1972
  %v2357 = vpack.c.b16 %v1989, %v1981
  %v2358 = vpack.c.b16 %v1990, %v1982
  %v2359 = vpack.c.b16 %v1991, %v1983
  %v2360 = vpack.c.b16 %v1992, %v1984
  %v2361 = vpack.c.b16 %v1993, %v1985
  %v2362 = vpack.c.b16 %v1994, %v1986
  %v2363 = vpack.c.b16 %v1995, %v1987
  %v2364 = vpack.c.b16 %v1996, %v1988
  %v2365 = vpack.c.b16 %v2005, %v1997
  %v2366 = vpack.c.b16 %v2006, %v1998
  %v2367 = vpack.c.b16 %v2007, %v1999
  %v2368 = vpack.c.b16 %v2008, %v2000
  %v2369 = vpack.c.b16 %v2009, %v2001
  %v2370 = vpack.c.b16 %v2010, %v2002
  %v2371 = vpack.c.b16 %v2011, %v2003
  %v2372 = vpack.c.b16 %v2012, %v2004
  %v2373 = vpack.c.b16 %v2021, %v2013
  %v2374 = vpack.c.b16 %v2022, %v2014
  %v2375 = vpack.c.b16 %v2023, %v2015
  %v2376 = vpack.c.b16 %v2024, %v2016
  %v2377 = vpack.c.b16 %v2025, %v2017
  %v2378 = vpack.c.b16 %v2026, %v2018
  %v2379 = vpack.c.b16 %v2027, %v2019
  %v2380 = vpack.c.b16 %v2028, %v2020
  %v2381 = vpack.c.b16 %v2037, %v2029
  %v2382 = vpack.c.b16 %v2038, %v2030
  %v2383 = vpack.c.b16 %v2039, %v2031
  %v2384 = vpack.c.b16 %v2040, %v2032
  %v2385 = vpack.c.b16 %v2041, %v2033
  %v2386 = vpack.c.b16 %v2042, %v2034
  %v2387 = vpack.c.b16 %v2043, %v2035
  %v2388 = vpack.c.b16 %v2044, %v2036
  %v2389 = vpack.c.b16 %v2053, %v2045
  %v2390 = vpack.c.b16 %v2054, %v2046
  %v2391 = vpack.c.b16 %v2055, %v2047
  %v2392 = vpack.c.b16 %v2056, %v2048
  %v2393 = vpack.c.b16 %v2057, %v2049
  %v2394 = vpack.c.b16 %v2058, %v2050
  %v2395 = vpack.c.b16 %v2059, %v2051
  %v2396 = vpack.c.b16 %v2060, %v2052
  %v2397 = vpack.c.b16 %v2069, %v2061
  %v2398 = vpack.c.b16 %v2070, %v2062
  %v2399 = vpack.c.b16 %v2071, %v2063
  %v2400 = vpack.c.b16 %v2072, %v2064
  %v2401 = vpack.c.b16 %v2073, %v2065
  %v2402 = vpack.c.b16 %v2074, %v2066
  %v2403 = vpack.c.b16 %v2075, %v2067
  %v2404 = vpack.c.b16 %v2076, %v2068
  %v2405 = vpack.c.b16 %v2085, %v2077
  %v2406 = vpack.c.b16 %v2086, %v2078
  %v2407 = vpack.c.b16 %v2087, %v2079
  %v2408 = vpack.c.b16 %v2088, %v2080
  %v2409 = vpack.c.b16 %v2089, %v2081
  %v2410 = vpack.c.b16 %v2090, %v2082
  %v2411 = vpack.c.b16 %v2091, %v2083
  %v2412 = vpack.c.b16 %v2092, %v2084
  %v2413 = vpack.c.b16 %v2101, %v2093
  %v2414 = vpack.c.b16 %v2102, %v2094
  %v2415 = vpack.c.b16 %v2103, %v2095
  %v2416 = vpack.c.b16 %v2104, %v2096
  %v2417 = vpack.c.b16 %v2105, %v2097
  %v2418 = vpack.c.b16 %v2106, %v2098
  %v2419 = vpack.c.b16 %v2107, %v2099
  %v2420 = vpack.c.b16 %v2108, %v2100
  %v2421 = vpack.c.b16 %v2117, %v2109
  %v2422 = vpack.c.b16 %v2118, %v2110
  %v2423 = vpack.c.b16 %v2119, %v2111
  %v2424 = vpack.c.b16 %v2120, %v2112
  %v2425 = vpack.c.b16 %v2121, %v2113
  %v2426 = vpack.c.b16 %v2122, %v2114
  %v2427 = vpack.c.b16 %v2123, %v2115
  %v2428 = vpack.c.b16 %v2124, %v2116
  %v2429 = vpack.c.b16 %v2133, %v2125
  %v2430 = vpack.c.b16 %v2134, %v2126
  %v2431 = vpack.c.b16 %v2135, %v2127
  %v2432 = vpack.c.b16 %v2136, %v2128
  %v2433 = vpack.c.b16 %v2137, %v2129
  %v2434 = vpack.c.b16 %v2138, %v2130
  %v2435 = vpack.c.b16 %v2139, %v2131
  %v2436 = vpack.c.b16 %v2140, %v2132
  %v2437 = vpack.c.b16 %v2149, %v2141
  %v2438 = vpack.c.b16 %v2150, %v2142
  %v2439 = vpack.c.b16 %v2151, %v2143
  %v2440 = vpack.c.b16 %v2152, %v2144
  %v2441 = vpack.c.b16 %v2153, %v2145
  %v2442 = vpack.c.b16 %v2154, %v2146
  %v2443 = vpack.c.b16 %v2155, %v2147
  %v2444 = vpack.c.b16 %v2156, %v2148
  %v2445 = vpack.c.b16 %v2165, %v2157
  %v2446 = vpack.c.b16 %v2166, %v2158
  %v2447 = vpack.c.b16 %v2167, %v2159
  %v2448 = vpack.c.b16 %v2168, %v2160
  %v2449 = vpack.c.b16 %v2169, %v2161
  %v2450 = vpack.c.b16 %v2170, %v2162
  %v2451 = vpack.c.b16 %v2171, %v2163
  %v2452 = vpack.c.b16 %v2172, %v2164
  %v2453 = vpack.c.b16 %v2181, %v2173
  %v2454 = vpack.c.b16 %v2182, %v2174
  %v2455 = vpack.c.b16 %v2183, %v2175
  %v2456 = vpack.c.b16 %v2184, %v2176
  %v2457 = vpack.c.b16 %v2185, %v2177
  %v2458 = vpack.c.b16 %v2186, %v2178
  %v2459 = vpack.c.b16 %v2187, %v2179
  %v2460 = vpack.c.b16 %v2188, %v2180
  %v2461 = vpack.c.b16 %v2197, %v2189
  %v2462 = vpack.c.b16 %v2198, %v2190
  %v2463 = vpack.c.b16 %v2199, %v2191
  %v2464 = vpack.c.b16 %v2200, %v2192
  %v2465 = vpack.c.b16 %v2201, %v2193
  %v2466 = vpack.c.b16 %v2202, %v2194
  %v2467 = vpack.c.b16 %v2203, %v2195
  %v2468 = vpack.c.b16 %v2204, %v2196
  %v2469 = vpack.c.b16 %v2213, %v2205
  %v2470 = vpack.c.b16 %v2214, %v2206
  %v2471 = vpack.c.b16 %v2215, %v2207
  %v2472 = vpack.c.b16 %v2216, %v2208
  %v2473 = vpack.c.b16 %v2217, %v2209
  %v2474 = vpack.c.b16 %v2218, %v2210
  %v2475 = vpack.c.b16 %v2219, %v2211
  %v2476 = vpack.c.b16 %v2220, %v2212
  %2733 = vmatprep.subr.bf16.mxu0 %v2222
  %2734 = vmatpush1.bf16.msra.mxu0 %v2221
  %2735 = vmatprep.subr.bf16.mxu0 %v2230
  %2736 = vmatpush1.bf16.msra.mxu0 %v2229
  %2737 = vmatprep.subr.bf16.mxu0 %v2238
  %2738 = vmatpush1.bf16.msra.mxu0 %v2237
  %2739 = vmatprep.subr.bf16.mxu0 %v2246
  %2740 = vmatpush1.bf16.msra.mxu0 %v2245
  %2741 = vmatprep.subr.bf16.mxu0 %v2254
  %2742 = vmatpush1.bf16.msra.mxu0 %v2253
  %2743 = vmatprep.subr.bf16.mxu0 %v2262
  %2744 = vmatpush1.bf16.msra.mxu0 %v2261
  %2745 = vmatprep.subr.bf16.mxu0 %v2270
  %2746 = vmatpush1.bf16.msra.mxu0 %v2269
  %2747 = vmatprep.subr.bf16.mxu0 %v2278
  %2748 = vmatpush1.bf16.msra.mxu0 %v2277
  %2749 = vmatprep.subr.bf16.mxu0 %v2286
  %2750 = vmatpush1.bf16.msra.mxu0 %v2285
  %2751 = vmatprep.subr.bf16.mxu0 %v2294
  %2752 = vmatpush1.bf16.msra.mxu0 %v2293
  %2753 = vmatprep.subr.bf16.mxu0 %v2302
  %2754 = vmatpush1.bf16.msra.mxu0 %v2301
  %2755 = vmatprep.subr.bf16.mxu0 %v2310
  %2756 = vmatpush1.bf16.msra.mxu0 %v2309
  %2757 = vmatprep.subr.bf16.mxu0 %v2318
  %2758 = vmatpush1.bf16.msra.mxu0 %v2317
  %2759 = vmatprep.subr.bf16.mxu0 %v2326
  %2760 = vmatpush1.bf16.msra.mxu0 %v2325
  %2761 = vmatprep.subr.bf16.mxu0 %v2334
  %2762 = vmatpush1.bf16.msra.mxu0 %v2333
  %2763 = vmatprep.subr.bf16.mxu0 %v2342
  %2764 = vmatpush1.bf16.msra.mxu0 %v2341
  %2765 = vmatprep.mubr.bf16.mxu0 %v1140
  %2766 = vmatmul.mubr.bf16.gmra.mrb[0].mxu0 %v1139
  %v2767 = vpop.f32.mrb[0].mxu0
  %v2768 = vadd.f32 %v1416, %v2767
  %v2769 = vpop.f32.mrb[0].mxu0
  %v2770 = vadd.f32 %v1420, %v2769
  %v2771 = vpop.f32.mrb[0].mxu0
  %v2772 = vadd.f32 %v1416, %v2771
  %v2773 = vpop.f32.mrb[0].mxu0
  %v2774 = vadd.f32 %v1420, %v2773
  %2775 = vmatprep.mubr.bf16.mxu0 %v1144
  %2776 = vmatmul.mubr.bf16.gmra.mrb[0].mxu0 %v1143
  %v2777 = vpop.f32.mrb[0].mxu0
  %v2778 = vadd.f32 %v1416, %v2777
  %v2779 = vpop.f32.mrb[0].mxu0
  %v2780 = vadd.f32 %v1420, %v2779
  %v2781 = vpop.f32.mrb[0].mxu0
  %v2782 = vadd.f32 %v1416, %v2781
  %v2783 = vpop.f32.mrb[0].mxu0
  %v2784 = vadd.f32 %v1420, %v2783
  %2785 = vmatprep.mubr.bf16.mxu0 %v1148
  %2786 = vmatmul.mubr.bf16.gmra.mrb[0].mxu0 %v1147
  %v2787 = vpop.f32.mrb[0].mxu0
  %v2788 = vadd.f32 %v1416, %v2787
  %v2789 = vpop.f32.mrb[0].mxu0
  %v2790 = vadd.f32 %v1420, %v2789
  %v2791 = vpop.f32.mrb[0].mxu0
  %v2792 = vadd.f32 %v1416, %v2791
  %v2793 = vpop.f32.mrb[0].mxu0
  %v2794 = vadd.f32 %v1420, %v2793
  %2795 = vmatprep.mubr.bf16.mxu0 %v1152
  %2796 = vmatmul.mubr.bf16.gmra.mrb[0].mxu0 %v1151
  %v2797 = vpop.f32.mrb[0].mxu0
  %v2798 = vadd.f32 %v1416, %v2797
  %v2799 = vpop.f32.mrb[0].mxu0
  %v2800 = vadd.f32 %v1420, %v2799
  %v2801 = vpop.f32.mrb[0].mxu0
  %v2802 = vadd.f32 %v1416, %v2801
  %v2803 = vpop.f32.mrb[0].mxu0
  %v2804 = vadd.f32 %v1420, %v2803
  %2805 = vdwg.mxu0
  %2806 = vmatprep.subr.bf16.mxu0 %v2350
  %2807 = vmatpush1.bf16.msra.mxu0 %v2349
  %2808 = vmatprep.subr.bf16.mxu0 %v2358
  %2809 = vmatpush1.bf16.msra.mxu0 %v2357
  %2810 = vmatprep.subr.bf16.mxu0 %v2366
  %2811 = vmatpush1.bf16.msra.mxu0 %v2365
  %2812 = vmatprep.subr.bf16.mxu0 %v2374
  %2813 = vmatpush1.bf16.msra.mxu0 %v2373
  %2814 = vmatprep.subr.bf16.mxu0 %v2382
  %2815 = vmatpush1.bf16.msra.mxu0 %v2381
  %2816 = vmatprep.subr.bf16.mxu0 %v2390
  %2817 = vmatpush1.bf16.msra.mxu0 %v2389
  %2818 = vmatprep.subr.bf16.mxu0 %v2398
  %2819 = vmatpush1.bf16.msra.mxu0 %v2397
  %2820 = vmatprep.subr.bf16.mxu0 %v2406
  %2821 = vmatpush1.bf16.msra.mxu0 %v2405
  %2822 = vmatprep.subr.bf16.mxu0 %v2414
  %2823 = vmatpush1.bf16.msra.mxu0 %v2413
  %2824 = vmatprep.subr.bf16.mxu0 %v2422
  %2825 = vmatpush1.bf16.msra.mxu0 %v2421
  %2826 = vmatprep.subr.bf16.mxu0 %v2430
  %2827 = vmatpush1.bf16.msra.mxu0 %v2429
  %2828 = vmatprep.subr.bf16.mxu0 %v2438
  %2829 = vmatpush1.bf16.msra.mxu0 %v2437
  %2830 = vmatprep.subr.bf16.mxu0 %v2446
  %2831 = vmatpush1.bf16.msra.mxu0 %v2445
  %2832 = vmatprep.subr.bf16.mxu0 %v2454
  %2833 = vmatpush1.bf16.msra.mxu0 %v2453
  %2834 = vmatprep.subr.bf16.mxu0 %v2462
  %2835 = vmatpush1.bf16.msra.mxu0 %v2461
  %2836 = vmatprep.subr.bf16.mxu0 %v2470
  %2837 = vmatpush1.bf16.msra.mxu0 %v2469
  %2838 = vmatprep.mubr.bf16.mxu0 %v1142
  %2839 = vmatmul.mubr.bf16.gmra.mrb[0].mxu0 %v1141
  %v2840 = vpop.f32.mrb[0].mxu0
  %v2841 = vadd.f32 %v2768, %v2840
  %v2842 = vpop.f32.mrb[0].mxu0
  %v2843 = vadd.f32 %v2770, %v2842
  %v2844 = vpop.f32.mrb[0].mxu0
  %v2845 = vadd.f32 %v2772, %v2844
  %v2846 = vpop.f32.mrb[0].mxu0
  %v2847 = vadd.f32 %v2774, %v2846
  %2848 = vmatprep.mubr.bf16.mxu0 %v1146
  %2849 = vmatmul.mubr.bf16.gmra.mrb[0].mxu0 %v1145
  %v2850 = vpop.f32.mrb[0].mxu0
  %v2851 = vadd.f32 %v2778, %v2850
  %v2852 = vpop.f32.mrb[0].mxu0
  %v2853 = vadd.f32 %v2780, %v2852
  %v2854 = vpop.f32.mrb[0].mxu0
  %v2855 = vadd.f32 %v2782, %v2854
  %v2856 = vpop.f32.mrb[0].mxu0
  %v2857 = vadd.f32 %v2784, %v2856
  %2858 = vmatprep.mubr.bf16.mxu0 %v1150
  %2859 = vmatmul.mubr.bf16.gmra.mrb[0].mxu0 %v1149
  %v2860 = vpop.f32.mrb[0].mxu0
  %v2861 = vadd.f32 %v2788, %v2860
  %v2862 = vpop.f32.mrb[0].mxu0
  %v2863 = vadd.f32 %v2790, %v2862
  %v2864 = vpop.f32.mrb[0].mxu0
  %v2865 = vadd.f32 %v2792, %v2864
  %v2866 = vpop.f32.mrb[0].mxu0
  %v2867 = vadd.f32 %v2794, %v2866
  %2868 = vmatprep.mubr.bf16.mxu0 %v1154
  %2869 = vmatmul.mubr.bf16.gmra.mrb[0].mxu0 %v1153
  %v2870 = vpop.f32.mrb[0].mxu0
  %v2871 = vadd.f32 %v2798, %v2870
  %v2872 = vpop.f32.mrb[0].mxu0
  %v2873 = vadd.f32 %v2800, %v2872
  %v2874 = vpop.f32.mrb[0].mxu0
  %v2875 = vadd.f32 %v2802, %v2874
  %v2876 = vpop.f32.mrb[0].mxu0
  %v2877 = vadd.f32 %v2804, %v2876
  %2878 = vdwg.mxu0
  %2879 = vmatprep.subr.bf16.mxu0 %v2224
  %2880 = vmatpush1.bf16.msra.mxu0 %v2223
  %2881 = vmatprep.subr.bf16.mxu0 %v2232
  %2882 = vmatpush1.bf16.msra.mxu0 %v2231
  %2883 = vmatprep.subr.bf16.mxu0 %v2240
  %2884 = vmatpush1.bf16.msra.mxu0 %v2239
  %2885 = vmatprep.subr.bf16.mxu0 %v2248
  %2886 = vmatpush1.bf16.msra.mxu0 %v2247
  %2887 = vmatprep.subr.bf16.mxu0 %v2256
  %2888 = vmatpush1.bf16.msra.mxu0 %v2255
  %2889 = vmatprep.subr.bf16.mxu0 %v2264
  %2890 = vmatpush1.bf16.msra.mxu0 %v2263
  %2891 = vmatprep.subr.bf16.mxu0 %v2272
  %2892 = vmatpush1.bf16.msra.mxu0 %v2271
  %2893 = vmatprep.subr.bf16.mxu0 %v2280
  %2894 = vmatpush1.bf16.msra.mxu0 %v2279
  %2895 = vmatprep.subr.bf16.mxu0 %v2288
  %2896 = vmatpush1.bf16.msra.mxu0 %v2287
  %2897 = vmatprep.subr.bf16.mxu0 %v2296
  %2898 = vmatpush1.bf16.msra.mxu0 %v2295
  %2899 = vmatprep.subr.bf16.mxu0 %v2304
  %2900 = vmatpush1.bf16.msra.mxu0 %v2303
  %2901 = vmatprep.subr.bf16.mxu0 %v2312
  %2902 = vmatpush1.bf16.msra.mxu0 %v2311
  %2903 = vmatprep.subr.bf16.mxu0 %v2320
  %2904 = vmatpush1.bf16.msra.mxu0 %v2319
  %2905 = vmatprep.subr.bf16.mxu0 %v2328
  %2906 = vmatpush1.bf16.msra.mxu0 %v2327
  %2907 = vmatprep.subr.bf16.mxu0 %v2336
  %2908 = vmatpush1.bf16.msra.mxu0 %v2335
  %2909 = vmatprep.subr.bf16.mxu0 %v2344
  %2910 = vmatpush1.bf16.msra.mxu0 %v2343
  %2911 = vmatprep.mubr.bf16.mxu0 %v1140
  %2912 = vmatmul.mubr.bf16.gmra.mrb[0].mxu0 %v1139
  %v2913 = vpop.f32.mrb[0].mxu0
  %v2914 = vadd.f32 %v1424, %v2913
  %v2915 = vpop.f32.mrb[0].mxu0
  %v2916 = vadd.f32 %v1428, %v2915
  %v2917 = vpop.f32.mrb[0].mxu0
  %v2918 = vadd.f32 %v1424, %v2917
  %v2919 = vpop.f32.mrb[0].mxu0
  %v2920 = vadd.f32 %v1428, %v2919
  %2921 = vmatprep.mubr.bf16.mxu0 %v1144
  %2922 = vmatmul.mubr.bf16.gmra.mrb[0].mxu0 %v1143
  %v2923 = vpop.f32.mrb[0].mxu0
  %v2924 = vadd.f32 %v1424, %v2923
  %v2925 = vpop.f32.mrb[0].mxu0
  %v2926 = vadd.f32 %v1428, %v2925
  %v2927 = vpop.f32.mrb[0].mxu0
  %v2928 = vadd.f32 %v1424, %v2927
  %v2929 = vpop.f32.mrb[0].mxu0
  %v2930 = vadd.f32 %v1428, %v2929
  %2931 = vmatprep.mubr.bf16.mxu0 %v1148
  %2932 = vmatmul.mubr.bf16.gmra.mrb[0].mxu0 %v1147
  %v2933 = vpop.f32.mrb[0].mxu0
  %v2934 = vadd.f32 %v1424, %v2933
  %v2935 = vpop.f32.mrb[0].mxu0
  %v2936 = vadd.f32 %v1428, %v2935
  %v2937 = vpop.f32.mrb[0].mxu0
  %v2938 = vadd.f32 %v1424, %v2937
  %v2939 = vpop.f32.mrb[0].mxu0
  %v2940 = vadd.f32 %v1428, %v2939
  %2941 = vmatprep.mubr.bf16.mxu0 %v1152
  %2942 = vmatmul.mubr.bf16.gmra.mrb[0].mxu0 %v1151
  %v2943 = vpop.f32.mrb[0].mxu0
  %v2944 = vadd.f32 %v1424, %v2943
  %v2945 = vpop.f32.mrb[0].mxu0
  %v2946 = vadd.f32 %v1428, %v2945
  %v2947 = vpop.f32.mrb[0].mxu0
  %v2948 = vadd.f32 %v1424, %v2947
  %v2949 = vpop.f32.mrb[0].mxu0
  %v2950 = vadd.f32 %v1428, %v2949
  %2951 = vdwg.mxu0
  %2952 = vmatprep.subr.bf16.mxu0 %v2352
  %2953 = vmatpush1.bf16.msra.mxu0 %v2351
  %2954 = vmatprep.subr.bf16.mxu0 %v2360
  %2955 = vmatpush1.bf16.msra.mxu0 %v2359
  %2956 = vmatprep.subr.bf16.mxu0 %v2368
  %2957 = vmatpush1.bf16.msra.mxu0 %v2367
  %2958 = vmatprep.subr.bf16.mxu0 %v2376
  %2959 = vmatpush1.bf16.msra.mxu0 %v2375
  %2960 = vmatprep.subr.bf16.mxu0 %v2384
  %2961 = vmatpush1.bf16.msra.mxu0 %v2383
  %2962 = vmatprep.subr.bf16.mxu0 %v2392
  %2963 = vmatpush1.bf16.msra.mxu0 %v2391
  %2964 = vmatprep.subr.bf16.mxu0 %v2400
  %2965 = vmatpush1.bf16.msra.mxu0 %v2399
  %2966 = vmatprep.subr.bf16.mxu0 %v2408
  %2967 = vmatpush1.bf16.msra.mxu0 %v2407
  %2968 = vmatprep.subr.bf16.mxu0 %v2416
  %2969 = vmatpush1.bf16.msra.mxu0 %v2415
  %2970 = vmatprep.subr.bf16.mxu0 %v2424
  %2971 = vmatpush1.bf16.msra.mxu0 %v2423
  %2972 = vmatprep.subr.bf16.mxu0 %v2432
  %2973 = vmatpush1.bf16.msra.mxu0 %v2431
  %2974 = vmatprep.subr.bf16.mxu0 %v2440
  %2975 = vmatpush1.bf16.msra.mxu0 %v2439
  %2976 = vmatprep.subr.bf16.mxu0 %v2448
  %2977 = vmatpush1.bf16.msra.mxu0 %v2447
  %2978 = vmatprep.subr.bf16.mxu0 %v2456
  %2979 = vmatpush1.bf16.msra.mxu0 %v2455
  %2980 = vmatprep.subr.bf16.mxu0 %v2464
  %2981 = vmatpush1.bf16.msra.mxu0 %v2463
  %2982 = vmatprep.subr.bf16.mxu0 %v2472
  %2983 = vmatpush1.bf16.msra.mxu0 %v2471
  %2984 = vmatprep.mubr.bf16.mxu0 %v1142
  %2985 = vmatmul.mubr.bf16.gmra.mrb[0].mxu0 %v1141
  %v2986 = vpop.f32.mrb[0].mxu0
  %v2987 = vadd.f32 %v2914, %v2986
  %v2988 = vpop.f32.mrb[0].mxu0
  %v2989 = vadd.f32 %v2916, %v2988
  %v2990 = vpop.f32.mrb[0].mxu0
  %v2991 = vadd.f32 %v2918, %v2990
  %v2992 = vpop.f32.mrb[0].mxu0
  %v2993 = vadd.f32 %v2920, %v2992
  %2994 = vmatprep.mubr.bf16.mxu0 %v1146
  %2995 = vmatmul.mubr.bf16.gmra.mrb[0].mxu0 %v1145
  %v2996 = vpop.f32.mrb[0].mxu0
  %v2997 = vadd.f32 %v2924, %v2996
  %v2998 = vpop.f32.mrb[0].mxu0
  %v2999 = vadd.f32 %v2926, %v2998
  %v3000 = vpop.f32.mrb[0].mxu0
  %v3001 = vadd.f32 %v2928, %v3000
  %v3002 = vpop.f32.mrb[0].mxu0
  %v3003 = vadd.f32 %v2930, %v3002
  %3004 = vmatprep.mubr.bf16.mxu0 %v1150
  %3005 = vmatmul.mubr.bf16.gmra.mrb[0].mxu0 %v1149
  %v3006 = vpop.f32.mrb[0].mxu0
  %v3007 = vadd.f32 %v2934, %v3006
  %v3008 = vpop.f32.mrb[0].mxu0
  %v3009 = vadd.f32 %v2936, %v3008
  %v3010 = vpop.f32.mrb[0].mxu0
  %v3011 = vadd.f32 %v2938, %v3010
  %v3012 = vpop.f32.mrb[0].mxu0
  %v3013 = vadd.f32 %v2940, %v3012
  %3014 = vmatprep.mubr.bf16.mxu0 %v1154
  %3015 = vmatmul.mubr.bf16.gmra.mrb[0].mxu0 %v1153
  %v3016 = vpop.f32.mrb[0].mxu0
  %v3017 = vadd.f32 %v2944, %v3016
  %v3018 = vpop.f32.mrb[0].mxu0
  %v3019 = vadd.f32 %v2946, %v3018
  %v3020 = vpop.f32.mrb[0].mxu0
  %v3021 = vadd.f32 %v2948, %v3020
  %v3022 = vpop.f32.mrb[0].mxu0
  %v3023 = vadd.f32 %v2950, %v3022
  %3024 = vdwg.mxu0
  %3025 = vmatprep.subr.bf16.mxu0 %v2226
  %3026 = vmatpush1.bf16.msra.mxu0 %v2225
  %3027 = vmatprep.subr.bf16.mxu0 %v2234
  %3028 = vmatpush1.bf16.msra.mxu0 %v2233
  %3029 = vmatprep.subr.bf16.mxu0 %v2242
  %3030 = vmatpush1.bf16.msra.mxu0 %v2241
  %3031 = vmatprep.subr.bf16.mxu0 %v2250
  %3032 = vmatpush1.bf16.msra.mxu0 %v2249
  %3033 = vmatprep.subr.bf16.mxu0 %v2258
  %3034 = vmatpush1.bf16.msra.mxu0 %v2257
  %3035 = vmatprep.subr.bf16.mxu0 %v2266
  %3036 = vmatpush1.bf16.msra.mxu0 %v2265
  %3037 = vmatprep.subr.bf16.mxu0 %v2274
  %3038 = vmatpush1.bf16.msra.mxu0 %v2273
  %3039 = vmatprep.subr.bf16.mxu0 %v2282
  %3040 = vmatpush1.bf16.msra.mxu0 %v2281
  %3041 = vmatprep.subr.bf16.mxu0 %v2290
  %3042 = vmatpush1.bf16.msra.mxu0 %v2289
  %3043 = vmatprep.subr.bf16.mxu0 %v2298
  %3044 = vmatpush1.bf16.msra.mxu0 %v2297
  %3045 = vmatprep.subr.bf16.mxu0 %v2306
  %3046 = vmatpush1.bf16.msra.mxu0 %v2305
  %3047 = vmatprep.subr.bf16.mxu0 %v2314
  %3048 = vmatpush1.bf16.msra.mxu0 %v2313
  %3049 = vmatprep.subr.bf16.mxu0 %v2322
  %3050 = vmatpush1.bf16.msra.mxu0 %v2321
  %3051 = vmatprep.subr.bf16.mxu0 %v2330
  %3052 = vmatpush1.bf16.msra.mxu0 %v2329
  %3053 = vmatprep.subr.bf16.mxu0 %v2338
  %3054 = vmatpush1.bf16.msra.mxu0 %v2337
  %3055 = vmatprep.subr.bf16.mxu0 %v2346
  %3056 = vmatpush1.bf16.msra.mxu0 %v2345
  %3057 = vmatprep.mubr.bf16.mxu0 %v1140
  %3058 = vmatmul.mubr.bf16.gmra.mrb[0].mxu0 %v1139
  %v3059 = vpop.f32.mrb[0].mxu0
  %v3060 = vadd.f32 %v1432, %v3059
  %v3061 = vpop.f32.mrb[0].mxu0
  %v3062 = vadd.f32 %v1436, %v3061
  %v3063 = vpop.f32.mrb[0].mxu0
  %v3064 = vadd.f32 %v1432, %v3063
  %v3065 = vpop.f32.mrb[0].mxu0
  %v3066 = vadd.f32 %v1436, %v3065
  %3067 = vmatprep.mubr.bf16.mxu0 %v1144
  %3068 = vmatmul.mubr.bf16.gmra.mrb[0].mxu0 %v1143
  %v3069 = vpop.f32.mrb[0].mxu0
  %v3070 = vadd.f32 %v1432, %v3069
  %v3071 = vpop.f32.mrb[0].mxu0
  %v3072 = vadd.f32 %v1436, %v3071
  %v3073 = vpop.f32.mrb[0].mxu0
  %v3074 = vadd.f32 %v1432, %v3073
  %v3075 = vpop.f32.mrb[0].mxu0
  %v3076 = vadd.f32 %v1436, %v3075
  %3077 = vmatprep.mubr.bf16.mxu0 %v1148
  %3078 = vmatmul.mubr.bf16.gmra.mrb[0].mxu0 %v1147
  %v3079 = vpop.f32.mrb[0].mxu0
  %v3080 = vadd.f32 %v1432, %v3079
  %v3081 = vpop.f32.mrb[0].mxu0
  %v3082 = vadd.f32 %v1436, %v3081
  %v3083 = vpop.f32.mrb[0].mxu0
  %v3084 = vadd.f32 %v1432, %v3083
  %v3085 = vpop.f32.mrb[0].mxu0
  %v3086 = vadd.f32 %v1436, %v3085
  %3087 = vmatprep.mubr.bf16.mxu0 %v1152
  %3088 = vmatmul.mubr.bf16.gmra.mrb[0].mxu0 %v1151
  %v3089 = vpop.f32.mrb[0].mxu0
  %v3090 = vadd.f32 %v1432, %v3089
  %v3091 = vpop.f32.mrb[0].mxu0
  %v3092 = vadd.f32 %v1436, %v3091
  %v3093 = vpop.f32.mrb[0].mxu0
  %v3094 = vadd.f32 %v1432, %v3093
  %v3095 = vpop.f32.mrb[0].mxu0
  %v3096 = vadd.f32 %v1436, %v3095
  %3097 = vdwg.mxu0
  %3098 = vmatprep.subr.bf16.mxu0 %v2354
  %3099 = vmatpush1.bf16.msra.mxu0 %v2353
  %3100 = vmatprep.subr.bf16.mxu0 %v2362
  %3101 = vmatpush1.bf16.msra.mxu0 %v2361
  %3102 = vmatprep.subr.bf16.mxu0 %v2370
  %3103 = vmatpush1.bf16.msra.mxu0 %v2369
  %3104 = vmatprep.subr.bf16.mxu0 %v2378
  %3105 = vmatpush1.bf16.msra.mxu0 %v2377
  %3106 = vmatprep.subr.bf16.mxu0 %v2386
  %3107 = vmatpush1.bf16.msra.mxu0 %v2385
  %3108 = vmatprep.subr.bf16.mxu0 %v2394
  %3109 = vmatpush1.bf16.msra.mxu0 %v2393
  %3110 = vmatprep.subr.bf16.mxu0 %v2402
  %3111 = vmatpush1.bf16.msra.mxu0 %v2401
  %3112 = vmatprep.subr.bf16.mxu0 %v2410
  %3113 = vmatpush1.bf16.msra.mxu0 %v2409
  %3114 = vmatprep.subr.bf16.mxu0 %v2418
  %3115 = vmatpush1.bf16.msra.mxu0 %v2417
  %3116 = vmatprep.subr.bf16.mxu0 %v2426
  %3117 = vmatpush1.bf16.msra.mxu0 %v2425
  %3118 = vmatprep.subr.bf16.mxu0 %v2434
  %3119 = vmatpush1.bf16.msra.mxu0 %v2433
  %3120 = vmatprep.subr.bf16.mxu0 %v2442
  %3121 = vmatpush1.bf16.msra.mxu0 %v2441
  %3122 = vmatprep.subr.bf16.mxu0 %v2450
  %3123 = vmatpush1.bf16.msra.mxu0 %v2449
  %3124 = vmatprep.subr.bf16.mxu0 %v2458
  %3125 = vmatpush1.bf16.msra.mxu0 %v2457
  %3126 = vmatprep.subr.bf16.mxu0 %v2466
  %3127 = vmatpush1.bf16.msra.mxu0 %v2465
  %3128 = vmatprep.subr.bf16.mxu0 %v2474
  %3129 = vmatpush1.bf16.msra.mxu0 %v2473
  %3130 = vmatprep.mubr.bf16.mxu0 %v1142
  %3131 = vmatmul.mubr.bf16.gmra.mrb[0].mxu0 %v1141
  %v3132 = vpop.f32.mrb[0].mxu0
  %v3133 = vadd.f32 %v3060, %v3132
  %v3134 = vpop.f32.mrb[0].mxu0
  %v3135 = vadd.f32 %v3062, %v3134
  %v3136 = vpop.f32.mrb[0].mxu0
  %v3137 = vadd.f32 %v3064, %v3136
  %v3138 = vpop.f32.mrb[0].mxu0
  %v3139 = vadd.f32 %v3066, %v3138
  %3140 = vmatprep.mubr.bf16.mxu0 %v1146
  %3141 = vmatmul.mubr.bf16.gmra.mrb[0].mxu0 %v1145
  %v3142 = vpop.f32.mrb[0].mxu0
  %v3143 = vadd.f32 %v3070, %v3142
  %v3144 = vpop.f32.mrb[0].mxu0
  %v3145 = vadd.f32 %v3072, %v3144
  %v3146 = vpop.f32.mrb[0].mxu0
  %v3147 = vadd.f32 %v3074, %v3146
  %v3148 = vpop.f32.mrb[0].mxu0
  %v3149 = vadd.f32 %v3076, %v3148
  %3150 = vmatprep.mubr.bf16.mxu0 %v1150
  %3151 = vmatmul.mubr.bf16.gmra.mrb[0].mxu0 %v1149
  %v3152 = vpop.f32.mrb[0].mxu0
  %v3153 = vadd.f32 %v3080, %v3152
  %v3154 = vpop.f32.mrb[0].mxu0
  %v3155 = vadd.f32 %v3082, %v3154
  %v3156 = vpop.f32.mrb[0].mxu0
  %v3157 = vadd.f32 %v3084, %v3156
  %v3158 = vpop.f32.mrb[0].mxu0
  %v3159 = vadd.f32 %v3086, %v3158
  %3160 = vmatprep.mubr.bf16.mxu0 %v1154
  %3161 = vmatmul.mubr.bf16.gmra.mrb[0].mxu0 %v1153
  %v3162 = vpop.f32.mrb[0].mxu0
  %v3163 = vadd.f32 %v3090, %v3162
  %v3164 = vpop.f32.mrb[0].mxu0
  %v3165 = vadd.f32 %v3092, %v3164
  %v3166 = vpop.f32.mrb[0].mxu0
  %v3167 = vadd.f32 %v3094, %v3166
  %v3168 = vpop.f32.mrb[0].mxu0
  %v3169 = vadd.f32 %v3096, %v3168
  %3170 = vdwg.mxu0
  %3171 = vmatprep.subr.bf16.mxu0 %v2228
  %3172 = vmatpush1.bf16.msra.mxu0 %v2227
  %3173 = vmatprep.subr.bf16.mxu0 %v2236
  %3174 = vmatpush1.bf16.msra.mxu0 %v2235
  %3175 = vmatprep.subr.bf16.mxu0 %v2244
  %3176 = vmatpush1.bf16.msra.mxu0 %v2243
  %3177 = vmatprep.subr.bf16.mxu0 %v2252
  %3178 = vmatpush1.bf16.msra.mxu0 %v2251
  %3179 = vmatprep.subr.bf16.mxu0 %v2260
  %3180 = vmatpush1.bf16.msra.mxu0 %v2259
  %3181 = vmatprep.subr.bf16.mxu0 %v2268
  %3182 = vmatpush1.bf16.msra.mxu0 %v2267
  %3183 = vmatprep.subr.bf16.mxu0 %v2276
  %3184 = vmatpush1.bf16.msra.mxu0 %v2275
  %3185 = vmatprep.subr.bf16.mxu0 %v2284
  %3186 = vmatpush1.bf16.msra.mxu0 %v2283
  %3187 = vmatprep.subr.bf16.mxu0 %v2292
  %3188 = vmatpush1.bf16.msra.mxu0 %v2291
  %3189 = vmatprep.subr.bf16.mxu0 %v2300
  %3190 = vmatpush1.bf16.msra.mxu0 %v2299
  %3191 = vmatprep.subr.bf16.mxu0 %v2308
  %3192 = vmatpush1.bf16.msra.mxu0 %v2307
  %3193 = vmatprep.subr.bf16.mxu0 %v2316
  %3194 = vmatpush1.bf16.msra.mxu0 %v2315
  %3195 = vmatprep.subr.bf16.mxu0 %v2324
  %3196 = vmatpush1.bf16.msra.mxu0 %v2323
  %3197 = vmatprep.subr.bf16.mxu0 %v2332
  %3198 = vmatpush1.bf16.msra.mxu0 %v2331
  %3199 = vmatprep.subr.bf16.mxu0 %v2340
  %3200 = vmatpush1.bf16.msra.mxu0 %v2339
  %3201 = vmatprep.subr.bf16.mxu0 %v2348
  %3202 = vmatpush1.bf16.msra.mxu0 %v2347
  %3203 = vmatprep.mubr.bf16.mxu0 %v1140
  %3204 = vmatmul.mubr.bf16.gmra.mrb[0].mxu0 %v1139
  %v3205 = vpop.f32.mrb[0].mxu0
  %v3206 = vadd.f32 %v1440, %v3205
  %v3207 = vpop.f32.mrb[0].mxu0
  %v3208 = vadd.f32 %v1444, %v3207
  %v3209 = vpop.f32.mrb[0].mxu0
  %v3210 = vadd.f32 %v1440, %v3209
  %v3211 = vpop.f32.mrb[0].mxu0
  %v3212 = vadd.f32 %v1444, %v3211
  %3213 = vmatprep.mubr.bf16.mxu0 %v1144
  %3214 = vmatmul.mubr.bf16.gmra.mrb[0].mxu0 %v1143
  %v3215 = vpop.f32.mrb[0].mxu0
  %v3216 = vadd.f32 %v1440, %v3215
  %v3217 = vpop.f32.mrb[0].mxu0
  %v3218 = vadd.f32 %v1444, %v3217
  %v3219 = vpop.f32.mrb[0].mxu0
  %v3220 = vadd.f32 %v1440, %v3219
  %v3221 = vpop.f32.mrb[0].mxu0
  %v3222 = vadd.f32 %v1444, %v3221
  %3223 = vmatprep.mubr.bf16.mxu0 %v1148
  %3224 = vmatmul.mubr.bf16.gmra.mrb[0].mxu0 %v1147
  %v3225 = vpop.f32.mrb[0].mxu0
  %v3226 = vadd.f32 %v1440, %v3225
  %v3227 = vpop.f32.mrb[0].mxu0
  %v3228 = vadd.f32 %v1444, %v3227
  %v3229 = vpop.f32.mrb[0].mxu0
  %v3230 = vadd.f32 %v1440, %v3229
  %v3231 = vpop.f32.mrb[0].mxu0
  %v3232 = vadd.f32 %v1444, %v3231
  %3233 = vmatprep.mubr.bf16.mxu0 %v1152
  %3234 = vmatmul.mubr.bf16.gmra.mrb[0].mxu0 %v1151
  %v3235 = vpop.f32.mrb[0].mxu0
  %v3236 = vadd.f32 %v1440, %v3235
  %v3237 = vpop.f32.mrb[0].mxu0
  %v3238 = vadd.f32 %v1444, %v3237
  %v3239 = vpop.f32.mrb[0].mxu0
  %v3240 = vadd.f32 %v1440, %v3239
  %v3241 = vpop.f32.mrb[0].mxu0
  %v3242 = vadd.f32 %v1444, %v3241
  %3243 = vdwg.mxu0
  %3244 = vmatprep.subr.bf16.mxu0 %v2356
  %3245 = vmatpush1.bf16.msra.mxu0 %v2355
  %3246 = vmatprep.subr.bf16.mxu0 %v2364
  %3247 = vmatpush1.bf16.msra.mxu0 %v2363
  %3248 = vmatprep.subr.bf16.mxu0 %v2372
  %3249 = vmatpush1.bf16.msra.mxu0 %v2371
  %3250 = vmatprep.subr.bf16.mxu0 %v2380
  %3251 = vmatpush1.bf16.msra.mxu0 %v2379
  %3252 = vmatprep.subr.bf16.mxu0 %v2388
  %3253 = vmatpush1.bf16.msra.mxu0 %v2387
  %3254 = vmatprep.subr.bf16.mxu0 %v2396
  %3255 = vmatpush1.bf16.msra.mxu0 %v2395
  %3256 = vmatprep.subr.bf16.mxu0 %v2404
  %3257 = vmatpush1.bf16.msra.mxu0 %v2403
  %3258 = vmatprep.subr.bf16.mxu0 %v2412
  %3259 = vmatpush1.bf16.msra.mxu0 %v2411
  %3260 = vmatprep.subr.bf16.mxu0 %v2420
  %3261 = vmatpush1.bf16.msra.mxu0 %v2419
  %3262 = vmatprep.subr.bf16.mxu0 %v2428
  %3263 = vmatpush1.bf16.msra.mxu0 %v2427
  %3264 = vmatprep.subr.bf16.mxu0 %v2436
  %3265 = vmatpush1.bf16.msra.mxu0 %v2435
  %3266 = vmatprep.subr.bf16.mxu0 %v2444
  %3267 = vmatpush1.bf16.msra.mxu0 %v2443
  %3268 = vmatprep.subr.bf16.mxu0 %v2452
  %3269 = vmatpush1.bf16.msra.mxu0 %v2451
  %3270 = vmatprep.subr.bf16.mxu0 %v2460
  %3271 = vmatpush1.bf16.msra.mxu0 %v2459
  %3272 = vmatprep.subr.bf16.mxu0 %v2468
  %3273 = vmatpush1.bf16.msra.mxu0 %v2467
  %3274 = vmatprep.subr.bf16.mxu0 %v2476
  %3275 = vmatpush1.bf16.msra.mxu0 %v2475
  %3276 = vmatprep.mubr.bf16.mxu0 %v1142
  %3277 = vmatmul.mubr.bf16.gmra.mrb[0].mxu0 %v1141
  %v3278 = vpop.f32.mrb[0].mxu0
  %v3279 = vadd.f32 %v3206, %v3278
  %v3280 = vpop.f32.mrb[0].mxu0
  %v3281 = vadd.f32 %v3208, %v3280
  %v3282 = vpop.f32.mrb[0].mxu0
  %v3283 = vadd.f32 %v3210, %v3282
  %v3284 = vpop.f32.mrb[0].mxu0
  %v3285 = vadd.f32 %v3212, %v3284
  %3286 = vmatprep.mubr.bf16.mxu0 %v1146
  %3287 = vmatmul.mubr.bf16.gmra.mrb[0].mxu0 %v1145
  %v3288 = vpop.f32.mrb[0].mxu0
  %v3289 = vadd.f32 %v3216, %v3288
  %v3290 = vpop.f32.mrb[0].mxu0
  %v3291 = vadd.f32 %v3218, %v3290
  %v3292 = vpop.f32.mrb[0].mxu0
  %v3293 = vadd.f32 %v3220, %v3292
  %v3294 = vpop.f32.mrb[0].mxu0
  %v3295 = vadd.f32 %v3222, %v3294
  %3296 = vmatprep.mubr.bf16.mxu0 %v1150
  %3297 = vmatmul.mubr.bf16.gmra.mrb[0].mxu0 %v1149
  %v3298 = vpop.f32.mrb[0].mxu0
  %v3299 = vadd.f32 %v3226, %v3298
  %v3300 = vpop.f32.mrb[0].mxu0
  %v3301 = vadd.f32 %v3228, %v3300
  %v3302 = vpop.f32.mrb[0].mxu0
  %v3303 = vadd.f32 %v3230, %v3302
  %v3304 = vpop.f32.mrb[0].mxu0
  %v3305 = vadd.f32 %v3232, %v3304
  %3306 = vmatprep.mubr.bf16.mxu0 %v1154
  %3307 = vmatmul.mubr.bf16.gmra.mrb[0].mxu0 %v1153
  %v3308 = vpop.f32.mrb[0].mxu0
  %v3309 = vadd.f32 %v3236, %v3308
  %v3310 = vpop.f32.mrb[0].mxu0
  %v3311 = vadd.f32 %v3238, %v3310
  %v3312 = vpop.f32.mrb[0].mxu0
  %v3313 = vadd.f32 %v3240, %v3312
  %v3314 = vpop.f32.mrb[0].mxu0
  %v3315 = vadd.f32 %v3242, %v3314
  %3316 = vdwg.mxu0
  %s3317 = smul.u32 0, 8
  %v3318 = vlaneseq
  %v3319 = vand.u32 %v3318, 127
  %v3320 = vstv %s3317
  %v3321 = vadd.s32 %v3320, %v3319
  %vm3322 = vcmp.lt.s32.totalorder %v3321, 4
  %v3323 = vsel %vm3322, 0.0, -1e+30
  %v3324 = vld [vmem:[#allocation2] sm:$0xff]
  %v3325 = vld [vmem:[#allocation2 + $0x8] sm:$0xff]
  %v3326 = vld [vmem:[#allocation2 + $0x10] sm:$0xff]
  %v3327 = vld [vmem:[#allocation2 + $0x18] sm:$0xff]
  %v3328 = vld [vmem:[#allocation2 + $0x20] sm:$0xff]
  %v3329 = vld [vmem:[#allocation2 + $0x28] sm:$0xff]
  %v3330 = vld [vmem:[#allocation2 + $0x30] sm:$0xff]
  %v3331 = vld [vmem:[#allocation2 + $0x38] sm:$0xff]
  %3333 = vbcast.lane.b32.xlu0 %v3323, 256
  %v3334 = vpop.permute.xlu0 %3333
  %v3335 = vadd.f32 %v2841, %v3334
  %v3336 = vadd.f32 %v2843, %v3334
  %v3337 = vadd.f32 %v2987, %v3334
  %v3338 = vadd.f32 %v2989, %v3334
  %v3339 = vadd.f32 %v3133, %v3334
  %v3340 = vadd.f32 %v3135, %v3334
  %v3341 = vadd.f32 %v3279, %v3334
  %v3342 = vadd.f32 %v3281, %v3334
  %v3343 = vadd.f32 %v2845, %v3334
  %v3344 = vadd.f32 %v2847, %v3334
  %v3345 = vadd.f32 %v2991, %v3334
  %v3346 = vadd.f32 %v2993, %v3334
  %v3347 = vadd.f32 %v3137, %v3334
  %v3348 = vadd.f32 %v3139, %v3334
  %v3349 = vadd.f32 %v3283, %v3334
  %v3350 = vadd.f32 %v3285, %v3334
  %v3351 = vadd.f32 %v2851, %v3334
  %v3352 = vadd.f32 %v2853, %v3334
  %v3353 = vadd.f32 %v2997, %v3334
  %v3354 = vadd.f32 %v2999, %v3334
  %v3355 = vadd.f32 %v3143, %v3334
  %v3356 = vadd.f32 %v3145, %v3334
  %v3357 = vadd.f32 %v3289, %v3334
  %v3358 = vadd.f32 %v3291, %v3334
  %v3359 = vadd.f32 %v2855, %v3334
  %v3360 = vadd.f32 %v2857, %v3334
  %v3361 = vadd.f32 %v3001, %v3334
  %v3362 = vadd.f32 %v3003, %v3334
  %v3363 = vadd.f32 %v3147, %v3334
  %v3364 = vadd.f32 %v3149, %v3334
  %v3365 = vadd.f32 %v3293, %v3334
  %v3366 = vadd.f32 %v3295, %v3334
  %v3367 = vadd.f32 %v2861, %v3334
  %v3368 = vadd.f32 %v2863, %v3334
  %v3369 = vadd.f32 %v3007, %v3334
  %v3370 = vadd.f32 %v3009, %v3334
  %v3371 = vadd.f32 %v3153, %v3334
  %v3372 = vadd.f32 %v3155, %v3334
  %v3373 = vadd.f32 %v3299, %v3334
  %v3374 = vadd.f32 %v3301, %v3334
  %v3375 = vadd.f32 %v2865, %v3334
  %v3376 = vadd.f32 %v2867, %v3334
  %v3377 = vadd.f32 %v3011, %v3334
  %v3378 = vadd.f32 %v3013, %v3334
  %v3379 = vadd.f32 %v3157, %v3334
  %v3380 = vadd.f32 %v3159, %v3334
  %v3381 = vadd.f32 %v3303, %v3334
  %v3382 = vadd.f32 %v3305, %v3334
  %v3383 = vadd.f32 %v2871, %v3334
  %v3384 = vadd.f32 %v2873, %v3334
  %v3385 = vadd.f32 %v3017, %v3334
  %v3386 = vadd.f32 %v3019, %v3334
  %v3387 = vadd.f32 %v3163, %v3334
  %v3388 = vadd.f32 %v3165, %v3334
  %v3389 = vadd.f32 %v3309, %v3334
  %v3390 = vadd.f32 %v3311, %v3334
  %v3391 = vadd.f32 %v2875, %v3334
  %v3392 = vadd.f32 %v2877, %v3334
  %v3393 = vadd.f32 %v3021, %v3334
  %v3394 = vadd.f32 %v3023, %v3334
  %v3395 = vadd.f32 %v3167, %v3334
  %v3396 = vadd.f32 %v3169, %v3334
  %v3397 = vadd.f32 %v3313, %v3334
  %v3398 = vadd.f32 %v3315, %v3334
  %v3399 = vrot.slane %v3335, 4
  %v3400 = vmax.f32 %v3335, %v3399
  %v3401 = vrot.slane %v3400, 2
  %v3402 = vmax.f32 %v3400, %v3401
  %v3403 = vrot.slane %v3402, 1
  %v3404 = vmax.f32 %v3402, %v3403
  %v3405 = vrot.slane %v3336, 4
  %v3406 = vmax.f32 %v3336, %v3405
  %v3407 = vrot.slane %v3406, 2
  %v3408 = vmax.f32 %v3406, %v3407
  %v3409 = vrot.slane %v3408, 1
  %v3410 = vmax.f32 %v3408, %v3409
  %v3411 = vrot.slane %v3337, 4
  %v3412 = vmax.f32 %v3337, %v3411
  %v3413 = vrot.slane %v3412, 2
  %v3414 = vmax.f32 %v3412, %v3413
  %v3415 = vrot.slane %v3414, 1
  %v3416 = vmax.f32 %v3414, %v3415
  %v3417 = vrot.slane %v3338, 4
  %v3418 = vmax.f32 %v3338, %v3417
  %v3419 = vrot.slane %v3418, 2
  %v3420 = vmax.f32 %v3418, %v3419
  %v3421 = vrot.slane %v3420, 1
  %v3422 = vmax.f32 %v3420, %v3421
  %v3423 = vrot.slane %v3339, 4
  %v3424 = vmax.f32 %v3339, %v3423
  %v3425 = vrot.slane %v3424, 2
  %v3426 = vmax.f32 %v3424, %v3425
  %v3427 = vrot.slane %v3426, 1
  %v3428 = vmax.f32 %v3426, %v3427
  %v3429 = vrot.slane %v3340, 4
  %v3430 = vmax.f32 %v3340, %v3429
  %v3431 = vrot.slane %v3430, 2
  %v3432 = vmax.f32 %v3430, %v3431
  %v3433 = vrot.slane %v3432, 1
  %v3434 = vmax.f32 %v3432, %v3433
  %v3435 = vrot.slane %v3341, 4
  %v3436 = vmax.f32 %v3341, %v3435
  %v3437 = vrot.slane %v3436, 2
  %v3438 = vmax.f32 %v3436, %v3437
  %v3439 = vrot.slane %v3438, 1
  %v3440 = vmax.f32 %v3438, %v3439
  %v3441 = vrot.slane %v3342, 4
  %v3442 = vmax.f32 %v3342, %v3441
  %v3443 = vrot.slane %v3442, 2
  %v3444 = vmax.f32 %v3442, %v3443
  %v3445 = vrot.slane %v3444, 1
  %v3446 = vmax.f32 %v3444, %v3445
  %v3447 = vrot.slane %v3343, 4
  %v3448 = vmax.f32 %v3343, %v3447
  %v3449 = vrot.slane %v3448, 2
  %v3450 = vmax.f32 %v3448, %v3449
  %v3451 = vrot.slane %v3450, 1
  %v3452 = vmax.f32 %v3450, %v3451
  %v3453 = vrot.slane %v3344, 4
  %v3454 = vmax.f32 %v3344, %v3453
  %v3455 = vrot.slane %v3454, 2
  %v3456 = vmax.f32 %v3454, %v3455
  %v3457 = vrot.slane %v3456, 1
  %v3458 = vmax.f32 %v3456, %v3457
  %v3459 = vrot.slane %v3345, 4
  %v3460 = vmax.f32 %v3345, %v3459
  %v3461 = vrot.slane %v3460, 2
  %v3462 = vmax.f32 %v3460, %v3461
  %v3463 = vrot.slane %v3462, 1
  %v3464 = vmax.f32 %v3462, %v3463
  %v3465 = vrot.slane %v3346, 4
  %v3466 = vmax.f32 %v3346, %v3465
  %v3467 = vrot.slane %v3466, 2
  %v3468 = vmax.f32 %v3466, %v3467
  %v3469 = vrot.slane %v3468, 1
  %v3470 = vmax.f32 %v3468, %v3469
  %v3471 = vrot.slane %v3347, 4
  %v3472 = vmax.f32 %v3347, %v3471
  %v3473 = vrot.slane %v3472, 2
  %v3474 = vmax.f32 %v3472, %v3473
  %v3475 = vrot.slane %v3474, 1
  %v3476 = vmax.f32 %v3474, %v3475
  %v3477 = vrot.slane %v3348, 4
  %v3478 = vmax.f32 %v3348, %v3477
  %v3479 = vrot.slane %v3478, 2
  %v3480 = vmax.f32 %v3478, %v3479
  %v3481 = vrot.slane %v3480, 1
  %v3482 = vmax.f32 %v3480, %v3481
  %v3483 = vrot.slane %v3349, 4
  %v3484 = vmax.f32 %v3349, %v3483
  %v3485 = vrot.slane %v3484, 2
  %v3486 = vmax.f32 %v3484, %v3485
  %v3487 = vrot.slane %v3486, 1
  %v3488 = vmax.f32 %v3486, %v3487
  %v3489 = vrot.slane %v3350, 4
  %v3490 = vmax.f32 %v3350, %v3489
  %v3491 = vrot.slane %v3490, 2
  %v3492 = vmax.f32 %v3490, %v3491
  %v3493 = vrot.slane %v3492, 1
  %v3494 = vmax.f32 %v3492, %v3493
  %v3495 = vrot.slane %v3351, 4
  %v3496 = vmax.f32 %v3351, %v3495
  %v3497 = vrot.slane %v3496, 2
  %v3498 = vmax.f32 %v3496, %v3497
  %v3499 = vrot.slane %v3498, 1
  %v3500 = vmax.f32 %v3498, %v3499
  %v3501 = vrot.slane %v3352, 4
  %v3502 = vmax.f32 %v3352, %v3501
  %v3503 = vrot.slane %v3502, 2
  %v3504 = vmax.f32 %v3502, %v3503
  %v3505 = vrot.slane %v3504, 1
  %v3506 = vmax.f32 %v3504, %v3505
  %v3507 = vrot.slane %v3353, 4
  %v3508 = vmax.f32 %v3353, %v3507
  %v3509 = vrot.slane %v3508, 2
  %v3510 = vmax.f32 %v3508, %v3509
  %v3511 = vrot.slane %v3510, 1
  %v3512 = vmax.f32 %v3510, %v3511
  %v3513 = vrot.slane %v3354, 4
  %v3514 = vmax.f32 %v3354, %v3513
  %v3515 = vrot.slane %v3514, 2
  %v3516 = vmax.f32 %v3514, %v3515
  %v3517 = vrot.slane %v3516, 1
  %v3518 = vmax.f32 %v3516, %v3517
  %v3519 = vrot.slane %v3355, 4
  %v3520 = vmax.f32 %v3355, %v3519
  %v3521 = vrot.slane %v3520, 2
  %v3522 = vmax.f32 %v3520, %v3521
  %v3523 = vrot.slane %v3522, 1
  %v3524 = vmax.f32 %v3522, %v3523
  %v3525 = vrot.slane %v3356, 4
  %v3526 = vmax.f32 %v3356, %v3525
  %v3527 = vrot.slane %v3526, 2
  %v3528 = vmax.f32 %v3526, %v3527
  %v3529 = vrot.slane %v3528, 1
  %v3530 = vmax.f32 %v3528, %v3529
  %v3531 = vrot.slane %v3357, 4
  %v3532 = vmax.f32 %v3357, %v3531
  %v3533 = vrot.slane %v3532, 2
  %v3534 = vmax.f32 %v3532, %v3533
  %v3535 = vrot.slane %v3534, 1
  %v3536 = vmax.f32 %v3534, %v3535
  %v3537 = vrot.slane %v3358, 4
  %v3538 = vmax.f32 %v3358, %v3537
  %v3539 = vrot.slane %v3538, 2
  %v3540 = vmax.f32 %v3538, %v3539
  %v3541 = vrot.slane %v3540, 1
  %v3542 = vmax.f32 %v3540, %v3541
  %v3543 = vrot.slane %v3359, 4
  %v3544 = vmax.f32 %v3359, %v3543
  %v3545 = vrot.slane %v3544, 2
  %v3546 = vmax.f32 %v3544, %v3545
  %v3547 = vrot.slane %v3546, 1
  %v3548 = vmax.f32 %v3546, %v3547
  %v3549 = vrot.slane %v3360, 4
  %v3550 = vmax.f32 %v3360, %v3549
  %v3551 = vrot.slane %v3550, 2
  %v3552 = vmax.f32 %v3550, %v3551
  %v3553 = vrot.slane %v3552, 1
  %v3554 = vmax.f32 %v3552, %v3553
  %v3555 = vrot.slane %v3361, 4
  %v3556 = vmax.f32 %v3361, %v3555
  %v3557 = vrot.slane %v3556, 2
  %v3558 = vmax.f32 %v3556, %v3557
  %v3559 = vrot.slane %v3558, 1
  %v3560 = vmax.f32 %v3558, %v3559
  %v3561 = vrot.slane %v3362, 4
  %v3562 = vmax.f32 %v3362, %v3561
  %v3563 = vrot.slane %v3562, 2
  %v3564 = vmax.f32 %v3562, %v3563
  %v3565 = vrot.slane %v3564, 1
  %v3566 = vmax.f32 %v3564, %v3565
  %v3567 = vrot.slane %v3363, 4
  %v3568 = vmax.f32 %v3363, %v3567
  %v3569 = vrot.slane %v3568, 2
  %v3570 = vmax.f32 %v3568, %v3569
  %v3571 = vrot.slane %v3570, 1
  %v3572 = vmax.f32 %v3570, %v3571
  %v3573 = vrot.slane %v3364, 4
  %v3574 = vmax.f32 %v3364, %v3573
  %v3575 = vrot.slane %v3574, 2
  %v3576 = vmax.f32 %v3574, %v3575
  %v3577 = vrot.slane %v3576, 1
  %v3578 = vmax.f32 %v3576, %v3577
  %v3579 = vrot.slane %v3365, 4
  %v3580 = vmax.f32 %v3365, %v3579
  %v3581 = vrot.slane %v3580, 2
  %v3582 = vmax.f32 %v3580, %v3581
  %v3583 = vrot.slane %v3582, 1
  %v3584 = vmax.f32 %v3582, %v3583
  %v3585 = vrot.slane %v3366, 4
  %v3586 = vmax.f32 %v3366, %v3585
  %v3587 = vrot.slane %v3586, 2
  %v3588 = vmax.f32 %v3586, %v3587
  %v3589 = vrot.slane %v3588, 1
  %v3590 = vmax.f32 %v3588, %v3589
  %v3591 = vrot.slane %v3367, 4
  %v3592 = vmax.f32 %v3367, %v3591
  %v3593 = vrot.slane %v3592, 2
  %v3594 = vmax.f32 %v3592, %v3593
  %v3595 = vrot.slane %v3594, 1
  %v3596 = vmax.f32 %v3594, %v3595
  %v3597 = vrot.slane %v3368, 4
  %v3598 = vmax.f32 %v3368, %v3597
  %v3599 = vrot.slane %v3598, 2
  %v3600 = vmax.f32 %v3598, %v3599
  %v3601 = vrot.slane %v3600, 1
  %v3602 = vmax.f32 %v3600, %v3601
  %v3603 = vrot.slane %v3369, 4
  %v3604 = vmax.f32 %v3369, %v3603
  %v3605 = vrot.slane %v3604, 2
  %v3606 = vmax.f32 %v3604, %v3605
  %v3607 = vrot.slane %v3606, 1
  %v3608 = vmax.f32 %v3606, %v3607
  %v3609 = vrot.slane %v3370, 4
  %v3610 = vmax.f32 %v3370, %v3609
  %v3611 = vrot.slane %v3610, 2
  %v3612 = vmax.f32 %v3610, %v3611
  %v3613 = vrot.slane %v3612, 1
  %v3614 = vmax.f32 %v3612, %v3613
  %v3615 = vrot.slane %v3371, 4
  %v3616 = vmax.f32 %v3371, %v3615
  %v3617 = vrot.slane %v3616, 2
  %v3618 = vmax.f32 %v3616, %v3617
  %v3619 = vrot.slane %v3618, 1
  %v3620 = vmax.f32 %v3618, %v3619
  %v3621 = vrot.slane %v3372, 4
  %v3622 = vmax.f32 %v3372, %v3621
  %v3623 = vrot.slane %v3622, 2
  %v3624 = vmax.f32 %v3622, %v3623
  %v3625 = vrot.slane %v3624, 1
  %v3626 = vmax.f32 %v3624, %v3625
  %v3627 = vrot.slane %v3373, 4
  %v3628 = vmax.f32 %v3373, %v3627
  %v3629 = vrot.slane %v3628, 2
  %v3630 = vmax.f32 %v3628, %v3629
  %v3631 = vrot.slane %v3630, 1
  %v3632 = vmax.f32 %v3630, %v3631
  %v3633 = vrot.slane %v3374, 4
  %v3634 = vmax.f32 %v3374, %v3633
  %v3635 = vrot.slane %v3634, 2
  %v3636 = vmax.f32 %v3634, %v3635
  %v3637 = vrot.slane %v3636, 1
  %v3638 = vmax.f32 %v3636, %v3637
  %v3639 = vrot.slane %v3375, 4
  %v3640 = vmax.f32 %v3375, %v3639
  %v3641 = vrot.slane %v3640, 2
  %v3642 = vmax.f32 %v3640, %v3641
  %v3643 = vrot.slane %v3642, 1
  %v3644 = vmax.f32 %v3642, %v3643
  %v3645 = vrot.slane %v3376, 4
  %v3646 = vmax.f32 %v3376, %v3645
  %v3647 = vrot.slane %v3646, 2
  %v3648 = vmax.f32 %v3646, %v3647
  %v3649 = vrot.slane %v3648, 1
  %v3650 = vmax.f32 %v3648, %v3649
  %v3651 = vrot.slane %v3377, 4
  %v3652 = vmax.f32 %v3377, %v3651
  %v3653 = vrot.slane %v3652, 2
  %v3654 = vmax.f32 %v3652, %v3653
  %v3655 = vrot.slane %v3654, 1
  %v3656 = vmax.f32 %v3654, %v3655
  %v3657 = vrot.slane %v3378, 4
  %v3658 = vmax.f32 %v3378, %v3657
  %v3659 = vrot.slane %v3658, 2
  %v3660 = vmax.f32 %v3658, %v3659
  %v3661 = vrot.slane %v3660, 1
  %v3662 = vmax.f32 %v3660, %v3661
  %v3663 = vrot.slane %v3379, 4
  %v3664 = vmax.f32 %v3379, %v3663
  %v3665 = vrot.slane %v3664, 2
  %v3666 = vmax.f32 %v3664, %v3665
  %v3667 = vrot.slane %v3666, 1
  %v3668 = vmax.f32 %v3666, %v3667
  %v3669 = vrot.slane %v3380, 4
  %v3670 = vmax.f32 %v3380, %v3669
  %v3671 = vrot.slane %v3670, 2
  %v3672 = vmax.f32 %v3670, %v3671
  %v3673 = vrot.slane %v3672, 1
  %v3674 = vmax.f32 %v3672, %v3673
  %v3675 = vrot.slane %v3381, 4
  %v3676 = vmax.f32 %v3381, %v3675
  %v3677 = vrot.slane %v3676, 2
  %v3678 = vmax.f32 %v3676, %v3677
  %v3679 = vrot.slane %v3678, 1
  %v3680 = vmax.f32 %v3678, %v3679
  %v3681 = vrot.slane %v3382, 4
  %v3682 = vmax.f32 %v3382, %v3681
  %v3683 = vrot.slane %v3682, 2
  %v3684 = vmax.f32 %v3682, %v3683
  %v3685 = vrot.slane %v3684, 1
  %v3686 = vmax.f32 %v3684, %v3685
  %v3687 = vrot.slane %v3383, 4
  %v3688 = vmax.f32 %v3383, %v3687
  %v3689 = vrot.slane %v3688, 2
  %v3690 = vmax.f32 %v3688, %v3689
  %v3691 = vrot.slane %v3690, 1
  %v3692 = vmax.f32 %v3690, %v3691
  %v3693 = vrot.slane %v3384, 4
  %v3694 = vmax.f32 %v3384, %v3693
  %v3695 = vrot.slane %v3694, 2
  %v3696 = vmax.f32 %v3694, %v3695
  %v3697 = vrot.slane %v3696, 1
  %v3698 = vmax.f32 %v3696, %v3697
  %v3699 = vrot.slane %v3385, 4
  %v3700 = vmax.f32 %v3385, %v3699
  %v3701 = vrot.slane %v3700, 2
  %v3702 = vmax.f32 %v3700, %v3701
  %v3703 = vrot.slane %v3702, 1
  %v3704 = vmax.f32 %v3702, %v3703
  %v3705 = vrot.slane %v3386, 4
  %v3706 = vmax.f32 %v3386, %v3705
  %v3707 = vrot.slane %v3706, 2
  %v3708 = vmax.f32 %v3706, %v3707
  %v3709 = vrot.slane %v3708, 1
  %v3710 = vmax.f32 %v3708, %v3709
  %v3711 = vrot.slane %v3387, 4
  %v3712 = vmax.f32 %v3387, %v3711
  %v3713 = vrot.slane %v3712, 2
  %v3714 = vmax.f32 %v3712, %v3713
  %v3715 = vrot.slane %v3714, 1
  %v3716 = vmax.f32 %v3714, %v3715
  %v3717 = vrot.slane %v3388, 4
  %v3718 = vmax.f32 %v3388, %v3717
  %v3719 = vrot.slane %v3718, 2
  %v3720 = vmax.f32 %v3718, %v3719
  %v3721 = vrot.slane %v3720, 1
  %v3722 = vmax.f32 %v3720, %v3721
  %v3723 = vrot.slane %v3389, 4
  %v3724 = vmax.f32 %v3389, %v3723
  %v3725 = vrot.slane %v3724, 2
  %v3726 = vmax.f32 %v3724, %v3725
  %v3727 = vrot.slane %v3726, 1
  %v3728 = vmax.f32 %v3726, %v3727
  %v3729 = vrot.slane %v3390, 4
  %v3730 = vmax.f32 %v3390, %v3729
  %v3731 = vrot.slane %v3730, 2
  %v3732 = vmax.f32 %v3730, %v3731
  %v3733 = vrot.slane %v3732, 1
  %v3734 = vmax.f32 %v3732, %v3733
  %v3735 = vrot.slane %v3391, 4
  %v3736 = vmax.f32 %v3391, %v3735
  %v3737 = vrot.slane %v3736, 2
  %v3738 = vmax.f32 %v3736, %v3737
  %v3739 = vrot.slane %v3738, 1
  %v3740 = vmax.f32 %v3738, %v3739
  %v3741 = vrot.slane %v3392, 4
  %v3742 = vmax.f32 %v3392, %v3741
  %v3743 = vrot.slane %v3742, 2
  %v3744 = vmax.f32 %v3742, %v3743
  %v3745 = vrot.slane %v3744, 1
  %v3746 = vmax.f32 %v3744, %v3745
  %v3747 = vrot.slane %v3393, 4
  %v3748 = vmax.f32 %v3393, %v3747
  %v3749 = vrot.slane %v3748, 2
  %v3750 = vmax.f32 %v3748, %v3749
  %v3751 = vrot.slane %v3750, 1
  %v3752 = vmax.f32 %v3750, %v3751
  %v3753 = vrot.slane %v3394, 4
  %v3754 = vmax.f32 %v3394, %v3753
  %v3755 = vrot.slane %v3754, 2
  %v3756 = vmax.f32 %v3754, %v3755
  %v3757 = vrot.slane %v3756, 1
  %v3758 = vmax.f32 %v3756, %v3757
  %v3759 = vrot.slane %v3395, 4
  %v3760 = vmax.f32 %v3395, %v3759
  %v3761 = vrot.slane %v3760, 2
  %v3762 = vmax.f32 %v3760, %v3761
  %v3763 = vrot.slane %v3762, 1
  %v3764 = vmax.f32 %v3762, %v3763
  %v3765 = vrot.slane %v3396, 4
  %v3766 = vmax.f32 %v3396, %v3765
  %v3767 = vrot.slane %v3766, 2
  %v3768 = vmax.f32 %v3766, %v3767
  %v3769 = vrot.slane %v3768, 1
  %v3770 = vmax.f32 %v3768, %v3769
  %v3771 = vrot.slane %v3397, 4
  %v3772 = vmax.f32 %v3397, %v3771
  %v3773 = vrot.slane %v3772, 2
  %v3774 = vmax.f32 %v3772, %v3773
  %v3775 = vrot.slane %v3774, 1
  %v3776 = vmax.f32 %v3774, %v3775
  %v3777 = vrot.slane %v3398, 4
  %v3778 = vmax.f32 %v3398, %v3777
  %v3779 = vrot.slane %v3778, 2
  %v3780 = vmax.f32 %v3778, %v3779
  %v3781 = vrot.slane %v3780, 1
  %v3782 = vmax.f32 %v3780, %v3781
  %vm3847 = vcmask 1041409
  %v3848 = vsel %vm3847, %v3452, %v3404
  %vm3849 = vcmask 1042434
  %v3850 = vsel %vm3849, %v3500, %v3848
  %vm3851 = vcmask 1043459
  %v3852 = vsel %vm3851, %v3548, %v3850
  %vm3853 = vcmask 1044484
  %v3854 = vsel %vm3853, %v3596, %v3852
  %vm3855 = vcmask 1045509
  %v3856 = vsel %vm3855, %v3644, %v3854
  %vm3857 = vcmask 1046534
  %v3858 = vsel %vm3857, %v3692, %v3856
  %vm3859 = vcmask 1047559
  %v3860 = vsel %vm3859, %v3740, %v3858
  %v3861 = vsel %vm3847, %v3458, %v3410
  %v3862 = vsel %vm3849, %v3506, %v3861
  %v3863 = vsel %vm3851, %v3554, %v3862
  %v3864 = vsel %vm3853, %v3602, %v3863
  %v3865 = vsel %vm3855, %v3650, %v3864
  %v3866 = vsel %vm3857, %v3698, %v3865
  %v3867 = vsel %vm3859, %v3746, %v3866
  %v3868 = vsel %vm3847, %v3464, %v3416
  %v3869 = vsel %vm3849, %v3512, %v3868
  %v3870 = vsel %vm3851, %v3560, %v3869
  %v3871 = vsel %vm3853, %v3608, %v3870
  %v3872 = vsel %vm3855, %v3656, %v3871
  %v3873 = vsel %vm3857, %v3704, %v3872
  %v3874 = vsel %vm3859, %v3752, %v3873
  %v3875 = vsel %vm3847, %v3470, %v3422
  %v3876 = vsel %vm3849, %v3518, %v3875
  %v3877 = vsel %vm3851, %v3566, %v3876
  %v3878 = vsel %vm3853, %v3614, %v3877
  %v3879 = vsel %vm3855, %v3662, %v3878
  %v3880 = vsel %vm3857, %v3710, %v3879
  %v3881 = vsel %vm3859, %v3758, %v3880
  %v3882 = vsel %vm3847, %v3476, %v3428
  %v3883 = vsel %vm3849, %v3524, %v3882
  %v3884 = vsel %vm3851, %v3572, %v3883
  %v3885 = vsel %vm3853, %v3620, %v3884
  %v3886 = vsel %vm3855, %v3668, %v3885
  %v3887 = vsel %vm3857, %v3716, %v3886
  %v3888 = vsel %vm3859, %v3764, %v3887
  %v3889 = vsel %vm3847, %v3482, %v3434
  %v3890 = vsel %vm3849, %v3530, %v3889
  %v3891 = vsel %vm3851, %v3578, %v3890
  %v3892 = vsel %vm3853, %v3626, %v3891
  %v3893 = vsel %vm3855, %v3674, %v3892
  %v3894 = vsel %vm3857, %v3722, %v3893
  %v3895 = vsel %vm3859, %v3770, %v3894
  %v3896 = vsel %vm3847, %v3488, %v3440
  %v3897 = vsel %vm3849, %v3536, %v3896
  %v3898 = vsel %vm3851, %v3584, %v3897
  %v3899 = vsel %vm3853, %v3632, %v3898
  %v3900 = vsel %vm3855, %v3680, %v3899
  %v3901 = vsel %vm3857, %v3728, %v3900
  %v3902 = vsel %vm3859, %v3776, %v3901
  %v3903 = vsel %vm3847, %v3494, %v3446
  %v3904 = vsel %vm3849, %v3542, %v3903
  %v3905 = vsel %vm3851, %v3590, %v3904
  %v3906 = vsel %vm3853, %v3638, %v3905
  %v3907 = vsel %vm3855, %v3686, %v3906
  %v3908 = vsel %vm3857, %v3734, %v3907
  %v3909 = vsel %vm3859, %v3782, %v3908
  %v3918 = vmax.f32 %v3324, %v3860
  %v3919 = vmax.f32 %v3325, %v3867
  %v3920 = vmax.f32 %v3326, %v3874
  %v3921 = vmax.f32 %v3327, %v3881
  %v3922 = vmax.f32 %v3328, %v3888
  %v3923 = vmax.f32 %v3329, %v3895
  %v3924 = vmax.f32 %v3330, %v3902
  %v3925 = vmax.f32 %v3331, %v3909
  %3926 = vst [vmem:[#allocation2] sm:$0xff] %v3918
  %3927 = vst [vmem:[#allocation2 + $0x8] sm:$0xff] %v3919
  %3928 = vst [vmem:[#allocation2 + $0x10] sm:$0xff] %v3920
  %3929 = vst [vmem:[#allocation2 + $0x18] sm:$0xff] %v3921
  %3930 = vst [vmem:[#allocation2 + $0x20] sm:$0xff] %v3922
  %3931 = vst [vmem:[#allocation2 + $0x28] sm:$0xff] %v3923
  %3932 = vst [vmem:[#allocation2 + $0x30] sm:$0xff] %v3924
  %3933 = vst [vmem:[#allocation2 + $0x38] sm:$0xff] %v3925
  // Predicated region
  $region66: #{pointnet2_cls_forward.5} parent=0 // pred_check
    %p3934 = pneg %p51
  $region67: #{pointnet2_cls_forward.5} parent=0 // pred_check_branch
    %3936 = sbr.rel (%p3934) target = $region69
  $region68: #{pointnet2_cls_forward.5} parent=0 // pred_region
    %v3937 = vld [vmem:[#allocation2] sm:$0xff]
    %v3938 = vld [vmem:[#allocation2 + $0x8] sm:$0xff]
    %v3939 = vld [vmem:[#allocation2 + $0x10] sm:$0xff]
    %v3940 = vld [vmem:[#allocation2 + $0x18] sm:$0xff]
    %v3941 = vld [vmem:[#allocation2 + $0x20] sm:$0xff]
    %v3942 = vld [vmem:[#allocation2 + $0x28] sm:$0xff]
    %v3943 = vld [vmem:[#allocation2 + $0x30] sm:$0xff]
    %v3944 = vld [vmem:[#allocation2 + $0x38] sm:$0xff]
    %v3945 = vpack.c.bf16 %v3937, %v3937
    %v3946 = vpack.c.bf16 %v3938, %v3938
    %v3947 = vpack.c.bf16 %v3939, %v3939
    %v3948 = vpack.c.bf16 %v3940, %v3940
    %v3949 = vpack.c.bf16 %v3941, %v3941
    %v3950 = vpack.c.bf16 %v3942, %v3942
    %v3951 = vpack.c.bf16 %v3943, %v3943
    %v3952 = vpack.c.bf16 %v3944, %v3944
    %v3953 = vld [vmem:[%s9] sm:$0xff]
    %v3954 = vld [vmem:[%s9 + $0x8] sm:$0xff]
    %v3955 = vld [vmem:[%s9 + $0x10] sm:$0xff]
    %v3956 = vld [vmem:[%s9 + $0x18] sm:$0xff]
    %v3957 = vld [vmem:[%s9 + $0x20] sm:$0xff]
    %v3958 = vld [vmem:[%s9 + $0x28] sm:$0xff]
    %v3959 = vld [vmem:[%s9 + $0x30] sm:$0xff]
    %v3960 = vld [vmem:[%s9 + $0x38] sm:$0xff]
    %v3961 = vld [vmem:[%s9 + $0x40] sm:$0xff]
    %v3962 = vld [vmem:[%s9 + $0x48] sm:$0xff]
    %v3963 = vld [vmem:[%s9 + $0x50] sm:$0xff]
    %v3964 = vld [vmem:[%s9 + $0x58] sm:$0xff]
    %v3965 = vld [vmem:[%s9 + $0x60] sm:$0xff]
    %v3966 = vld [vmem:[%s9 + $0x68] sm:$0xff]
    %v3967 = vld [vmem:[%s9 + $0x70] sm:$0xff]
    %v3968 = vld [vmem:[%s9 + $0x78] sm:$0xff]
    %v3969 = vld [vmem:[%s9 + $0x80] sm:$0xff]
    %v3970 = vld [vmem:[%s9 + $0x88] sm:$0xff]
    %v3971 = vld [vmem:[%s9 + $0x90] sm:$0xff]
    %v3972 = vld [vmem:[%s9 + $0x98] sm:$0xff]
    %v3973 = vld [vmem:[%s9 + $0xa0] sm:$0xff]
    %v3974 = vld [vmem:[%s9 + $0xa8] sm:$0xff]
    %v3975 = vld [vmem:[%s9 + $0xb0] sm:$0xff]
    %v3976 = vld [vmem:[%s9 + $0xb8] sm:$0xff]
    %v3977 = vld [vmem:[%s9 + $0xc0] sm:$0xff]
    %v3978 = vld [vmem:[%s9 + $0xc8] sm:$0xff]
    %v3979 = vld [vmem:[%s9 + $0xd0] sm:$0xff]
    %v3980 = vld [vmem:[%s9 + $0xd8] sm:$0xff]
    %v3981 = vld [vmem:[%s9 + $0xe0] sm:$0xff]
    %v3982 = vld [vmem:[%s9 + $0xe8] sm:$0xff]
    %v3983 = vld [vmem:[%s9 + $0xf0] sm:$0xff]
    %v3984 = vld [vmem:[%s9 + $0xf8] sm:$0xff]
    %v3985 = vld [vmem:[%s9 + $0x100] sm:$0xff]
    %v3986 = vld [vmem:[%s9 + $0x108] sm:$0xff]
    %v3987 = vld [vmem:[%s9 + $0x110] sm:$0xff]
    %v3988 = vld [vmem:[%s9 + $0x118] sm:$0xff]
    %v3989 = vld [vmem:[%s9 + $0x120] sm:$0xff]
    %v3990 = vld [vmem:[%s9 + $0x128] sm:$0xff]
    %v3991 = vld [vmem:[%s9 + $0x130] sm:$0xff]
    %v3992 = vld [vmem:[%s9 + $0x138] sm:$0xff]
    %v3993 = vld [vmem:[%s9 + $0x140] sm:$0xff]
    %v3994 = vld [vmem:[%s9 + $0x148] sm:$0xff]
    %v3995 = vld [vmem:[%s9 + $0x150] sm:$0xff]
    %v3996 = vld [vmem:[%s9 + $0x158] sm:$0xff]
    %v3997 = vld [vmem:[%s9 + $0x160] sm:$0xff]
    %v3998 = vld [vmem:[%s9 + $0x168] sm:$0xff]
    %v3999 = vld [vmem:[%s9 + $0x170] sm:$0xff]
    %v4000 = vld [vmem:[%s9 + $0x178] sm:$0xff]
    %v4001 = vld [vmem:[%s9 + $0x180] sm:$0xff]
    %v4002 = vld [vmem:[%s9 + $0x188] sm:$0xff]
    %v4003 = vld [vmem:[%s9 + $0x190] sm:$0xff]
    %v4004 = vld [vmem:[%s9 + $0x198] sm:$0xff]
    %v4005 = vld [vmem:[%s9 + $0x1a0] sm:$0xff]
    %v4006 = vld [vmem:[%s9 + $0x1a8] sm:$0xff]
    %v4007 = vld [vmem:[%s9 + $0x1b0] sm:$0xff]
    %v4008 = vld [vmem:[%s9 + $0x1b8] sm:$0xff]
    %v4009 = vld [vmem:[%s9 + $0x1c0] sm:$0xff]
    %v4010 = vld [vmem:[%s9 + $0x1c8] sm:$0xff]
    %v4011 = vld [vmem:[%s9 + $0x1d0] sm:$0xff]
    %v4012 = vld [vmem:[%s9 + $0x1d8] sm:$0xff]
    %v4013 = vld [vmem:[%s9 + $0x1e0] sm:$0xff]
    %v4014 = vld [vmem:[%s9 + $0x1e8] sm:$0xff]
    %v4015 = vld [vmem:[%s9 + $0x1f0] sm:$0xff]
    %v4016 = vld [vmem:[%s9 + $0x1f8] sm:$0xff]
    %v4017 = vld [vmem:[%s9 + $0x200] sm:$0xff]
    %v4018 = vld [vmem:[%s9 + $0x208] sm:$0xff]
    %v4019 = vld [vmem:[%s9 + $0x210] sm:$0xff]
    %v4020 = vld [vmem:[%s9 + $0x218] sm:$0xff]
    %v4021 = vld [vmem:[%s9 + $0x220] sm:$0xff]
    %v4022 = vld [vmem:[%s9 + $0x228] sm:$0xff]
    %v4023 = vld [vmem:[%s9 + $0x230] sm:$0xff]
    %v4024 = vld [vmem:[%s9 + $0x238] sm:$0xff]
    %v4025 = vld [vmem:[%s9 + $0x240] sm:$0xff]
    %v4026 = vld [vmem:[%s9 + $0x248] sm:$0xff]
    %v4027 = vld [vmem:[%s9 + $0x250] sm:$0xff]
    %v4028 = vld [vmem:[%s9 + $0x258] sm:$0xff]
    %v4029 = vld [vmem:[%s9 + $0x260] sm:$0xff]
    %v4030 = vld [vmem:[%s9 + $0x268] sm:$0xff]
    %v4031 = vld [vmem:[%s9 + $0x270] sm:$0xff]
    %v4032 = vld [vmem:[%s9 + $0x278] sm:$0xff]
    %v4033 = vld [vmem:[%s9 + $0x280] sm:$0xff]
    %v4034 = vld [vmem:[%s9 + $0x288] sm:$0xff]
    %v4035 = vld [vmem:[%s9 + $0x290] sm:$0xff]
    %v4036 = vld [vmem:[%s9 + $0x298] sm:$0xff]
    %v4037 = vld [vmem:[%s9 + $0x2a0] sm:$0xff]
    %v4038 = vld [vmem:[%s9 + $0x2a8] sm:$0xff]
    %v4039 = vld [vmem:[%s9 + $0x2b0] sm:$0xff]
    %v4040 = vld [vmem:[%s9 + $0x2b8] sm:$0xff]
    %v4041 = vld [vmem:[%s9 + $0x2c0] sm:$0xff]
    %v4042 = vld [vmem:[%s9 + $0x2c8] sm:$0xff]
    %v4043 = vld [vmem:[%s9 + $0x2d0] sm:$0xff]
    %v4044 = vld [vmem:[%s9 + $0x2d8] sm:$0xff]
    %v4045 = vld [vmem:[%s9 + $0x2e0] sm:$0xff]
    %v4046 = vld [vmem:[%s9 + $0x2e8] sm:$0xff]
    %v4047 = vld [vmem:[%s9 + $0x2f0] sm:$0xff]
    %v4048 = vld [vmem:[%s9 + $0x2f8] sm:$0xff]
    %v4049 = vld [vmem:[%s9 + $0x300] sm:$0xff]
    %v4050 = vld [vmem:[%s9 + $0x308] sm:$0xff]
    %v4051 = vld [vmem:[%s9 + $0x310] sm:$0xff]
    %v4052 = vld [vmem:[%s9 + $0x318] sm:$0xff]
    %v4053 = vld [vmem:[%s9 + $0x320] sm:$0xff]
    %v4054 = vld [vmem:[%s9 + $0x328] sm:$0xff]
    %v4055 = vld [vmem:[%s9 + $0x330] sm:$0xff]
    %v4056 = vld [vmem:[%s9 + $0x338] sm:$0xff]
    %v4057 = vld [vmem:[%s9 + $0x340] sm:$0xff]
    %v4058 = vld [vmem:[%s9 + $0x348] sm:$0xff]
    %v4059 = vld [vmem:[%s9 + $0x350] sm:$0xff]
    %v4060 = vld [vmem:[%s9 + $0x358] sm:$0xff]
    %v4061 = vld [vmem:[%s9 + $0x360] sm:$0xff]
    %v4062 = vld [vmem:[%s9 + $0x368] sm:$0xff]
    %v4063 = vld [vmem:[%s9 + $0x370] sm:$0xff]
    %v4064 = vld [vmem:[%s9 + $0x378] sm:$0xff]
    %v4065 = vld [vmem:[%s9 + $0x380] sm:$0xff]
    %v4066 = vld [vmem:[%s9 + $0x388] sm:$0xff]
    %v4067 = vld [vmem:[%s9 + $0x390] sm:$0xff]
    %v4068 = vld [vmem:[%s9 + $0x398] sm:$0xff]
    %v4069 = vld [vmem:[%s9 + $0x3a0] sm:$0xff]
    %v4070 = vld [vmem:[%s9 + $0x3a8] sm:$0xff]
    %v4071 = vld [vmem:[%s9 + $0x3b0] sm:$0xff]
    %v4072 = vld [vmem:[%s9 + $0x3b8] sm:$0xff]
    %v4073 = vld [vmem:[%s9 + $0x3c0] sm:$0xff]
    %v4074 = vld [vmem:[%s9 + $0x3c8] sm:$0xff]
    %v4075 = vld [vmem:[%s9 + $0x3d0] sm:$0xff]
    %v4076 = vld [vmem:[%s9 + $0x3d8] sm:$0xff]
    %v4077 = vld [vmem:[%s9 + $0x3e0] sm:$0xff]
    %v4078 = vld [vmem:[%s9 + $0x3e8] sm:$0xff]
    %v4079 = vld [vmem:[%s9 + $0x3f0] sm:$0xff]
    %v4080 = vld [vmem:[%s9 + $0x3f8] sm:$0xff]
    %v4081 = vld [vmem:[%s9 + $0x400] sm:$0xff]
    %v4082 = vld [vmem:[%s9 + $0x408] sm:$0xff]
    %v4083 = vld [vmem:[%s9 + $0x410] sm:$0xff]
    %v4084 = vld [vmem:[%s9 + $0x418] sm:$0xff]
    %v4085 = vld [vmem:[%s9 + $0x420] sm:$0xff]
    %v4086 = vld [vmem:[%s9 + $0x428] sm:$0xff]
    %v4087 = vld [vmem:[%s9 + $0x430] sm:$0xff]
    %v4088 = vld [vmem:[%s9 + $0x438] sm:$0xff]
    %v4089 = vld [vmem:[%s9 + $0x440] sm:$0xff]
    %v4090 = vld [vmem:[%s9 + $0x448] sm:$0xff]
    %v4091 = vld [vmem:[%s9 + $0x450] sm:$0xff]
    %v4092 = vld [vmem:[%s9 + $0x458] sm:$0xff]
    %v4093 = vld [vmem:[%s9 + $0x460] sm:$0xff]
    %v4094 = vld [vmem:[%s9 + $0x468] sm:$0xff]
    %v4095 = vld [vmem:[%s9 + $0x470] sm:$0xff]
    %v4096 = vld [vmem:[%s9 + $0x478] sm:$0xff]
    %v4097 = vld [vmem:[%s9 + $0x480] sm:$0xff]
    %v4098 = vld [vmem:[%s9 + $0x488] sm:$0xff]
    %v4099 = vld [vmem:[%s9 + $0x490] sm:$0xff]
    %v4100 = vld [vmem:[%s9 + $0x498] sm:$0xff]
    %v4101 = vld [vmem:[%s9 + $0x4a0] sm:$0xff]
    %v4102 = vld [vmem:[%s9 + $0x4a8] sm:$0xff]
    %v4103 = vld [vmem:[%s9 + $0x4b0] sm:$0xff]
    %v4104 = vld [vmem:[%s9 + $0x4b8] sm:$0xff]
    %v4105 = vld [vmem:[%s9 + $0x4c0] sm:$0xff]
    %v4106 = vld [vmem:[%s9 + $0x4c8] sm:$0xff]
    %v4107 = vld [vmem:[%s9 + $0x4d0] sm:$0xff]
    %v4108 = vld [vmem:[%s9 + $0x4d8] sm:$0xff]
    %v4109 = vld [vmem:[%s9 + $0x4e0] sm:$0xff]
    %v4110 = vld [vmem:[%s9 + $0x4e8] sm:$0xff]
    %v4111 = vld [vmem:[%s9 + $0x4f0] sm:$0xff]
    %v4112 = vld [vmem:[%s9 + $0x4f8] sm:$0xff]
    %v4113 = vld [vmem:[%s9 + $0x500] sm:$0xff]
    %v4114 = vld [vmem:[%s9 + $0x508] sm:$0xff]
    %v4115 = vld [vmem:[%s9 + $0x510] sm:$0xff]
    %v4116 = vld [vmem:[%s9 + $0x518] sm:$0xff]
    %v4117 = vld [vmem:[%s9 + $0x520] sm:$0xff]
    %v4118 = vld [vmem:[%s9 + $0x528] sm:$0xff]
    %v4119 = vld [vmem:[%s9 + $0x530] sm:$0xff]
    %v4120 = vld [vmem:[%s9 + $0x538] sm:$0xff]
    %v4121 = vld [vmem:[%s9 + $0x540] sm:$0xff]
    %v4122 = vld [vmem:[%s9 + $0x548] sm:$0xff]
    %v4123 = vld [vmem:[%s9 + $0x550] sm:$0xff]
    %v4124 = vld [vmem:[%s9 + $0x558] sm:$0xff]
    %v4125 = vld [vmem:[%s9 + $0x560] sm:$0xff]
    %v4126 = vld [vmem:[%s9 + $0x568] sm:$0xff]
    %v4127 = vld [vmem:[%s9 + $0x570] sm:$0xff]
    %v4128 = vld [vmem:[%s9 + $0x578] sm:$0xff]
    %v4129 = vld [vmem:[%s9 + $0x580] sm:$0xff]
    %v4130 = vld [vmem:[%s9 + $0x588] sm:$0xff]
    %v4131 = vld [vmem:[%s9 + $0x590] sm:$0xff]
    %v4132 = vld [vmem:[%s9 + $0x598] sm:$0xff]
    %v4133 = vld [vmem:[%s9 + $0x5a0] sm:$0xff]
    %v4134 = vld [vmem:[%s9 + $0x5a8] sm:$0xff]
    %v4135 = vld [vmem:[%s9 + $0x5b0] sm:$0xff]
    %v4136 = vld [vmem:[%s9 + $0x5b8] sm:$0xff]
    %v4137 = vld [vmem:[%s9 + $0x5c0] sm:$0xff]
    %v4138 = vld [vmem:[%s9 + $0x5c8] sm:$0xff]
    %v4139 = vld [vmem:[%s9 + $0x5d0] sm:$0xff]
    %v4140 = vld [vmem:[%s9 + $0x5d8] sm:$0xff]
    %v4141 = vld [vmem:[%s9 + $0x5e0] sm:$0xff]
    %v4142 = vld [vmem:[%s9 + $0x5e8] sm:$0xff]
    %v4143 = vld [vmem:[%s9 + $0x5f0] sm:$0xff]
    %v4144 = vld [vmem:[%s9 + $0x5f8] sm:$0xff]
    %v4145 = vld [vmem:[%s9 + $0x600] sm:$0xff]
    %v4146 = vld [vmem:[%s9 + $0x608] sm:$0xff]
    %v4147 = vld [vmem:[%s9 + $0x610] sm:$0xff]
    %v4148 = vld [vmem:[%s9 + $0x618] sm:$0xff]
    %v4149 = vld [vmem:[%s9 + $0x620] sm:$0xff]
    %v4150 = vld [vmem:[%s9 + $0x628] sm:$0xff]
    %v4151 = vld [vmem:[%s9 + $0x630] sm:$0xff]
    %v4152 = vld [vmem:[%s9 + $0x638] sm:$0xff]
    %v4153 = vld [vmem:[%s9 + $0x640] sm:$0xff]
    %v4154 = vld [vmem:[%s9 + $0x648] sm:$0xff]
    %v4155 = vld [vmem:[%s9 + $0x650] sm:$0xff]
    %v4156 = vld [vmem:[%s9 + $0x658] sm:$0xff]
    %v4157 = vld [vmem:[%s9 + $0x660] sm:$0xff]
    %v4158 = vld [vmem:[%s9 + $0x668] sm:$0xff]
    %v4159 = vld [vmem:[%s9 + $0x670] sm:$0xff]
    %v4160 = vld [vmem:[%s9 + $0x678] sm:$0xff]
    %v4161 = vld [vmem:[%s9 + $0x680] sm:$0xff]
    %v4162 = vld [vmem:[%s9 + $0x688] sm:$0xff]
    %v4163 = vld [vmem:[%s9 + $0x690] sm:$0xff]
    %v4164 = vld [vmem:[%s9 + $0x698] sm:$0xff]
    %v4165 = vld [vmem:[%s9 + $0x6a0] sm:$0xff]
    %v4166 = vld [vmem:[%s9 + $0x6a8] sm:$0xff]
    %v4167 = vld [vmem:[%s9 + $0x6b0] sm:$0xff]
    %v4168 = vld [vmem:[%s9 + $0x6b8] sm:$0xff]
    %v4169 = vld [vmem:[%s9 + $0x6c0] sm:$0xff]
    %v4170 = vld [vmem:[%s9 + $0x6c8] sm:$0xff]
    %v4171 = vld [vmem:[%s9 + $0x6d0] sm:$0xff]
    %v4172 = vld [vmem:[%s9 + $0x6d8] sm:$0xff]
    %v4173 = vld [vmem:[%s9 + $0x6e0] sm:$0xff]
    %v4174 = vld [vmem:[%s9 + $0x6e8] sm:$0xff]
    %v4175 = vld [vmem:[%s9 + $0x6f0] sm:$0xff]
    %v4176 = vld [vmem:[%s9 + $0x6f8] sm:$0xff]
    %v4177 = vld [vmem:[%s9 + $0x700] sm:$0xff]
    %v4178 = vld [vmem:[%s9 + $0x708] sm:$0xff]
    %v4179 = vld [vmem:[%s9 + $0x710] sm:$0xff]
    %v4180 = vld [vmem:[%s9 + $0x718] sm:$0xff]
    %v4181 = vld [vmem:[%s9 + $0x720] sm:$0xff]
    %v4182 = vld [vmem:[%s9 + $0x728] sm:$0xff]
    %v4183 = vld [vmem:[%s9 + $0x730] sm:$0xff]
    %v4184 = vld [vmem:[%s9 + $0x738] sm:$0xff]
    %v4185 = vld [vmem:[%s9 + $0x740] sm:$0xff]
    %v4186 = vld [vmem:[%s9 + $0x748] sm:$0xff]
    %v4187 = vld [vmem:[%s9 + $0x750] sm:$0xff]
    %v4188 = vld [vmem:[%s9 + $0x758] sm:$0xff]
    %v4189 = vld [vmem:[%s9 + $0x760] sm:$0xff]
    %v4190 = vld [vmem:[%s9 + $0x768] sm:$0xff]
    %v4191 = vld [vmem:[%s9 + $0x770] sm:$0xff]
    %v4192 = vld [vmem:[%s9 + $0x778] sm:$0xff]
    %v4193 = vld [vmem:[%s9 + $0x780] sm:$0xff]
    %v4194 = vld [vmem:[%s9 + $0x788] sm:$0xff]
    %v4195 = vld [vmem:[%s9 + $0x790] sm:$0xff]
    %v4196 = vld [vmem:[%s9 + $0x798] sm:$0xff]
    %v4197 = vld [vmem:[%s9 + $0x7a0] sm:$0xff]
    %v4198 = vld [vmem:[%s9 + $0x7a8] sm:$0xff]
    %v4199 = vld [vmem:[%s9 + $0x7b0] sm:$0xff]
    %v4200 = vld [vmem:[%s9 + $0x7b8] sm:$0xff]
    %v4201 = vld [vmem:[%s9 + $0x7c0] sm:$0xff]
    %v4202 = vld [vmem:[%s9 + $0x7c8] sm:$0xff]
    %v4203 = vld [vmem:[%s9 + $0x7d0] sm:$0xff]
    %v4204 = vld [vmem:[%s9 + $0x7d8] sm:$0xff]
    %v4205 = vld [vmem:[%s9 + $0x7e0] sm:$0xff]
    %v4206 = vld [vmem:[%s9 + $0x7e8] sm:$0xff]
    %v4207 = vld [vmem:[%s9 + $0x7f0] sm:$0xff]
    %v4208 = vld [vmem:[%s9 + $0x7f8] sm:$0xff]
    %v4209 = vld [vmem:[%s10] sm:$0xf]
    %v4211 = vlaneseq
    %v4212 = vshrl.u32 %v4211, 7
    %v4213 = vsub.s32 0, %v4212
    %v4214 = vrot.slane %v4209, %v4213
    %v4215 = vlaneseq
    %v4216 = vshrl.u32 %v4215, 7
    %v4217 = vsub.s32 1, %v4216
    %v4218 = vrot.slane %v4209, %v4217
    %v4219 = vlaneseq
    %v4220 = vshrl.u32 %v4219, 7
    %v4221 = vsub.s32 2, %v4220
    %v4222 = vrot.slane %v4209, %v4221
    %v4223 = vlaneseq
    %v4224 = vshrl.u32 %v4223, 7
    %v4225 = vsub.s32 3, %v4224
    %v4226 = vrot.slane %v4209, %v4225
    %v4487 = vunpack.c.l.b16 %v3953
    %v4488 = vunpack.c.h.b16 %v3953
    %v4489 = vunpack.c.l.b16 %v3954
    %v4490 = vunpack.c.h.b16 %v3954
    %v4491 = vunpack.c.l.b16 %v3955
    %v4492 = vunpack.c.h.b16 %v3955
    %v4493 = vunpack.c.l.b16 %v3956
    %v4494 = vunpack.c.h.b16 %v3956
    %v4495 = vunpack.c.l.b16 %v3957
    %v4496 = vunpack.c.h.b16 %v3957
    %v4497 = vunpack.c.l.b16 %v3958
    %v4498 = vunpack.c.h.b16 %v3958
    %v4499 = vunpack.c.l.b16 %v3959
    %v4500 = vunpack.c.h.b16 %v3959
    %v4501 = vunpack.c.l.b16 %v3960
    %v4502 = vunpack.c.h.b16 %v3960
    %v4503 = vunpack.c.l.b16 %v3961
    %v4504 = vunpack.c.h.b16 %v3961
    %v4505 = vunpack.c.l.b16 %v3962
    %v4506 = vunpack.c.h.b16 %v3962
    %v4507 = vunpack.c.l.b16 %v3963
    %v4508 = vunpack.c.h.b16 %v3963
    %v4509 = vunpack.c.l.b16 %v3964
    %v4510 = vunpack.c.h.b16 %v3964
    %v4511 = vunpack.c.l.b16 %v3965
    %v4512 = vunpack.c.h.b16 %v3965
    %v4513 = vunpack.c.l.b16 %v3966
    %v4514 = vunpack.c.h.b16 %v3966
    %v4515 = vunpack.c.l.b16 %v3967
    %v4516 = vunpack.c.h.b16 %v3967
    %v4517 = vunpack.c.l.b16 %v3968
    %v4518 = vunpack.c.h.b16 %v3968
    %v4519 = vunpack.c.l.b16 %v3969
    %v4520 = vunpack.c.h.b16 %v3969
    %v4521 = vunpack.c.l.b16 %v3970
    %v4522 = vunpack.c.h.b16 %v3970
    %v4523 = vunpack.c.l.b16 %v3971
    %v4524 = vunpack.c.h.b16 %v3971
    %v4525 = vunpack.c.l.b16 %v3972
    %v4526 = vunpack.c.h.b16 %v3972
    %v4527 = vunpack.c.l.b16 %v3973
    %v4528 = vunpack.c.h.b16 %v3973
    %v4529 = vunpack.c.l.b16 %v3974
    %v4530 = vunpack.c.h.b16 %v3974
    %v4531 = vunpack.c.l.b16 %v3975
    %v4532 = vunpack.c.h.b16 %v3975
    %v4533 = vunpack.c.l.b16 %v3976
    %v4534 = vunpack.c.h.b16 %v3976
    %v4535 = vunpack.c.l.b16 %v3977
    %v4536 = vunpack.c.h.b16 %v3977
    %v4537 = vunpack.c.l.b16 %v3978
    %v4538 = vunpack.c.h.b16 %v3978
    %v4539 = vunpack.c.l.b16 %v3979
    %v4540 = vunpack.c.h.b16 %v3979
    %v4541 = vunpack.c.l.b16 %v3980
    %v4542 = vunpack.c.h.b16 %v3980
    %v4543 = vunpack.c.l.b16 %v3981
    %v4544 = vunpack.c.h.b16 %v3981
    %v4545 = vunpack.c.l.b16 %v3982
    %v4546 = vunpack.c.h.b16 %v3982
    %v4547 = vunpack.c.l.b16 %v3983
    %v4548 = vunpack.c.h.b16 %v3983
    %v4549 = vunpack.c.l.b16 %v3984
    %v4550 = vunpack.c.h.b16 %v3984
    %v4551 = vunpack.c.l.b16 %v3985
    %v4552 = vunpack.c.h.b16 %v3985
    %v4553 = vunpack.c.l.b16 %v3986
    %v4554 = vunpack.c.h.b16 %v3986
    %v4555 = vunpack.c.l.b16 %v3987
    %v4556 = vunpack.c.h.b16 %v3987
    %v4557 = vunpack.c.l.b16 %v3988
    %v4558 = vunpack.c.h.b16 %v3988
    %v4559 = vunpack.c.l.b16 %v3989
    %v4560 = vunpack.c.h.b16 %v3989
    %v4561 = vunpack.c.l.b16 %v3990
    %v4562 = vunpack.c.h.b16 %v3990
    %v4563 = vunpack.c.l.b16 %v3991
    %v4564 = vunpack.c.h.b16 %v3991
    %v4565 = vunpack.c.l.b16 %v3992
    %v4566 = vunpack.c.h.b16 %v3992
    %v4567 = vunpack.c.l.b16 %v3993
    %v4568 = vunpack.c.h.b16 %v3993
    %v4569 = vunpack.c.l.b16 %v3994
    %v4570 = vunpack.c.h.b16 %v3994
    %v4571 = vunpack.c.l.b16 %v3995
    %v4572 = vunpack.c.h.b16 %v3995
    %v4573 = vunpack.c.l.b16 %v3996
    %v4574 = vunpack.c.h.b16 %v3996
    %v4575 = vunpack.c.l.b16 %v3997
    %v4576 = vunpack.c.h.b16 %v3997
    %v4577 = vunpack.c.l.b16 %v3998
    %v4578 = vunpack.c.h.b16 %v3998
    %v4579 = vunpack.c.l.b16 %v3999
    %v4580 = vunpack.c.h.b16 %v3999
    %v4581 = vunpack.c.l.b16 %v4000
    %v4582 = vunpack.c.h.b16 %v4000
    %v4583 = vunpack.c.l.b16 %v4001
    %v4584 = vunpack.c.h.b16 %v4001
    %v4585 = vunpack.c.l.b16 %v4002
    %v4586 = vunpack.c.h.b16 %v4002
    %v4587 = vunpack.c.l.b16 %v4003
    %v4588 = vunpack.c.h.b16 %v4003
    %v4589 = vunpack.c.l.b16 %v4004
    %v4590 = vunpack.c.h.b16 %v4004
    %v4591 = vunpack.c.l.b16 %v4005
    %v4592 = vunpack.c.h.b16 %v4005
    %v4593 = vunpack.c.l.b16 %v4006
    %v4594 = vunpack.c.h.b16 %v4006
    %v4595 = vunpack.c.l.b16 %v4007
    %v4596 = vunpack.c.h.b16 %v4007
    %v4597 = vunpack.c.l.b16 %v4008
    %v4598 = vunpack.c.h.b16 %v4008
    %v4599 = vunpack.c.l.b16 %v4009
    %v4600 = vunpack.c.h.b16 %v4009
    %v4601 = vunpack.c.l.b16 %v4010
    %v4602 = vunpack.c.h.b16 %v4010
    %v4603 = vunpack.c.l.b16 %v4011
    %v4604 = vunpack.c.h.b16 %v4011
    %v4605 = vunpack.c.l.b16 %v4012
    %v4606 = vunpack.c.h.b16 %v4012
    %v4607 = vunpack.c.l.b16 %v4013
    %v4608 = vunpack.c.h.b16 %v4013
    %v4609 = vunpack.c.l.b16 %v4014
    %v4610 = vunpack.c.h.b16 %v4014
    %v4611 = vunpack.c.l.b16 %v4015
    %v4612 = vunpack.c.h.b16 %v4015
    %v4613 = vunpack.c.l.b16 %v4016
    %v4614 = vunpack.c.h.b16 %v4016
    %v4615 = vunpack.c.l.b16 %v4017
    %v4616 = vunpack.c.h.b16 %v4017
    %v4617 = vunpack.c.l.b16 %v4018
    %v4618 = vunpack.c.h.b16 %v4018
    %v4619 = vunpack.c.l.b16 %v4019
    %v4620 = vunpack.c.h.b16 %v4019
    %v4621 = vunpack.c.l.b16 %v4020
    %v4622 = vunpack.c.h.b16 %v4020
    %v4623 = vunpack.c.l.b16 %v4021
    %v4624 = vunpack.c.h.b16 %v4021
    %v4625 = vunpack.c.l.b16 %v4022
    %v4626 = vunpack.c.h.b16 %v4022
    %v4627 = vunpack.c.l.b16 %v4023
    %v4628 = vunpack.c.h.b16 %v4023
    %v4629 = vunpack.c.l.b16 %v4024
    %v4630 = vunpack.c.h.b16 %v4024
    %v4631 = vunpack.c.l.b16 %v4025
    %v4632 = vunpack.c.h.b16 %v4025
    %v4633 = vunpack.c.l.b16 %v4026
    %v4634 = vunpack.c.h.b16 %v4026
    %v4635 = vunpack.c.l.b16 %v4027
    %v4636 = vunpack.c.h.b16 %v4027
    %v4637 = vunpack.c.l.b16 %v4028
    %v4638 = vunpack.c.h.b16 %v4028
    %v4639 = vunpack.c.l.b16 %v4029
    %v4640 = vunpack.c.h.b16 %v4029
    %v4641 = vunpack.c.l.b16 %v4030
    %v4642 = vunpack.c.h.b16 %v4030
    %v4643 = vunpack.c.l.b16 %v4031
    %v4644 = vunpack.c.h.b16 %v4031
    %v4645 = vunpack.c.l.b16 %v4032
    %v4646 = vunpack.c.h.b16 %v4032
    %v4647 = vunpack.c.l.b16 %v4033
    %v4648 = vunpack.c.h.b16 %v4033
    %v4649 = vunpack.c.l.b16 %v4034
    %v4650 = vunpack.c.h.b16 %v4034
    %v4651 = vunpack.c.l.b16 %v4035
    %v4652 = vunpack.c.h.b16 %v4035
    %v4653 = vunpack.c.l.b16 %v4036
    %v4654 = vunpack.c.h.b16 %v4036
    %v4655 = vunpack.c.l.b16 %v4037
    %v4656 = vunpack.c.h.b16 %v4037
    %v4657 = vunpack.c.l.b16 %v4038
    %v4658 = vunpack.c.h.b16 %v4038
    %v4659 = vunpack.c.l.b16 %v4039
    %v4660 = vunpack.c.h.b16 %v4039
    %v4661 = vunpack.c.l.b16 %v4040
    %v4662 = vunpack.c.h.b16 %v4040
    %v4663 = vunpack.c.l.b16 %v4041
    %v4664 = vunpack.c.h.b16 %v4041
    %v4665 = vunpack.c.l.b16 %v4042
    %v4666 = vunpack.c.h.b16 %v4042
    %v4667 = vunpack.c.l.b16 %v4043
    %v4668 = vunpack.c.h.b16 %v4043
    %v4669 = vunpack.c.l.b16 %v4044
    %v4670 = vunpack.c.h.b16 %v4044
    %v4671 = vunpack.c.l.b16 %v4045
    %v4672 = vunpack.c.h.b16 %v4045
    %v4673 = vunpack.c.l.b16 %v4046
    %v4674 = vunpack.c.h.b16 %v4046
    %v4675 = vunpack.c.l.b16 %v4047
    %v4676 = vunpack.c.h.b16 %v4047
    %v4677 = vunpack.c.l.b16 %v4048
    %v4678 = vunpack.c.h.b16 %v4048
    %v4679 = vunpack.c.l.b16 %v4049
    %v4680 = vunpack.c.h.b16 %v4049
    %v4681 = vunpack.c.l.b16 %v4050
    %v4682 = vunpack.c.h.b16 %v4050
    %v4683 = vunpack.c.l.b16 %v4051
    %v4684 = vunpack.c.h.b16 %v4051
    %v4685 = vunpack.c.l.b16 %v4052
    %v4686 = vunpack.c.h.b16 %v4052
    %v4687 = vunpack.c.l.b16 %v4053
    %v4688 = vunpack.c.h.b16 %v4053
    %v4689 = vunpack.c.l.b16 %v4054
    %v4690 = vunpack.c.h.b16 %v4054
    %v4691 = vunpack.c.l.b16 %v4055
    %v4692 = vunpack.c.h.b16 %v4055
    %v4693 = vunpack.c.l.b16 %v4056
    %v4694 = vunpack.c.h.b16 %v4056
    %v4695 = vunpack.c.l.b16 %v4057
    %v4696 = vunpack.c.h.b16 %v4057
    %v4697 = vunpack.c.l.b16 %v4058
    %v4698 = vunpack.c.h.b16 %v4058
    %v4699 = vunpack.c.l.b16 %v4059
    %v4700 = vunpack.c.h.b16 %v4059
    %v4701 = vunpack.c.l.b16 %v4060
    %v4702 = vunpack.c.h.b16 %v4060
    %v4703 = vunpack.c.l.b16 %v4061
    %v4704 = vunpack.c.h.b16 %v4061
    %v4705 = vunpack.c.l.b16 %v4062
    %v4706 = vunpack.c.h.b16 %v4062
    %v4707 = vunpack.c.l.b16 %v4063
    %v4708 = vunpack.c.h.b16 %v4063
    %v4709 = vunpack.c.l.b16 %v4064
    %v4710 = vunpack.c.h.b16 %v4064
    %v4711 = vunpack.c.l.b16 %v4065
    %v4712 = vunpack.c.h.b16 %v4065
    %v4713 = vunpack.c.l.b16 %v4066
    %v4714 = vunpack.c.h.b16 %v4066
    %v4715 = vunpack.c.l.b16 %v4067
    %v4716 = vunpack.c.h.b16 %v4067
    %v4717 = vunpack.c.l.b16 %v4068
    %v4718 = vunpack.c.h.b16 %v4068
    %v4719 = vunpack.c.l.b16 %v4069
    %v4720 = vunpack.c.h.b16 %v4069
    %v4721 = vunpack.c.l.b16 %v4070
    %v4722 = vunpack.c.h.b16 %v4070
    %v4723 = vunpack.c.l.b16 %v4071
    %v4724 = vunpack.c.h.b16 %v4071
    %v4725 = vunpack.c.l.b16 %v4072
    %v4726 = vunpack.c.h.b16 %v4072
    %v4727 = vunpack.c.l.b16 %v4073
    %v4728 = vunpack.c.h.b16 %v4073
    %v4729 = vunpack.c.l.b16 %v4074
    %v4730 = vunpack.c.h.b16 %v4074
    %v4731 = vunpack.c.l.b16 %v4075
    %v4732 = vunpack.c.h.b16 %v4075
    %v4733 = vunpack.c.l.b16 %v4076
    %v4734 = vunpack.c.h.b16 %v4076
    %v4735 = vunpack.c.l.b16 %v4077
    %v4736 = vunpack.c.h.b16 %v4077
    %v4737 = vunpack.c.l.b16 %v4078
    %v4738 = vunpack.c.h.b16 %v4078
    %v4739 = vunpack.c.l.b16 %v4079
    %v4740 = vunpack.c.h.b16 %v4079
    %v4741 = vunpack.c.l.b16 %v4080
    %v4742 = vunpack.c.h.b16 %v4080
    %v4743 = vunpack.c.l.b16 %v4081
    %v4744 = vunpack.c.h.b16 %v4081
    %v4745 = vunpack.c.l.b16 %v4082
    %v4746 = vunpack.c.h.b16 %v4082
    %v4747 = vunpack.c.l.b16 %v4083
    %v4748 = vunpack.c.h.b16 %v4083
    %v4749 = vunpack.c.l.b16 %v4084
    %v4750 = vunpack.c.h.b16 %v4084
    %v4751 = vunpack.c.l.b16 %v4085
    %v4752 = vunpack.c.h.b16 %v4085
    %v4753 = vunpack.c.l.b16 %v4086
    %v4754 = vunpack.c.h.b16 %v4086
    %v4755 = vunpack.c.l.b16 %v4087
    %v4756 = vunpack.c.h.b16 %v4087
    %v4757 = vunpack.c.l.b16 %v4088
    %v4758 = vunpack.c.h.b16 %v4088
    %v4759 = vunpack.c.l.b16 %v4089
    %v4760 = vunpack.c.h.b16 %v4089
    %v4761 = vunpack.c.l.b16 %v4090
    %v4762 = vunpack.c.h.b16 %v4090
    %v4763 = vunpack.c.l.b16 %v4091
    %v4764 = vunpack.c.h.b16 %v4091
    %v4765 = vunpack.c.l.b16 %v4092
    %v4766 = vunpack.c.h.b16 %v4092
    %v4767 = vunpack.c.l.b16 %v4093
    %v4768 = vunpack.c.h.b16 %v4093
    %v4769 = vunpack.c.l.b16 %v4094
    %v4770 = vunpack.c.h.b16 %v4094
    %v4771 = vunpack.c.l.b16 %v4095
    %v4772 = vunpack.c.h.b16 %v4095
    %v4773 = vunpack.c.l.b16 %v4096
    %v4774 = vunpack.c.h.b16 %v4096
    %v4775 = vunpack.c.l.b16 %v4097
    %v4776 = vunpack.c.h.b16 %v4097
    %v4777 = vunpack.c.l.b16 %v4098
    %v4778 = vunpack.c.h.b16 %v4098
    %v4779 = vunpack.c.l.b16 %v4099
    %v4780 = vunpack.c.h.b16 %v4099
    %v4781 = vunpack.c.l.b16 %v4100
    %v4782 = vunpack.c.h.b16 %v4100
    %v4783 = vunpack.c.l.b16 %v4101
    %v4784 = vunpack.c.h.b16 %v4101
    %v4785 = vunpack.c.l.b16 %v4102
    %v4786 = vunpack.c.h.b16 %v4102
    %v4787 = vunpack.c.l.b16 %v4103
    %v4788 = vunpack.c.h.b16 %v4103
    %v4789 = vunpack.c.l.b16 %v4104
    %v4790 = vunpack.c.h.b16 %v4104
    %v4791 = vunpack.c.l.b16 %v4105
    %v4792 = vunpack.c.h.b16 %v4105
    %v4793 = vunpack.c.l.b16 %v4106
    %v4794 = vunpack.c.h.b16 %v4106
    %v4795 = vunpack.c.l.b16 %v4107
    %v4796 = vunpack.c.h.b16 %v4107
    %v4797 = vunpack.c.l.b16 %v4108
    %v4798 = vunpack.c.h.b16 %v4108
    %v4799 = vunpack.c.l.b16 %v4109
    %v4800 = vunpack.c.h.b16 %v4109
    %v4801 = vunpack.c.l.b16 %v4110
    %v4802 = vunpack.c.h.b16 %v4110
    %v4803 = vunpack.c.l.b16 %v4111
    %v4804 = vunpack.c.h.b16 %v4111
    %v4805 = vunpack.c.l.b16 %v4112
    %v4806 = vunpack.c.h.b16 %v4112
    %v4807 = vunpack.c.l.b16 %v4113
    %v4808 = vunpack.c.h.b16 %v4113
    %v4809 = vunpack.c.l.b16 %v4114
    %v4810 = vunpack.c.h.b16 %v4114
    %v4811 = vunpack.c.l.b16 %v4115
    %v4812 = vunpack.c.h.b16 %v4115
    %v4813 = vunpack.c.l.b16 %v4116
    %v4814 = vunpack.c.h.b16 %v4116
    %v4815 = vunpack.c.l.b16 %v4117
    %v4816 = vunpack.c.h.b16 %v4117
    %v4817 = vunpack.c.l.b16 %v4118
    %v4818 = vunpack.c.h.b16 %v4118
    %v4819 = vunpack.c.l.b16 %v4119
    %v4820 = vunpack.c.h.b16 %v4119
    %v4821 = vunpack.c.l.b16 %v4120
    %v4822 = vunpack.c.h.b16 %v4120
    %v4823 = vunpack.c.l.b16 %v4121
    %v4824 = vunpack.c.h.b16 %v4121
    %v4825 = vunpack.c.l.b16 %v4122
    %v4826 = vunpack.c.h.b16 %v4122
    %v4827 = vunpack.c.l.b16 %v4123
    %v4828 = vunpack.c.h.b16 %v4123
    %v4829 = vunpack.c.l.b16 %v4124
    %v4830 = vunpack.c.h.b16 %v4124
    %v4831 = vunpack.c.l.b16 %v4125
    %v4832 = vunpack.c.h.b16 %v4125
    %v4833 = vunpack.c.l.b16 %v4126
    %v4834 = vunpack.c.h.b16 %v4126
    %v4835 = vunpack.c.l.b16 %v4127
    %v4836 = vunpack.c.h.b16 %v4127
    %v4837 = vunpack.c.l.b16 %v4128
    %v4838 = vunpack.c.h.b16 %v4128
    %v4839 = vunpack.c.l.b16 %v4129
    %v4840 = vunpack.c.h.b16 %v4129
    %v4841 = vunpack.c.l.b16 %v4130
    %v4842 = vunpack.c.h.b16 %v4130
    %v4843 = vunpack.c.l.b16 %v4131
    %v4844 = vunpack.c.h.b16 %v4131
    %v4845 = vunpack.c.l.b16 %v4132
    %v4846 = vunpack.c.h.b16 %v4132
    %v4847 = vunpack.c.l.b16 %v4133
    %v4848 = vunpack.c.h.b16 %v4133
    %v4849 = vunpack.c.l.b16 %v4134
    %v4850 = vunpack.c.h.b16 %v4134
    %v4851 = vunpack.c.l.b16 %v4135
    %v4852 = vunpack.c.h.b16 %v4135
    %v4853 = vunpack.c.l.b16 %v4136
    %v4854 = vunpack.c.h.b16 %v4136
    %v4855 = vunpack.c.l.b16 %v4137
    %v4856 = vunpack.c.h.b16 %v4137
    %v4857 = vunpack.c.l.b16 %v4138
    %v4858 = vunpack.c.h.b16 %v4138
    %v4859 = vunpack.c.l.b16 %v4139
    %v4860 = vunpack.c.h.b16 %v4139
    %v4861 = vunpack.c.l.b16 %v4140
    %v4862 = vunpack.c.h.b16 %v4140
    %v4863 = vunpack.c.l.b16 %v4141
    %v4864 = vunpack.c.h.b16 %v4141
    %v4865 = vunpack.c.l.b16 %v4142
    %v4866 = vunpack.c.h.b16 %v4142
    %v4867 = vunpack.c.l.b16 %v4143
    %v4868 = vunpack.c.h.b16 %v4143
    %v4869 = vunpack.c.l.b16 %v4144
    %v4870 = vunpack.c.h.b16 %v4144
    %v4871 = vunpack.c.l.b16 %v4145
    %v4872 = vunpack.c.h.b16 %v4145
    %v4873 = vunpack.c.l.b16 %v4146
    %v4874 = vunpack.c.h.b16 %v4146
    %v4875 = vunpack.c.l.b16 %v4147
    %v4876 = vunpack.c.h.b16 %v4147
    %v4877 = vunpack.c.l.b16 %v4148
    %v4878 = vunpack.c.h.b16 %v4148
    %v4879 = vunpack.c.l.b16 %v4149
    %v4880 = vunpack.c.h.b16 %v4149
    %v4881 = vunpack.c.l.b16 %v4150
    %v4882 = vunpack.c.h.b16 %v4150
    %v4883 = vunpack.c.l.b16 %v4151
    %v4884 = vunpack.c.h.b16 %v4151
    %v4885 = vunpack.c.l.b16 %v4152
    %v4886 = vunpack.c.h.b16 %v4152
    %v4887 = vunpack.c.l.b16 %v4153
    %v4888 = vunpack.c.h.b16 %v4153
    %v4889 = vunpack.c.l.b16 %v4154
    %v4890 = vunpack.c.h.b16 %v4154
    %v4891 = vunpack.c.l.b16 %v4155
    %v4892 = vunpack.c.h.b16 %v4155
    %v4893 = vunpack.c.l.b16 %v4156
    %v4894 = vunpack.c.h.b16 %v4156
    %v4895 = vunpack.c.l.b16 %v4157
    %v4896 = vunpack.c.h.b16 %v4157
    %v4897 = vunpack.c.l.b16 %v4158
    %v4898 = vunpack.c.h.b16 %v4158
    %v4899 = vunpack.c.l.b16 %v4159
    %v4900 = vunpack.c.h.b16 %v4159
    %v4901 = vunpack.c.l.b16 %v4160
    %v4902 = vunpack.c.h.b16 %v4160
    %v4903 = vunpack.c.l.b16 %v4161
    %v4904 = vunpack.c.h.b16 %v4161
    %v4905 = vunpack.c.l.b16 %v4162
    %v4906 = vunpack.c.h.b16 %v4162
    %v4907 = vunpack.c.l.b16 %v4163
    %v4908 = vunpack.c.h.b16 %v4163
    %v4909 = vunpack.c.l.b16 %v4164
    %v4910 = vunpack.c.h.b16 %v4164
    %v4911 = vunpack.c.l.b16 %v4165
    %v4912 = vunpack.c.h.b16 %v4165
    %v4913 = vunpack.c.l.b16 %v4166
    %v4914 = vunpack.c.h.b16 %v4166
    %v4915 = vunpack.c.l.b16 %v4167
    %v4916 = vunpack.c.h.b16 %v4167
    %v4917 = vunpack.c.l.b16 %v4168
    %v4918 = vunpack.c.h.b16 %v4168
    %v4919 = vunpack.c.l.b16 %v4169
    %v4920 = vunpack.c.h.b16 %v4169
    %v4921 = vunpack.c.l.b16 %v4170
    %v4922 = vunpack.c.h.b16 %v4170
    %v4923 = vunpack.c.l.b16 %v4171
    %v4924 = vunpack.c.h.b16 %v4171
    %v4925 = vunpack.c.l.b16 %v4172
    %v4926 = vunpack.c.h.b16 %v4172
    %v4927 = vunpack.c.l.b16 %v4173
    %v4928 = vunpack.c.h.b16 %v4173
    %v4929 = vunpack.c.l.b16 %v4174
    %v4930 = vunpack.c.h.b16 %v4174
    %v4931 = vunpack.c.l.b16 %v4175
    %v4932 = vunpack.c.h.b16 %v4175
    %v4933 = vunpack.c.l.b16 %v4176
    %v4934 = vunpack.c.h.b16 %v4176
    %v4935 = vunpack.c.l.b16 %v4177
    %v4936 = vunpack.c.h.b16 %v4177
    %v4937 = vunpack.c.l.b16 %v4178
    %v4938 = vunpack.c.h.b16 %v4178
    %v4939 = vunpack.c.l.b16 %v4179
    %v4940 = vunpack.c.h.b16 %v4179
    %v4941 = vunpack.c.l.b16 %v4180
    %v4942 = vunpack.c.h.b16 %v4180
    %v4943 = vunpack.c.l.b16 %v4181
    %v4944 = vunpack.c.h.b16 %v4181
    %v4945 = vunpack.c.l.b16 %v4182
    %v4946 = vunpack.c.h.b16 %v4182
    %v4947 = vunpack.c.l.b16 %v4183
    %v4948 = vunpack.c.h.b16 %v4183
    %v4949 = vunpack.c.l.b16 %v4184
    %v4950 = vunpack.c.h.b16 %v4184
    %v4951 = vunpack.c.l.b16 %v4185
    %v4952 = vunpack.c.h.b16 %v4185
    %v4953 = vunpack.c.l.b16 %v4186
    %v4954 = vunpack.c.h.b16 %v4186
    %v4955 = vunpack.c.l.b16 %v4187
    %v4956 = vunpack.c.h.b16 %v4187
    %v4957 = vunpack.c.l.b16 %v4188
    %v4958 = vunpack.c.h.b16 %v4188
    %v4959 = vunpack.c.l.b16 %v4189
    %v4960 = vunpack.c.h.b16 %v4189
    %v4961 = vunpack.c.l.b16 %v4190
    %v4962 = vunpack.c.h.b16 %v4190
    %v4963 = vunpack.c.l.b16 %v4191
    %v4964 = vunpack.c.h.b16 %v4191
    %v4965 = vunpack.c.l.b16 %v4192
    %v4966 = vunpack.c.h.b16 %v4192
    %v4967 = vunpack.c.l.b16 %v4193
    %v4968 = vunpack.c.h.b16 %v4193
    %v4969 = vunpack.c.l.b16 %v4194
    %v4970 = vunpack.c.h.b16 %v4194
    %v4971 = vunpack.c.l.b16 %v4195
    %v4972 = vunpack.c.h.b16 %v4195
    %v4973 = vunpack.c.l.b16 %v4196
    %v4974 = vunpack.c.h.b16 %v4196
    %v4975 = vunpack.c.l.b16 %v4197
    %v4976 = vunpack.c.h.b16 %v4197
    %v4977 = vunpack.c.l.b16 %v4198
    %v4978 = vunpack.c.h.b16 %v4198
    %v4979 = vunpack.c.l.b16 %v4199
    %v4980 = vunpack.c.h.b16 %v4199
    %v4981 = vunpack.c.l.b16 %v4200
    %v4982 = vunpack.c.h.b16 %v4200
    %v4983 = vunpack.c.l.b16 %v4201
    %v4984 = vunpack.c.h.b16 %v4201
    %v4985 = vunpack.c.l.b16 %v4202
    %v4986 = vunpack.c.h.b16 %v4202
    %v4987 = vunpack.c.l.b16 %v4203
    %v4988 = vunpack.c.h.b16 %v4203
    %v4989 = vunpack.c.l.b16 %v4204
    %v4990 = vunpack.c.h.b16 %v4204
    %v4991 = vunpack.c.l.b16 %v4205
    %v4992 = vunpack.c.h.b16 %v4205
    %v4993 = vunpack.c.l.b16 %v4206
    %v4994 = vunpack.c.h.b16 %v4206
    %v4995 = vunpack.c.l.b16 %v4207
    %v4996 = vunpack.c.h.b16 %v4207
    %v4997 = vunpack.c.l.b16 %v4208
    %v4998 = vunpack.c.h.b16 %v4208
    %v4999 = vpack.c.b16 %v4491, %v4487
    %v5000 = vpack.c.b16 %v4492, %v4488
    %v5001 = vpack.c.b16 %v4493, %v4489
    %v5002 = vpack.c.b16 %v4494, %v4490
    %v5003 = vpack.c.b16 %v4499, %v4495
    %v5004 = vpack.c.b16 %v4500, %v4496
    %v5005 = vpack.c.b16 %v4501, %v4497
    %v5006 = vpack.c.b16 %v4502, %v4498
    %v5007 = vpack.c.b16 %v4507, %v4503
    %v5008 = vpack.c.b16 %v4508, %v4504
    %v5009 = vpack.c.b16 %v4509, %v4505
    %v5010 = vpack.c.b16 %v4510, %v4506
    %v5011 = vpack.c.b16 %v4515, %v4511
    %v5012 = vpack.c.b16 %v4516, %v4512
    %v5013 = vpack.c.b16 %v4517, %v4513
    %v5014 = vpack.c.b16 %v4518, %v4514
    %v5015 = vpack.c.b16 %v4523, %v4519
    %v5016 = vpack.c.b16 %v4524, %v4520
    %v5017 = vpack.c.b16 %v4525, %v4521
    %v5018 = vpack.c.b16 %v4526, %v4522
    %v5019 = vpack.c.b16 %v4531, %v4527
    %v5020 = vpack.c.b16 %v4532, %v4528
    %v5021 = vpack.c.b16 %v4533, %v4529
    %v5022 = vpack.c.b16 %v4534, %v4530
    %v5023 = vpack.c.b16 %v4539, %v4535
    %v5024 = vpack.c.b16 %v4540, %v4536
    %v5025 = vpack.c.b16 %v4541, %v4537
    %v5026 = vpack.c.b16 %v4542, %v4538
    %v5027 = vpack.c.b16 %v4547, %v4543
    %v5028 = vpack.c.b16 %v4548, %v4544
    %v5029 = vpack.c.b16 %v4549, %v4545
    %v5030 = vpack.c.b16 %v4550, %v4546
    %v5031 = vpack.c.b16 %v4555, %v4551
    %v5032 = vpack.c.b16 %v4556, %v4552
    %v5033 = vpack.c.b16 %v4557, %v4553
    %v5034 = vpack.c.b16 %v4558, %v4554
    %v5035 = vpack.c.b16 %v4563, %v4559
    %v5036 = vpack.c.b16 %v4564, %v4560
    %v5037 = vpack.c.b16 %v4565, %v4561
    %v5038 = vpack.c.b16 %v4566, %v4562
    %v5039 = vpack.c.b16 %v4571, %v4567
    %v5040 = vpack.c.b16 %v4572, %v4568
    %v5041 = vpack.c.b16 %v4573, %v4569
    %v5042 = vpack.c.b16 %v4574, %v4570
    %v5043 = vpack.c.b16 %v4579, %v4575
    %v5044 = vpack.c.b16 %v4580, %v4576
    %v5045 = vpack.c.b16 %v4581, %v4577
    %v5046 = vpack.c.b16 %v4582, %v4578
    %v5047 = vpack.c.b16 %v4587, %v4583
    %v5048 = vpack.c.b16 %v4588, %v4584
    %v5049 = vpack.c.b16 %v4589, %v4585
    %v5050 = vpack.c.b16 %v4590, %v4586
    %v5051 = vpack.c.b16 %v4595, %v4591
    %v5052 = vpack.c.b16 %v4596, %v4592
    %v5053 = vpack.c.b16 %v4597, %v4593
    %v5054 = vpack.c.b16 %v4598, %v4594
    %v5055 = vpack.c.b16 %v4603, %v4599
    %v5056 = vpack.c.b16 %v4604, %v4600
    %v5057 = vpack.c.b16 %v4605, %v4601
    %v5058 = vpack.c.b16 %v4606, %v4602
    %v5059 = vpack.c.b16 %v4611, %v4607
    %v5060 = vpack.c.b16 %v4612, %v4608
    %v5061 = vpack.c.b16 %v4613, %v4609
    %v5062 = vpack.c.b16 %v4614, %v4610
    %v5063 = vpack.c.b16 %v4619, %v4615
    %v5064 = vpack.c.b16 %v4620, %v4616
    %v5065 = vpack.c.b16 %v4621, %v4617
    %v5066 = vpack.c.b16 %v4622, %v4618
    %v5067 = vpack.c.b16 %v4627, %v4623
    %v5068 = vpack.c.b16 %v4628, %v4624
    %v5069 = vpack.c.b16 %v4629, %v4625
    %v5070 = vpack.c.b16 %v4630, %v4626
    %v5071 = vpack.c.b16 %v4635, %v4631
    %v5072 = vpack.c.b16 %v4636, %v4632
    %v5073 = vpack.c.b16 %v4637, %v4633
    %v5074 = vpack.c.b16 %v4638, %v4634
    %v5075 = vpack.c.b16 %v4643, %v4639
    %v5076 = vpack.c.b16 %v4644, %v4640
    %v5077 = vpack.c.b16 %v4645, %v4641
    %v5078 = vpack.c.b16 %v4646, %v4642
    %v5079 = vpack.c.b16 %v4651, %v4647
    %v5080 = vpack.c.b16 %v4652, %v4648
    %v5081 = vpack.c.b16 %v4653, %v4649
    %v5082 = vpack.c.b16 %v4654, %v4650
    %v5083 = vpack.c.b16 %v4659, %v4655
    %v5084 = vpack.c.b16 %v4660, %v4656
    %v5085 = vpack.c.b16 %v4661, %v4657
    %v5086 = vpack.c.b16 %v4662, %v4658
    %v5087 = vpack.c.b16 %v4667, %v4663
    %v5088 = vpack.c.b16 %v4668, %v4664
    %v5089 = vpack.c.b16 %v4669, %v4665
    %v5090 = vpack.c.b16 %v4670, %v4666
    %v5091 = vpack.c.b16 %v4675, %v4671
    %v5092 = vpack.c.b16 %v4676, %v4672
    %v5093 = vpack.c.b16 %v4677, %v4673
    %v5094 = vpack.c.b16 %v4678, %v4674
    %v5095 = vpack.c.b16 %v4683, %v4679
    %v5096 = vpack.c.b16 %v4684, %v4680
    %v5097 = vpack.c.b16 %v4685, %v4681
    %v5098 = vpack.c.b16 %v4686, %v4682
    %v5099 = vpack.c.b16 %v4691, %v4687
    %v5100 = vpack.c.b16 %v4692, %v4688
    %v5101 = vpack.c.b16 %v4693, %v4689
    %v5102 = vpack.c.b16 %v4694, %v4690
    %v5103 = vpack.c.b16 %v4699, %v4695
    %v5104 = vpack.c.b16 %v4700, %v4696
    %v5105 = vpack.c.b16 %v4701, %v4697
    %v5106 = vpack.c.b16 %v4702, %v4698
    %v5107 = vpack.c.b16 %v4707, %v4703
    %v5108 = vpack.c.b16 %v4708, %v4704
    %v5109 = vpack.c.b16 %v4709, %v4705
    %v5110 = vpack.c.b16 %v4710, %v4706
    %v5111 = vpack.c.b16 %v4715, %v4711
    %v5112 = vpack.c.b16 %v4716, %v4712
    %v5113 = vpack.c.b16 %v4717, %v4713
    %v5114 = vpack.c.b16 %v4718, %v4714
    %v5115 = vpack.c.b16 %v4723, %v4719
    %v5116 = vpack.c.b16 %v4724, %v4720
    %v5117 = vpack.c.b16 %v4725, %v4721
    %v5118 = vpack.c.b16 %v4726, %v4722
    %v5119 = vpack.c.b16 %v4731, %v4727
    %v5120 = vpack.c.b16 %v4732, %v4728
    %v5121 = vpack.c.b16 %v4733, %v4729
    %v5122 = vpack.c.b16 %v4734, %v4730
    %v5123 = vpack.c.b16 %v4739, %v4735
    %v5124 = vpack.c.b16 %v4740, %v4736
    %v5125 = vpack.c.b16 %v4741, %v4737
    %v5126 = vpack.c.b16 %v4742, %v4738
    %v5127 = vpack.c.b16 %v4747, %v4743
    %v5128 = vpack.c.b16 %v4748, %v4744
    %v5129 = vpack.c.b16 %v4749, %v4745
    %v5130 = vpack.c.b16 %v4750, %v4746
    %v5131 = vpack.c.b16 %v4755, %v4751
    %v5132 = vpack.c.b16 %v4756, %v4752
    %v5133 = vpack.c.b16 %v4757, %v4753
    %v5134 = vpack.c.b16 %v4758, %v4754
    %v5135 = vpack.c.b16 %v4763, %v4759
    %v5136 = vpack.c.b16 %v4764, %v4760
    %v5137 = vpack.c.b16 %v4765, %v4761
    %v5138 = vpack.c.b16 %v4766, %v4762
    %v5139 = vpack.c.b16 %v4771, %v4767
    %v5140 = vpack.c.b16 %v4772, %v4768
    %v5141 = vpack.c.b16 %v4773, %v4769
    %v5142 = vpack.c.b16 %v4774, %v4770
    %v5143 = vpack.c.b16 %v4779, %v4775
    %v5144 = vpack.c.b16 %v4780, %v4776
    %v5145 = vpack.c.b16 %v4781, %v4777
    %v5146 = vpack.c.b16 %v4782, %v4778
    %v5147 = vpack.c.b16 %v4787, %v4783
    %v5148 = vpack.c.b16 %v4788, %v4784
    %v5149 = vpack.c.b16 %v4789, %v4785
    %v5150 = vpack.c.b16 %v4790, %v4786
    %v5151 = vpack.c.b16 %v4795, %v4791
    %v5152 = vpack.c.b16 %v4796, %v4792
    %v5153 = vpack.c.b16 %v4797, %v4793
    %v5154 = vpack.c.b16 %v4798, %v4794
    %v5155 = vpack.c.b16 %v4803, %v4799
    %v5156 = vpack.c.b16 %v4804, %v4800
    %v5157 = vpack.c.b16 %v4805, %v4801
    %v5158 = vpack.c.b16 %v4806, %v4802
    %v5159 = vpack.c.b16 %v4811, %v4807
    %v5160 = vpack.c.b16 %v4812, %v4808
    %v5161 = vpack.c.b16 %v4813, %v4809
    %v5162 = vpack.c.b16 %v4814, %v4810
    %v5163 = vpack.c.b16 %v4819, %v4815
    %v5164 = vpack.c.b16 %v4820, %v4816
    %v5165 = vpack.c.b16 %v4821, %v4817
    %v5166 = vpack.c.b16 %v4822, %v4818
    %v5167 = vpack.c.b16 %v4827, %v4823
    %v5168 = vpack.c.b16 %v4828, %v4824
    %v5169 = vpack.c.b16 %v4829, %v4825
    %v5170 = vpack.c.b16 %v4830, %v4826
    %v5171 = vpack.c.b16 %v4835, %v4831
    %v5172 = vpack.c.b16 %v4836, %v4832
    %v5173 = vpack.c.b16 %v4837, %v4833
    %v5174 = vpack.c.b16 %v4838, %v4834
    %v5175 = vpack.c.b16 %v4843, %v4839
    %v5176 = vpack.c.b16 %v4844, %v4840
    %v5177 = vpack.c.b16 %v4845, %v4841
    %v5178 = vpack.c.b16 %v4846, %v4842
    %v5179 = vpack.c.b16 %v4851, %v4847
    %v5180 = vpack.c.b16 %v4852, %v4848
    %v5181 = vpack.c.b16 %v4853, %v4849
    %v5182 = vpack.c.b16 %v4854, %v4850
    %v5183 = vpack.c.b16 %v4859, %v4855
    %v5184 = vpack.c.b16 %v4860, %v4856
    %v5185 = vpack.c.b16 %v4861, %v4857
    %v5186 = vpack.c.b16 %v4862, %v4858
    %v5187 = vpack.c.b16 %v4867, %v4863
    %v5188 = vpack.c.b16 %v4868, %v4864
    %v5189 = vpack.c.b16 %v4869, %v4865
    %v5190 = vpack.c.b16 %v4870, %v4866
    %v5191 = vpack.c.b16 %v4875, %v4871
    %v5192 = vpack.c.b16 %v4876, %v4872
    %v5193 = vpack.c.b16 %v4877, %v4873
    %v5194 = vpack.c.b16 %v4878, %v4874
    %v5195 = vpack.c.b16 %v4883, %v4879
    %v5196 = vpack.c.b16 %v4884, %v4880
    %v5197 = vpack.c.b16 %v4885, %v4881
    %v5198 = vpack.c.b16 %v4886, %v4882
    %v5199 = vpack.c.b16 %v4891, %v4887
    %v5200 = vpack.c.b16 %v4892, %v4888
    %v5201 = vpack.c.b16 %v4893, %v4889
    %v5202 = vpack.c.b16 %v4894, %v4890
    %v5203 = vpack.c.b16 %v4899, %v4895
    %v5204 = vpack.c.b16 %v4900, %v4896
    %v5205 = vpack.c.b16 %v4901, %v4897
    %v5206 = vpack.c.b16 %v4902, %v4898
    %v5207 = vpack.c.b16 %v4907, %v4903
    %v5208 = vpack.c.b16 %v4908, %v4904
    %v5209 = vpack.c.b16 %v4909, %v4905
    %v5210 = vpack.c.b16 %v4910, %v4906
    %v5211 = vpack.c.b16 %v4915, %v4911
    %v5212 = vpack.c.b16 %v4916, %v4912
    %v5213 = vpack.c.b16 %v4917, %v4913
    %v5214 = vpack.c.b16 %v4918, %v4914
    %v5215 = vpack.c.b16 %v4923, %v4919
    %v5216 = vpack.c.b16 %v4924, %v4920
    %v5217 = vpack.c.b16 %v4925, %v4921
    %v5218 = vpack.c.b16 %v4926, %v4922
    %v5219 = vpack.c.b16 %v4931, %v4927
    %v5220 = vpack.c.b16 %v4932, %v4928
    %v5221 = vpack.c.b16 %v4933, %v4929
    %v5222 = vpack.c.b16 %v4934, %v4930
    %v5223 = vpack.c.b16 %v4939, %v4935
    %v5224 = vpack.c.b16 %v4940, %v4936
    %v5225 = vpack.c.b16 %v4941, %v4937
    %v5226 = vpack.c.b16 %v4942, %v4938
    %v5227 = vpack.c.b16 %v4947, %v4943
    %v5228 = vpack.c.b16 %v4948, %v4944
    %v5229 = vpack.c.b16 %v4949, %v4945
    %v5230 = vpack.c.b16 %v4950, %v4946
    %v5231 = vpack.c.b16 %v4955, %v4951
    %v5232 = vpack.c.b16 %v4956, %v4952
    %v5233 = vpack.c.b16 %v4957, %v4953
    %v5234 = vpack.c.b16 %v4958, %v4954
    %v5235 = vpack.c.b16 %v4963, %v4959
    %v5236 = vpack.c.b16 %v4964, %v4960
    %v5237 = vpack.c.b16 %v4965, %v4961
    %v5238 = vpack.c.b16 %v4966, %v4962
    %v5239 = vpack.c.b16 %v4971, %v4967
    %v5240 = vpack.c.b16 %v4972, %v4968
    %v5241 = vpack.c.b16 %v4973, %v4969
    %v5242 = vpack.c.b16 %v4974, %v4970
    %v5243 = vpack.c.b16 %v4979, %v4975
    %v5244 = vpack.c.b16 %v4980, %v4976
    %v5245 = vpack.c.b16 %v4981, %v4977
    %v5246 = vpack.c.b16 %v4982, %v4978
    %v5247 = vpack.c.b16 %v4987, %v4983
    %v5248 = vpack.c.b16 %v4988, %v4984
    %v5249 = vpack.c.b16 %v4989, %v4985
    %v5250 = vpack.c.b16 %v4990, %v4986
    %v5251 = vpack.c.b16 %v4995, %v4991
    %v5252 = vpack.c.b16 %v4996, %v4992
    %v5253 = vpack.c.b16 %v4997, %v4993
    %v5254 = vpack.c.b16 %v4998, %v4994
    %5511 = vmatprep.subr.bf16.mxu0 %v5000
    %5512 = vmatpush1.bf16.msra.mxu0 %v4999
    %5513 = vmatprep.subr.bf16.mxu0 %v5004
    %5514 = vmatpush1.bf16.msra.mxu0 %v5003
    %5515 = vmatprep.subr.bf16.mxu0 %v5008
    %5516 = vmatpush1.bf16.msra.mxu0 %v5007
    %5517 = vmatprep.subr.bf16.mxu0 %v5012
    %5518 = vmatpush1.bf16.msra.mxu0 %v5011
    %5519 = vmatprep.subr.bf16.mxu0 %v5016
    %5520 = vmatpush1.bf16.msra.mxu0 %v5015
    %5521 = vmatprep.subr.bf16.mxu0 %v5020
    %5522 = vmatpush1.bf16.msra.mxu0 %v5019
    %5523 = vmatprep.subr.bf16.mxu0 %v5024
    %5524 = vmatpush1.bf16.msra.mxu0 %v5023
    %5525 = vmatprep.subr.bf16.mxu0 %v5028
    %5526 = vmatpush1.bf16.msra.mxu0 %v5027
    %5527 = vmatprep.subr.bf16.mxu0 %v5032
    %5528 = vmatpush1.bf16.msra.mxu0 %v5031
    %5529 = vmatprep.subr.bf16.mxu0 %v5036
    %5530 = vmatpush1.bf16.msra.mxu0 %v5035
    %5531 = vmatprep.subr.bf16.mxu0 %v5040
    %5532 = vmatpush1.bf16.msra.mxu0 %v5039
    %5533 = vmatprep.subr.bf16.mxu0 %v5044
    %5534 = vmatpush1.bf16.msra.mxu0 %v5043
    %5535 = vmatprep.subr.bf16.mxu0 %v5048
    %5536 = vmatpush1.bf16.msra.mxu0 %v5047
    %5537 = vmatprep.subr.bf16.mxu0 %v5052
    %5538 = vmatpush1.bf16.msra.mxu0 %v5051
    %5539 = vmatprep.subr.bf16.mxu0 %v5056
    %5540 = vmatpush1.bf16.msra.mxu0 %v5055
    %5541 = vmatprep.subr.bf16.mxu0 %v5060
    %5542 = vmatpush1.bf16.msra.mxu0 %v5059
    %5543 = vmatprep.mubr.bf16.mxu0 %v3946
    %5544 = vmatmul.mubr.bf16.gmra.mrb[0].mxu0 %v3945
    %v5545 = vpop.f32.mrb[0].mxu0
    %v5546 = vadd.f32 %v4214, %v5545
    %v5547 = vpop.f32.mrb[0].mxu0
    %v5548 = vadd.f32 %v4218, %v5547
    %v5549 = vpop.f32.mrb[0].mxu0
    %v5550 = vpop.f32.mrb[0].mxu0
    %5551 = vdwg.mxu0
    %5552 = vmatprep.subr.bf16.mxu0 %v5064
    %5553 = vmatpush1.bf16.msra.mxu0 %v5063
    %5554 = vmatprep.subr.bf16.mxu0 %v5068
    %5555 = vmatpush1.bf16.msra.mxu0 %v5067
    %5556 = vmatprep.subr.bf16.mxu0 %v5072
    %5557 = vmatpush1.bf16.msra.mxu0 %v5071
    %5558 = vmatprep.subr.bf16.mxu0 %v5076
    %5559 = vmatpush1.bf16.msra.mxu0 %v5075
    %5560 = vmatprep.subr.bf16.mxu0 %v5080
    %5561 = vmatpush1.bf16.msra.mxu0 %v5079
    %5562 = vmatprep.subr.bf16.mxu0 %v5084
    %5563 = vmatpush1.bf16.msra.mxu0 %v5083
    %5564 = vmatprep.subr.bf16.mxu0 %v5088
    %5565 = vmatpush1.bf16.msra.mxu0 %v5087
    %5566 = vmatprep.subr.bf16.mxu0 %v5092
    %5567 = vmatpush1.bf16.msra.mxu0 %v5091
    %5568 = vmatprep.subr.bf16.mxu0 %v5096
    %5569 = vmatpush1.bf16.msra.mxu0 %v5095
    %5570 = vmatprep.subr.bf16.mxu0 %v5100
    %5571 = vmatpush1.bf16.msra.mxu0 %v5099
    %5572 = vmatprep.subr.bf16.mxu0 %v5104
    %5573 = vmatpush1.bf16.msra.mxu0 %v5103
    %5574 = vmatprep.subr.bf16.mxu0 %v5108
    %5575 = vmatpush1.bf16.msra.mxu0 %v5107
    %5576 = vmatprep.subr.bf16.mxu0 %v5112
    %5577 = vmatpush1.bf16.msra.mxu0 %v5111
    %5578 = vmatprep.subr.bf16.mxu0 %v5116
    %5579 = vmatpush1.bf16.msra.mxu0 %v5115
    %5580 = vmatprep.subr.bf16.mxu0 %v5120
    %5581 = vmatpush1.bf16.msra.mxu0 %v5119
    %5582 = vmatprep.subr.bf16.mxu0 %v5124
    %5583 = vmatpush1.bf16.msra.mxu0 %v5123
    %5584 = vmatprep.mubr.bf16.mxu0 %v3948
    %5585 = vmatmul.mubr.bf16.gmra.mrb[0].mxu0 %v3947
    %v5586 = vpop.f32.mrb[0].mxu0
    %v5587 = vadd.f32 %v5546, %v5586
    %v5588 = vpop.f32.mrb[0].mxu0
    %v5589 = vadd.f32 %v5548, %v5588
    %v5590 = vpop.f32.mrb[0].mxu0
    %v5591 = vpop.f32.mrb[0].mxu0
    %5592 = vdwg.mxu0
    %5593 = vmatprep.subr.bf16.mxu0 %v5128
    %5594 = vmatpush1.bf16.msra.mxu0 %v5127
    %5595 = vmatprep.subr.bf16.mxu0 %v5132
    %5596 = vmatpush1.bf16.msra.mxu0 %v5131
    %5597 = vmatprep.subr.bf16.mxu0 %v5136
    %5598 = vmatpush1.bf16.msra.mxu0 %v5135
    %5599 = vmatprep.subr.bf16.mxu0 %v5140
    %5600 = vmatpush1.bf16.msra.mxu0 %v5139
    %5601 = vmatprep.subr.bf16.mxu0 %v5144
    %5602 = vmatpush1.bf16.msra.mxu0 %v5143
    %5603 = vmatprep.subr.bf16.mxu0 %v5148
    %5604 = vmatpush1.bf16.msra.mxu0 %v5147
    %5605 = vmatprep.subr.bf16.mxu0 %v5152
    %5606 = vmatpush1.bf16.msra.mxu0 %v5151
    %5607 = vmatprep.subr.bf16.mxu0 %v5156
    %5608 = vmatpush1.bf16.msra.mxu0 %v5155
    %5609 = vmatprep.subr.bf16.mxu0 %v5160
    %5610 = vmatpush1.bf16.msra.mxu0 %v5159
    %5611 = vmatprep.subr.bf16.mxu0 %v5164
    %5612 = vmatpush1.bf16.msra.mxu0 %v5163
    %5613 = vmatprep.subr.bf16.mxu0 %v5168
    %5614 = vmatpush1.bf16.msra.mxu0 %v5167
    %5615 = vmatprep.subr.bf16.mxu0 %v5172
    %5616 = vmatpush1.bf16.msra.mxu0 %v5171
    %5617 = vmatprep.subr.bf16.mxu0 %v5176
    %5618 = vmatpush1.bf16.msra.mxu0 %v5175
    %5619 = vmatprep.subr.bf16.mxu0 %v5180
    %5620 = vmatpush1.bf16.msra.mxu0 %v5179
    %5621 = vmatprep.subr.bf16.mxu0 %v5184
    %5622 = vmatpush1.bf16.msra.mxu0 %v5183
    %5623 = vmatprep.subr.bf16.mxu0 %v5188
    %5624 = vmatpush1.bf16.msra.mxu0 %v5187
    %5625 = vmatprep.mubr.bf16.mxu0 %v3950
    %5626 = vmatmul.mubr.bf16.gmra.mrb[0].mxu0 %v3949
    %v5627 = vpop.f32.mrb[0].mxu0
    %v5628 = vadd.f32 %v5587, %v5627
    %v5629 = vpop.f32.mrb[0].mxu0
    %v5630 = vadd.f32 %v5589, %v5629
    %v5631 = vpop.f32.mrb[0].mxu0
    %v5632 = vpop.f32.mrb[0].mxu0
    %5633 = vdwg.mxu0
    %5634 = vmatprep.subr.bf16.mxu0 %v5192
    %5635 = vmatpush1.bf16.msra.mxu0 %v5191
    %5636 = vmatprep.subr.bf16.mxu0 %v5196
    %5637 = vmatpush1.bf16.msra.mxu0 %v5195
    %5638 = vmatprep.subr.bf16.mxu0 %v5200
    %5639 = vmatpush1.bf16.msra.mxu0 %v5199
    %5640 = vmatprep.subr.bf16.mxu0 %v5204
    %5641 = vmatpush1.bf16.msra.mxu0 %v5203
    %5642 = vmatprep.subr.bf16.mxu0 %v5208
    %5643 = vmatpush1.bf16.msra.mxu0 %v5207
    %5644 = vmatprep.subr.bf16.mxu0 %v5212
    %5645 = vmatpush1.bf16.msra.mxu0 %v5211
    %5646 = vmatprep.subr.bf16.mxu0 %v5216
    %5647 = vmatpush1.bf16.msra.mxu0 %v5215
    %5648 = vmatprep.subr.bf16.mxu0 %v5220
    %5649 = vmatpush1.bf16.msra.mxu0 %v5219
    %5650 = vmatprep.subr.bf16.mxu0 %v5224
    %5651 = vmatpush1.bf16.msra.mxu0 %v5223
    %5652 = vmatprep.subr.bf16.mxu0 %v5228
    %5653 = vmatpush1.bf16.msra.mxu0 %v5227
    %5654 = vmatprep.subr.bf16.mxu0 %v5232
    %5655 = vmatpush1.bf16.msra.mxu0 %v5231
    %5656 = vmatprep.subr.bf16.mxu0 %v5236
    %5657 = vmatpush1.bf16.msra.mxu0 %v5235
    %5658 = vmatprep.subr.bf16.mxu0 %v5240
    %5659 = vmatpush1.bf16.msra.mxu0 %v5239
    %5660 = vmatprep.subr.bf16.mxu0 %v5244
    %5661 = vmatpush1.bf16.msra.mxu0 %v5243
    %5662 = vmatprep.subr.bf16.mxu0 %v5248
    %5663 = vmatpush1.bf16.msra.mxu0 %v5247
    %5664 = vmatprep.subr.bf16.mxu0 %v5252
    %5665 = vmatpush1.bf16.msra.mxu0 %v5251
    %5666 = vmatprep.mubr.bf16.mxu0 %v3952
    %5667 = vmatmul.mubr.bf16.gmra.mrb[0].mxu0 %v3951
    %v5668 = vpop.f32.mrb[0].mxu0
    %v5669 = vadd.f32 %v5628, %v5668
    %v5670 = vpop.f32.mrb[0].mxu0
    %v5671 = vadd.f32 %v5630, %v5670
    %v5672 = vpop.f32.mrb[0].mxu0
    %v5673 = vpop.f32.mrb[0].mxu0
    %5674 = vdwg.mxu0
    %5675 = vmatprep.subr.bf16.mxu0 %v5002
    %5676 = vmatpush1.bf16.msra.mxu0 %v5001
    %5677 = vmatprep.subr.bf16.mxu0 %v5006
    %5678 = vmatpush1.bf16.msra.mxu0 %v5005
    %5679 = vmatprep.subr.bf16.mxu0 %v5010
    %5680 = vmatpush1.bf16.msra.mxu0 %v5009
    %5681 = vmatprep.subr.bf16.mxu0 %v5014
    %5682 = vmatpush1.bf16.msra.mxu0 %v5013
    %5683 = vmatprep.subr.bf16.mxu0 %v5018
    %5684 = vmatpush1.bf16.msra.mxu0 %v5017
    %5685 = vmatprep.subr.bf16.mxu0 %v5022
    %5686 = vmatpush1.bf16.msra.mxu0 %v5021
    %5687 = vmatprep.subr.bf16.mxu0 %v5026
    %5688 = vmatpush1.bf16.msra.mxu0 %v5025
    %5689 = vmatprep.subr.bf16.mxu0 %v5030
    %5690 = vmatpush1.bf16.msra.mxu0 %v5029
    %5691 = vmatprep.subr.bf16.mxu0 %v5034
    %5692 = vmatpush1.bf16.msra.mxu0 %v5033
    %5693 = vmatprep.subr.bf16.mxu0 %v5038
    %5694 = vmatpush1.bf16.msra.mxu0 %v5037
    %5695 = vmatprep.subr.bf16.mxu0 %v5042
    %5696 = vmatpush1.bf16.msra.mxu0 %v5041
    %5697 = vmatprep.subr.bf16.mxu0 %v5046
    %5698 = vmatpush1.bf16.msra.mxu0 %v5045
    %5699 = vmatprep.subr.bf16.mxu0 %v5050
    %5700 = vmatpush1.bf16.msra.mxu0 %v5049
    %5701 = vmatprep.subr.bf16.mxu0 %v5054
    %5702 = vmatpush1.bf16.msra.mxu0 %v5053
    %5703 = vmatprep.subr.bf16.mxu0 %v5058
    %5704 = vmatpush1.bf16.msra.mxu0 %v5057
    %5705 = vmatprep.subr.bf16.mxu0 %v5062
    %5706 = vmatpush1.bf16.msra.mxu0 %v5061
    %5707 = vmatprep.mubr.bf16.mxu0 %v3946
    %5708 = vmatmul.mubr.bf16.gmra.mrb[0].mxu0 %v3945
    %v5709 = vpop.f32.mrb[0].mxu0
    %v5710 = vadd.f32 %v4222, %v5709
    %v5711 = vpop.f32.mrb[0].mxu0
    %v5712 = vadd.f32 %v4226, %v5711
    %v5713 = vpop.f32.mrb[0].mxu0
    %v5714 = vpop.f32.mrb[0].mxu0
    %5715 = vdwg.mxu0
    %5716 = vmatprep.subr.bf16.mxu0 %v5066
    %5717 = vmatpush1.bf16.msra.mxu0 %v5065
    %5718 = vmatprep.subr.bf16.mxu0 %v5070
    %5719 = vmatpush1.bf16.msra.mxu0 %v5069
    %5720 = vmatprep.subr.bf16.mxu0 %v5074
    %5721 = vmatpush1.bf16.msra.mxu0 %v5073
    %5722 = vmatprep.subr.bf16.mxu0 %v5078
    %5723 = vmatpush1.bf16.msra.mxu0 %v5077
    %5724 = vmatprep.subr.bf16.mxu0 %v5082
    %5725 = vmatpush1.bf16.msra.mxu0 %v5081
    %5726 = vmatprep.subr.bf16.mxu0 %v5086
    %5727 = vmatpush1.bf16.msra.mxu0 %v5085
    %5728 = vmatprep.subr.bf16.mxu0 %v5090
    %5729 = vmatpush1.bf16.msra.mxu0 %v5089
    %5730 = vmatprep.subr.bf16.mxu0 %v5094
    %5731 = vmatpush1.bf16.msra.mxu0 %v5093
    %5732 = vmatprep.subr.bf16.mxu0 %v5098
    %5733 = vmatpush1.bf16.msra.mxu0 %v5097
    %5734 = vmatprep.subr.bf16.mxu0 %v5102
    %5735 = vmatpush1.bf16.msra.mxu0 %v5101
    %5736 = vmatprep.subr.bf16.mxu0 %v5106
    %5737 = vmatpush1.bf16.msra.mxu0 %v5105
    %5738 = vmatprep.subr.bf16.mxu0 %v5110
    %5739 = vmatpush1.bf16.msra.mxu0 %v5109
    %5740 = vmatprep.subr.bf16.mxu0 %v5114
    %5741 = vmatpush1.bf16.msra.mxu0 %v5113
    %5742 = vmatprep.subr.bf16.mxu0 %v5118
    %5743 = vmatpush1.bf16.msra.mxu0 %v5117
    %5744 = vmatprep.subr.bf16.mxu0 %v5122
    %5745 = vmatpush1.bf16.msra.mxu0 %v5121
    %5746 = vmatprep.subr.bf16.mxu0 %v5126
    %5747 = vmatpush1.bf16.msra.mxu0 %v5125
    %5748 = vmatprep.mubr.bf16.mxu0 %v3948
    %5749 = vmatmul.mubr.bf16.gmra.mrb[0].mxu0 %v3947
    %v5750 = vpop.f32.mrb[0].mxu0
    %v5751 = vadd.f32 %v5710, %v5750
    %v5752 = vpop.f32.mrb[0].mxu0
    %v5753 = vadd.f32 %v5712, %v5752
    %v5754 = vpop.f32.mrb[0].mxu0
    %v5755 = vpop.f32.mrb[0].mxu0
    %5756 = vdwg.mxu0
    %5757 = vmatprep.subr.bf16.mxu0 %v5130
    %5758 = vmatpush1.bf16.msra.mxu0 %v5129
    %5759 = vmatprep.subr.bf16.mxu0 %v5134
    %5760 = vmatpush1.bf16.msra.mxu0 %v5133
    %5761 = vmatprep.subr.bf16.mxu0 %v5138
    %5762 = vmatpush1.bf16.msra.mxu0 %v5137
    %5763 = vmatprep.subr.bf16.mxu0 %v5142
    %5764 = vmatpush1.bf16.msra.mxu0 %v5141
    %5765 = vmatprep.subr.bf16.mxu0 %v5146
    %5766 = vmatpush1.bf16.msra.mxu0 %v5145
    %5767 = vmatprep.subr.bf16.mxu0 %v5150
    %5768 = vmatpush1.bf16.msra.mxu0 %v5149
    %5769 = vmatprep.subr.bf16.mxu0 %v5154
    %5770 = vmatpush1.bf16.msra.mxu0 %v5153
    %5771 = vmatprep.subr.bf16.mxu0 %v5158
    %5772 = vmatpush1.bf16.msra.mxu0 %v5157
    %5773 = vmatprep.subr.bf16.mxu0 %v5162
    %5774 = vmatpush1.bf16.msra.mxu0 %v5161
    %5775 = vmatprep.subr.bf16.mxu0 %v5166
    %5776 = vmatpush1.bf16.msra.mxu0 %v5165
    %5777 = vmatprep.subr.bf16.mxu0 %v5170
    %5778 = vmatpush1.bf16.msra.mxu0 %v5169
    %5779 = vmatprep.subr.bf16.mxu0 %v5174
    %5780 = vmatpush1.bf16.msra.mxu0 %v5173
    %5781 = vmatprep.subr.bf16.mxu0 %v5178
    %5782 = vmatpush1.bf16.msra.mxu0 %v5177
    %5783 = vmatprep.subr.bf16.mxu0 %v5182
    %5784 = vmatpush1.bf16.msra.mxu0 %v5181
    %5785 = vmatprep.subr.bf16.mxu0 %v5186
    %5786 = vmatpush1.bf16.msra.mxu0 %v5185
    %5787 = vmatprep.subr.bf16.mxu0 %v5190
    %5788 = vmatpush1.bf16.msra.mxu0 %v5189
    %5789 = vmatprep.mubr.bf16.mxu0 %v3950
    %5790 = vmatmul.mubr.bf16.gmra.mrb[0].mxu0 %v3949
    %v5791 = vpop.f32.mrb[0].mxu0
    %v5792 = vadd.f32 %v5751, %v5791
    %v5793 = vpop.f32.mrb[0].mxu0
    %v5794 = vadd.f32 %v5753, %v5793
    %v5795 = vpop.f32.mrb[0].mxu0
    %v5796 = vpop.f32.mrb[0].mxu0
    %5797 = vdwg.mxu0
    %5798 = vmatprep.subr.bf16.mxu0 %v5194
    %5799 = vmatpush1.bf16.msra.mxu0 %v5193
    %5800 = vmatprep.subr.bf16.mxu0 %v5198
    %5801 = vmatpush1.bf16.msra.mxu0 %v5197
    %5802 = vmatprep.subr.bf16.mxu0 %v5202
    %5803 = vmatpush1.bf16.msra.mxu0 %v5201
    %5804 = vmatprep.subr.bf16.mxu0 %v5206
    %5805 = vmatpush1.bf16.msra.mxu0 %v5205
    %5806 = vmatprep.subr.bf16.mxu0 %v5210
    %5807 = vmatpush1.bf16.msra.mxu0 %v5209
    %5808 = vmatprep.subr.bf16.mxu0 %v5214
    %5809 = vmatpush1.bf16.msra.mxu0 %v5213
    %5810 = vmatprep.subr.bf16.mxu0 %v5218
    %5811 = vmatpush1.bf16.msra.mxu0 %v5217
    %5812 = vmatprep.subr.bf16.mxu0 %v5222
    %5813 = vmatpush1.bf16.msra.mxu0 %v5221
    %5814 = vmatprep.subr.bf16.mxu0 %v5226
    %5815 = vmatpush1.bf16.msra.mxu0 %v5225
    %5816 = vmatprep.subr.bf16.mxu0 %v5230
    %5817 = vmatpush1.bf16.msra.mxu0 %v5229
    %5818 = vmatprep.subr.bf16.mxu0 %v5234
    %5819 = vmatpush1.bf16.msra.mxu0 %v5233
    %5820 = vmatprep.subr.bf16.mxu0 %v5238
    %5821 = vmatpush1.bf16.msra.mxu0 %v5237
    %5822 = vmatprep.subr.bf16.mxu0 %v5242
    %5823 = vmatpush1.bf16.msra.mxu0 %v5241
    %5824 = vmatprep.subr.bf16.mxu0 %v5246
    %5825 = vmatpush1.bf16.msra.mxu0 %v5245
    %5826 = vmatprep.subr.bf16.mxu0 %v5250
    %5827 = vmatpush1.bf16.msra.mxu0 %v5249
    %5828 = vmatprep.subr.bf16.mxu0 %v5254
    %5829 = vmatpush1.bf16.msra.mxu0 %v5253
    %5830 = vmatprep.mubr.bf16.mxu0 %v3952
    %5831 = vmatmul.mubr.bf16.gmra.mrb[0].mxu0 %v3951
    %v5832 = vpop.f32.mrb[0].mxu0
    %v5833 = vadd.f32 %v5792, %v5832
    %v5834 = vpop.f32.mrb[0].mxu0
    %v5835 = vadd.f32 %v5794, %v5834
    %v5836 = vpop.f32.mrb[0].mxu0
    %v5837 = vpop.f32.mrb[0].mxu0
    %5838 = vdwg.mxu0
    %v5839 = vmax.f32 %v5669, 0.0
    %v5840 = vmax.f32 %v5671, 0.0
    %v5841 = vmax.f32 %v5833, 0.0
    %v5842 = vmax.f32 %v5835, 0.0
    %v5843 = vpack.c.bf16 %v5839, %v5839
    %v5844 = vpack.c.bf16 %v5840, %v5840
    %v5845 = vpack.c.bf16 %v5841, %v5841
    %v5846 = vpack.c.bf16 %v5842, %v5842
    %v5847 = vld [vmem:[%s11] sm:$0xff]
    %v5848 = vld [vmem:[%s11 + $0x8] sm:$0xff]
    %v5849 = vld [vmem:[%s11 + $0x10] sm:$0xff]
    %v5850 = vld [vmem:[%s11 + $0x18] sm:$0xff]
    %v5851 = vld [vmem:[%s11 + $0x20] sm:$0xff]
    %v5852 = vld [vmem:[%s11 + $0x28] sm:$0xff]
    %v5853 = vld [vmem:[%s11 + $0x30] sm:$0xff]
    %v5854 = vld [vmem:[%s11 + $0x38] sm:$0xff]
    %v5855 = vld [vmem:[%s11 + $0x40] sm:$0xff]
    %v5856 = vld [vmem:[%s11 + $0x48] sm:$0xff]
    %v5857 = vld [vmem:[%s11 + $0x50] sm:$0xff]
    %v5858 = vld [vmem:[%s11 + $0x58] sm:$0xff]
    %v5859 = vld [vmem:[%s11 + $0x60] sm:$0xff]
    %v5860 = vld [vmem:[%s11 + $0x68] sm:$0xff]
    %v5861 = vld [vmem:[%s11 + $0x70] sm:$0xff]
    %v5862 = vld [vmem:[%s11 + $0x78] sm:$0xff]
    %v5863 = vld [vmem:[%s11 + $0x80] sm:$0xff]
    %v5864 = vld [vmem:[%s11 + $0x88] sm:$0xff]
    %v5865 = vld [vmem:[%s11 + $0x90] sm:$0xff]
    %v5866 = vld [vmem:[%s11 + $0x98] sm:$0xff]
    %v5867 = vld [vmem:[%s11 + $0xa0] sm:$0xff]
    %v5868 = vld [vmem:[%s11 + $0xa8] sm:$0xff]
    %v5869 = vld [vmem:[%s11 + $0xb0] sm:$0xff]
    %v5870 = vld [vmem:[%s11 + $0xb8] sm:$0xff]
    %v5871 = vld [vmem:[%s11 + $0xc0] sm:$0xff]
    %v5872 = vld [vmem:[%s11 + $0xc8] sm:$0xff]
    %v5873 = vld [vmem:[%s11 + $0xd0] sm:$0xff]
    %v5874 = vld [vmem:[%s11 + $0xd8] sm:$0xff]
    %v5875 = vld [vmem:[%s11 + $0xe0] sm:$0xff]
    %v5876 = vld [vmem:[%s11 + $0xe8] sm:$0xff]
    %v5877 = vld [vmem:[%s11 + $0xf0] sm:$0xff]
    %v5878 = vld [vmem:[%s11 + $0xf8] sm:$0xff]
    %v5879 = vld [vmem:[%s11 + $0x100] sm:$0xff]
    %v5880 = vld [vmem:[%s11 + $0x108] sm:$0xff]
    %v5881 = vld [vmem:[%s11 + $0x110] sm:$0xff]
    %v5882 = vld [vmem:[%s11 + $0x118] sm:$0xff]
    %v5883 = vld [vmem:[%s11 + $0x120] sm:$0xff]
    %v5884 = vld [vmem:[%s11 + $0x128] sm:$0xff]
    %v5885 = vld [vmem:[%s11 + $0x130] sm:$0xff]
    %v5886 = vld [vmem:[%s11 + $0x138] sm:$0xff]
    %v5887 = vld [vmem:[%s11 + $0x140] sm:$0xff]
    %v5888 = vld [vmem:[%s11 + $0x148] sm:$0xff]
    %v5889 = vld [vmem:[%s11 + $0x150] sm:$0xff]
    %v5890 = vld [vmem:[%s11 + $0x158] sm:$0xff]
    %v5891 = vld [vmem:[%s11 + $0x160] sm:$0xff]
    %v5892 = vld [vmem:[%s11 + $0x168] sm:$0xff]
    %v5893 = vld [vmem:[%s11 + $0x170] sm:$0xff]
    %v5894 = vld [vmem:[%s11 + $0x178] sm:$0xff]
    %v5895 = vld [vmem:[%s11 + $0x180] sm:$0xff]
    %v5896 = vld [vmem:[%s11 + $0x188] sm:$0xff]
    %v5897 = vld [vmem:[%s11 + $0x190] sm:$0xff]
    %v5898 = vld [vmem:[%s11 + $0x198] sm:$0xff]
    %v5899 = vld [vmem:[%s11 + $0x1a0] sm:$0xff]
    %v5900 = vld [vmem:[%s11 + $0x1a8] sm:$0xff]
    %v5901 = vld [vmem:[%s11 + $0x1b0] sm:$0xff]
    %v5902 = vld [vmem:[%s11 + $0x1b8] sm:$0xff]
    %v5903 = vld [vmem:[%s11 + $0x1c0] sm:$0xff]
    %v5904 = vld [vmem:[%s11 + $0x1c8] sm:$0xff]
    %v5905 = vld [vmem:[%s11 + $0x1d0] sm:$0xff]
    %v5906 = vld [vmem:[%s11 + $0x1d8] sm:$0xff]
    %v5907 = vld [vmem:[%s11 + $0x1e0] sm:$0xff]
    %v5908 = vld [vmem:[%s11 + $0x1e8] sm:$0xff]
    %v5909 = vld [vmem:[%s11 + $0x1f0] sm:$0xff]
    %v5910 = vld [vmem:[%s11 + $0x1f8] sm:$0xff]
    %v5911 = vld [vmem:[%s12] sm:$0x3]
    %v5913 = vlaneseq
    %v5914 = vshrl.u32 %v5913, 7
    %v5915 = vsub.s32 0, %v5914
    %v5916 = vrot.slane %v5911, %v5915
    %v5917 = vlaneseq
    %v5918 = vshrl.u32 %v5917, 7
    %v5919 = vsub.s32 1, %v5918
    %v5920 = vrot.slane %v5911, %v5919
    %v5987 = vunpack.c.l.b16 %v5847
    %v5988 = vunpack.c.h.b16 %v5847
    %v5989 = vunpack.c.l.b16 %v5848
    %v5990 = vunpack.c.h.b16 %v5848
    %v5991 = vunpack.c.l.b16 %v5849
    %v5992 = vunpack.c.h.b16 %v5849
    %v5993 = vunpack.c.l.b16 %v5850
    %v5994 = vunpack.c.h.b16 %v5850
    %v5995 = vunpack.c.l.b16 %v5851
    %v5996 = vunpack.c.h.b16 %v5851
    %v5997 = vunpack.c.l.b16 %v5852
    %v5998 = vunpack.c.h.b16 %v5852
    %v5999 = vunpack.c.l.b16 %v5853
    %v6000 = vunpack.c.h.b16 %v5853
    %v6001 = vunpack.c.l.b16 %v5854
    %v6002 = vunpack.c.h.b16 %v5854
    %v6003 = vunpack.c.l.b16 %v5855
    %v6004 = vunpack.c.h.b16 %v5855
    %v6005 = vunpack.c.l.b16 %v5856
    %v6006 = vunpack.c.h.b16 %v5856
    %v6007 = vunpack.c.l.b16 %v5857
    %v6008 = vunpack.c.h.b16 %v5857
    %v6009 = vunpack.c.l.b16 %v5858
    %v6010 = vunpack.c.h.b16 %v5858
    %v6011 = vunpack.c.l.b16 %v5859
    %v6012 = vunpack.c.h.b16 %v5859
    %v6013 = vunpack.c.l.b16 %v5860
    %v6014 = vunpack.c.h.b16 %v5860
    %v6015 = vunpack.c.l.b16 %v5861
    %v6016 = vunpack.c.h.b16 %v5861
    %v6017 = vunpack.c.l.b16 %v5862
    %v6018 = vunpack.c.h.b16 %v5862
    %v6019 = vunpack.c.l.b16 %v5863
    %v6020 = vunpack.c.h.b16 %v5863
    %v6021 = vunpack.c.l.b16 %v5864
    %v6022 = vunpack.c.h.b16 %v5864
    %v6023 = vunpack.c.l.b16 %v5865
    %v6024 = vunpack.c.h.b16 %v5865
    %v6025 = vunpack.c.l.b16 %v5866
    %v6026 = vunpack.c.h.b16 %v5866
    %v6027 = vunpack.c.l.b16 %v5867
    %v6028 = vunpack.c.h.b16 %v5867
    %v6029 = vunpack.c.l.b16 %v5868
    %v6030 = vunpack.c.h.b16 %v5868
    %v6031 = vunpack.c.l.b16 %v5869
    %v6032 = vunpack.c.h.b16 %v5869
    %v6033 = vunpack.c.l.b16 %v5870
    %v6034 = vunpack.c.h.b16 %v5870
    %v6035 = vunpack.c.l.b16 %v5871
    %v6036 = vunpack.c.h.b16 %v5871
    %v6037 = vunpack.c.l.b16 %v5872
    %v6038 = vunpack.c.h.b16 %v5872
    %v6039 = vunpack.c.l.b16 %v5873
    %v6040 = vunpack.c.h.b16 %v5873
    %v6041 = vunpack.c.l.b16 %v5874
    %v6042 = vunpack.c.h.b16 %v5874
    %v6043 = vunpack.c.l.b16 %v5875
    %v6044 = vunpack.c.h.b16 %v5875
    %v6045 = vunpack.c.l.b16 %v5876
    %v6046 = vunpack.c.h.b16 %v5876
    %v6047 = vunpack.c.l.b16 %v5877
    %v6048 = vunpack.c.h.b16 %v5877
    %v6049 = vunpack.c.l.b16 %v5878
    %v6050 = vunpack.c.h.b16 %v5878
    %v6051 = vunpack.c.l.b16 %v5879
    %v6052 = vunpack.c.h.b16 %v5879
    %v6053 = vunpack.c.l.b16 %v5880
    %v6054 = vunpack.c.h.b16 %v5880
    %v6055 = vunpack.c.l.b16 %v5881
    %v6056 = vunpack.c.h.b16 %v5881
    %v6057 = vunpack.c.l.b16 %v5882
    %v6058 = vunpack.c.h.b16 %v5882
    %v6059 = vunpack.c.l.b16 %v5883
    %v6060 = vunpack.c.h.b16 %v5883
    %v6061 = vunpack.c.l.b16 %v5884
    %v6062 = vunpack.c.h.b16 %v5884
    %v6063 = vunpack.c.l.b16 %v5885
    %v6064 = vunpack.c.h.b16 %v5885
    %v6065 = vunpack.c.l.b16 %v5886
    %v6066 = vunpack.c.h.b16 %v5886
    %v6067 = vunpack.c.l.b16 %v5887
    %v6068 = vunpack.c.h.b16 %v5887
    %v6069 = vunpack.c.l.b16 %v5888
    %v6070 = vunpack.c.h.b16 %v5888
    %v6071 = vunpack.c.l.b16 %v5889
    %v6072 = vunpack.c.h.b16 %v5889
    %v6073 = vunpack.c.l.b16 %v5890
    %v6074 = vunpack.c.h.b16 %v5890
    %v6075 = vunpack.c.l.b16 %v5891
    %v6076 = vunpack.c.h.b16 %v5891
    %v6077 = vunpack.c.l.b16 %v5892
    %v6078 = vunpack.c.h.b16 %v5892
    %v6079 = vunpack.c.l.b16 %v5893
    %v6080 = vunpack.c.h.b16 %v5893
    %v6081 = vunpack.c.l.b16 %v5894
    %v6082 = vunpack.c.h.b16 %v5894
    %v6083 = vunpack.c.l.b16 %v5895
    %v6084 = vunpack.c.h.b16 %v5895
    %v6085 = vunpack.c.l.b16 %v5896
    %v6086 = vunpack.c.h.b16 %v5896
    %v6087 = vunpack.c.l.b16 %v5897
    %v6088 = vunpack.c.h.b16 %v5897
    %v6089 = vunpack.c.l.b16 %v5898
    %v6090 = vunpack.c.h.b16 %v5898
    %v6091 = vunpack.c.l.b16 %v5899
    %v6092 = vunpack.c.h.b16 %v5899
    %v6093 = vunpack.c.l.b16 %v5900
    %v6094 = vunpack.c.h.b16 %v5900
    %v6095 = vunpack.c.l.b16 %v5901
    %v6096 = vunpack.c.h.b16 %v5901
    %v6097 = vunpack.c.l.b16 %v5902
    %v6098 = vunpack.c.h.b16 %v5902
    %v6099 = vunpack.c.l.b16 %v5903
    %v6100 = vunpack.c.h.b16 %v5903
    %v6101 = vunpack.c.l.b16 %v5904
    %v6102 = vunpack.c.h.b16 %v5904
    %v6103 = vunpack.c.l.b16 %v5905
    %v6104 = vunpack.c.h.b16 %v5905
    %v6105 = vunpack.c.l.b16 %v5906
    %v6106 = vunpack.c.h.b16 %v5906
    %v6107 = vunpack.c.l.b16 %v5907
    %v6108 = vunpack.c.h.b16 %v5907
    %v6109 = vunpack.c.l.b16 %v5908
    %v6110 = vunpack.c.h.b16 %v5908
    %v6111 = vunpack.c.l.b16 %v5909
    %v6112 = vunpack.c.h.b16 %v5909
    %v6113 = vunpack.c.l.b16 %v5910
    %v6114 = vunpack.c.h.b16 %v5910
    %v6115 = vpack.c.b16 %v5989, %v5987
    %v6116 = vpack.c.b16 %v5990, %v5988
    %v6117 = vpack.c.b16 %v5993, %v5991
    %v6118 = vpack.c.b16 %v5994, %v5992
    %v6119 = vpack.c.b16 %v5997, %v5995
    %v6120 = vpack.c.b16 %v5998, %v5996
    %v6121 = vpack.c.b16 %v6001, %v5999
    %v6122 = vpack.c.b16 %v6002, %v6000
    %v6123 = vpack.c.b16 %v6005, %v6003
    %v6124 = vpack.c.b16 %v6006, %v6004
    %v6125 = vpack.c.b16 %v6009, %v6007
    %v6126 = vpack.c.b16 %v6010, %v6008
    %v6127 = vpack.c.b16 %v6013, %v6011
    %v6128 = vpack.c.b16 %v6014, %v6012
    %v6129 = vpack.c.b16 %v6017, %v6015
    %v6130 = vpack.c.b16 %v6018, %v6016
    %v6131 = vpack.c.b16 %v6021, %v6019
    %v6132 = vpack.c.b16 %v6022, %v6020
    %v6133 = vpack.c.b16 %v6025, %v6023
    %v6134 = vpack.c.b16 %v6026, %v6024
    %v6135 = vpack.c.b16 %v6029, %v6027
    %v6136 = vpack.c.b16 %v6030, %v6028
    %v6137 = vpack.c.b16 %v6033, %v6031
    %v6138 = vpack.c.b16 %v6034, %v6032
    %v6139 = vpack.c.b16 %v6037, %v6035
    %v6140 = vpack.c.b16 %v6038, %v6036
    %v6141 = vpack.c.b16 %v6041, %v6039
    %v6142 = vpack.c.b16 %v6042, %v6040
    %v6143 = vpack.c.b16 %v6045, %v6043
    %v6144 = vpack.c.b16 %v6046, %v6044
    %v6145 = vpack.c.b16 %v6049, %v6047
    %v6146 = vpack.c.b16 %v6050, %v6048
    %v6147 = vpack.c.b16 %v6053, %v6051
    %v6148 = vpack.c.b16 %v6054, %v6052
    %v6149 = vpack.c.b16 %v6057, %v6055
    %v6150 = vpack.c.b16 %v6058, %v6056
    %v6151 = vpack.c.b16 %v6061, %v6059
    %v6152 = vpack.c.b16 %v6062, %v6060
    %v6153 = vpack.c.b16 %v6065, %v6063
    %v6154 = vpack.c.b16 %v6066, %v6064
    %v6155 = vpack.c.b16 %v6069, %v6067
    %v6156 = vpack.c.b16 %v6070, %v6068
    %v6157 = vpack.c.b16 %v6073, %v6071
    %v6158 = vpack.c.b16 %v6074, %v6072
    %v6159 = vpack.c.b16 %v6077, %v6075
    %v6160 = vpack.c.b16 %v6078, %v6076
    %v6161 = vpack.c.b16 %v6081, %v6079
    %v6162 = vpack.c.b16 %v6082, %v6080
    %v6163 = vpack.c.b16 %v6085, %v6083
    %v6164 = vpack.c.b16 %v6086, %v6084
    %v6165 = vpack.c.b16 %v6089, %v6087
    %v6166 = vpack.c.b16 %v6090, %v6088
    %v6167 = vpack.c.b16 %v6093, %v6091
    %v6168 = vpack.c.b16 %v6094, %v6092
    %v6169 = vpack.c.b16 %v6097, %v6095
    %v6170 = vpack.c.b16 %v6098, %v6096
    %v6171 = vpack.c.b16 %v6101, %v6099
    %v6172 = vpack.c.b16 %v6102, %v6100
    %v6173 = vpack.c.b16 %v6105, %v6103
    %v6174 = vpack.c.b16 %v6106, %v6104
    %v6175 = vpack.c.b16 %v6109, %v6107
    %v6176 = vpack.c.b16 %v6110, %v6108
    %v6177 = vpack.c.b16 %v6113, %v6111
    %v6178 = vpack.c.b16 %v6114, %v6112
    %6243 = vmatprep.subr.bf16.mxu0 %v6116
    %6244 = vmatpush1.bf16.msra.mxu0 %v6115
    %6245 = vmatprep.subr.bf16.mxu0 %v6118
    %6246 = vmatpush1.bf16.msra.mxu0 %v6117
    %6247 = vmatprep.subr.bf16.mxu0 %v6120
    %6248 = vmatpush1.bf16.msra.mxu0 %v6119
    %6249 = vmatprep.subr.bf16.mxu0 %v6122
    %6250 = vmatpush1.bf16.msra.mxu0 %v6121
    %6251 = vmatprep.subr.bf16.mxu0 %v6124
    %6252 = vmatpush1.bf16.msra.mxu0 %v6123
    %6253 = vmatprep.subr.bf16.mxu0 %v6126
    %6254 = vmatpush1.bf16.msra.mxu0 %v6125
    %6255 = vmatprep.subr.bf16.mxu0 %v6128
    %6256 = vmatpush1.bf16.msra.mxu0 %v6127
    %6257 = vmatprep.subr.bf16.mxu0 %v6130
    %6258 = vmatpush1.bf16.msra.mxu0 %v6129
    %6259 = vmatprep.subr.bf16.mxu0 %v6132
    %6260 = vmatpush1.bf16.msra.mxu0 %v6131
    %6261 = vmatprep.subr.bf16.mxu0 %v6134
    %6262 = vmatpush1.bf16.msra.mxu0 %v6133
    %6263 = vmatprep.subr.bf16.mxu0 %v6136
    %6264 = vmatpush1.bf16.msra.mxu0 %v6135
    %6265 = vmatprep.subr.bf16.mxu0 %v6138
    %6266 = vmatpush1.bf16.msra.mxu0 %v6137
    %6267 = vmatprep.subr.bf16.mxu0 %v6140
    %6268 = vmatpush1.bf16.msra.mxu0 %v6139
    %6269 = vmatprep.subr.bf16.mxu0 %v6142
    %6270 = vmatpush1.bf16.msra.mxu0 %v6141
    %6271 = vmatprep.subr.bf16.mxu0 %v6144
    %6272 = vmatpush1.bf16.msra.mxu0 %v6143
    %6273 = vmatprep.subr.bf16.mxu0 %v6146
    %6274 = vmatpush1.bf16.msra.mxu0 %v6145
    %6275 = vmatprep.mubr.bf16.mxu0 %v5844
    %6276 = vmatmul.mubr.bf16.gmra.mrb[0].mxu0 %v5843
    %v6277 = vpop.f32.mrb[0].mxu0
    %v6278 = vadd.f32 %v5916, %v6277
    %v6279 = vpop.f32.mrb[0].mxu0
    %v6280 = vadd.f32 %v5920, %v6279
    %v6281 = vpop.f32.mrb[0].mxu0
    %v6282 = vpop.f32.mrb[0].mxu0
    %6283 = vdwg.mxu0
    %6284 = vmatprep.subr.bf16.mxu0 %v6148
    %6285 = vmatpush1.bf16.msra.mxu0 %v6147
    %6286 = vmatprep.subr.bf16.mxu0 %v6150
    %6287 = vmatpush1.bf16.msra.mxu0 %v6149
    %6288 = vmatprep.subr.bf16.mxu0 %v6152
    %6289 = vmatpush1.bf16.msra.mxu0 %v6151
    %6290 = vmatprep.subr.bf16.mxu0 %v6154
    %6291 = vmatpush1.bf16.msra.mxu0 %v6153
    %6292 = vmatprep.subr.bf16.mxu0 %v6156
    %6293 = vmatpush1.bf16.msra.mxu0 %v6155
    %6294 = vmatprep.subr.bf16.mxu0 %v6158
    %6295 = vmatpush1.bf16.msra.mxu0 %v6157
    %6296 = vmatprep.subr.bf16.mxu0 %v6160
    %6297 = vmatpush1.bf16.msra.mxu0 %v6159
    %6298 = vmatprep.subr.bf16.mxu0 %v6162
    %6299 = vmatpush1.bf16.msra.mxu0 %v6161
    %6300 = vmatprep.subr.bf16.mxu0 %v6164
    %6301 = vmatpush1.bf16.msra.mxu0 %v6163
    %6302 = vmatprep.subr.bf16.mxu0 %v6166
    %6303 = vmatpush1.bf16.msra.mxu0 %v6165
    %6304 = vmatprep.subr.bf16.mxu0 %v6168
    %6305 = vmatpush1.bf16.msra.mxu0 %v6167
    %6306 = vmatprep.subr.bf16.mxu0 %v6170
    %6307 = vmatpush1.bf16.msra.mxu0 %v6169
    %6308 = vmatprep.subr.bf16.mxu0 %v6172
    %6309 = vmatpush1.bf16.msra.mxu0 %v6171
    %6310 = vmatprep.subr.bf16.mxu0 %v6174
    %6311 = vmatpush1.bf16.msra.mxu0 %v6173
    %6312 = vmatprep.subr.bf16.mxu0 %v6176
    %6313 = vmatpush1.bf16.msra.mxu0 %v6175
    %6314 = vmatprep.subr.bf16.mxu0 %v6178
    %6315 = vmatpush1.bf16.msra.mxu0 %v6177
    %6316 = vmatprep.mubr.bf16.mxu0 %v5846
    %6317 = vmatmul.mubr.bf16.gmra.mrb[0].mxu0 %v5845
    %v6318 = vpop.f32.mrb[0].mxu0
    %v6319 = vadd.f32 %v6278, %v6318
    %v6320 = vpop.f32.mrb[0].mxu0
    %v6321 = vadd.f32 %v6280, %v6320
    %v6322 = vpop.f32.mrb[0].mxu0
    %v6323 = vpop.f32.mrb[0].mxu0
    %6324 = vdwg.mxu0
    %v6325 = vmax.f32 %v6319, 0.0
    %v6326 = vmax.f32 %v6321, 0.0
    %v6327 = vpack.c.bf16 %v6325, %v6325
    %v6328 = vpack.c.bf16 %v6326, %v6326
    %v6329 = vld [vmem:[%s13] sm:$0xf]
    %v6330 = vld [vmem:[%s13 + $0x4] sm:$0xf]
    %v6331 = vld [vmem:[%s13 + $0x8] sm:$0xf]
    %v6332 = vld [vmem:[%s13 + $0xc] sm:$0xf]
    %v6333 = vld [vmem:[%s13 + $0x10] sm:$0xf]
    %v6334 = vld [vmem:[%s13 + $0x14] sm:$0xf]
    %v6335 = vld [vmem:[%s13 + $0x18] sm:$0xf]
    %v6336 = vld [vmem:[%s13 + $0x1c] sm:$0xf]
    %v6337 = vld [vmem:[%s13 + $0x20] sm:$0xf]
    %v6338 = vld [vmem:[%s13 + $0x24] sm:$0xf]
    %v6339 = vld [vmem:[%s13 + $0x28] sm:$0xf]
    %v6340 = vld [vmem:[%s13 + $0x2c] sm:$0xf]
    %v6341 = vld [vmem:[%s13 + $0x30] sm:$0xf]
    %v6342 = vld [vmem:[%s13 + $0x34] sm:$0xf]
    %v6343 = vld [vmem:[%s13 + $0x38] sm:$0xf]
    %v6344 = vld [vmem:[%s13 + $0x3c] sm:$0xf]
    %v6345 = vld [vmem:[%s13 + $0x40] sm:$0xf]
    %v6346 = vld [vmem:[%s13 + $0x44] sm:$0xf]
    %v6347 = vld [vmem:[%s13 + $0x48] sm:$0xf]
    %v6348 = vld [vmem:[%s13 + $0x4c] sm:$0xf]
    %v6349 = vld [vmem:[%s13 + $0x50] sm:$0xf]
    %v6350 = vld [vmem:[%s13 + $0x54] sm:$0xf]
    %v6351 = vld [vmem:[%s13 + $0x58] sm:$0xf]
    %v6352 = vld [vmem:[%s13 + $0x5c] sm:$0xf]
    %v6353 = vld [vmem:[%s13 + $0x60] sm:$0xf]
    %v6354 = vld [vmem:[%s13 + $0x64] sm:$0xf]
    %v6355 = vld [vmem:[%s13 + $0x68] sm:$0xf]
    %v6356 = vld [vmem:[%s13 + $0x6c] sm:$0xf]
    %v6357 = vld [vmem:[%s13 + $0x70] sm:$0xf]
    %v6358 = vld [vmem:[%s13 + $0x74] sm:$0xf]
    %v6359 = vld [vmem:[%s13 + $0x78] sm:$0xf]
    %v6360 = vld [vmem:[%s13 + $0x7c] sm:$0xf]
    %v6361 = vld [vmem:[%s14] sm:$0x1]
    %v6363 = vlaneseq
    %v6364 = vshrl.u32 %v6363, 7
    %v6365 = vsub.s32 0, %v6364
    %v6366 = vrot.slane %v6361, %v6365
    %v6400 = vunpack.c.l.b16 %v6329
    %v6401 = vunpack.c.l.b16 %v6330
    %v6402 = vunpack.c.l.b16 %v6331
    %v6403 = vunpack.c.l.b16 %v6332
    %v6404 = vunpack.c.l.b16 %v6333
    %v6405 = vunpack.c.l.b16 %v6334
    %v6406 = vunpack.c.l.b16 %v6335
    %v6407 = vunpack.c.l.b16 %v6336
    %v6408 = vunpack.c.l.b16 %v6337
    %v6409 = vunpack.c.l.b16 %v6338
    %v6410 = vunpack.c.l.b16 %v6339
    %v6411 = vunpack.c.l.b16 %v6340
    %v6412 = vunpack.c.l.b16 %v6341
    %v6413 = vunpack.c.l.b16 %v6342
    %v6414 = vunpack.c.l.b16 %v6343
    %v6415 = vunpack.c.l.b16 %v6344
    %v6416 = vunpack.c.l.b16 %v6345
    %v6417 = vunpack.c.l.b16 %v6346
    %v6418 = vunpack.c.l.b16 %v6347
    %v6419 = vunpack.c.l.b16 %v6348
    %v6420 = vunpack.c.l.b16 %v6349
    %v6421 = vunpack.c.l.b16 %v6350
    %v6422 = vunpack.c.l.b16 %v6351
    %v6423 = vunpack.c.l.b16 %v6352
    %v6424 = vunpack.c.l.b16 %v6353
    %v6425 = vunpack.c.l.b16 %v6354
    %v6426 = vunpack.c.l.b16 %v6355
    %v6427 = vunpack.c.l.b16 %v6356
    %v6428 = vunpack.c.l.b16 %v6357
    %v6429 = vunpack.c.l.b16 %v6358
    %v6430 = vunpack.c.l.b16 %v6359
    %v6431 = vunpack.c.l.b16 %v6360
    %v6432 = vpack.c.b16 %v6401, %v6400
    %v6433 = vpack.c.b16 %v6403, %v6402
    %v6434 = vpack.c.b16 %v6405, %v6404
    %v6435 = vpack.c.b16 %v6407, %v6406
    %v6436 = vpack.c.b16 %v6409, %v6408
    %v6437 = vpack.c.b16 %v6411, %v6410
    %v6438 = vpack.c.b16 %v6413, %v6412
    %v6439 = vpack.c.b16 %v6415, %v6414
    %v6440 = vpack.c.b16 %v6417, %v6416
    %v6441 = vpack.c.b16 %v6419, %v6418
    %v6442 = vpack.c.b16 %v6421, %v6420
    %v6443 = vpack.c.b16 %v6423, %v6422
    %v6444 = vpack.c.b16 %v6425, %v6424
    %v6445 = vpack.c.b16 %v6427, %v6426
    %v6446 = vpack.c.b16 %v6429, %v6428
    %v6447 = vpack.c.b16 %v6431, %v6430
    %6464 = vmatprep.subr.bf16.mxu0 0
    %6465 = vmatpush1.bf16.msra.mxu0 %v6432
    %6466 = vmatprep.subr.bf16.mxu0 0
    %6467 = vmatpush1.bf16.msra.mxu0 %v6433
    %6468 = vmatprep.subr.bf16.mxu0 0
    %6469 = vmatpush1.bf16.msra.mxu0 %v6434
    %6470 = vmatprep.subr.bf16.mxu0 0
    %6471 = vmatpush1.bf16.msra.mxu0 %v6435
    %6472 = vmatprep.subr.bf16.mxu0 0
    %6473 = vmatpush1.bf16.msra.mxu0 %v6436
    %6474 = vmatprep.subr.bf16.mxu0 0
    %6475 = vmatpush1.bf16.msra.mxu0 %v6437
    %6476 = vmatprep.subr.bf16.mxu0 0
    %6477 = vmatpush1.bf16.msra.mxu0 %v6438
    %6478 = vmatprep.subr.bf16.mxu0 0
    %6479 = vmatpush1.bf16.msra.mxu0 %v6439
    %6480 = vmatprep.subr.bf16.mxu0 0
    %6481 = vmatpush1.bf16.msra.mxu0 %v6440
    %6482 = vmatprep.subr.bf16.mxu0 0
    %6483 = vmatpush1.bf16.msra.mxu0 %v6441
    %6484 = vmatprep.subr.bf16.mxu0 0
    %6485 = vmatpush1.bf16.msra.mxu0 %v6442
    %6486 = vmatprep.subr.bf16.mxu0 0
    %6487 = vmatpush1.bf16.msra.mxu0 %v6443
    %6488 = vmatprep.subr.bf16.mxu0 0
    %6489 = vmatpush1.bf16.msra.mxu0 %v6444
    %6490 = vmatprep.subr.bf16.mxu0 0
    %6491 = vmatpush1.bf16.msra.mxu0 %v6445
    %6492 = vmatprep.subr.bf16.mxu0 0
    %6493 = vmatpush1.bf16.msra.mxu0 %v6446
    %6494 = vmatprep.subr.bf16.mxu0 0
    %6495 = vmatpush1.bf16.msra.mxu0 %v6447
    %6496 = vmatprep.mubr.bf16.mxu0 %v6328
    %6497 = vmatmul.mubr.bf16.gmra.mrb[0].mxu0 %v6327
    %v6498 = vpop.f32.mrb[0].mxu0
    %v6499 = vadd.f32 %v6366, %v6498
    %v6500 = vpop.f32.mrb[0].mxu0
    %v6501 = vpop.f32.mrb[0].mxu0
    %v6502 = vpop.f32.mrb[0].mxu0
    %6503 = vdwg.mxu0
    %v6504 = vxor.u32 %v6499, 2147483648
    %v6505 = vmul.f32 %v6504, 1.442695
    %v6506 = vpow.pop %v6505
    %v6507 = vadd.f32 %v6506, 1.0
    %v6508 = vrcp.pop %v6507
    %v6509 = vmul.f32 1.0, %v6508
    %6510 = vst [vmem:[%s15] sm:$0xff] %v6509
  $region69: #{pointnet2_cls_forward.5} parent=0 // pred_fallthru
    _
  // Predicated region
  $region70: #{pointnet2_cls_forward.5} parent=0 // pred_check
    _
  $region71: #{pointnet2_cls_forward.5} parent=0 // pred_check_branch
    %6512 = sbr.rel (0) target = $region73
  $region72: #{pointnet2_cls_forward.5} parent=0 // pred_region
    _
  $region73: #{pointnet2_cls_forward.5} parent=0 // pred_fallthru
    _
  // Predicated region
  $region74: #{pointnet2_cls_forward.5} parent=0 // pred_check
    _
  $region75: #{pointnet2_cls_forward.5} parent=0 // pred_check_branch
    %6514 = sbr.rel (0) target = $region77
  $region76: #{pointnet2_cls_forward.5} parent=0 // pred_region
    _
  $region77: #{pointnet2_cls_forward.5} parent=0 // pred_fallthru
    _

</llo_original>
